<compile_context>
chip_gen: v6e
topology: v6e:2x2x1
jax: 0.10.0
libtpu: 0.0.40
codegen_flags: <defaults>
</compile_context>

<pallas_src>
import jax
import jax.numpy as jnp
from jax import lax
from jax.experimental import pallas as pl
from jax.experimental.pallas import tpu as pltpu

MODEL_CONFIG = {
    "CNN": {
        "input_channels": 1,
        "conv1_out": 8,
        "conv2_out": 16,
        "fc1_out": 32,
        "output_dim": 10,
    }
}

# Spatial sizes implied by the forward pass (fc1 expects 5*5*conv2_out -> 28x28 input).
H0 = 28            # input spatial
H1 = H0 - 2        # 26 after conv1 (3x3, stride 1, valid)
P1 = H1 // 2       # 13 after 2x2 max-pool
H2 = P1 - 2        # 11 after conv2
P2 = H2 // 2       # 5  after 2x2 max-pool

XS = 32            # per-image column stride of the stacked conv1 input (>= H0)
S1 = 16            # per-image column stride after pool1 (>= P1 + 2)
S2 = 8             # per-image column stride after pool2 (>= P2)
OUT_LANES = 128    # lane width of the per-step (transposed) logits block


# ----------------------------------------------------------------------------
# Host-side weight / selector packing (pure layout plumbing, done once).
# ----------------------------------------------------------------------------
def conv_band_matrices(w, h_in):
    """Pack OIHW conv weights (C_out, C_in, 3, 3) into KW shifted-diagonal mats.

    Returns M of shape (KW, C_out*H_out, C_in*H_in) such that, for an image
    stacked as X = (C_in*H_in, W_in):
        conv(x)[co, oh, ow] == sum_kw (M[kw] @ X[:, kw:kw+W_out])[co*H_out+oh, ow]
    """
    c_out, c_in, kh_sz, kw_sz = w.shape
    h_out = h_in - kh_sz + 1
    r = jnp.arange(h_in)
    oh = jnp.arange(h_out)
    kh = jnp.arange(kh_sz)
    # e[kh, oh, r] = 1 iff r == oh + kh
    e = (r[None, None, :] == (oh[None, :, None] + kh[:, None, None])).astype(w.dtype)
    m = jnp.einsum("oihw,hyr->woyir", w, e)      # (KW, C_out, H_out, C_in, H_in)
    return m.reshape(kw_sz, c_out * h_out, c_in * h_in)


def conv_lhs_with_bias(w, b, h_in, dtype):
    """Concat the KW band matrices along K and append the bias column
    (the kernel appends a matching ones row to the RHS)."""
    m = conv_band_matrices(w.astype(jnp.float32), h_in)
    h_out = h_in - w.shape[2] + 1
    bias_col = jnp.repeat(b.astype(jnp.float32), h_out)[:, None]
    return jnp.concatenate([m[0], m[1], m[2], bias_col], axis=1).astype(dtype)


def pool_row_selectors(c, h_in, h_out, dtype):
    """(2, c*h_out, c*h_in): block-diag row pickers S[p][c*h_out+i, c*h_in+2i+p]=1."""
    base = (jnp.arange(h_in)[None, None, :]
            == (2 * jnp.arange(h_out)[None, :, None]
                + jnp.arange(2)[:, None, None])).astype(jnp.float32)
    eye = jnp.eye(c, dtype=jnp.float32)
    return jnp.stack([jnp.kron(eye, base[0]),
                      jnp.kron(eye, base[1])]).astype(dtype)


def batched_col_pool_selectors(bt, s_in, s_out, n_valid, dtype):
    """(2, bt*s_in - 2, bt*s_out): [p, b*s_in + 2j + p, b*s_out + j] = 1, j < n_valid.

    Block-diagonal over the BT images stacked along lanes; also performs the
    VALID-crop (only j < n_valid is selected, padded lanes stay zero)."""
    w_in = bt * s_in - 2
    col = jnp.arange(w_in)[None, :, None]
    o = jnp.arange(bt * s_out)[None, None, :]
    b_idx, j = o // s_out, o % s_out
    p = jnp.arange(2)[:, None, None]
    sel = (col == b_idx * s_in + 2 * j + p) & (j < n_valid)
    return sel.astype(dtype)


def fc_col_selectors(bt, s_out, n_valid, dtype):
    """(n_valid, bt*s_out, bt): [w, b*s_out + w, b] = 1  (picks feature column w)."""
    row = jnp.arange(bt * s_out)[None, :, None]
    b_idx = jnp.arange(bt)[None, None, :]
    w = jnp.arange(n_valid)[:, None, None]
    return (row == b_idx * s_out + w).astype(dtype)


# ----------------------------------------------------------------------------
# Fused kernel: conv1+ReLU+pool -> conv2+ReLU+pool -> fc1+ReLU -> fc2
# (BT images per grid step, batch on the lane axis throughout)
# ----------------------------------------------------------------------------
def cnn_fused_kernel(x_ref, w1_ref, w2_ref, srow1_ref, scol1_ref,
                     srow2_ref, scol2_ref, w1r_ref, sel5_ref,
                     fb1_ref, fw2_ref, fb2_ref, o_ref):
    f32, bf16 = jnp.float32, jnp.bfloat16

    def dot32(a, b):
        return jnp.dot(a, b, preferred_element_type=f32)

    # ---- conv1 (bias folded via ones row) + ReLU ---------------------------
    x = x_ref[...]                                       # (Cin*28, BT*32) bf16
    wv1 = x.shape[1] - 2
    rhs1 = jnp.concatenate(
        [x[:, 0:wv1], x[:, 1:wv1 + 1], x[:, 2:wv1 + 2],
         jnp.ones((1, wv1), bf16)], axis=0)              # (3*Cin*28 + 1, wv1)
    h1 = jnp.maximum(dot32(w1_ref[...], rhs1), 0.0).astype(bf16)   # (C1*26, wv1)

    # ---- 2x2 max-pool #1: rows (even/odd) then columns (block-diag crop) ---
    p1r = jnp.maximum(dot32(srow1_ref[0], h1),
                      dot32(srow1_ref[1], h1)).astype(bf16)        # (C1*13, wv1)
    p1 = jnp.maximum(dot32(p1r, scol1_ref[0]),
                     dot32(p1r, scol1_ref[1])).astype(bf16)        # (C1*13, BT*16)

    # ---- conv2 (bias folded) + ReLU ----------------------------------------
    wv2 = p1.shape[1] - 2
    rhs2 = jnp.concatenate(
        [p1[:, 0:wv2], p1[:, 1:wv2 + 1], p1[:, 2:wv2 + 2],
         jnp.ones((1, wv2), bf16)], axis=0)              # (3*C1*13 + 1, wv2)
    h2 = jnp.maximum(dot32(w2_ref[...], rhs2), 0.0).astype(bf16)   # (C2*11, wv2)

    # ---- 2x2 max-pool #2 -----------------------------------------------------
    p2r = jnp.maximum(dot32(srow2_ref[0], h2),
                      dot32(srow2_ref[1], h2)).astype(bf16)        # (C2*5, wv2)
    p2 = jnp.maximum(dot32(p2r, scol2_ref[0]),
                     dot32(p2r, scol2_ref[1])).astype(bf16)        # (C2*5, BT*8)

    # ---- fc1 + ReLU (transposed: hidden x batch, batch stays on lanes) ------
    h_t = fb1_ref[...]                                   # (hid, BT) f32 (bias)
    for w in range(P2):
        t = dot32(p2, sel5_ref[w]).astype(bf16)          # (C2*5, BT) feature col w
        h_t = h_t + dot32(w1r_ref[w], t)                 # (hid, BT)
    h_t = jnp.maximum(h_t, 0.0).astype(bf16)

    # ---- fc2 + bias, zero-pad lanes to 128 for a dense unmasked store -------
    logits = dot32(fw2_ref[...], h_t) + fb2_ref[...]     # (DOP, BT) f32
    pad = o_ref.shape[1] - logits.shape[1]
    o_ref[...] = jnp.concatenate(
        [logits, jnp.zeros((logits.shape[0], pad), f32)], axis=1)


# ----------------------------------------------------------------------------
# Full forward
# ----------------------------------------------------------------------------
def cnn_forward(x, params, *, bt=16):
    """x: (B, C_in, 28, 28) f32.  bt = images per grid step (multiple of 4, <=128)."""
    (cw1, cb1, cw2, cb2, fw1, fb1, fw2, fb2) = params
    b, c_in, h, w = x.shape
    assert h == H0 and w == H0, "fc1 = 5*5*conv2_out implies 28x28 inputs"
    assert bt % 4 == 0 and bt <= OUT_LANES
    c1, c2 = cw1.shape[0], cw2.shape[0]
    hid, d_out = fw1.shape[1], fw2.shape[1]
    assert fw1.shape[0] == c2 * P2 * P2
    f32, bf16 = jnp.float32, jnp.bfloat16

    steps = -(-b // bt)
    b_pad = steps * bt
    dop = max(8, ((d_out + 7) // 8) * 8)                 # padded logits rows

    # ---- input layout: (C_in*28, B_pad*32) bf16, per-image column stride 32
    xb = jnp.pad(x.astype(f32),
                 ((0, b_pad - b), (0, 0), (0, 0), (0, XS - H0)))
    x_wide = (jnp.transpose(xb, (1, 2, 0, 3))
              .reshape(c_in * H0, b_pad * XS).astype(bf16))

    # ---- conv weights (merged-K band matrices + bias column), pool selectors
    w1cat = conv_lhs_with_bias(cw1, cb1, H0, bf16)       # (C1*26, 3*Cin*28 + 1)
    w2cat = conv_lhs_with_bias(cw2, cb2, P1, bf16)       # (C2*11, 3*C1*13 + 1)
    srow1 = pool_row_selectors(c1, H1, P1, bf16)         # (2, C1*13, C1*26)
    srow2 = pool_row_selectors(c2, H2, P2, bf16)         # (2, C2*5,  C2*11)
    scol1 = batched_col_pool_selectors(bt, XS, S1, P1, bf16)   # (2, bt*32-2, bt*16)
    scol2 = batched_col_pool_selectors(bt, S1, S2, P2, bf16)   # (2, bt*16-2, bt*8)

    # ---- FC weights re-packed for the transposed, lane-batched formulation
    sel5 = fc_col_selectors(bt, S2, P2, bf16)            # (5, bt*8, bt)
    w1r = (fw1.astype(f32).reshape(c2, P2, P2, hid)
           .transpose(2, 3, 0, 1).reshape(P2, hid, c2 * P2)).astype(bf16)  # (5, hid, 80)
    fb1_bc = jnp.broadcast_to(fb1.astype(f32)[:, None], (hid, bt)) + 0.0
    fw2t = jnp.zeros((dop, hid), f32).at[:d_out, :].set(fw2.astype(f32).T).astype(bf16)
    fb2_bc = jnp.zeros((dop, bt), f32).at[:d_out, :].set(
        jnp.broadcast_to(fb2.astype(f32)[:, None], (d_out, bt)))

    out_wide = pl.pallas_call(
        cnn_fused_kernel,
        out_shape=jax.ShapeDtypeStruct((dop, steps * OUT_LANES), f32),
        grid=(steps,),
        in_specs=[
            pl.BlockSpec((c_in * H0, bt * XS), lambda i: (0, i)),
            pl.BlockSpec(w1cat.shape, lambda i: (0, 0)),
            pl.BlockSpec(w2cat.shape, lambda i: (0, 0)),
            pl.BlockSpec(srow1.shape, lambda i: (0, 0, 0)),
            pl.BlockSpec(scol1.shape, lambda i: (0, 0, 0)),
            pl.BlockSpec(srow2.shape, lambda i: (0, 0, 0)),
            pl.BlockSpec(scol2.shape, lambda i: (0, 0, 0)),
            pl.BlockSpec(w1r.shape, lambda i: (0, 0, 0)),
            pl.BlockSpec(sel5.shape, lambda i: (0, 0, 0)),
            pl.BlockSpec(fb1_bc.shape, lambda i: (0, 0)),
            pl.BlockSpec(fw2t.shape, lambda i: (0, 0)),
            pl.BlockSpec(fb2_bc.shape, lambda i: (0, 0)),
        ],
        out_specs=pl.BlockSpec((dop, OUT_LANES), lambda i: (0, i)),
        compiler_params=pltpu.CompilerParams(
            dimension_semantics=("parallel",)),
    )(x_wide, w1cat, w2cat, srow1, scol1, srow2, scol2, w1r, sel5,
      fb1_bc, fw2t, fb2_bc)

    # per-step block: row o, lane b_local -> logits of image step*bt + b_local
    out = (out_wide.reshape(dop, steps, OUT_LANES)[:d_out, :, :bt]
           .transpose(1, 2, 0).reshape(b_pad, d_out))
    return out[:b]


# ----------------------------------------------------------------------------
# Params / reference / main
# ----------------------------------------------------------------------------
def init_params(key, cfg):
    c_in, c1, c2 = cfg["input_channels"], cfg["conv1_out"], cfg["conv2_out"]
    h1, d_out = cfg["fc1_out"], cfg["output_dim"]
    d_in_fc = P2 * P2 * c2
    ks = jax.random.split(key, 8)

    def u(k, shape, fan_in):
        lim = 1.0 / (fan_in ** 0.5)
        return jax.random.uniform(k, shape, jnp.float32, -lim, lim)

    cw1 = u(ks[0], (c1, c_in, 3, 3), c_in * 9)
    cb1 = u(ks[1], (c1,), c_in * 9)
    cw2 = u(ks[2], (c2, c1, 3, 3), c1 * 9)
    cb2 = u(ks[3], (c2,), c1 * 9)
    fw1 = u(ks[4], (d_in_fc, h1), d_in_fc)     # stored (in, out), i.e. torch W^T
    fb1 = u(ks[5], (h1,), d_in_fc)
    fw2 = u(ks[6], (h1, d_out), h1)
    fb2 = u(ks[7], (d_out,), h1)
    return (cw1, cb1, cw2, cb2, fw1, fb1, fw2, fb2)


def reference_forward(x, params):
    (cw1, cb1, cw2, cb2, fw1, fb1, fw2, fb2) = params
    dn = ("NCHW", "OIHW", "NCHW")
    y = lax.conv_general_dilated(x, cw1, (1, 1), "VALID", dimension_numbers=dn)
    y = jnp.maximum(y + cb1[None, :, None, None], 0.0)
    y = lax.reduce_window(y, -jnp.inf, lax.max, (1, 1, 2, 2), (1, 1, 2, 2), "VALID")
    y = lax.conv_general_dilated(y, cw2, (1, 1), "VALID", dimension_numbers=dn)
    y = jnp.maximum(y + cb2[None, :, None, None], 0.0)
    y = lax.reduce_window(y, -jnp.inf, lax.max, (1, 1, 2, 2), (1, 1, 2, 2), "VALID")
    y = y.reshape(y.shape[0], -1)
    y = jnp.maximum(y @ fw1 + fb1, 0.0)
    return y @ fw2 + fb2


if __name__ == "__main__":
    cfg = MODEL_CONFIG["CNN"]
    key = jax.random.PRNGKey(0)
    kx, kp = jax.random.split(key)

    # batch=2, spatial 28x28 (implied by fc1 = 5*5*conv2_out after two conv+pool).
    x = jax.random.normal(kx, (2, cfg["input_channels"], H0, H0), dtype=jnp.float32)
    params = init_params(kp, cfg)

    fwd = jax.jit(lambda xx: cnn_forward(xx, params))
    out = jax.block_until_ready(fwd(x))

    ref = reference_forward(x, params)
    assert out.shape == (2, cfg["output_dim"])
    # bf16 MXU operands throughout -> loose tolerance vs the all-f32 reference.
    assert jnp.allclose(out, ref, atol=3e-2, rtol=3e-2), \
        float(jnp.max(jnp.abs(out - ref)))

    print("KERNEL_OK")
</pallas_src>

<mosaic_0001>
module attributes {stable_mosaic.version = 11 : i64} {
  func.func @cnn_fused_kernel(%arg0: i32, %arg1: memref<28x512xbf16, #tpu.memory_space<vmem>>, %arg2: memref<208x85xbf16, #tpu.memory_space<vmem>>, %arg3: memref<176x313xbf16, #tpu.memory_space<vmem>>, %arg4: memref<2x104x208xbf16, #tpu.memory_space<vmem>>, %arg5: memref<2x510x256xbf16, #tpu.memory_space<vmem>>, %arg6: memref<2x80x176xbf16, #tpu.memory_space<vmem>>, %arg7: memref<2x254x128xbf16, #tpu.memory_space<vmem>>, %arg8: memref<5x32x80xbf16, #tpu.memory_space<vmem>>, %arg9: memref<5x128x16xbf16, #tpu.memory_space<vmem>>, %arg10: memref<32x16xf32, #tpu.memory_space<vmem>>, %arg11: memref<16x32xbf16, #tpu.memory_space<vmem>>, %arg12: memref<16x16xf32, #tpu.memory_space<vmem>>, %arg13: memref<16x128xf32, #tpu.memory_space<vmem>>) attributes {dimension_semantics = [#tpu.dimension_semantics<parallel>], iteration_bounds = array<i64: 1>, scalar_prefetch = 0 : i64, scratch_operands = 0 : i64, tpu.core_type = #tpu.core_type<tc>, window_params = [{transform_indices = @transform_0, window_bounds = array<i64: 28, 512>}, {pipeline_mode = #tpu.pipeline_mode<synchronous>, transform_indices = @transform_1, window_bounds = array<i64: 208, 85>}, {pipeline_mode = #tpu.pipeline_mode<synchronous>, transform_indices = @transform_2, window_bounds = array<i64: 176, 313>}, {pipeline_mode = #tpu.pipeline_mode<synchronous>, transform_indices = @transform_3, window_bounds = array<i64: 2, 104, 208>}, {pipeline_mode = #tpu.pipeline_mode<synchronous>, transform_indices = @transform_4, window_bounds = array<i64: 2, 510, 256>}, {pipeline_mode = #tpu.pipeline_mode<synchronous>, transform_indices = @transform_5, window_bounds = array<i64: 2, 80, 176>}, {pipeline_mode = #tpu.pipeline_mode<synchronous>, transform_indices = @transform_6, window_bounds = array<i64: 2, 254, 128>}, {pipeline_mode = #tpu.pipeline_mode<synchronous>, transform_indices = @transform_7, window_bounds = array<i64: 5, 32, 80>}, {pipeline_mode = #tpu.pipeline_mode<synchronous>, transform_indices = @transform_8, window_bounds = array<i64: 5, 128, 16>}, {pipeline_mode = #tpu.pipeline_mode<synchronous>, transform_indices = @transform_9, window_bounds = array<i64: 32, 16>}, {pipeline_mode = #tpu.pipeline_mode<synchronous>, transform_indices = @transform_10, window_bounds = array<i64: 16, 32>}, {pipeline_mode = #tpu.pipeline_mode<synchronous>, transform_indices = @transform_11, window_bounds = array<i64: 16, 16>}, {transform_indices = @transform_12, window_bounds = array<i64: 16, 128>}]} {
    %c0 = arith.constant 0 : index
    %c0_0 = arith.constant 0 : index
    %0 = vector.load %arg1[%c0, %c0_0] : memref<28x512xbf16, #tpu.memory_space<vmem>>, vector<28x512xbf16>
    %1 = vector.extract_strided_slice %0 {offsets = [0, 0], sizes = [28, 510], strides = [1, 1]} : vector<28x512xbf16> to vector<28x510xbf16>
    %2 = vector.extract_strided_slice %0 {offsets = [0, 1], sizes = [28, 510], strides = [1, 1]} : vector<28x512xbf16> to vector<28x510xbf16>
    %3 = vector.extract_strided_slice %0 {offsets = [0, 2], sizes = [28, 510], strides = [1, 1]} : vector<28x512xbf16> to vector<28x510xbf16>
    %cst = arith.constant 1.000000e+00 : bf16
    %4 = vector.broadcast %cst : bf16 to vector<1x510xbf16>
    %5 = tpu.concatenate %1, %2, %3, %4 in 0 : vector<28x510xbf16>, vector<28x510xbf16>, vector<28x510xbf16>, vector<1x510xbf16> -> vector<85x510xbf16>
    %c0_1 = arith.constant 0 : index
    %c0_2 = arith.constant 0 : index
    %6 = vector.load %arg2[%c0_1, %c0_2] : memref<208x85xbf16, #tpu.memory_space<vmem>>, vector<208x85xbf16>
    %cst_3 = arith.constant dense<0.000000e+00> : vector<208x510xf32>
    %7 = tpu.matmul %6, %5, %cst_3 {dimension_numbers = #tpu.dot_dimension_numbers<[1], [0], [0], [1], [0, 0, 1, 1], [], []>} : vector<208x85xbf16>, vector<85x510xbf16>, vector<208x510xf32> -> vector<208x510xf32>
    %cst_4 = arith.constant 0.000000e+00 : f32
    %8 = vector.broadcast %cst_4 : f32 to vector<208x510xf32>
    %9 = arith.maximumf %7, %8 : vector<208x510xf32>
    %10 = arith.truncf %9 : vector<208x510xf32> to vector<208x510xbf16>
    %c0_5 = arith.constant 0 : index
    %c0_6 = arith.constant 0 : index
    %c0_7 = arith.constant 0 : index
    %11 = vector.load %arg4[%c0_5, %c0_6, %c0_7] : memref<2x104x208xbf16, #tpu.memory_space<vmem>>, vector<1x104x208xbf16>
    %12 = vector.shape_cast %11 : vector<1x104x208xbf16> to vector<104x208xbf16>
    %cst_8 = arith.constant dense<0.000000e+00> : vector<104x510xf32>
    %13 = tpu.matmul %12, %10, %cst_8 {dimension_numbers = #tpu.dot_dimension_numbers<[1], [0], [0], [1], [0, 0, 1, 1], [], []>} : vector<104x208xbf16>, vector<208x510xbf16>, vector<104x510xf32> -> vector<104x510xf32>
    %c1 = arith.constant 1 : index
    %c0_9 = arith.constant 0 : index
    %c0_10 = arith.constant 0 : index
    %14 = vector.load %arg4[%c1, %c0_9, %c0_10] : memref<2x104x208xbf16, #tpu.memory_space<vmem>>, vector<1x104x208xbf16>
    %15 = vector.shape_cast %14 : vector<1x104x208xbf16> to vector<104x208xbf16>
    %cst_11 = arith.constant dense<0.000000e+00> : vector<104x510xf32>
    %16 = tpu.matmul %15, %10, %cst_11 {dimension_numbers = #tpu.dot_dimension_numbers<[1], [0], [0], [1], [0, 0, 1, 1], [], []>} : vector<104x208xbf16>, vector<208x510xbf16>, vector<104x510xf32> -> vector<104x510xf32>
    %17 = arith.maximumf %13, %16 : vector<104x510xf32>
    %18 = arith.truncf %17 : vector<104x510xf32> to vector<104x510xbf16>
    %c0_12 = arith.constant 0 : index
    %c0_13 = arith.constant 0 : index
    %c0_14 = arith.constant 0 : index
    %19 = vector.load %arg5[%c0_12, %c0_13, %c0_14] : memref<2x510x256xbf16, #tpu.memory_space<vmem>>, vector<1x510x256xbf16>
    %20 = vector.shape_cast %19 : vector<1x510x256xbf16> to vector<510x256xbf16>
    %cst_15 = arith.constant dense<0.000000e+00> : vector<104x256xf32>
    %21 = tpu.matmul %18, %20, %cst_15 {dimension_numbers = #tpu.dot_dimension_numbers<[1], [0], [0], [1], [0, 0, 1, 1], [], []>} : vector<104x510xbf16>, vector<510x256xbf16>, vector<104x256xf32> -> vector<104x256xf32>
    %c1_16 = arith.constant 1 : index
    %c0_17 = arith.constant 0 : index
    %c0_18 = arith.constant 0 : index
    %22 = vector.load %arg5[%c1_16, %c0_17, %c0_18] : memref<2x510x256xbf16, #tpu.memory_space<vmem>>, vector<1x510x256xbf16>
    %23 = vector.shape_cast %22 : vector<1x510x256xbf16> to vector<510x256xbf16>
    %cst_19 = arith.constant dense<0.000000e+00> : vector<104x256xf32>
    %24 = tpu.matmul %18, %23, %cst_19 {dimension_numbers = #tpu.dot_dimension_numbers<[1], [0], [0], [1], [0, 0, 1, 1], [], []>} : vector<104x510xbf16>, vector<510x256xbf16>, vector<104x256xf32> -> vector<104x256xf32>
    %25 = arith.maximumf %21, %24 : vector<104x256xf32>
    %26 = arith.truncf %25 : vector<104x256xf32> to vector<104x256xbf16>
    %27 = vector.extract_strided_slice %26 {offsets = [0, 0], sizes = [104, 254], strides = [1, 1]} : vector<104x256xbf16> to vector<104x254xbf16>
    %28 = vector.extract_strided_slice %26 {offsets = [0, 1], sizes = [104, 254], strides = [1, 1]} : vector<104x256xbf16> to vector<104x254xbf16>
    %29 = vector.extract_strided_slice %26 {offsets = [0, 2], sizes = [104, 254], strides = [1, 1]} : vector<104x256xbf16> to vector<104x254xbf16>
    %cst_20 = arith.constant 1.000000e+00 : bf16
    %30 = vector.broadcast %cst_20 : bf16 to vector<1x254xbf16>
    %31 = tpu.concatenate %27, %28, %29, %30 in 0 : vector<104x254xbf16>, vector<104x254xbf16>, vector<104x254xbf16>, vector<1x254xbf16> -> vector<313x254xbf16>
    %c0_21 = arith.constant 0 : index
    %c0_22 = arith.constant 0 : index
    %32 = vector.load %arg3[%c0_21, %c0_22] : memref<176x313xbf16, #tpu.memory_space<vmem>>, vector<176x313xbf16>
    %cst_23 = arith.constant dense<0.000000e+00> : vector<176x254xf32>
    %33 = tpu.matmul %32, %31, %cst_23 {dimension_numbers = #tpu.dot_dimension_numbers<[1], [0], [0], [1], [0, 0, 1, 1], [], []>} : vector<176x313xbf16>, vector<313x254xbf16>, vector<176x254xf32> -> vector<176x254xf32>
    %cst_24 = arith.constant 0.000000e+00 : f32
    %34 = vector.broadcast %cst_24 : f32 to vector<176x254xf32>
    %35 = arith.maximumf %33, %34 : vector<176x254xf32>
    %36 = arith.truncf %35 : vector<176x254xf32> to vector<176x254xbf16>
    %c0_25 = arith.constant 0 : index
    %c0_26 = arith.constant 0 : index
    %c0_27 = arith.constant 0 : index
    %37 = vector.load %arg6[%c0_25, %c0_26, %c0_27] : memref<2x80x176xbf16, #tpu.memory_space<vmem>>, vector<1x80x176xbf16>
    %38 = vector.shape_cast %37 : vector<1x80x176xbf16> to vector<80x176xbf16>
    %cst_28 = arith.constant dense<0.000000e+00> : vector<80x254xf32>
    %39 = tpu.matmul %38, %36, %cst_28 {dimension_numbers = #tpu.dot_dimension_numbers<[1], [0], [0], [1], [0, 0, 1, 1], [], []>} : vector<80x176xbf16>, vector<176x254xbf16>, vector<80x254xf32> -> vector<80x254xf32>
    %c1_29 = arith.constant 1 : index
    %c0_30 = arith.constant 0 : index
    %c0_31 = arith.constant 0 : index
    %40 = vector.load %arg6[%c1_29, %c0_30, %c0_31] : memref<2x80x176xbf16, #tpu.memory_space<vmem>>, vector<1x80x176xbf16>
    %41 = vector.shape_cast %40 : vector<1x80x176xbf16> to vector<80x176xbf16>
    %cst_32 = arith.constant dense<0.000000e+00> : vector<80x254xf32>
    %42 = tpu.matmul %41, %36, %cst_32 {dimension_numbers = #tpu.dot_dimension_numbers<[1], [0], [0], [1], [0, 0, 1, 1], [], []>} : vector<80x176xbf16>, vector<176x254xbf16>, vector<80x254xf32> -> vector<80x254xf32>
    %43 = arith.maximumf %39, %42 : vector<80x254xf32>
    %44 = arith.truncf %43 : vector<80x254xf32> to vector<80x254xbf16>
    %c0_33 = arith.constant 0 : index
    %c0_34 = arith.constant 0 : index
    %c0_35 = arith.constant 0 : index
    %45 = vector.load %arg7[%c0_33, %c0_34, %c0_35] : memref<2x254x128xbf16, #tpu.memory_space<vmem>>, vector<1x254x128xbf16>
    %46 = vector.shape_cast %45 : vector<1x254x128xbf16> to vector<254x128xbf16>
    %cst_36 = arith.constant dense<0.000000e+00> : vector<80x128xf32>
    %47 = tpu.matmul %44, %46, %cst_36 {dimension_numbers = #tpu.dot_dimension_numbers<[1], [0], [0], [1], [0, 0, 1, 1], [], []>} : vector<80x254xbf16>, vector<254x128xbf16>, vector<80x128xf32> -> vector<80x128xf32>
    %c1_37 = arith.constant 1 : index
    %c0_38 = arith.constant 0 : index
    %c0_39 = arith.constant 0 : index
    %48 = vector.load %arg7[%c1_37, %c0_38, %c0_39] : memref<2x254x128xbf16, #tpu.memory_space<vmem>>, vector<1x254x128xbf16>
    %49 = vector.shape_cast %48 : vector<1x254x128xbf16> to vector<254x128xbf16>
    %cst_40 = arith.constant dense<0.000000e+00> : vector<80x128xf32>
    %50 = tpu.matmul %44, %49, %cst_40 {dimension_numbers = #tpu.dot_dimension_numbers<[1], [0], [0], [1], [0, 0, 1, 1], [], []>} : vector<80x254xbf16>, vector<254x128xbf16>, vector<80x128xf32> -> vector<80x128xf32>
    %51 = arith.maximumf %47, %50 : vector<80x128xf32>
    %52 = arith.truncf %51 : vector<80x128xf32> to vector<80x128xbf16>
    %c0_41 = arith.constant 0 : index
    %c0_42 = arith.constant 0 : index
    %53 = vector.load %arg10[%c0_41, %c0_42] : memref<32x16xf32, #tpu.memory_space<vmem>>, vector<32x16xf32>
    %c0_43 = arith.constant 0 : index
    %c0_44 = arith.constant 0 : index
    %c0_45 = arith.constant 0 : index
    %54 = vector.load %arg9[%c0_43, %c0_44, %c0_45] : memref<5x128x16xbf16, #tpu.memory_space<vmem>>, vector<1x128x16xbf16>
    %55 = vector.shape_cast %54 : vector<1x128x16xbf16> to vector<128x16xbf16>
    %cst_46 = arith.constant dense<0.000000e+00> : vector<80x16xf32>
    %56 = tpu.matmul %52, %55, %cst_46 {dimension_numbers = #tpu.dot_dimension_numbers<[1], [0], [0], [1], [0, 0, 1, 1], [], []>} : vector<80x128xbf16>, vector<128x16xbf16>, vector<80x16xf32> -> vector<80x16xf32>
    %57 = arith.truncf %56 : vector<80x16xf32> to vector<80x16xbf16>
    %c0_47 = arith.constant 0 : index
    %c0_48 = arith.constant 0 : index
    %c0_49 = arith.constant 0 : index
    %58 = vector.load %arg8[%c0_47, %c0_48, %c0_49] : memref<5x32x80xbf16, #tpu.memory_space<vmem>>, vector<1x32x80xbf16>
    %59 = vector.shape_cast %58 : vector<1x32x80xbf16> to vector<32x80xbf16>
    %cst_50 = arith.constant dense<0.000000e+00> : vector<32x16xf32>
    %60 = tpu.matmul %59, %57, %cst_50 {dimension_numbers = #tpu.dot_dimension_numbers<[1], [0], [0], [1], [0, 0, 1, 1], [], []>} : vector<32x80xbf16>, vector<80x16xbf16>, vector<32x16xf32> -> vector<32x16xf32>
    %61 = arith.addf %53, %60 : vector<32x16xf32>
    %c1_51 = arith.constant 1 : index
    %c0_52 = arith.constant 0 : index
    %c0_53 = arith.constant 0 : index
    %62 = vector.load %arg9[%c1_51, %c0_52, %c0_53] : memref<5x128x16xbf16, #tpu.memory_space<vmem>>, vector<1x128x16xbf16>
    %63 = vector.shape_cast %62 : vector<1x128x16xbf16> to vector<128x16xbf16>
    %cst_54 = arith.constant dense<0.000000e+00> : vector<80x16xf32>
    %64 = tpu.matmul %52, %63, %cst_54 {dimension_numbers = #tpu.dot_dimension_numbers<[1], [0], [0], [1], [0, 0, 1, 1], [], []>} : vector<80x128xbf16>, vector<128x16xbf16>, vector<80x16xf32> -> vector<80x16xf32>
    %65 = arith.truncf %64 : vector<80x16xf32> to vector<80x16xbf16>
    %c1_55 = arith.constant 1 : index
    %c0_56 = arith.constant 0 : index
    %c0_57 = arith.constant 0 : index
    %66 = vector.load %arg8[%c1_55, %c0_56, %c0_57] : memref<5x32x80xbf16, #tpu.memory_space<vmem>>, vector<1x32x80xbf16>
    %67 = vector.shape_cast %66 : vector<1x32x80xbf16> to vector<32x80xbf16>
    %cst_58 = arith.constant dense<0.000000e+00> : vector<32x16xf32>
    %68 = tpu.matmul %67, %65, %cst_58 {dimension_numbers = #tpu.dot_dimension_numbers<[1], [0], [0], [1], [0, 0, 1, 1], [], []>} : vector<32x80xbf16>, vector<80x16xbf16>, vector<32x16xf32> -> vector<32x16xf32>
    %69 = arith.addf %61, %68 : vector<32x16xf32>
    %c2 = arith.constant 2 : index
    %c0_59 = arith.constant 0 : index
    %c0_60 = arith.constant 0 : index
    %70 = vector.load %arg9[%c2, %c0_59, %c0_60] : memref<5x128x16xbf16, #tpu.memory_space<vmem>>, vector<1x128x16xbf16>
    %71 = vector.shape_cast %70 : vector<1x128x16xbf16> to vector<128x16xbf16>
    %cst_61 = arith.constant dense<0.000000e+00> : vector<80x16xf32>
    %72 = tpu.matmul %52, %71, %cst_61 {dimension_numbers = #tpu.dot_dimension_numbers<[1], [0], [0], [1], [0, 0, 1, 1], [], []>} : vector<80x128xbf16>, vector<128x16xbf16>, vector<80x16xf32> -> vector<80x16xf32>
    %73 = arith.truncf %72 : vector<80x16xf32> to vector<80x16xbf16>
    %c2_62 = arith.constant 2 : index
    %c0_63 = arith.constant 0 : index
    %c0_64 = arith.constant 0 : index
    %74 = vector.load %arg8[%c2_62, %c0_63, %c0_64] : memref<5x32x80xbf16, #tpu.memory_space<vmem>>, vector<1x32x80xbf16>
    %75 = vector.shape_cast %74 : vector<1x32x80xbf16> to vector<32x80xbf16>
    %cst_65 = arith.constant dense<0.000000e+00> : vector<32x16xf32>
    %76 = tpu.matmul %75, %73, %cst_65 {dimension_numbers = #tpu.dot_dimension_numbers<[1], [0], [0], [1], [0, 0, 1, 1], [], []>} : vector<32x80xbf16>, vector<80x16xbf16>, vector<32x16xf32> -> vector<32x16xf32>
    %77 = arith.addf %69, %76 : vector<32x16xf32>
    %c3 = arith.constant 3 : index
    %c0_66 = arith.constant 0 : index
    %c0_67 = arith.constant 0 : index
    %78 = vector.load %arg9[%c3, %c0_66, %c0_67] : memref<5x128x16xbf16, #tpu.memory_space<vmem>>, vector<1x128x16xbf16>
    %79 = vector.shape_cast %78 : vector<1x128x16xbf16> to vector<128x16xbf16>
    %cst_68 = arith.constant dense<0.000000e+00> : vector<80x16xf32>
    %80 = tpu.matmul %52, %79, %cst_68 {dimension_numbers = #tpu.dot_dimension_numbers<[1], [0], [0], [1], [0, 0, 1, 1], [], []>} : vector<80x128xbf16>, vector<128x16xbf16>, vector<80x16xf32> -> vector<80x16xf32>
    %81 = arith.truncf %80 : vector<80x16xf32> to vector<80x16xbf16>
    %c3_69 = arith.constant 3 : index
    %c0_70 = arith.constant 0 : index
    %c0_71 = arith.constant 0 : index
    %82 = vector.load %arg8[%c3_69, %c0_70, %c0_71] : memref<5x32x80xbf16, #tpu.memory_space<vmem>>, vector<1x32x80xbf16>
    %83 = vector.shape_cast %82 : vector<1x32x80xbf16> to vector<32x80xbf16>
    %cst_72 = arith.constant dense<0.000000e+00> : vector<32x16xf32>
    %84 = tpu.matmul %83, %81, %cst_72 {dimension_numbers = #tpu.dot_dimension_numbers<[1], [0], [0], [1], [0, 0, 1, 1], [], []>} : vector<32x80xbf16>, vector<80x16xbf16>, vector<32x16xf32> -> vector<32x16xf32>
    %85 = arith.addf %77, %84 : vector<32x16xf32>
    %c4 = arith.constant 4 : index
    %c0_73 = arith.constant 0 : index
    %c0_74 = arith.constant 0 : index
    %86 = vector.load %arg9[%c4, %c0_73, %c0_74] : memref<5x128x16xbf16, #tpu.memory_space<vmem>>, vector<1x128x16xbf16>
    %87 = vector.shape_cast %86 : vector<1x128x16xbf16> to vector<128x16xbf16>
    %cst_75 = arith.constant dense<0.000000e+00> : vector<80x16xf32>
    %88 = tpu.matmul %52, %87, %cst_75 {dimension_numbers = #tpu.dot_dimension_numbers<[1], [0], [0], [1], [0, 0, 1, 1], [], []>} : vector<80x128xbf16>, vector<128x16xbf16>, vector<80x16xf32> -> vector<80x16xf32>
    %89 = arith.truncf %88 : vector<80x16xf32> to vector<80x16xbf16>
    %c4_76 = arith.constant 4 : index
    %c0_77 = arith.constant 0 : index
    %c0_78 = arith.constant 0 : index
    %90 = vector.load %arg8[%c4_76, %c0_77, %c0_78] : memref<5x32x80xbf16, #tpu.memory_space<vmem>>, vector<1x32x80xbf16>
    %91 = vector.shape_cast %90 : vector<1x32x80xbf16> to vector<32x80xbf16>
    %cst_79 = arith.constant dense<0.000000e+00> : vector<32x16xf32>
    %92 = tpu.matmul %91, %89, %cst_79 {dimension_numbers = #tpu.dot_dimension_numbers<[1], [0], [0], [1], [0, 0, 1, 1], [], []>} : vector<32x80xbf16>, vector<80x16xbf16>, vector<32x16xf32> -> vector<32x16xf32>
    %93 = arith.addf %85, %92 : vector<32x16xf32>
    %cst_80 = arith.constant 0.000000e+00 : f32
    %94 = vector.broadcast %cst_80 : f32 to vector<32x16xf32>
    %95 = arith.maximumf %93, %94 : vector<32x16xf32>
    %96 = arith.truncf %95 : vector<32x16xf32> to vector<32x16xbf16>
    %c0_81 = arith.constant 0 : index
    %c0_82 = arith.constant 0 : index
    %97 = vector.load %arg11[%c0_81, %c0_82] : memref<16x32xbf16, #tpu.memory_space<vmem>>, vector<16x32xbf16>
    %cst_83 = arith.constant dense<0.000000e+00> : vector<16x16xf32>
    %98 = tpu.matmul %97, %96, %cst_83 {dimension_numbers = #tpu.dot_dimension_numbers<[1], [0], [0], [1], [0, 0, 1, 1], [], []>} : vector<16x32xbf16>, vector<32x16xbf16>, vector<16x16xf32> -> vector<16x16xf32>
    %c0_84 = arith.constant 0 : index
    %c0_85 = arith.constant 0 : index
    %99 = vector.load %arg12[%c0_84, %c0_85] : memref<16x16xf32, #tpu.memory_space<vmem>>, vector<16x16xf32>
    %100 = arith.addf %98, %99 : vector<16x16xf32>
    %cst_86 = arith.constant 0.000000e+00 : f32
    %101 = vector.broadcast %cst_86 : f32 to vector<16x112xf32>
    %102 = tpu.concatenate %100, %101 in 1 : vector<16x16xf32>, vector<16x112xf32> -> vector<16x128xf32>
    %c0_87 = arith.constant 0 : index
    %c0_88 = arith.constant 0 : index
    %103 = vector.load %arg13[%c0_87, %c0_88] : memref<16x128xf32, #tpu.memory_space<vmem>>, vector<16x128xf32>
    tpu.vector_store %arg13[%c0_87, %c0_88], %102 {strides = array<i32>} : memref<16x128xf32, #tpu.memory_space<vmem>>, vector<16x128xf32>,
    return
  }
  func.func @transform_0(%arg0: i32) -> (i32, i32) {
    %c0_i32 = arith.constant 0 : i32
    %c0_i32_0 = arith.constant 0 : i32
    return %c0_i32, %arg0 : i32, i32
  }
  func.func @transform_1(%arg0: i32) -> (i32, i32) {
    %c0_i32 = arith.constant 0 : i32
    %c0_i32_0 = arith.constant 0 : i32
    %c0_i32_1 = arith.constant 0 : i32
    return %c0_i32, %c0_i32_0 : i32, i32
  }
  func.func @transform_2(%arg0: i32) -> (i32, i32) {
    %c0_i32 = arith.constant 0 : i32
    %c0_i32_0 = arith.constant 0 : i32
    %c0_i32_1 = arith.constant 0 : i32
    return %c0_i32, %c0_i32_0 : i32, i32
  }
  func.func @transform_3(%arg0: i32) -> (i32, i32, i32) {
    %c0_i32 = arith.constant 0 : i32
    %c0_i32_0 = arith.constant 0 : i32
    %c0_i32_1 = arith.constant 0 : i32
    %c0_i32_2 = arith.constant 0 : i32
    return %c0_i32, %c0_i32_0, %c0_i32_1 : i32, i32, i32
  }
  func.func @transform_4(%arg0: i32) -> (i32, i32, i32) {
    %c0_i32 = arith.constant 0 : i32
    %c0_i32_0 = arith.constant 0 : i32
    %c0_i32_1 = arith.constant 0 : i32
    %c0_i32_2 = arith.constant 0 : i32
    return %c0_i32, %c0_i32_0, %c0_i32_1 : i32, i32, i32
  }
  func.func @transform_5(%arg0: i32) -> (i32, i32, i32) {
    %c0_i32 = arith.constant 0 : i32
    %c0_i32_0 = arith.constant 0 : i32
    %c0_i32_1 = arith.constant 0 : i32
    %c0_i32_2 = arith.constant 0 : i32
    return %c0_i32, %c0_i32_0, %c0_i32_1 : i32, i32, i32
  }
  func.func @transform_6(%arg0: i32) -> (i32, i32, i32) {
    %c0_i32 = arith.constant 0 : i32
    %c0_i32_0 = arith.constant 0 : i32
    %c0_i32_1 = arith.constant 0 : i32
    %c0_i32_2 = arith.constant 0 : i32
    return %c0_i32, %c0_i32_0, %c0_i32_1 : i32, i32, i32
  }
  func.func @transform_7(%arg0: i32) -> (i32, i32, i32) {
    %c0_i32 = arith.constant 0 : i32
    %c0_i32_0 = arith.constant 0 : i32
    %c0_i32_1 = arith.constant 0 : i32
    %c0_i32_2 = arith.constant 0 : i32
    return %c0_i32, %c0_i32_0, %c0_i32_1 : i32, i32, i32
  }
  func.func @transform_8(%arg0: i32) -> (i32, i32, i32) {
    %c0_i32 = arith.constant 0 : i32
    %c0_i32_0 = arith.constant 0 : i32
    %c0_i32_1 = arith.constant 0 : i32
    %c0_i32_2 = arith.constant 0 : i32
    return %c0_i32, %c0_i32_0, %c0_i32_1 : i32, i32, i32
  }
  func.func @transform_9(%arg0: i32) -> (i32, i32) {
    %c0_i32 = arith.constant 0 : i32
    %c0_i32_0 = arith.constant 0 : i32
    %c0_i32_1 = arith.constant 0 : i32
    return %c0_i32, %c0_i32_0 : i32, i32
  }
  func.func @transform_10(%arg0: i32) -> (i32, i32) {
    %c0_i32 = arith.constant 0 : i32
    %c0_i32_0 = arith.constant 0 : i32
    %c0_i32_1 = arith.constant 0 : i32
    return %c0_i32, %c0_i32_0 : i32, i32
  }
  func.func @transform_11(%arg0: i32) -> (i32, i32) {
    %c0_i32 = arith.constant 0 : i32
    %c0_i32_0 = arith.constant 0 : i32
    %c0_i32_1 = arith.constant 0 : i32
    return %c0_i32, %c0_i32_0 : i32, i32
  }
  func.func @transform_12(%arg0: i32) -> (i32, i32) {
    %c0_i32 = arith.constant 0 : i32
    %c0_i32_0 = arith.constant 0 : i32
    return %c0_i32, %arg0 : i32, i32
  }
}

</mosaic_0001>

<llo_original>
// kernel: squeeze.2
$region0: #{squeeze.2}
  %s0 = inlined_call_operand.vmem [shape: bf16[1,16,11,8,13], index: 0, kind: input, shape index: {}]
  %s1 = inlined_call_operand.vmem [shape: bf16[176,104], index: 1, kind: output, shape index: {}]
  $region1: #{squeeze.2} parent=0
    #allocation0 [shape = 'u8[90112]{0}', space=vmem, size = 0x16000, scoped, tag = 'scoped mem for output reshape']
    #allocation1 [shape = 'u8[720896]{0}', space=vmem, size = 0xb0000, scoped, tag = 'scoped mem for input reshape']
    %s3 = smul.u32 4, 2
    %s4 = sshll.u32 1, %s3
    %s5 = ssub.s32 %s4, 1
    %s6 = smul.addr 4, 175
    %s7 = scalar_lea.vmem %s0, %s6
    %s8 = sshrl.u32 %s5, 1
    %s9 = sor.u32 %s5, %s8
    %s10 = sand.u32 %s9, 85
    %s11 = sshrl.u32 %s10, 1
    %s12 = sor.u32 %s10, %s11
    %s13 = sand.u32 51, %s12
    %s14 = sshrl.u32 %s13, 2
    %s15 = sor.u32 %s13, %s14
    %s16 = sand.u32 15, %s15
    %v17 = vld [vmem:[%s7] sm:%s16]
    %v18 = vunpack.c.l.bf16 %v17
    %v19 = vunpack.c.h.bf16 %v17
    %s20 = scalar_lea.vmem [#allocation1], 1400
    %21 = vst [vmem:[%s20] sm:%s5] %v18
    %s22 = smul.addr 4, 174
    %s23 = scalar_lea.vmem %s0, %s22
    %s24 = sshrl.u32 %s5, 1
    %s25 = sor.u32 %s5, %s24
    %s26 = sand.u32 %s25, 85
    %s27 = sshrl.u32 %s26, 1
    %s28 = sor.u32 %s26, %s27
    %s29 = sand.u32 51, %s28
    %s30 = sshrl.u32 %s29, 2
    %s31 = sor.u32 %s29, %s30
    %s32 = sand.u32 15, %s31
    %v33 = vld [vmem:[%s23] sm:%s32]
    %v34 = vunpack.c.l.bf16 %v33
    %v35 = vunpack.c.h.bf16 %v33
    %s36 = scalar_lea.vmem [#allocation1], 1392
    %37 = vst [vmem:[%s36] sm:%s5] %v34
    %s38 = smul.addr 4, 173
    %s39 = scalar_lea.vmem %s0, %s38
    %s40 = sshrl.u32 %s5, 1
    %s41 = sor.u32 %s5, %s40
    %s42 = sand.u32 %s41, 85
    %s43 = sshrl.u32 %s42, 1
    %s44 = sor.u32 %s42, %s43
    %s45 = sand.u32 51, %s44
    %s46 = sshrl.u32 %s45, 2
    %s47 = sor.u32 %s45, %s46
    %s48 = sand.u32 15, %s47
    %v49 = vld [vmem:[%s39] sm:%s48]
    %v50 = vunpack.c.l.bf16 %v49
    %v51 = vunpack.c.h.bf16 %v49
    %s52 = scalar_lea.vmem [#allocation1], 1384
    %53 = vst [vmem:[%s52] sm:%s5] %v50
    %s54 = smul.addr 4, 172
    %s55 = scalar_lea.vmem %s0, %s54
    %s56 = sshrl.u32 %s5, 1
    %s57 = sor.u32 %s5, %s56
    %s58 = sand.u32 %s57, 85
    %s59 = sshrl.u32 %s58, 1
    %s60 = sor.u32 %s58, %s59
    %s61 = sand.u32 51, %s60
    %s62 = sshrl.u32 %s61, 2
    %s63 = sor.u32 %s61, %s62
    %s64 = sand.u32 15, %s63
    %v65 = vld [vmem:[%s55] sm:%s64]
    %v66 = vunpack.c.l.bf16 %v65
    %v67 = vunpack.c.h.bf16 %v65
    %s68 = scalar_lea.vmem [#allocation1], 1376
    %69 = vst [vmem:[%s68] sm:%s5] %v66
    %s70 = smul.addr 4, 171
    %s71 = scalar_lea.vmem %s0, %s70
    %s72 = sshrl.u32 %s5, 1
    %s73 = sor.u32 %s5, %s72
    %s74 = sand.u32 %s73, 85
    %s75 = sshrl.u32 %s74, 1
    %s76 = sor.u32 %s74, %s75
    %s77 = sand.u32 51, %s76
    %s78 = sshrl.u32 %s77, 2
    %s79 = sor.u32 %s77, %s78
    %s80 = sand.u32 15, %s79
    %v81 = vld [vmem:[%s71] sm:%s80]
    %v82 = vunpack.c.l.bf16 %v81
    %v83 = vunpack.c.h.bf16 %v81
    %s84 = scalar_lea.vmem [#allocation1], 1368
    %85 = vst [vmem:[%s84] sm:%s5] %v82
    %s86 = smul.addr 4, 170
    %s87 = scalar_lea.vmem %s0, %s86
    %s88 = sshrl.u32 %s5, 1
    %s89 = sor.u32 %s5, %s88
    %s90 = sand.u32 %s89, 85
    %s91 = sshrl.u32 %s90, 1
    %s92 = sor.u32 %s90, %s91
    %s93 = sand.u32 51, %s92
    %s94 = sshrl.u32 %s93, 2
    %s95 = sor.u32 %s93, %s94
    %s96 = sand.u32 15, %s95
    %v97 = vld [vmem:[%s87] sm:%s96]
    %v98 = vunpack.c.l.bf16 %v97
    %v99 = vunpack.c.h.bf16 %v97
    %s100 = scalar_lea.vmem [#allocation1], 1360
    %101 = vst [vmem:[%s100] sm:%s5] %v98
    %s102 = smul.addr 4, 169
    %s103 = scalar_lea.vmem %s0, %s102
    %s104 = sshrl.u32 %s5, 1
    %s105 = sor.u32 %s5, %s104
    %s106 = sand.u32 %s105, 85
    %s107 = sshrl.u32 %s106, 1
    %s108 = sor.u32 %s106, %s107
    %s109 = sand.u32 51, %s108
    %s110 = sshrl.u32 %s109, 2
    %s111 = sor.u32 %s109, %s110
    %s112 = sand.u32 15, %s111
    %v113 = vld [vmem:[%s103] sm:%s112]
    %v114 = vunpack.c.l.bf16 %v113
    %v115 = vunpack.c.h.bf16 %v113
    %s116 = scalar_lea.vmem [#allocation1], 1352
    %117 = vst [vmem:[%s116] sm:%s5] %v114
    %s118 = smul.addr 4, 168
    %s119 = scalar_lea.vmem %s0, %s118
    %s120 = sshrl.u32 %s5, 1
    %s121 = sor.u32 %s5, %s120
    %s122 = sand.u32 %s121, 85
    %s123 = sshrl.u32 %s122, 1
    %s124 = sor.u32 %s122, %s123
    %s125 = sand.u32 51, %s124
    %s126 = sshrl.u32 %s125, 2
    %s127 = sor.u32 %s125, %s126
    %s128 = sand.u32 15, %s127
    %v129 = vld [vmem:[%s119] sm:%s128]
    %v130 = vunpack.c.l.bf16 %v129
    %v131 = vunpack.c.h.bf16 %v129
    %s132 = scalar_lea.vmem [#allocation1], 1344
    %133 = vst [vmem:[%s132] sm:%s5] %v130
    %s134 = smul.addr 4, 167
    %s135 = scalar_lea.vmem %s0, %s134
    %s136 = sshrl.u32 %s5, 1
    %s137 = sor.u32 %s5, %s136
    %s138 = sand.u32 %s137, 85
    %s139 = sshrl.u32 %s138, 1
    %s140 = sor.u32 %s138, %s139
    %s141 = sand.u32 51, %s140
    %s142 = sshrl.u32 %s141, 2
    %s143 = sor.u32 %s141, %s142
    %s144 = sand.u32 15, %s143
    %v145 = vld [vmem:[%s135] sm:%s144]
    %v146 = vunpack.c.l.bf16 %v145
    %v147 = vunpack.c.h.bf16 %v145
    %s148 = scalar_lea.vmem [#allocation1], 1336
    %149 = vst [vmem:[%s148] sm:%s5] %v146
    %s150 = smul.addr 4, 166
    %s151 = scalar_lea.vmem %s0, %s150
    %s152 = sshrl.u32 %s5, 1
    %s153 = sor.u32 %s5, %s152
    %s154 = sand.u32 %s153, 85
    %s155 = sshrl.u32 %s154, 1
    %s156 = sor.u32 %s154, %s155
    %s157 = sand.u32 51, %s156
    %s158 = sshrl.u32 %s157, 2
    %s159 = sor.u32 %s157, %s158
    %s160 = sand.u32 15, %s159
    %v161 = vld [vmem:[%s151] sm:%s160]
    %v162 = vunpack.c.l.bf16 %v161
    %v163 = vunpack.c.h.bf16 %v161
    %s164 = scalar_lea.vmem [#allocation1], 1328
    %165 = vst [vmem:[%s164] sm:%s5] %v162
    %s166 = smul.addr 4, 165
    %s167 = scalar_lea.vmem %s0, %s166
    %s168 = sshrl.u32 %s5, 1
    %s169 = sor.u32 %s5, %s168
    %s170 = sand.u32 %s169, 85
    %s171 = sshrl.u32 %s170, 1
    %s172 = sor.u32 %s170, %s171
    %s173 = sand.u32 51, %s172
    %s174 = sshrl.u32 %s173, 2
    %s175 = sor.u32 %s173, %s174
    %s176 = sand.u32 15, %s175
    %v177 = vld [vmem:[%s167] sm:%s176]
    %v178 = vunpack.c.l.bf16 %v177
    %v179 = vunpack.c.h.bf16 %v177
    %s180 = scalar_lea.vmem [#allocation1], 1320
    %181 = vst [vmem:[%s180] sm:%s5] %v178
    %s182 = smul.addr 4, 164
    %s183 = scalar_lea.vmem %s0, %s182
    %s184 = sshrl.u32 %s5, 1
    %s185 = sor.u32 %s5, %s184
    %s186 = sand.u32 %s185, 85
    %s187 = sshrl.u32 %s186, 1
    %s188 = sor.u32 %s186, %s187
    %s189 = sand.u32 51, %s188
    %s190 = sshrl.u32 %s189, 2
    %s191 = sor.u32 %s189, %s190
    %s192 = sand.u32 15, %s191
    %v193 = vld [vmem:[%s183] sm:%s192]
    %v194 = vunpack.c.l.bf16 %v193
    %v195 = vunpack.c.h.bf16 %v193
    %s196 = scalar_lea.vmem [#allocation1], 1312
    %197 = vst [vmem:[%s196] sm:%s5] %v194
    %s198 = smul.addr 4, 163
    %s199 = scalar_lea.vmem %s0, %s198
    %s200 = sshrl.u32 %s5, 1
    %s201 = sor.u32 %s5, %s200
    %s202 = sand.u32 %s201, 85
    %s203 = sshrl.u32 %s202, 1
    %s204 = sor.u32 %s202, %s203
    %s205 = sand.u32 51, %s204
    %s206 = sshrl.u32 %s205, 2
    %s207 = sor.u32 %s205, %s206
    %s208 = sand.u32 15, %s207
    %v209 = vld [vmem:[%s199] sm:%s208]
    %v210 = vunpack.c.l.bf16 %v209
    %v211 = vunpack.c.h.bf16 %v209
    %s212 = scalar_lea.vmem [#allocation1], 1304
    %213 = vst [vmem:[%s212] sm:%s5] %v210
    %s214 = smul.addr 4, 162
    %s215 = scalar_lea.vmem %s0, %s214
    %s216 = sshrl.u32 %s5, 1
    %s217 = sor.u32 %s5, %s216
    %s218 = sand.u32 %s217, 85
    %s219 = sshrl.u32 %s218, 1
    %s220 = sor.u32 %s218, %s219
    %s221 = sand.u32 51, %s220
    %s222 = sshrl.u32 %s221, 2
    %s223 = sor.u32 %s221, %s222
    %s224 = sand.u32 15, %s223
    %v225 = vld [vmem:[%s215] sm:%s224]
    %v226 = vunpack.c.l.bf16 %v225
    %v227 = vunpack.c.h.bf16 %v225
    %s228 = scalar_lea.vmem [#allocation1], 1296
    %229 = vst [vmem:[%s228] sm:%s5] %v226
    %s230 = smul.addr 4, 161
    %s231 = scalar_lea.vmem %s0, %s230
    %s232 = sshrl.u32 %s5, 1
    %s233 = sor.u32 %s5, %s232
    %s234 = sand.u32 %s233, 85
    %s235 = sshrl.u32 %s234, 1
    %s236 = sor.u32 %s234, %s235
    %s237 = sand.u32 51, %s236
    %s238 = sshrl.u32 %s237, 2
    %s239 = sor.u32 %s237, %s238
    %s240 = sand.u32 15, %s239
    %v241 = vld [vmem:[%s231] sm:%s240]
    %v242 = vunpack.c.l.bf16 %v241
    %v243 = vunpack.c.h.bf16 %v241
    %s244 = scalar_lea.vmem [#allocation1], 1288
    %245 = vst [vmem:[%s244] sm:%s5] %v242
    %s246 = smul.addr 4, 160
    %s247 = scalar_lea.vmem %s0, %s246
    %s248 = sshrl.u32 %s5, 1
    %s249 = sor.u32 %s5, %s248
    %s250 = sand.u32 %s249, 85
    %s251 = sshrl.u32 %s250, 1
    %s252 = sor.u32 %s250, %s251
    %s253 = sand.u32 51, %s252
    %s254 = sshrl.u32 %s253, 2
    %s255 = sor.u32 %s253, %s254
    %s256 = sand.u32 15, %s255
    %v257 = vld [vmem:[%s247] sm:%s256]
    %v258 = vunpack.c.l.bf16 %v257
    %v259 = vunpack.c.h.bf16 %v257
    %s260 = scalar_lea.vmem [#allocation1], 1280
    %261 = vst [vmem:[%s260] sm:%s5] %v258
    %s262 = smul.addr 4, 159
    %s263 = scalar_lea.vmem %s0, %s262
    %s264 = sshrl.u32 %s5, 1
    %s265 = sor.u32 %s5, %s264
    %s266 = sand.u32 %s265, 85
    %s267 = sshrl.u32 %s266, 1
    %s268 = sor.u32 %s266, %s267
    %s269 = sand.u32 51, %s268
    %s270 = sshrl.u32 %s269, 2
    %s271 = sor.u32 %s269, %s270
    %s272 = sand.u32 15, %s271
    %v273 = vld [vmem:[%s263] sm:%s272]
    %v274 = vunpack.c.l.bf16 %v273
    %v275 = vunpack.c.h.bf16 %v273
    %s276 = scalar_lea.vmem [#allocation1], 1272
    %277 = vst [vmem:[%s276] sm:%s5] %v274
    %s278 = smul.addr 4, 158
    %s279 = scalar_lea.vmem %s0, %s278
    %s280 = sshrl.u32 %s5, 1
    %s281 = sor.u32 %s5, %s280
    %s282 = sand.u32 %s281, 85
    %s283 = sshrl.u32 %s282, 1
    %s284 = sor.u32 %s282, %s283
    %s285 = sand.u32 51, %s284
    %s286 = sshrl.u32 %s285, 2
    %s287 = sor.u32 %s285, %s286
    %s288 = sand.u32 15, %s287
    %v289 = vld [vmem:[%s279] sm:%s288]
    %v290 = vunpack.c.l.bf16 %v289
    %v291 = vunpack.c.h.bf16 %v289
    %s292 = scalar_lea.vmem [#allocation1], 1264
    %293 = vst [vmem:[%s292] sm:%s5] %v290
    %s294 = smul.addr 4, 157
    %s295 = scalar_lea.vmem %s0, %s294
    %s296 = sshrl.u32 %s5, 1
    %s297 = sor.u32 %s5, %s296
    %s298 = sand.u32 %s297, 85
    %s299 = sshrl.u32 %s298, 1
    %s300 = sor.u32 %s298, %s299
    %s301 = sand.u32 51, %s300
    %s302 = sshrl.u32 %s301, 2
    %s303 = sor.u32 %s301, %s302
    %s304 = sand.u32 15, %s303
    %v305 = vld [vmem:[%s295] sm:%s304]
    %v306 = vunpack.c.l.bf16 %v305
    %v307 = vunpack.c.h.bf16 %v305
    %s308 = scalar_lea.vmem [#allocation1], 1256
    %309 = vst [vmem:[%s308] sm:%s5] %v306
    %s310 = smul.addr 4, 156
    %s311 = scalar_lea.vmem %s0, %s310
    %s312 = sshrl.u32 %s5, 1
    %s313 = sor.u32 %s5, %s312
    %s314 = sand.u32 %s313, 85
    %s315 = sshrl.u32 %s314, 1
    %s316 = sor.u32 %s314, %s315
    %s317 = sand.u32 51, %s316
    %s318 = sshrl.u32 %s317, 2
    %s319 = sor.u32 %s317, %s318
    %s320 = sand.u32 15, %s319
    %v321 = vld [vmem:[%s311] sm:%s320]
    %v322 = vunpack.c.l.bf16 %v321
    %v323 = vunpack.c.h.bf16 %v321
    %s324 = scalar_lea.vmem [#allocation1], 1248
    %325 = vst [vmem:[%s324] sm:%s5] %v322
    %s326 = smul.addr 4, 155
    %s327 = scalar_lea.vmem %s0, %s326
    %s328 = sshrl.u32 %s5, 1
    %s329 = sor.u32 %s5, %s328
    %s330 = sand.u32 %s329, 85
    %s331 = sshrl.u32 %s330, 1
    %s332 = sor.u32 %s330, %s331
    %s333 = sand.u32 51, %s332
    %s334 = sshrl.u32 %s333, 2
    %s335 = sor.u32 %s333, %s334
    %s336 = sand.u32 15, %s335
    %v337 = vld [vmem:[%s327] sm:%s336]
    %v338 = vunpack.c.l.bf16 %v337
    %v339 = vunpack.c.h.bf16 %v337
    %s340 = scalar_lea.vmem [#allocation1], 1240
    %341 = vst [vmem:[%s340] sm:%s5] %v338
    %s342 = smul.addr 4, 154
    %s343 = scalar_lea.vmem %s0, %s342
    %s344 = sshrl.u32 %s5, 1
    %s345 = sor.u32 %s5, %s344
    %s346 = sand.u32 %s345, 85
    %s347 = sshrl.u32 %s346, 1
    %s348 = sor.u32 %s346, %s347
    %s349 = sand.u32 51, %s348
    %s350 = sshrl.u32 %s349, 2
    %s351 = sor.u32 %s349, %s350
    %s352 = sand.u32 15, %s351
    %v353 = vld [vmem:[%s343] sm:%s352]
    %v354 = vunpack.c.l.bf16 %v353
    %v355 = vunpack.c.h.bf16 %v353
    %s356 = scalar_lea.vmem [#allocation1], 1232
    %357 = vst [vmem:[%s356] sm:%s5] %v354
    %s358 = smul.addr 4, 153
    %s359 = scalar_lea.vmem %s0, %s358
    %s360 = sshrl.u32 %s5, 1
    %s361 = sor.u32 %s5, %s360
    %s362 = sand.u32 %s361, 85
    %s363 = sshrl.u32 %s362, 1
    %s364 = sor.u32 %s362, %s363
    %s365 = sand.u32 51, %s364
    %s366 = sshrl.u32 %s365, 2
    %s367 = sor.u32 %s365, %s366
    %s368 = sand.u32 15, %s367
    %v369 = vld [vmem:[%s359] sm:%s368]
    %v370 = vunpack.c.l.bf16 %v369
    %v371 = vunpack.c.h.bf16 %v369
    %s372 = scalar_lea.vmem [#allocation1], 1224
    %373 = vst [vmem:[%s372] sm:%s5] %v370
    %s374 = smul.addr 4, 152
    %s375 = scalar_lea.vmem %s0, %s374
    %s376 = sshrl.u32 %s5, 1
    %s377 = sor.u32 %s5, %s376
    %s378 = sand.u32 %s377, 85
    %s379 = sshrl.u32 %s378, 1
    %s380 = sor.u32 %s378, %s379
    %s381 = sand.u32 51, %s380
    %s382 = sshrl.u32 %s381, 2
    %s383 = sor.u32 %s381, %s382
    %s384 = sand.u32 15, %s383
    %v385 = vld [vmem:[%s375] sm:%s384]
    %v386 = vunpack.c.l.bf16 %v385
    %v387 = vunpack.c.h.bf16 %v385
    %s388 = scalar_lea.vmem [#allocation1], 1216
    %389 = vst [vmem:[%s388] sm:%s5] %v386
    %s390 = smul.addr 4, 151
    %s391 = scalar_lea.vmem %s0, %s390
    %s392 = sshrl.u32 %s5, 1
    %s393 = sor.u32 %s5, %s392
    %s394 = sand.u32 %s393, 85
    %s395 = sshrl.u32 %s394, 1
    %s396 = sor.u32 %s394, %s395
    %s397 = sand.u32 51, %s396
    %s398 = sshrl.u32 %s397, 2
    %s399 = sor.u32 %s397, %s398
    %s400 = sand.u32 15, %s399
    %v401 = vld [vmem:[%s391] sm:%s400]
    %v402 = vunpack.c.l.bf16 %v401
    %v403 = vunpack.c.h.bf16 %v401
    %s404 = scalar_lea.vmem [#allocation1], 1208
    %405 = vst [vmem:[%s404] sm:%s5] %v402
    %s406 = smul.addr 4, 150
    %s407 = scalar_lea.vmem %s0, %s406
    %s408 = sshrl.u32 %s5, 1
    %s409 = sor.u32 %s5, %s408
    %s410 = sand.u32 %s409, 85
    %s411 = sshrl.u32 %s410, 1
    %s412 = sor.u32 %s410, %s411
    %s413 = sand.u32 51, %s412
    %s414 = sshrl.u32 %s413, 2
    %s415 = sor.u32 %s413, %s414
    %s416 = sand.u32 15, %s415
    %v417 = vld [vmem:[%s407] sm:%s416]
    %v418 = vunpack.c.l.bf16 %v417
    %v419 = vunpack.c.h.bf16 %v417
    %s420 = scalar_lea.vmem [#allocation1], 1200
    %421 = vst [vmem:[%s420] sm:%s5] %v418
    %s422 = smul.addr 4, 149
    %s423 = scalar_lea.vmem %s0, %s422
    %s424 = sshrl.u32 %s5, 1
    %s425 = sor.u32 %s5, %s424
    %s426 = sand.u32 %s425, 85
    %s427 = sshrl.u32 %s426, 1
    %s428 = sor.u32 %s426, %s427
    %s429 = sand.u32 51, %s428
    %s430 = sshrl.u32 %s429, 2
    %s431 = sor.u32 %s429, %s430
    %s432 = sand.u32 15, %s431
    %v433 = vld [vmem:[%s423] sm:%s432]
    %v434 = vunpack.c.l.bf16 %v433
    %v435 = vunpack.c.h.bf16 %v433
    %s436 = scalar_lea.vmem [#allocation1], 1192
    %437 = vst [vmem:[%s436] sm:%s5] %v434
    %s438 = smul.addr 4, 148
    %s439 = scalar_lea.vmem %s0, %s438
    %s440 = sshrl.u32 %s5, 1
    %s441 = sor.u32 %s5, %s440
    %s442 = sand.u32 %s441, 85
    %s443 = sshrl.u32 %s442, 1
    %s444 = sor.u32 %s442, %s443
    %s445 = sand.u32 51, %s444
    %s446 = sshrl.u32 %s445, 2
    %s447 = sor.u32 %s445, %s446
    %s448 = sand.u32 15, %s447
    %v449 = vld [vmem:[%s439] sm:%s448]
    %v450 = vunpack.c.l.bf16 %v449
    %v451 = vunpack.c.h.bf16 %v449
    %s452 = scalar_lea.vmem [#allocation1], 1184
    %453 = vst [vmem:[%s452] sm:%s5] %v450
    %s454 = smul.addr 4, 147
    %s455 = scalar_lea.vmem %s0, %s454
    %s456 = sshrl.u32 %s5, 1
    %s457 = sor.u32 %s5, %s456
    %s458 = sand.u32 %s457, 85
    %s459 = sshrl.u32 %s458, 1
    %s460 = sor.u32 %s458, %s459
    %s461 = sand.u32 51, %s460
    %s462 = sshrl.u32 %s461, 2
    %s463 = sor.u32 %s461, %s462
    %s464 = sand.u32 15, %s463
    %v465 = vld [vmem:[%s455] sm:%s464]
    %v466 = vunpack.c.l.bf16 %v465
    %v467 = vunpack.c.h.bf16 %v465
    %s468 = scalar_lea.vmem [#allocation1], 1176
    %469 = vst [vmem:[%s468] sm:%s5] %v466
    %s470 = smul.addr 4, 146
    %s471 = scalar_lea.vmem %s0, %s470
    %s472 = sshrl.u32 %s5, 1
    %s473 = sor.u32 %s5, %s472
    %s474 = sand.u32 %s473, 85
    %s475 = sshrl.u32 %s474, 1
    %s476 = sor.u32 %s474, %s475
    %s477 = sand.u32 51, %s476
    %s478 = sshrl.u32 %s477, 2
    %s479 = sor.u32 %s477, %s478
    %s480 = sand.u32 15, %s479
    %v481 = vld [vmem:[%s471] sm:%s480]
    %v482 = vunpack.c.l.bf16 %v481
    %v483 = vunpack.c.h.bf16 %v481
    %s484 = scalar_lea.vmem [#allocation1], 1168
    %485 = vst [vmem:[%s484] sm:%s5] %v482
    %s486 = smul.addr 4, 145
    %s487 = scalar_lea.vmem %s0, %s486
    %s488 = sshrl.u32 %s5, 1
    %s489 = sor.u32 %s5, %s488
    %s490 = sand.u32 %s489, 85
    %s491 = sshrl.u32 %s490, 1
    %s492 = sor.u32 %s490, %s491
    %s493 = sand.u32 51, %s492
    %s494 = sshrl.u32 %s493, 2
    %s495 = sor.u32 %s493, %s494
    %s496 = sand.u32 15, %s495
    %v497 = vld [vmem:[%s487] sm:%s496]
    %v498 = vunpack.c.l.bf16 %v497
    %v499 = vunpack.c.h.bf16 %v497
    %s500 = scalar_lea.vmem [#allocation1], 1160
    %501 = vst [vmem:[%s500] sm:%s5] %v498
    %s502 = smul.addr 4, 144
    %s503 = scalar_lea.vmem %s0, %s502
    %s504 = sshrl.u32 %s5, 1
    %s505 = sor.u32 %s5, %s504
    %s506 = sand.u32 %s505, 85
    %s507 = sshrl.u32 %s506, 1
    %s508 = sor.u32 %s506, %s507
    %s509 = sand.u32 51, %s508
    %s510 = sshrl.u32 %s509, 2
    %s511 = sor.u32 %s509, %s510
    %s512 = sand.u32 15, %s511
    %v513 = vld [vmem:[%s503] sm:%s512]
    %v514 = vunpack.c.l.bf16 %v513
    %v515 = vunpack.c.h.bf16 %v513
    %s516 = scalar_lea.vmem [#allocation1], 1152
    %517 = vst [vmem:[%s516] sm:%s5] %v514
    %s518 = smul.addr 4, 143
    %s519 = scalar_lea.vmem %s0, %s518
    %s520 = sshrl.u32 %s5, 1
    %s521 = sor.u32 %s5, %s520
    %s522 = sand.u32 %s521, 85
    %s523 = sshrl.u32 %s522, 1
    %s524 = sor.u32 %s522, %s523
    %s525 = sand.u32 51, %s524
    %s526 = sshrl.u32 %s525, 2
    %s527 = sor.u32 %s525, %s526
    %s528 = sand.u32 15, %s527
    %v529 = vld [vmem:[%s519] sm:%s528]
    %v530 = vunpack.c.l.bf16 %v529
    %v531 = vunpack.c.h.bf16 %v529
    %s532 = scalar_lea.vmem [#allocation1], 1144
    %533 = vst [vmem:[%s532] sm:%s5] %v530
    %s534 = smul.addr 4, 142
    %s535 = scalar_lea.vmem %s0, %s534
    %s536 = sshrl.u32 %s5, 1
    %s537 = sor.u32 %s5, %s536
    %s538 = sand.u32 %s537, 85
    %s539 = sshrl.u32 %s538, 1
    %s540 = sor.u32 %s538, %s539
    %s541 = sand.u32 51, %s540
    %s542 = sshrl.u32 %s541, 2
    %s543 = sor.u32 %s541, %s542
    %s544 = sand.u32 15, %s543
    %v545 = vld [vmem:[%s535] sm:%s544]
    %v546 = vunpack.c.l.bf16 %v545
    %v547 = vunpack.c.h.bf16 %v545
    %s548 = scalar_lea.vmem [#allocation1], 1136
    %549 = vst [vmem:[%s548] sm:%s5] %v546
    %s550 = smul.addr 4, 141
    %s551 = scalar_lea.vmem %s0, %s550
    %s552 = sshrl.u32 %s5, 1
    %s553 = sor.u32 %s5, %s552
    %s554 = sand.u32 %s553, 85
    %s555 = sshrl.u32 %s554, 1
    %s556 = sor.u32 %s554, %s555
    %s557 = sand.u32 51, %s556
    %s558 = sshrl.u32 %s557, 2
    %s559 = sor.u32 %s557, %s558
    %s560 = sand.u32 15, %s559
    %v561 = vld [vmem:[%s551] sm:%s560]
    %v562 = vunpack.c.l.bf16 %v561
    %v563 = vunpack.c.h.bf16 %v561
    %s564 = scalar_lea.vmem [#allocation1], 1128
    %565 = vst [vmem:[%s564] sm:%s5] %v562
    %s566 = smul.addr 4, 140
    %s567 = scalar_lea.vmem %s0, %s566
    %s568 = sshrl.u32 %s5, 1
    %s569 = sor.u32 %s5, %s568
    %s570 = sand.u32 %s569, 85
    %s571 = sshrl.u32 %s570, 1
    %s572 = sor.u32 %s570, %s571
    %s573 = sand.u32 51, %s572
    %s574 = sshrl.u32 %s573, 2
    %s575 = sor.u32 %s573, %s574
    %s576 = sand.u32 15, %s575
    %v577 = vld [vmem:[%s567] sm:%s576]
    %v578 = vunpack.c.l.bf16 %v577
    %v579 = vunpack.c.h.bf16 %v577
    %s580 = scalar_lea.vmem [#allocation1], 1120
    %581 = vst [vmem:[%s580] sm:%s5] %v578
    %s582 = smul.addr 4, 139
    %s583 = scalar_lea.vmem %s0, %s582
    %s584 = sshrl.u32 %s5, 1
    %s585 = sor.u32 %s5, %s584
    %s586 = sand.u32 %s585, 85
    %s587 = sshrl.u32 %s586, 1
    %s588 = sor.u32 %s586, %s587
    %s589 = sand.u32 51, %s588
    %s590 = sshrl.u32 %s589, 2
    %s591 = sor.u32 %s589, %s590
    %s592 = sand.u32 15, %s591
    %v593 = vld [vmem:[%s583] sm:%s592]
    %v594 = vunpack.c.l.bf16 %v593
    %v595 = vunpack.c.h.bf16 %v593
    %s596 = scalar_lea.vmem [#allocation1], 1112
    %597 = vst [vmem:[%s596] sm:%s5] %v594
    %s598 = smul.addr 4, 138
    %s599 = scalar_lea.vmem %s0, %s598
    %s600 = sshrl.u32 %s5, 1
    %s601 = sor.u32 %s5, %s600
    %s602 = sand.u32 %s601, 85
    %s603 = sshrl.u32 %s602, 1
    %s604 = sor.u32 %s602, %s603
    %s605 = sand.u32 51, %s604
    %s606 = sshrl.u32 %s605, 2
    %s607 = sor.u32 %s605, %s606
    %s608 = sand.u32 15, %s607
    %v609 = vld [vmem:[%s599] sm:%s608]
    %v610 = vunpack.c.l.bf16 %v609
    %v611 = vunpack.c.h.bf16 %v609
    %s612 = scalar_lea.vmem [#allocation1], 1104
    %613 = vst [vmem:[%s612] sm:%s5] %v610
    %s614 = smul.addr 4, 137
    %s615 = scalar_lea.vmem %s0, %s614
    %s616 = sshrl.u32 %s5, 1
    %s617 = sor.u32 %s5, %s616
    %s618 = sand.u32 %s617, 85
    %s619 = sshrl.u32 %s618, 1
    %s620 = sor.u32 %s618, %s619
    %s621 = sand.u32 51, %s620
    %s622 = sshrl.u32 %s621, 2
    %s623 = sor.u32 %s621, %s622
    %s624 = sand.u32 15, %s623
    %v625 = vld [vmem:[%s615] sm:%s624]
    %v626 = vunpack.c.l.bf16 %v625
    %v627 = vunpack.c.h.bf16 %v625
    %s628 = scalar_lea.vmem [#allocation1], 1096
    %629 = vst [vmem:[%s628] sm:%s5] %v626
    %s630 = smul.addr 4, 136
    %s631 = scalar_lea.vmem %s0, %s630
    %s632 = sshrl.u32 %s5, 1
    %s633 = sor.u32 %s5, %s632
    %s634 = sand.u32 %s633, 85
    %s635 = sshrl.u32 %s634, 1
    %s636 = sor.u32 %s634, %s635
    %s637 = sand.u32 51, %s636
    %s638 = sshrl.u32 %s637, 2
    %s639 = sor.u32 %s637, %s638
    %s640 = sand.u32 15, %s639
    %v641 = vld [vmem:[%s631] sm:%s640]
    %v642 = vunpack.c.l.bf16 %v641
    %v643 = vunpack.c.h.bf16 %v641
    %s644 = scalar_lea.vmem [#allocation1], 1088
    %645 = vst [vmem:[%s644] sm:%s5] %v642
    %s646 = smul.addr 4, 135
    %s647 = scalar_lea.vmem %s0, %s646
    %s648 = sshrl.u32 %s5, 1
    %s649 = sor.u32 %s5, %s648
    %s650 = sand.u32 %s649, 85
    %s651 = sshrl.u32 %s650, 1
    %s652 = sor.u32 %s650, %s651
    %s653 = sand.u32 51, %s652
    %s654 = sshrl.u32 %s653, 2
    %s655 = sor.u32 %s653, %s654
    %s656 = sand.u32 15, %s655
    %v657 = vld [vmem:[%s647] sm:%s656]
    %v658 = vunpack.c.l.bf16 %v657
    %v659 = vunpack.c.h.bf16 %v657
    %s660 = scalar_lea.vmem [#allocation1], 1080
    %661 = vst [vmem:[%s660] sm:%s5] %v658
    %s662 = smul.addr 4, 134
    %s663 = scalar_lea.vmem %s0, %s662
    %s664 = sshrl.u32 %s5, 1
    %s665 = sor.u32 %s5, %s664
    %s666 = sand.u32 %s665, 85
    %s667 = sshrl.u32 %s666, 1
    %s668 = sor.u32 %s666, %s667
    %s669 = sand.u32 51, %s668
    %s670 = sshrl.u32 %s669, 2
    %s671 = sor.u32 %s669, %s670
    %s672 = sand.u32 15, %s671
    %v673 = vld [vmem:[%s663] sm:%s672]
    %v674 = vunpack.c.l.bf16 %v673
    %v675 = vunpack.c.h.bf16 %v673
    %s676 = scalar_lea.vmem [#allocation1], 1072
    %677 = vst [vmem:[%s676] sm:%s5] %v674
    %s678 = smul.addr 4, 133
    %s679 = scalar_lea.vmem %s0, %s678
    %s680 = sshrl.u32 %s5, 1
    %s681 = sor.u32 %s5, %s680
    %s682 = sand.u32 %s681, 85
    %s683 = sshrl.u32 %s682, 1
    %s684 = sor.u32 %s682, %s683
    %s685 = sand.u32 51, %s684
    %s686 = sshrl.u32 %s685, 2
    %s687 = sor.u32 %s685, %s686
    %s688 = sand.u32 15, %s687
    %v689 = vld [vmem:[%s679] sm:%s688]
    %v690 = vunpack.c.l.bf16 %v689
    %v691 = vunpack.c.h.bf16 %v689
    %s692 = scalar_lea.vmem [#allocation1], 1064
    %693 = vst [vmem:[%s692] sm:%s5] %v690
    %s694 = smul.addr 4, 132
    %s695 = scalar_lea.vmem %s0, %s694
    %s696 = sshrl.u32 %s5, 1
    %s697 = sor.u32 %s5, %s696
    %s698 = sand.u32 %s697, 85
    %s699 = sshrl.u32 %s698, 1
    %s700 = sor.u32 %s698, %s699
    %s701 = sand.u32 51, %s700
    %s702 = sshrl.u32 %s701, 2
    %s703 = sor.u32 %s701, %s702
    %s704 = sand.u32 15, %s703
    %v705 = vld [vmem:[%s695] sm:%s704]
    %v706 = vunpack.c.l.bf16 %v705
    %v707 = vunpack.c.h.bf16 %v705
    %s708 = scalar_lea.vmem [#allocation1], 1056
    %709 = vst [vmem:[%s708] sm:%s5] %v706
    %s710 = smul.addr 4, 131
    %s711 = scalar_lea.vmem %s0, %s710
    %s712 = sshrl.u32 %s5, 1
    %s713 = sor.u32 %s5, %s712
    %s714 = sand.u32 %s713, 85
    %s715 = sshrl.u32 %s714, 1
    %s716 = sor.u32 %s714, %s715
    %s717 = sand.u32 51, %s716
    %s718 = sshrl.u32 %s717, 2
    %s719 = sor.u32 %s717, %s718
    %s720 = sand.u32 15, %s719
    %v721 = vld [vmem:[%s711] sm:%s720]
    %v722 = vunpack.c.l.bf16 %v721
    %v723 = vunpack.c.h.bf16 %v721
    %s724 = scalar_lea.vmem [#allocation1], 1048
    %725 = vst [vmem:[%s724] sm:%s5] %v722
    %s726 = smul.addr 4, 130
    %s727 = scalar_lea.vmem %s0, %s726
    %s728 = sshrl.u32 %s5, 1
    %s729 = sor.u32 %s5, %s728
    %s730 = sand.u32 %s729, 85
    %s731 = sshrl.u32 %s730, 1
    %s732 = sor.u32 %s730, %s731
    %s733 = sand.u32 51, %s732
    %s734 = sshrl.u32 %s733, 2
    %s735 = sor.u32 %s733, %s734
    %s736 = sand.u32 15, %s735
    %v737 = vld [vmem:[%s727] sm:%s736]
    %v738 = vunpack.c.l.bf16 %v737
    %v739 = vunpack.c.h.bf16 %v737
    %s740 = scalar_lea.vmem [#allocation1], 1040
    %741 = vst [vmem:[%s740] sm:%s5] %v738
    %s742 = smul.addr 4, 129
    %s743 = scalar_lea.vmem %s0, %s742
    %s744 = sshrl.u32 %s5, 1
    %s745 = sor.u32 %s5, %s744
    %s746 = sand.u32 %s745, 85
    %s747 = sshrl.u32 %s746, 1
    %s748 = sor.u32 %s746, %s747
    %s749 = sand.u32 51, %s748
    %s750 = sshrl.u32 %s749, 2
    %s751 = sor.u32 %s749, %s750
    %s752 = sand.u32 15, %s751
    %v753 = vld [vmem:[%s743] sm:%s752]
    %v754 = vunpack.c.l.bf16 %v753
    %v755 = vunpack.c.h.bf16 %v753
    %s756 = scalar_lea.vmem [#allocation1], 1032
    %757 = vst [vmem:[%s756] sm:%s5] %v754
    %s758 = smul.addr 4, 128
    %s759 = scalar_lea.vmem %s0, %s758
    %s760 = sshrl.u32 %s5, 1
    %s761 = sor.u32 %s5, %s760
    %s762 = sand.u32 %s761, 85
    %s763 = sshrl.u32 %s762, 1
    %s764 = sor.u32 %s762, %s763
    %s765 = sand.u32 51, %s764
    %s766 = sshrl.u32 %s765, 2
    %s767 = sor.u32 %s765, %s766
    %s768 = sand.u32 15, %s767
    %v769 = vld [vmem:[%s759] sm:%s768]
    %v770 = vunpack.c.l.bf16 %v769
    %v771 = vunpack.c.h.bf16 %v769
    %s772 = scalar_lea.vmem [#allocation1], 1024
    %773 = vst [vmem:[%s772] sm:%s5] %v770
    %s774 = smul.addr 4, 127
    %s775 = scalar_lea.vmem %s0, %s774
    %s776 = sshrl.u32 %s5, 1
    %s777 = sor.u32 %s5, %s776
    %s778 = sand.u32 %s777, 85
    %s779 = sshrl.u32 %s778, 1
    %s780 = sor.u32 %s778, %s779
    %s781 = sand.u32 51, %s780
    %s782 = sshrl.u32 %s781, 2
    %s783 = sor.u32 %s781, %s782
    %s784 = sand.u32 15, %s783
    %v785 = vld [vmem:[%s775] sm:%s784]
    %v786 = vunpack.c.l.bf16 %v785
    %v787 = vunpack.c.h.bf16 %v785
    %s788 = scalar_lea.vmem [#allocation1], 1016
    %789 = vst [vmem:[%s788] sm:%s5] %v786
    %s790 = smul.addr 4, 126
    %s791 = scalar_lea.vmem %s0, %s790
    %s792 = sshrl.u32 %s5, 1
    %s793 = sor.u32 %s5, %s792
    %s794 = sand.u32 %s793, 85
    %s795 = sshrl.u32 %s794, 1
    %s796 = sor.u32 %s794, %s795
    %s797 = sand.u32 51, %s796
    %s798 = sshrl.u32 %s797, 2
    %s799 = sor.u32 %s797, %s798
    %s800 = sand.u32 15, %s799
    %v801 = vld [vmem:[%s791] sm:%s800]
    %v802 = vunpack.c.l.bf16 %v801
    %v803 = vunpack.c.h.bf16 %v801
    %s804 = scalar_lea.vmem [#allocation1], 1008
    %805 = vst [vmem:[%s804] sm:%s5] %v802
    %s806 = smul.addr 4, 125
    %s807 = scalar_lea.vmem %s0, %s806
    %s808 = sshrl.u32 %s5, 1
    %s809 = sor.u32 %s5, %s808
    %s810 = sand.u32 %s809, 85
    %s811 = sshrl.u32 %s810, 1
    %s812 = sor.u32 %s810, %s811
    %s813 = sand.u32 51, %s812
    %s814 = sshrl.u32 %s813, 2
    %s815 = sor.u32 %s813, %s814
    %s816 = sand.u32 15, %s815
    %v817 = vld [vmem:[%s807] sm:%s816]
    %v818 = vunpack.c.l.bf16 %v817
    %v819 = vunpack.c.h.bf16 %v817
    %s820 = scalar_lea.vmem [#allocation1], 1000
    %821 = vst [vmem:[%s820] sm:%s5] %v818
    %s822 = smul.addr 4, 124
    %s823 = scalar_lea.vmem %s0, %s822
    %s824 = sshrl.u32 %s5, 1
    %s825 = sor.u32 %s5, %s824
    %s826 = sand.u32 %s825, 85
    %s827 = sshrl.u32 %s826, 1
    %s828 = sor.u32 %s826, %s827
    %s829 = sand.u32 51, %s828
    %s830 = sshrl.u32 %s829, 2
    %s831 = sor.u32 %s829, %s830
    %s832 = sand.u32 15, %s831
    %v833 = vld [vmem:[%s823] sm:%s832]
    %v834 = vunpack.c.l.bf16 %v833
    %v835 = vunpack.c.h.bf16 %v833
    %s836 = scalar_lea.vmem [#allocation1], 992
    %837 = vst [vmem:[%s836] sm:%s5] %v834
    %s838 = smul.addr 4, 123
    %s839 = scalar_lea.vmem %s0, %s838
    %s840 = sshrl.u32 %s5, 1
    %s841 = sor.u32 %s5, %s840
    %s842 = sand.u32 %s841, 85
    %s843 = sshrl.u32 %s842, 1
    %s844 = sor.u32 %s842, %s843
    %s845 = sand.u32 51, %s844
    %s846 = sshrl.u32 %s845, 2
    %s847 = sor.u32 %s845, %s846
    %s848 = sand.u32 15, %s847
    %v849 = vld [vmem:[%s839] sm:%s848]
    %v850 = vunpack.c.l.bf16 %v849
    %v851 = vunpack.c.h.bf16 %v849
    %s852 = scalar_lea.vmem [#allocation1], 984
    %853 = vst [vmem:[%s852] sm:%s5] %v850
    %s854 = smul.addr 4, 122
    %s855 = scalar_lea.vmem %s0, %s854
    %s856 = sshrl.u32 %s5, 1
    %s857 = sor.u32 %s5, %s856
    %s858 = sand.u32 %s857, 85
    %s859 = sshrl.u32 %s858, 1
    %s860 = sor.u32 %s858, %s859
    %s861 = sand.u32 51, %s860
    %s862 = sshrl.u32 %s861, 2
    %s863 = sor.u32 %s861, %s862
    %s864 = sand.u32 15, %s863
    %v865 = vld [vmem:[%s855] sm:%s864]
    %v866 = vunpack.c.l.bf16 %v865
    %v867 = vunpack.c.h.bf16 %v865
    %s868 = scalar_lea.vmem [#allocation1], 976
    %869 = vst [vmem:[%s868] sm:%s5] %v866
    %s870 = smul.addr 4, 121
    %s871 = scalar_lea.vmem %s0, %s870
    %s872 = sshrl.u32 %s5, 1
    %s873 = sor.u32 %s5, %s872
    %s874 = sand.u32 %s873, 85
    %s875 = sshrl.u32 %s874, 1
    %s876 = sor.u32 %s874, %s875
    %s877 = sand.u32 51, %s876
    %s878 = sshrl.u32 %s877, 2
    %s879 = sor.u32 %s877, %s878
    %s880 = sand.u32 15, %s879
    %v881 = vld [vmem:[%s871] sm:%s880]
    %v882 = vunpack.c.l.bf16 %v881
    %v883 = vunpack.c.h.bf16 %v881
    %s884 = scalar_lea.vmem [#allocation1], 968
    %885 = vst [vmem:[%s884] sm:%s5] %v882
    %s886 = smul.addr 4, 120
    %s887 = scalar_lea.vmem %s0, %s886
    %s888 = sshrl.u32 %s5, 1
    %s889 = sor.u32 %s5, %s888
    %s890 = sand.u32 %s889, 85
    %s891 = sshrl.u32 %s890, 1
    %s892 = sor.u32 %s890, %s891
    %s893 = sand.u32 51, %s892
    %s894 = sshrl.u32 %s893, 2
    %s895 = sor.u32 %s893, %s894
    %s896 = sand.u32 15, %s895
    %v897 = vld [vmem:[%s887] sm:%s896]
    %v898 = vunpack.c.l.bf16 %v897
    %v899 = vunpack.c.h.bf16 %v897
    %s900 = scalar_lea.vmem [#allocation1], 960
    %901 = vst [vmem:[%s900] sm:%s5] %v898
    %s902 = smul.addr 4, 119
    %s903 = scalar_lea.vmem %s0, %s902
    %s904 = sshrl.u32 %s5, 1
    %s905 = sor.u32 %s5, %s904
    %s906 = sand.u32 %s905, 85
    %s907 = sshrl.u32 %s906, 1
    %s908 = sor.u32 %s906, %s907
    %s909 = sand.u32 51, %s908
    %s910 = sshrl.u32 %s909, 2
    %s911 = sor.u32 %s909, %s910
    %s912 = sand.u32 15, %s911
    %v913 = vld [vmem:[%s903] sm:%s912]
    %v914 = vunpack.c.l.bf16 %v913
    %v915 = vunpack.c.h.bf16 %v913
    %s916 = scalar_lea.vmem [#allocation1], 952
    %917 = vst [vmem:[%s916] sm:%s5] %v914
    %s918 = smul.addr 4, 118
    %s919 = scalar_lea.vmem %s0, %s918
    %s920 = sshrl.u32 %s5, 1
    %s921 = sor.u32 %s5, %s920
    %s922 = sand.u32 %s921, 85
    %s923 = sshrl.u32 %s922, 1
    %s924 = sor.u32 %s922, %s923
    %s925 = sand.u32 51, %s924
    %s926 = sshrl.u32 %s925, 2
    %s927 = sor.u32 %s925, %s926
    %s928 = sand.u32 15, %s927
    %v929 = vld [vmem:[%s919] sm:%s928]
    %v930 = vunpack.c.l.bf16 %v929
    %v931 = vunpack.c.h.bf16 %v929
    %s932 = scalar_lea.vmem [#allocation1], 944
    %933 = vst [vmem:[%s932] sm:%s5] %v930
    %s934 = smul.addr 4, 117
    %s935 = scalar_lea.vmem %s0, %s934
    %s936 = sshrl.u32 %s5, 1
    %s937 = sor.u32 %s5, %s936
    %s938 = sand.u32 %s937, 85
    %s939 = sshrl.u32 %s938, 1
    %s940 = sor.u32 %s938, %s939
    %s941 = sand.u32 51, %s940
    %s942 = sshrl.u32 %s941, 2
    %s943 = sor.u32 %s941, %s942
    %s944 = sand.u32 15, %s943
    %v945 = vld [vmem:[%s935] sm:%s944]
    %v946 = vunpack.c.l.bf16 %v945
    %v947 = vunpack.c.h.bf16 %v945
    %s948 = scalar_lea.vmem [#allocation1], 936
    %949 = vst [vmem:[%s948] sm:%s5] %v946
    %s950 = smul.addr 4, 116
    %s951 = scalar_lea.vmem %s0, %s950
    %s952 = sshrl.u32 %s5, 1
    %s953 = sor.u32 %s5, %s952
    %s954 = sand.u32 %s953, 85
    %s955 = sshrl.u32 %s954, 1
    %s956 = sor.u32 %s954, %s955
    %s957 = sand.u32 51, %s956
    %s958 = sshrl.u32 %s957, 2
    %s959 = sor.u32 %s957, %s958
    %s960 = sand.u32 15, %s959
    %v961 = vld [vmem:[%s951] sm:%s960]
    %v962 = vunpack.c.l.bf16 %v961
    %v963 = vunpack.c.h.bf16 %v961
    %s964 = scalar_lea.vmem [#allocation1], 928
    %965 = vst [vmem:[%s964] sm:%s5] %v962
    %s966 = smul.addr 4, 115
    %s967 = scalar_lea.vmem %s0, %s966
    %s968 = sshrl.u32 %s5, 1
    %s969 = sor.u32 %s5, %s968
    %s970 = sand.u32 %s969, 85
    %s971 = sshrl.u32 %s970, 1
    %s972 = sor.u32 %s970, %s971
    %s973 = sand.u32 51, %s972
    %s974 = sshrl.u32 %s973, 2
    %s975 = sor.u32 %s973, %s974
    %s976 = sand.u32 15, %s975
    %v977 = vld [vmem:[%s967] sm:%s976]
    %v978 = vunpack.c.l.bf16 %v977
    %v979 = vunpack.c.h.bf16 %v977
    %s980 = scalar_lea.vmem [#allocation1], 920
    %981 = vst [vmem:[%s980] sm:%s5] %v978
    %s982 = smul.addr 4, 114
    %s983 = scalar_lea.vmem %s0, %s982
    %s984 = sshrl.u32 %s5, 1
    %s985 = sor.u32 %s5, %s984
    %s986 = sand.u32 %s985, 85
    %s987 = sshrl.u32 %s986, 1
    %s988 = sor.u32 %s986, %s987
    %s989 = sand.u32 51, %s988
    %s990 = sshrl.u32 %s989, 2
    %s991 = sor.u32 %s989, %s990
    %s992 = sand.u32 15, %s991
    %v993 = vld [vmem:[%s983] sm:%s992]
    %v994 = vunpack.c.l.bf16 %v993
    %v995 = vunpack.c.h.bf16 %v993
    %s996 = scalar_lea.vmem [#allocation1], 912
    %997 = vst [vmem:[%s996] sm:%s5] %v994
    %s998 = smul.addr 4, 113
    %s999 = scalar_lea.vmem %s0, %s998
    %s1000 = sshrl.u32 %s5, 1
    %s1001 = sor.u32 %s5, %s1000
    %s1002 = sand.u32 %s1001, 85
    %s1003 = sshrl.u32 %s1002, 1
    %s1004 = sor.u32 %s1002, %s1003
    %s1005 = sand.u32 51, %s1004
    %s1006 = sshrl.u32 %s1005, 2
    %s1007 = sor.u32 %s1005, %s1006
    %s1008 = sand.u32 15, %s1007
    %v1009 = vld [vmem:[%s999] sm:%s1008]
    %v1010 = vunpack.c.l.bf16 %v1009
    %v1011 = vunpack.c.h.bf16 %v1009
    %s1012 = scalar_lea.vmem [#allocation1], 904
    %1013 = vst [vmem:[%s1012] sm:%s5] %v1010
    %s1014 = smul.addr 4, 112
    %s1015 = scalar_lea.vmem %s0, %s1014
    %s1016 = sshrl.u32 %s5, 1
    %s1017 = sor.u32 %s5, %s1016
    %s1018 = sand.u32 %s1017, 85
    %s1019 = sshrl.u32 %s1018, 1
    %s1020 = sor.u32 %s1018, %s1019
    %s1021 = sand.u32 51, %s1020
    %s1022 = sshrl.u32 %s1021, 2
    %s1023 = sor.u32 %s1021, %s1022
    %s1024 = sand.u32 15, %s1023
    %v1025 = vld [vmem:[%s1015] sm:%s1024]
    %v1026 = vunpack.c.l.bf16 %v1025
    %v1027 = vunpack.c.h.bf16 %v1025
    %s1028 = scalar_lea.vmem [#allocation1], 896
    %1029 = vst [vmem:[%s1028] sm:%s5] %v1026
    %s1030 = smul.addr 4, 111
    %s1031 = scalar_lea.vmem %s0, %s1030
    %s1032 = sshrl.u32 %s5, 1
    %s1033 = sor.u32 %s5, %s1032
    %s1034 = sand.u32 %s1033, 85
    %s1035 = sshrl.u32 %s1034, 1
    %s1036 = sor.u32 %s1034, %s1035
    %s1037 = sand.u32 51, %s1036
    %s1038 = sshrl.u32 %s1037, 2
    %s1039 = sor.u32 %s1037, %s1038
    %s1040 = sand.u32 15, %s1039
    %v1041 = vld [vmem:[%s1031] sm:%s1040]
    %v1042 = vunpack.c.l.bf16 %v1041
    %v1043 = vunpack.c.h.bf16 %v1041
    %s1044 = scalar_lea.vmem [#allocation1], 888
    %1045 = vst [vmem:[%s1044] sm:%s5] %v1042
    %s1046 = smul.addr 4, 110
    %s1047 = scalar_lea.vmem %s0, %s1046
    %s1048 = sshrl.u32 %s5, 1
    %s1049 = sor.u32 %s5, %s1048
    %s1050 = sand.u32 %s1049, 85
    %s1051 = sshrl.u32 %s1050, 1
    %s1052 = sor.u32 %s1050, %s1051
    %s1053 = sand.u32 51, %s1052
    %s1054 = sshrl.u32 %s1053, 2
    %s1055 = sor.u32 %s1053, %s1054
    %s1056 = sand.u32 15, %s1055
    %v1057 = vld [vmem:[%s1047] sm:%s1056]
    %v1058 = vunpack.c.l.bf16 %v1057
    %v1059 = vunpack.c.h.bf16 %v1057
    %s1060 = scalar_lea.vmem [#allocation1], 880
    %1061 = vst [vmem:[%s1060] sm:%s5] %v1058
    %s1062 = smul.addr 4, 109
    %s1063 = scalar_lea.vmem %s0, %s1062
    %s1064 = sshrl.u32 %s5, 1
    %s1065 = sor.u32 %s5, %s1064
    %s1066 = sand.u32 %s1065, 85
    %s1067 = sshrl.u32 %s1066, 1
    %s1068 = sor.u32 %s1066, %s1067
    %s1069 = sand.u32 51, %s1068
    %s1070 = sshrl.u32 %s1069, 2
    %s1071 = sor.u32 %s1069, %s1070
    %s1072 = sand.u32 15, %s1071
    %v1073 = vld [vmem:[%s1063] sm:%s1072]
    %v1074 = vunpack.c.l.bf16 %v1073
    %v1075 = vunpack.c.h.bf16 %v1073
    %s1076 = scalar_lea.vmem [#allocation1], 872
    %1077 = vst [vmem:[%s1076] sm:%s5] %v1074
    %s1078 = smul.addr 4, 108
    %s1079 = scalar_lea.vmem %s0, %s1078
    %s1080 = sshrl.u32 %s5, 1
    %s1081 = sor.u32 %s5, %s1080
    %s1082 = sand.u32 %s1081, 85
    %s1083 = sshrl.u32 %s1082, 1
    %s1084 = sor.u32 %s1082, %s1083
    %s1085 = sand.u32 51, %s1084
    %s1086 = sshrl.u32 %s1085, 2
    %s1087 = sor.u32 %s1085, %s1086
    %s1088 = sand.u32 15, %s1087
    %v1089 = vld [vmem:[%s1079] sm:%s1088]
    %v1090 = vunpack.c.l.bf16 %v1089
    %v1091 = vunpack.c.h.bf16 %v1089
    %s1092 = scalar_lea.vmem [#allocation1], 864
    %1093 = vst [vmem:[%s1092] sm:%s5] %v1090
    %s1094 = smul.addr 4, 107
    %s1095 = scalar_lea.vmem %s0, %s1094
    %s1096 = sshrl.u32 %s5, 1
    %s1097 = sor.u32 %s5, %s1096
    %s1098 = sand.u32 %s1097, 85
    %s1099 = sshrl.u32 %s1098, 1
    %s1100 = sor.u32 %s1098, %s1099
    %s1101 = sand.u32 51, %s1100
    %s1102 = sshrl.u32 %s1101, 2
    %s1103 = sor.u32 %s1101, %s1102
    %s1104 = sand.u32 15, %s1103
    %v1105 = vld [vmem:[%s1095] sm:%s1104]
    %v1106 = vunpack.c.l.bf16 %v1105
    %v1107 = vunpack.c.h.bf16 %v1105
    %s1108 = scalar_lea.vmem [#allocation1], 856
    %1109 = vst [vmem:[%s1108] sm:%s5] %v1106
    %s1110 = smul.addr 4, 106
    %s1111 = scalar_lea.vmem %s0, %s1110
    %s1112 = sshrl.u32 %s5, 1
    %s1113 = sor.u32 %s5, %s1112
    %s1114 = sand.u32 %s1113, 85
    %s1115 = sshrl.u32 %s1114, 1
    %s1116 = sor.u32 %s1114, %s1115
    %s1117 = sand.u32 51, %s1116
    %s1118 = sshrl.u32 %s1117, 2
    %s1119 = sor.u32 %s1117, %s1118
    %s1120 = sand.u32 15, %s1119
    %v1121 = vld [vmem:[%s1111] sm:%s1120]
    %v1122 = vunpack.c.l.bf16 %v1121
    %v1123 = vunpack.c.h.bf16 %v1121
    %s1124 = scalar_lea.vmem [#allocation1], 848
    %1125 = vst [vmem:[%s1124] sm:%s5] %v1122
    %s1126 = smul.addr 4, 105
    %s1127 = scalar_lea.vmem %s0, %s1126
    %s1128 = sshrl.u32 %s5, 1
    %s1129 = sor.u32 %s5, %s1128
    %s1130 = sand.u32 %s1129, 85
    %s1131 = sshrl.u32 %s1130, 1
    %s1132 = sor.u32 %s1130, %s1131
    %s1133 = sand.u32 51, %s1132
    %s1134 = sshrl.u32 %s1133, 2
    %s1135 = sor.u32 %s1133, %s1134
    %s1136 = sand.u32 15, %s1135
    %v1137 = vld [vmem:[%s1127] sm:%s1136]
    %v1138 = vunpack.c.l.bf16 %v1137
    %v1139 = vunpack.c.h.bf16 %v1137
    %s1140 = scalar_lea.vmem [#allocation1], 840
    %1141 = vst [vmem:[%s1140] sm:%s5] %v1138
    %s1142 = smul.addr 4, 104
    %s1143 = scalar_lea.vmem %s0, %s1142
    %s1144 = sshrl.u32 %s5, 1
    %s1145 = sor.u32 %s5, %s1144
    %s1146 = sand.u32 %s1145, 85
    %s1147 = sshrl.u32 %s1146, 1
    %s1148 = sor.u32 %s1146, %s1147
    %s1149 = sand.u32 51, %s1148
    %s1150 = sshrl.u32 %s1149, 2
    %s1151 = sor.u32 %s1149, %s1150
    %s1152 = sand.u32 15, %s1151
    %v1153 = vld [vmem:[%s1143] sm:%s1152]
    %v1154 = vunpack.c.l.bf16 %v1153
    %v1155 = vunpack.c.h.bf16 %v1153
    %s1156 = scalar_lea.vmem [#allocation1], 832
    %1157 = vst [vmem:[%s1156] sm:%s5] %v1154
    %s1158 = smul.addr 4, 103
    %s1159 = scalar_lea.vmem %s0, %s1158
    %s1160 = sshrl.u32 %s5, 1
    %s1161 = sor.u32 %s5, %s1160
    %s1162 = sand.u32 %s1161, 85
    %s1163 = sshrl.u32 %s1162, 1
    %s1164 = sor.u32 %s1162, %s1163
    %s1165 = sand.u32 51, %s1164
    %s1166 = sshrl.u32 %s1165, 2
    %s1167 = sor.u32 %s1165, %s1166
    %s1168 = sand.u32 15, %s1167
    %v1169 = vld [vmem:[%s1159] sm:%s1168]
    %v1170 = vunpack.c.l.bf16 %v1169
    %v1171 = vunpack.c.h.bf16 %v1169
    %s1172 = scalar_lea.vmem [#allocation1], 824
    %1173 = vst [vmem:[%s1172] sm:%s5] %v1170
    %s1174 = smul.addr 4, 102
    %s1175 = scalar_lea.vmem %s0, %s1174
    %s1176 = sshrl.u32 %s5, 1
    %s1177 = sor.u32 %s5, %s1176
    %s1178 = sand.u32 %s1177, 85
    %s1179 = sshrl.u32 %s1178, 1
    %s1180 = sor.u32 %s1178, %s1179
    %s1181 = sand.u32 51, %s1180
    %s1182 = sshrl.u32 %s1181, 2
    %s1183 = sor.u32 %s1181, %s1182
    %s1184 = sand.u32 15, %s1183
    %v1185 = vld [vmem:[%s1175] sm:%s1184]
    %v1186 = vunpack.c.l.bf16 %v1185
    %v1187 = vunpack.c.h.bf16 %v1185
    %s1188 = scalar_lea.vmem [#allocation1], 816
    %1189 = vst [vmem:[%s1188] sm:%s5] %v1186
    %s1190 = smul.addr 4, 101
    %s1191 = scalar_lea.vmem %s0, %s1190
    %s1192 = sshrl.u32 %s5, 1
    %s1193 = sor.u32 %s5, %s1192
    %s1194 = sand.u32 %s1193, 85
    %s1195 = sshrl.u32 %s1194, 1
    %s1196 = sor.u32 %s1194, %s1195
    %s1197 = sand.u32 51, %s1196
    %s1198 = sshrl.u32 %s1197, 2
    %s1199 = sor.u32 %s1197, %s1198
    %s1200 = sand.u32 15, %s1199
    %v1201 = vld [vmem:[%s1191] sm:%s1200]
    %v1202 = vunpack.c.l.bf16 %v1201
    %v1203 = vunpack.c.h.bf16 %v1201
    %s1204 = scalar_lea.vmem [#allocation1], 808
    %1205 = vst [vmem:[%s1204] sm:%s5] %v1202
    %s1206 = smul.addr 4, 100
    %s1207 = scalar_lea.vmem %s0, %s1206
    %s1208 = sshrl.u32 %s5, 1
    %s1209 = sor.u32 %s5, %s1208
    %s1210 = sand.u32 %s1209, 85
    %s1211 = sshrl.u32 %s1210, 1
    %s1212 = sor.u32 %s1210, %s1211
    %s1213 = sand.u32 51, %s1212
    %s1214 = sshrl.u32 %s1213, 2
    %s1215 = sor.u32 %s1213, %s1214
    %s1216 = sand.u32 15, %s1215
    %v1217 = vld [vmem:[%s1207] sm:%s1216]
    %v1218 = vunpack.c.l.bf16 %v1217
    %v1219 = vunpack.c.h.bf16 %v1217
    %s1220 = scalar_lea.vmem [#allocation1], 800
    %1221 = vst [vmem:[%s1220] sm:%s5] %v1218
    %s1222 = smul.addr 4, 99
    %s1223 = scalar_lea.vmem %s0, %s1222
    %s1224 = sshrl.u32 %s5, 1
    %s1225 = sor.u32 %s5, %s1224
    %s1226 = sand.u32 %s1225, 85
    %s1227 = sshrl.u32 %s1226, 1
    %s1228 = sor.u32 %s1226, %s1227
    %s1229 = sand.u32 51, %s1228
    %s1230 = sshrl.u32 %s1229, 2
    %s1231 = sor.u32 %s1229, %s1230
    %s1232 = sand.u32 15, %s1231
    %v1233 = vld [vmem:[%s1223] sm:%s1232]
    %v1234 = vunpack.c.l.bf16 %v1233
    %v1235 = vunpack.c.h.bf16 %v1233
    %s1236 = scalar_lea.vmem [#allocation1], 792
    %1237 = vst [vmem:[%s1236] sm:%s5] %v1234
    %s1238 = smul.addr 4, 98
    %s1239 = scalar_lea.vmem %s0, %s1238
    %s1240 = sshrl.u32 %s5, 1
    %s1241 = sor.u32 %s5, %s1240
    %s1242 = sand.u32 %s1241, 85
    %s1243 = sshrl.u32 %s1242, 1
    %s1244 = sor.u32 %s1242, %s1243
    %s1245 = sand.u32 51, %s1244
    %s1246 = sshrl.u32 %s1245, 2
    %s1247 = sor.u32 %s1245, %s1246
    %s1248 = sand.u32 15, %s1247
    %v1249 = vld [vmem:[%s1239] sm:%s1248]
    %v1250 = vunpack.c.l.bf16 %v1249
    %v1251 = vunpack.c.h.bf16 %v1249
    %s1252 = scalar_lea.vmem [#allocation1], 784
    %1253 = vst [vmem:[%s1252] sm:%s5] %v1250
    %s1254 = smul.addr 4, 97
    %s1255 = scalar_lea.vmem %s0, %s1254
    %s1256 = sshrl.u32 %s5, 1
    %s1257 = sor.u32 %s5, %s1256
    %s1258 = sand.u32 %s1257, 85
    %s1259 = sshrl.u32 %s1258, 1
    %s1260 = sor.u32 %s1258, %s1259
    %s1261 = sand.u32 51, %s1260
    %s1262 = sshrl.u32 %s1261, 2
    %s1263 = sor.u32 %s1261, %s1262
    %s1264 = sand.u32 15, %s1263
    %v1265 = vld [vmem:[%s1255] sm:%s1264]
    %v1266 = vunpack.c.l.bf16 %v1265
    %v1267 = vunpack.c.h.bf16 %v1265
    %s1268 = scalar_lea.vmem [#allocation1], 776
    %1269 = vst [vmem:[%s1268] sm:%s5] %v1266
    %s1270 = smul.addr 4, 96
    %s1271 = scalar_lea.vmem %s0, %s1270
    %s1272 = sshrl.u32 %s5, 1
    %s1273 = sor.u32 %s5, %s1272
    %s1274 = sand.u32 %s1273, 85
    %s1275 = sshrl.u32 %s1274, 1
    %s1276 = sor.u32 %s1274, %s1275
    %s1277 = sand.u32 51, %s1276
    %s1278 = sshrl.u32 %s1277, 2
    %s1279 = sor.u32 %s1277, %s1278
    %s1280 = sand.u32 15, %s1279
    %v1281 = vld [vmem:[%s1271] sm:%s1280]
    %v1282 = vunpack.c.l.bf16 %v1281
    %v1283 = vunpack.c.h.bf16 %v1281
    %s1284 = scalar_lea.vmem [#allocation1], 768
    %1285 = vst [vmem:[%s1284] sm:%s5] %v1282
    %s1286 = smul.addr 4, 95
    %s1287 = scalar_lea.vmem %s0, %s1286
    %s1288 = sshrl.u32 %s5, 1
    %s1289 = sor.u32 %s5, %s1288
    %s1290 = sand.u32 %s1289, 85
    %s1291 = sshrl.u32 %s1290, 1
    %s1292 = sor.u32 %s1290, %s1291
    %s1293 = sand.u32 51, %s1292
    %s1294 = sshrl.u32 %s1293, 2
    %s1295 = sor.u32 %s1293, %s1294
    %s1296 = sand.u32 15, %s1295
    %v1297 = vld [vmem:[%s1287] sm:%s1296]
    %v1298 = vunpack.c.l.bf16 %v1297
    %v1299 = vunpack.c.h.bf16 %v1297
    %s1300 = scalar_lea.vmem [#allocation1], 760
    %1301 = vst [vmem:[%s1300] sm:%s5] %v1298
    %s1302 = smul.addr 4, 94
    %s1303 = scalar_lea.vmem %s0, %s1302
    %s1304 = sshrl.u32 %s5, 1
    %s1305 = sor.u32 %s5, %s1304
    %s1306 = sand.u32 %s1305, 85
    %s1307 = sshrl.u32 %s1306, 1
    %s1308 = sor.u32 %s1306, %s1307
    %s1309 = sand.u32 51, %s1308
    %s1310 = sshrl.u32 %s1309, 2
    %s1311 = sor.u32 %s1309, %s1310
    %s1312 = sand.u32 15, %s1311
    %v1313 = vld [vmem:[%s1303] sm:%s1312]
    %v1314 = vunpack.c.l.bf16 %v1313
    %v1315 = vunpack.c.h.bf16 %v1313
    %s1316 = scalar_lea.vmem [#allocation1], 752
    %1317 = vst [vmem:[%s1316] sm:%s5] %v1314
    %s1318 = smul.addr 4, 93
    %s1319 = scalar_lea.vmem %s0, %s1318
    %s1320 = sshrl.u32 %s5, 1
    %s1321 = sor.u32 %s5, %s1320
    %s1322 = sand.u32 %s1321, 85
    %s1323 = sshrl.u32 %s1322, 1
    %s1324 = sor.u32 %s1322, %s1323
    %s1325 = sand.u32 51, %s1324
    %s1326 = sshrl.u32 %s1325, 2
    %s1327 = sor.u32 %s1325, %s1326
    %s1328 = sand.u32 15, %s1327
    %v1329 = vld [vmem:[%s1319] sm:%s1328]
    %v1330 = vunpack.c.l.bf16 %v1329
    %v1331 = vunpack.c.h.bf16 %v1329
    %s1332 = scalar_lea.vmem [#allocation1], 744
    %1333 = vst [vmem:[%s1332] sm:%s5] %v1330
    %s1334 = smul.addr 4, 92
    %s1335 = scalar_lea.vmem %s0, %s1334
    %s1336 = sshrl.u32 %s5, 1
    %s1337 = sor.u32 %s5, %s1336
    %s1338 = sand.u32 %s1337, 85
    %s1339 = sshrl.u32 %s1338, 1
    %s1340 = sor.u32 %s1338, %s1339
    %s1341 = sand.u32 51, %s1340
    %s1342 = sshrl.u32 %s1341, 2
    %s1343 = sor.u32 %s1341, %s1342
    %s1344 = sand.u32 15, %s1343
    %v1345 = vld [vmem:[%s1335] sm:%s1344]
    %v1346 = vunpack.c.l.bf16 %v1345
    %v1347 = vunpack.c.h.bf16 %v1345
    %s1348 = scalar_lea.vmem [#allocation1], 736
    %1349 = vst [vmem:[%s1348] sm:%s5] %v1346
    %s1350 = smul.addr 4, 91
    %s1351 = scalar_lea.vmem %s0, %s1350
    %s1352 = sshrl.u32 %s5, 1
    %s1353 = sor.u32 %s5, %s1352
    %s1354 = sand.u32 %s1353, 85
    %s1355 = sshrl.u32 %s1354, 1
    %s1356 = sor.u32 %s1354, %s1355
    %s1357 = sand.u32 51, %s1356
    %s1358 = sshrl.u32 %s1357, 2
    %s1359 = sor.u32 %s1357, %s1358
    %s1360 = sand.u32 15, %s1359
    %v1361 = vld [vmem:[%s1351] sm:%s1360]
    %v1362 = vunpack.c.l.bf16 %v1361
    %v1363 = vunpack.c.h.bf16 %v1361
    %s1364 = scalar_lea.vmem [#allocation1], 728
    %1365 = vst [vmem:[%s1364] sm:%s5] %v1362
    %s1366 = smul.addr 4, 90
    %s1367 = scalar_lea.vmem %s0, %s1366
    %s1368 = sshrl.u32 %s5, 1
    %s1369 = sor.u32 %s5, %s1368
    %s1370 = sand.u32 %s1369, 85
    %s1371 = sshrl.u32 %s1370, 1
    %s1372 = sor.u32 %s1370, %s1371
    %s1373 = sand.u32 51, %s1372
    %s1374 = sshrl.u32 %s1373, 2
    %s1375 = sor.u32 %s1373, %s1374
    %s1376 = sand.u32 15, %s1375
    %v1377 = vld [vmem:[%s1367] sm:%s1376]
    %v1378 = vunpack.c.l.bf16 %v1377
    %v1379 = vunpack.c.h.bf16 %v1377
    %s1380 = scalar_lea.vmem [#allocation1], 720
    %1381 = vst [vmem:[%s1380] sm:%s5] %v1378
    %s1382 = smul.addr 4, 89
    %s1383 = scalar_lea.vmem %s0, %s1382
    %s1384 = sshrl.u32 %s5, 1
    %s1385 = sor.u32 %s5, %s1384
    %s1386 = sand.u32 %s1385, 85
    %s1387 = sshrl.u32 %s1386, 1
    %s1388 = sor.u32 %s1386, %s1387
    %s1389 = sand.u32 51, %s1388
    %s1390 = sshrl.u32 %s1389, 2
    %s1391 = sor.u32 %s1389, %s1390
    %s1392 = sand.u32 15, %s1391
    %v1393 = vld [vmem:[%s1383] sm:%s1392]
    %v1394 = vunpack.c.l.bf16 %v1393
    %v1395 = vunpack.c.h.bf16 %v1393
    %s1396 = scalar_lea.vmem [#allocation1], 712
    %1397 = vst [vmem:[%s1396] sm:%s5] %v1394
    %s1398 = smul.addr 4, 88
    %s1399 = scalar_lea.vmem %s0, %s1398
    %s1400 = sshrl.u32 %s5, 1
    %s1401 = sor.u32 %s5, %s1400
    %s1402 = sand.u32 %s1401, 85
    %s1403 = sshrl.u32 %s1402, 1
    %s1404 = sor.u32 %s1402, %s1403
    %s1405 = sand.u32 51, %s1404
    %s1406 = sshrl.u32 %s1405, 2
    %s1407 = sor.u32 %s1405, %s1406
    %s1408 = sand.u32 15, %s1407
    %v1409 = vld [vmem:[%s1399] sm:%s1408]
    %v1410 = vunpack.c.l.bf16 %v1409
    %v1411 = vunpack.c.h.bf16 %v1409
    %s1412 = scalar_lea.vmem [#allocation1], 704
    %1413 = vst [vmem:[%s1412] sm:%s5] %v1410
    %s1414 = smul.addr 4, 87
    %s1415 = scalar_lea.vmem %s0, %s1414
    %s1416 = sshrl.u32 %s5, 1
    %s1417 = sor.u32 %s5, %s1416
    %s1418 = sand.u32 %s1417, 85
    %s1419 = sshrl.u32 %s1418, 1
    %s1420 = sor.u32 %s1418, %s1419
    %s1421 = sand.u32 51, %s1420
    %s1422 = sshrl.u32 %s1421, 2
    %s1423 = sor.u32 %s1421, %s1422
    %s1424 = sand.u32 15, %s1423
    %v1425 = vld [vmem:[%s1415] sm:%s1424]
    %v1426 = vunpack.c.l.bf16 %v1425
    %v1427 = vunpack.c.h.bf16 %v1425
    %s1428 = scalar_lea.vmem [#allocation1], 696
    %1429 = vst [vmem:[%s1428] sm:%s5] %v1426
    %s1430 = smul.addr 4, 86
    %s1431 = scalar_lea.vmem %s0, %s1430
    %s1432 = sshrl.u32 %s5, 1
    %s1433 = sor.u32 %s5, %s1432
    %s1434 = sand.u32 %s1433, 85
    %s1435 = sshrl.u32 %s1434, 1
    %s1436 = sor.u32 %s1434, %s1435
    %s1437 = sand.u32 51, %s1436
    %s1438 = sshrl.u32 %s1437, 2
    %s1439 = sor.u32 %s1437, %s1438
    %s1440 = sand.u32 15, %s1439
    %v1441 = vld [vmem:[%s1431] sm:%s1440]
    %v1442 = vunpack.c.l.bf16 %v1441
    %v1443 = vunpack.c.h.bf16 %v1441
    %s1444 = scalar_lea.vmem [#allocation1], 688
    %1445 = vst [vmem:[%s1444] sm:%s5] %v1442
    %s1446 = smul.addr 4, 85
    %s1447 = scalar_lea.vmem %s0, %s1446
    %s1448 = sshrl.u32 %s5, 1
    %s1449 = sor.u32 %s5, %s1448
    %s1450 = sand.u32 %s1449, 85
    %s1451 = sshrl.u32 %s1450, 1
    %s1452 = sor.u32 %s1450, %s1451
    %s1453 = sand.u32 51, %s1452
    %s1454 = sshrl.u32 %s1453, 2
    %s1455 = sor.u32 %s1453, %s1454
    %s1456 = sand.u32 15, %s1455
    %v1457 = vld [vmem:[%s1447] sm:%s1456]
    %v1458 = vunpack.c.l.bf16 %v1457
    %v1459 = vunpack.c.h.bf16 %v1457
    %s1460 = scalar_lea.vmem [#allocation1], 680
    %1461 = vst [vmem:[%s1460] sm:%s5] %v1458
    %s1462 = smul.addr 4, 84
    %s1463 = scalar_lea.vmem %s0, %s1462
    %s1464 = sshrl.u32 %s5, 1
    %s1465 = sor.u32 %s5, %s1464
    %s1466 = sand.u32 %s1465, 85
    %s1467 = sshrl.u32 %s1466, 1
    %s1468 = sor.u32 %s1466, %s1467
    %s1469 = sand.u32 51, %s1468
    %s1470 = sshrl.u32 %s1469, 2
    %s1471 = sor.u32 %s1469, %s1470
    %s1472 = sand.u32 15, %s1471
    %v1473 = vld [vmem:[%s1463] sm:%s1472]
    %v1474 = vunpack.c.l.bf16 %v1473
    %v1475 = vunpack.c.h.bf16 %v1473
    %s1476 = scalar_lea.vmem [#allocation1], 672
    %1477 = vst [vmem:[%s1476] sm:%s5] %v1474
    %s1478 = smul.addr 4, 83
    %s1479 = scalar_lea.vmem %s0, %s1478
    %s1480 = sshrl.u32 %s5, 1
    %s1481 = sor.u32 %s5, %s1480
    %s1482 = sand.u32 %s1481, 85
    %s1483 = sshrl.u32 %s1482, 1
    %s1484 = sor.u32 %s1482, %s1483
    %s1485 = sand.u32 51, %s1484
    %s1486 = sshrl.u32 %s1485, 2
    %s1487 = sor.u32 %s1485, %s1486
    %s1488 = sand.u32 15, %s1487
    %v1489 = vld [vmem:[%s1479] sm:%s1488]
    %v1490 = vunpack.c.l.bf16 %v1489
    %v1491 = vunpack.c.h.bf16 %v1489
    %s1492 = scalar_lea.vmem [#allocation1], 664
    %1493 = vst [vmem:[%s1492] sm:%s5] %v1490
    %s1494 = smul.addr 4, 82
    %s1495 = scalar_lea.vmem %s0, %s1494
    %s1496 = sshrl.u32 %s5, 1
    %s1497 = sor.u32 %s5, %s1496
    %s1498 = sand.u32 %s1497, 85
    %s1499 = sshrl.u32 %s1498, 1
    %s1500 = sor.u32 %s1498, %s1499
    %s1501 = sand.u32 51, %s1500
    %s1502 = sshrl.u32 %s1501, 2
    %s1503 = sor.u32 %s1501, %s1502
    %s1504 = sand.u32 15, %s1503
    %v1505 = vld [vmem:[%s1495] sm:%s1504]
    %v1506 = vunpack.c.l.bf16 %v1505
    %v1507 = vunpack.c.h.bf16 %v1505
    %s1508 = scalar_lea.vmem [#allocation1], 656
    %1509 = vst [vmem:[%s1508] sm:%s5] %v1506
    %s1510 = smul.addr 4, 81
    %s1511 = scalar_lea.vmem %s0, %s1510
    %s1512 = sshrl.u32 %s5, 1
    %s1513 = sor.u32 %s5, %s1512
    %s1514 = sand.u32 %s1513, 85
    %s1515 = sshrl.u32 %s1514, 1
    %s1516 = sor.u32 %s1514, %s1515
    %s1517 = sand.u32 51, %s1516
    %s1518 = sshrl.u32 %s1517, 2
    %s1519 = sor.u32 %s1517, %s1518
    %s1520 = sand.u32 15, %s1519
    %v1521 = vld [vmem:[%s1511] sm:%s1520]
    %v1522 = vunpack.c.l.bf16 %v1521
    %v1523 = vunpack.c.h.bf16 %v1521
    %s1524 = scalar_lea.vmem [#allocation1], 648
    %1525 = vst [vmem:[%s1524] sm:%s5] %v1522
    %s1526 = smul.addr 4, 80
    %s1527 = scalar_lea.vmem %s0, %s1526
    %s1528 = sshrl.u32 %s5, 1
    %s1529 = sor.u32 %s5, %s1528
    %s1530 = sand.u32 %s1529, 85
    %s1531 = sshrl.u32 %s1530, 1
    %s1532 = sor.u32 %s1530, %s1531
    %s1533 = sand.u32 51, %s1532
    %s1534 = sshrl.u32 %s1533, 2
    %s1535 = sor.u32 %s1533, %s1534
    %s1536 = sand.u32 15, %s1535
    %v1537 = vld [vmem:[%s1527] sm:%s1536]
    %v1538 = vunpack.c.l.bf16 %v1537
    %v1539 = vunpack.c.h.bf16 %v1537
    %s1540 = scalar_lea.vmem [#allocation1], 640
    %1541 = vst [vmem:[%s1540] sm:%s5] %v1538
    %s1542 = smul.addr 4, 79
    %s1543 = scalar_lea.vmem %s0, %s1542
    %s1544 = sshrl.u32 %s5, 1
    %s1545 = sor.u32 %s5, %s1544
    %s1546 = sand.u32 %s1545, 85
    %s1547 = sshrl.u32 %s1546, 1
    %s1548 = sor.u32 %s1546, %s1547
    %s1549 = sand.u32 51, %s1548
    %s1550 = sshrl.u32 %s1549, 2
    %s1551 = sor.u32 %s1549, %s1550
    %s1552 = sand.u32 15, %s1551
    %v1553 = vld [vmem:[%s1543] sm:%s1552]
    %v1554 = vunpack.c.l.bf16 %v1553
    %v1555 = vunpack.c.h.bf16 %v1553
    %s1556 = scalar_lea.vmem [#allocation1], 632
    %1557 = vst [vmem:[%s1556] sm:%s5] %v1554
    %s1558 = smul.addr 4, 78
    %s1559 = scalar_lea.vmem %s0, %s1558
    %s1560 = sshrl.u32 %s5, 1
    %s1561 = sor.u32 %s5, %s1560
    %s1562 = sand.u32 %s1561, 85
    %s1563 = sshrl.u32 %s1562, 1
    %s1564 = sor.u32 %s1562, %s1563
    %s1565 = sand.u32 51, %s1564
    %s1566 = sshrl.u32 %s1565, 2
    %s1567 = sor.u32 %s1565, %s1566
    %s1568 = sand.u32 15, %s1567
    %v1569 = vld [vmem:[%s1559] sm:%s1568]
    %v1570 = vunpack.c.l.bf16 %v1569
    %v1571 = vunpack.c.h.bf16 %v1569
    %s1572 = scalar_lea.vmem [#allocation1], 624
    %1573 = vst [vmem:[%s1572] sm:%s5] %v1570
    %s1574 = smul.addr 4, 77
    %s1575 = scalar_lea.vmem %s0, %s1574
    %s1576 = sshrl.u32 %s5, 1
    %s1577 = sor.u32 %s5, %s1576
    %s1578 = sand.u32 %s1577, 85
    %s1579 = sshrl.u32 %s1578, 1
    %s1580 = sor.u32 %s1578, %s1579
    %s1581 = sand.u32 51, %s1580
    %s1582 = sshrl.u32 %s1581, 2
    %s1583 = sor.u32 %s1581, %s1582
    %s1584 = sand.u32 15, %s1583
    %v1585 = vld [vmem:[%s1575] sm:%s1584]
    %v1586 = vunpack.c.l.bf16 %v1585
    %v1587 = vunpack.c.h.bf16 %v1585
    %s1588 = scalar_lea.vmem [#allocation1], 616
    %1589 = vst [vmem:[%s1588] sm:%s5] %v1586
    %s1590 = smul.addr 4, 76
    %s1591 = scalar_lea.vmem %s0, %s1590
    %s1592 = sshrl.u32 %s5, 1
    %s1593 = sor.u32 %s5, %s1592
    %s1594 = sand.u32 %s1593, 85
    %s1595 = sshrl.u32 %s1594, 1
    %s1596 = sor.u32 %s1594, %s1595
    %s1597 = sand.u32 51, %s1596
    %s1598 = sshrl.u32 %s1597, 2
    %s1599 = sor.u32 %s1597, %s1598
    %s1600 = sand.u32 15, %s1599
    %v1601 = vld [vmem:[%s1591] sm:%s1600]
    %v1602 = vunpack.c.l.bf16 %v1601
    %v1603 = vunpack.c.h.bf16 %v1601
    %s1604 = scalar_lea.vmem [#allocation1], 608
    %1605 = vst [vmem:[%s1604] sm:%s5] %v1602
    %s1606 = smul.addr 4, 75
    %s1607 = scalar_lea.vmem %s0, %s1606
    %s1608 = sshrl.u32 %s5, 1
    %s1609 = sor.u32 %s5, %s1608
    %s1610 = sand.u32 %s1609, 85
    %s1611 = sshrl.u32 %s1610, 1
    %s1612 = sor.u32 %s1610, %s1611
    %s1613 = sand.u32 51, %s1612
    %s1614 = sshrl.u32 %s1613, 2
    %s1615 = sor.u32 %s1613, %s1614
    %s1616 = sand.u32 15, %s1615
    %v1617 = vld [vmem:[%s1607] sm:%s1616]
    %v1618 = vunpack.c.l.bf16 %v1617
    %v1619 = vunpack.c.h.bf16 %v1617
    %s1620 = scalar_lea.vmem [#allocation1], 600
    %1621 = vst [vmem:[%s1620] sm:%s5] %v1618
    %s1622 = smul.addr 4, 74
    %s1623 = scalar_lea.vmem %s0, %s1622
    %s1624 = sshrl.u32 %s5, 1
    %s1625 = sor.u32 %s5, %s1624
    %s1626 = sand.u32 %s1625, 85
    %s1627 = sshrl.u32 %s1626, 1
    %s1628 = sor.u32 %s1626, %s1627
    %s1629 = sand.u32 51, %s1628
    %s1630 = sshrl.u32 %s1629, 2
    %s1631 = sor.u32 %s1629, %s1630
    %s1632 = sand.u32 15, %s1631
    %v1633 = vld [vmem:[%s1623] sm:%s1632]
    %v1634 = vunpack.c.l.bf16 %v1633
    %v1635 = vunpack.c.h.bf16 %v1633
    %s1636 = scalar_lea.vmem [#allocation1], 592
    %1637 = vst [vmem:[%s1636] sm:%s5] %v1634
    %s1638 = smul.addr 4, 73
    %s1639 = scalar_lea.vmem %s0, %s1638
    %s1640 = sshrl.u32 %s5, 1
    %s1641 = sor.u32 %s5, %s1640
    %s1642 = sand.u32 %s1641, 85
    %s1643 = sshrl.u32 %s1642, 1
    %s1644 = sor.u32 %s1642, %s1643
    %s1645 = sand.u32 51, %s1644
    %s1646 = sshrl.u32 %s1645, 2
    %s1647 = sor.u32 %s1645, %s1646
    %s1648 = sand.u32 15, %s1647
    %v1649 = vld [vmem:[%s1639] sm:%s1648]
    %v1650 = vunpack.c.l.bf16 %v1649
    %v1651 = vunpack.c.h.bf16 %v1649
    %s1652 = scalar_lea.vmem [#allocation1], 584
    %1653 = vst [vmem:[%s1652] sm:%s5] %v1650
    %s1654 = smul.addr 4, 72
    %s1655 = scalar_lea.vmem %s0, %s1654
    %s1656 = sshrl.u32 %s5, 1
    %s1657 = sor.u32 %s5, %s1656
    %s1658 = sand.u32 %s1657, 85
    %s1659 = sshrl.u32 %s1658, 1
    %s1660 = sor.u32 %s1658, %s1659
    %s1661 = sand.u32 51, %s1660
    %s1662 = sshrl.u32 %s1661, 2
    %s1663 = sor.u32 %s1661, %s1662
    %s1664 = sand.u32 15, %s1663
    %v1665 = vld [vmem:[%s1655] sm:%s1664]
    %v1666 = vunpack.c.l.bf16 %v1665
    %v1667 = vunpack.c.h.bf16 %v1665
    %s1668 = scalar_lea.vmem [#allocation1], 576
    %1669 = vst [vmem:[%s1668] sm:%s5] %v1666
    %s1670 = smul.addr 4, 71
    %s1671 = scalar_lea.vmem %s0, %s1670
    %s1672 = sshrl.u32 %s5, 1
    %s1673 = sor.u32 %s5, %s1672
    %s1674 = sand.u32 %s1673, 85
    %s1675 = sshrl.u32 %s1674, 1
    %s1676 = sor.u32 %s1674, %s1675
    %s1677 = sand.u32 51, %s1676
    %s1678 = sshrl.u32 %s1677, 2
    %s1679 = sor.u32 %s1677, %s1678
    %s1680 = sand.u32 15, %s1679
    %v1681 = vld [vmem:[%s1671] sm:%s1680]
    %v1682 = vunpack.c.l.bf16 %v1681
    %v1683 = vunpack.c.h.bf16 %v1681
    %s1684 = scalar_lea.vmem [#allocation1], 568
    %1685 = vst [vmem:[%s1684] sm:%s5] %v1682
    %s1686 = smul.addr 4, 70
    %s1687 = scalar_lea.vmem %s0, %s1686
    %s1688 = sshrl.u32 %s5, 1
    %s1689 = sor.u32 %s5, %s1688
    %s1690 = sand.u32 %s1689, 85
    %s1691 = sshrl.u32 %s1690, 1
    %s1692 = sor.u32 %s1690, %s1691
    %s1693 = sand.u32 51, %s1692
    %s1694 = sshrl.u32 %s1693, 2
    %s1695 = sor.u32 %s1693, %s1694
    %s1696 = sand.u32 15, %s1695
    %v1697 = vld [vmem:[%s1687] sm:%s1696]
    %v1698 = vunpack.c.l.bf16 %v1697
    %v1699 = vunpack.c.h.bf16 %v1697
    %s1700 = scalar_lea.vmem [#allocation1], 560
    %1701 = vst [vmem:[%s1700] sm:%s5] %v1698
    %s1702 = smul.addr 4, 69
    %s1703 = scalar_lea.vmem %s0, %s1702
    %s1704 = sshrl.u32 %s5, 1
    %s1705 = sor.u32 %s5, %s1704
    %s1706 = sand.u32 %s1705, 85
    %s1707 = sshrl.u32 %s1706, 1
    %s1708 = sor.u32 %s1706, %s1707
    %s1709 = sand.u32 51, %s1708
    %s1710 = sshrl.u32 %s1709, 2
    %s1711 = sor.u32 %s1709, %s1710
    %s1712 = sand.u32 15, %s1711
    %v1713 = vld [vmem:[%s1703] sm:%s1712]
    %v1714 = vunpack.c.l.bf16 %v1713
    %v1715 = vunpack.c.h.bf16 %v1713
    %s1716 = scalar_lea.vmem [#allocation1], 552
    %1717 = vst [vmem:[%s1716] sm:%s5] %v1714
    %s1718 = smul.addr 4, 68
    %s1719 = scalar_lea.vmem %s0, %s1718
    %s1720 = sshrl.u32 %s5, 1
    %s1721 = sor.u32 %s5, %s1720
    %s1722 = sand.u32 %s1721, 85
    %s1723 = sshrl.u32 %s1722, 1
    %s1724 = sor.u32 %s1722, %s1723
    %s1725 = sand.u32 51, %s1724
    %s1726 = sshrl.u32 %s1725, 2
    %s1727 = sor.u32 %s1725, %s1726
    %s1728 = sand.u32 15, %s1727
    %v1729 = vld [vmem:[%s1719] sm:%s1728]
    %v1730 = vunpack.c.l.bf16 %v1729
    %v1731 = vunpack.c.h.bf16 %v1729
    %s1732 = scalar_lea.vmem [#allocation1], 544
    %1733 = vst [vmem:[%s1732] sm:%s5] %v1730
    %s1734 = smul.addr 4, 67
    %s1735 = scalar_lea.vmem %s0, %s1734
    %s1736 = sshrl.u32 %s5, 1
    %s1737 = sor.u32 %s5, %s1736
    %s1738 = sand.u32 %s1737, 85
    %s1739 = sshrl.u32 %s1738, 1
    %s1740 = sor.u32 %s1738, %s1739
    %s1741 = sand.u32 51, %s1740
    %s1742 = sshrl.u32 %s1741, 2
    %s1743 = sor.u32 %s1741, %s1742
    %s1744 = sand.u32 15, %s1743
    %v1745 = vld [vmem:[%s1735] sm:%s1744]
    %v1746 = vunpack.c.l.bf16 %v1745
    %v1747 = vunpack.c.h.bf16 %v1745
    %s1748 = scalar_lea.vmem [#allocation1], 536
    %1749 = vst [vmem:[%s1748] sm:%s5] %v1746
    %s1750 = smul.addr 4, 66
    %s1751 = scalar_lea.vmem %s0, %s1750
    %s1752 = sshrl.u32 %s5, 1
    %s1753 = sor.u32 %s5, %s1752
    %s1754 = sand.u32 %s1753, 85
    %s1755 = sshrl.u32 %s1754, 1
    %s1756 = sor.u32 %s1754, %s1755
    %s1757 = sand.u32 51, %s1756
    %s1758 = sshrl.u32 %s1757, 2
    %s1759 = sor.u32 %s1757, %s1758
    %s1760 = sand.u32 15, %s1759
    %v1761 = vld [vmem:[%s1751] sm:%s1760]
    %v1762 = vunpack.c.l.bf16 %v1761
    %v1763 = vunpack.c.h.bf16 %v1761
    %s1764 = scalar_lea.vmem [#allocation1], 528
    %1765 = vst [vmem:[%s1764] sm:%s5] %v1762
    %s1766 = smul.addr 4, 65
    %s1767 = scalar_lea.vmem %s0, %s1766
    %s1768 = sshrl.u32 %s5, 1
    %s1769 = sor.u32 %s5, %s1768
    %s1770 = sand.u32 %s1769, 85
    %s1771 = sshrl.u32 %s1770, 1
    %s1772 = sor.u32 %s1770, %s1771
    %s1773 = sand.u32 51, %s1772
    %s1774 = sshrl.u32 %s1773, 2
    %s1775 = sor.u32 %s1773, %s1774
    %s1776 = sand.u32 15, %s1775
    %v1777 = vld [vmem:[%s1767] sm:%s1776]
    %v1778 = vunpack.c.l.bf16 %v1777
    %v1779 = vunpack.c.h.bf16 %v1777
    %s1780 = scalar_lea.vmem [#allocation1], 520
    %1781 = vst [vmem:[%s1780] sm:%s5] %v1778
    %s1782 = smul.addr 4, 64
    %s1783 = scalar_lea.vmem %s0, %s1782
    %s1784 = sshrl.u32 %s5, 1
    %s1785 = sor.u32 %s5, %s1784
    %s1786 = sand.u32 %s1785, 85
    %s1787 = sshrl.u32 %s1786, 1
    %s1788 = sor.u32 %s1786, %s1787
    %s1789 = sand.u32 51, %s1788
    %s1790 = sshrl.u32 %s1789, 2
    %s1791 = sor.u32 %s1789, %s1790
    %s1792 = sand.u32 15, %s1791
    %v1793 = vld [vmem:[%s1783] sm:%s1792]
    %v1794 = vunpack.c.l.bf16 %v1793
    %v1795 = vunpack.c.h.bf16 %v1793
    %s1796 = scalar_lea.vmem [#allocation1], 512
    %1797 = vst [vmem:[%s1796] sm:%s5] %v1794
    %s1798 = smul.addr 4, 63
    %s1799 = scalar_lea.vmem %s0, %s1798
    %s1800 = sshrl.u32 %s5, 1
    %s1801 = sor.u32 %s5, %s1800
    %s1802 = sand.u32 %s1801, 85
    %s1803 = sshrl.u32 %s1802, 1
    %s1804 = sor.u32 %s1802, %s1803
    %s1805 = sand.u32 51, %s1804
    %s1806 = sshrl.u32 %s1805, 2
    %s1807 = sor.u32 %s1805, %s1806
    %s1808 = sand.u32 15, %s1807
    %v1809 = vld [vmem:[%s1799] sm:%s1808]
    %v1810 = vunpack.c.l.bf16 %v1809
    %v1811 = vunpack.c.h.bf16 %v1809
    %s1812 = scalar_lea.vmem [#allocation1], 504
    %1813 = vst [vmem:[%s1812] sm:%s5] %v1810
    %s1814 = smul.addr 4, 62
    %s1815 = scalar_lea.vmem %s0, %s1814
    %s1816 = sshrl.u32 %s5, 1
    %s1817 = sor.u32 %s5, %s1816
    %s1818 = sand.u32 %s1817, 85
    %s1819 = sshrl.u32 %s1818, 1
    %s1820 = sor.u32 %s1818, %s1819
    %s1821 = sand.u32 51, %s1820
    %s1822 = sshrl.u32 %s1821, 2
    %s1823 = sor.u32 %s1821, %s1822
    %s1824 = sand.u32 15, %s1823
    %v1825 = vld [vmem:[%s1815] sm:%s1824]
    %v1826 = vunpack.c.l.bf16 %v1825
    %v1827 = vunpack.c.h.bf16 %v1825
    %s1828 = scalar_lea.vmem [#allocation1], 496
    %1829 = vst [vmem:[%s1828] sm:%s5] %v1826
    %s1830 = smul.addr 4, 61
    %s1831 = scalar_lea.vmem %s0, %s1830
    %s1832 = sshrl.u32 %s5, 1
    %s1833 = sor.u32 %s5, %s1832
    %s1834 = sand.u32 %s1833, 85
    %s1835 = sshrl.u32 %s1834, 1
    %s1836 = sor.u32 %s1834, %s1835
    %s1837 = sand.u32 51, %s1836
    %s1838 = sshrl.u32 %s1837, 2
    %s1839 = sor.u32 %s1837, %s1838
    %s1840 = sand.u32 15, %s1839
    %v1841 = vld [vmem:[%s1831] sm:%s1840]
    %v1842 = vunpack.c.l.bf16 %v1841
    %v1843 = vunpack.c.h.bf16 %v1841
    %s1844 = scalar_lea.vmem [#allocation1], 488
    %1845 = vst [vmem:[%s1844] sm:%s5] %v1842
    %s1846 = smul.addr 4, 60
    %s1847 = scalar_lea.vmem %s0, %s1846
    %s1848 = sshrl.u32 %s5, 1
    %s1849 = sor.u32 %s5, %s1848
    %s1850 = sand.u32 %s1849, 85
    %s1851 = sshrl.u32 %s1850, 1
    %s1852 = sor.u32 %s1850, %s1851
    %s1853 = sand.u32 51, %s1852
    %s1854 = sshrl.u32 %s1853, 2
    %s1855 = sor.u32 %s1853, %s1854
    %s1856 = sand.u32 15, %s1855
    %v1857 = vld [vmem:[%s1847] sm:%s1856]
    %v1858 = vunpack.c.l.bf16 %v1857
    %v1859 = vunpack.c.h.bf16 %v1857
    %s1860 = scalar_lea.vmem [#allocation1], 480
    %1861 = vst [vmem:[%s1860] sm:%s5] %v1858
    %s1862 = smul.addr 4, 59
    %s1863 = scalar_lea.vmem %s0, %s1862
    %s1864 = sshrl.u32 %s5, 1
    %s1865 = sor.u32 %s5, %s1864
    %s1866 = sand.u32 %s1865, 85
    %s1867 = sshrl.u32 %s1866, 1
    %s1868 = sor.u32 %s1866, %s1867
    %s1869 = sand.u32 51, %s1868
    %s1870 = sshrl.u32 %s1869, 2
    %s1871 = sor.u32 %s1869, %s1870
    %s1872 = sand.u32 15, %s1871
    %v1873 = vld [vmem:[%s1863] sm:%s1872]
    %v1874 = vunpack.c.l.bf16 %v1873
    %v1875 = vunpack.c.h.bf16 %v1873
    %s1876 = scalar_lea.vmem [#allocation1], 472
    %1877 = vst [vmem:[%s1876] sm:%s5] %v1874
    %s1878 = smul.addr 4, 58
    %s1879 = scalar_lea.vmem %s0, %s1878
    %s1880 = sshrl.u32 %s5, 1
    %s1881 = sor.u32 %s5, %s1880
    %s1882 = sand.u32 %s1881, 85
    %s1883 = sshrl.u32 %s1882, 1
    %s1884 = sor.u32 %s1882, %s1883
    %s1885 = sand.u32 51, %s1884
    %s1886 = sshrl.u32 %s1885, 2
    %s1887 = sor.u32 %s1885, %s1886
    %s1888 = sand.u32 15, %s1887
    %v1889 = vld [vmem:[%s1879] sm:%s1888]
    %v1890 = vunpack.c.l.bf16 %v1889
    %v1891 = vunpack.c.h.bf16 %v1889
    %s1892 = scalar_lea.vmem [#allocation1], 464
    %1893 = vst [vmem:[%s1892] sm:%s5] %v1890
    %s1894 = smul.addr 4, 57
    %s1895 = scalar_lea.vmem %s0, %s1894
    %s1896 = sshrl.u32 %s5, 1
    %s1897 = sor.u32 %s5, %s1896
    %s1898 = sand.u32 %s1897, 85
    %s1899 = sshrl.u32 %s1898, 1
    %s1900 = sor.u32 %s1898, %s1899
    %s1901 = sand.u32 51, %s1900
    %s1902 = sshrl.u32 %s1901, 2
    %s1903 = sor.u32 %s1901, %s1902
    %s1904 = sand.u32 15, %s1903
    %v1905 = vld [vmem:[%s1895] sm:%s1904]
    %v1906 = vunpack.c.l.bf16 %v1905
    %v1907 = vunpack.c.h.bf16 %v1905
    %s1908 = scalar_lea.vmem [#allocation1], 456
    %1909 = vst [vmem:[%s1908] sm:%s5] %v1906
    %s1910 = smul.addr 4, 56
    %s1911 = scalar_lea.vmem %s0, %s1910
    %s1912 = sshrl.u32 %s5, 1
    %s1913 = sor.u32 %s5, %s1912
    %s1914 = sand.u32 %s1913, 85
    %s1915 = sshrl.u32 %s1914, 1
    %s1916 = sor.u32 %s1914, %s1915
    %s1917 = sand.u32 51, %s1916
    %s1918 = sshrl.u32 %s1917, 2
    %s1919 = sor.u32 %s1917, %s1918
    %s1920 = sand.u32 15, %s1919
    %v1921 = vld [vmem:[%s1911] sm:%s1920]
    %v1922 = vunpack.c.l.bf16 %v1921
    %v1923 = vunpack.c.h.bf16 %v1921
    %s1924 = scalar_lea.vmem [#allocation1], 448
    %1925 = vst [vmem:[%s1924] sm:%s5] %v1922
    %s1926 = smul.addr 4, 55
    %s1927 = scalar_lea.vmem %s0, %s1926
    %s1928 = sshrl.u32 %s5, 1
    %s1929 = sor.u32 %s5, %s1928
    %s1930 = sand.u32 %s1929, 85
    %s1931 = sshrl.u32 %s1930, 1
    %s1932 = sor.u32 %s1930, %s1931
    %s1933 = sand.u32 51, %s1932
    %s1934 = sshrl.u32 %s1933, 2
    %s1935 = sor.u32 %s1933, %s1934
    %s1936 = sand.u32 15, %s1935
    %v1937 = vld [vmem:[%s1927] sm:%s1936]
    %v1938 = vunpack.c.l.bf16 %v1937
    %v1939 = vunpack.c.h.bf16 %v1937
    %s1940 = scalar_lea.vmem [#allocation1], 440
    %1941 = vst [vmem:[%s1940] sm:%s5] %v1938
    %s1942 = smul.addr 4, 54
    %s1943 = scalar_lea.vmem %s0, %s1942
    %s1944 = sshrl.u32 %s5, 1
    %s1945 = sor.u32 %s5, %s1944
    %s1946 = sand.u32 %s1945, 85
    %s1947 = sshrl.u32 %s1946, 1
    %s1948 = sor.u32 %s1946, %s1947
    %s1949 = sand.u32 51, %s1948
    %s1950 = sshrl.u32 %s1949, 2
    %s1951 = sor.u32 %s1949, %s1950
    %s1952 = sand.u32 15, %s1951
    %v1953 = vld [vmem:[%s1943] sm:%s1952]
    %v1954 = vunpack.c.l.bf16 %v1953
    %v1955 = vunpack.c.h.bf16 %v1953
    %s1956 = scalar_lea.vmem [#allocation1], 432
    %1957 = vst [vmem:[%s1956] sm:%s5] %v1954
    %s1958 = smul.addr 4, 53
    %s1959 = scalar_lea.vmem %s0, %s1958
    %s1960 = sshrl.u32 %s5, 1
    %s1961 = sor.u32 %s5, %s1960
    %s1962 = sand.u32 %s1961, 85
    %s1963 = sshrl.u32 %s1962, 1
    %s1964 = sor.u32 %s1962, %s1963
    %s1965 = sand.u32 51, %s1964
    %s1966 = sshrl.u32 %s1965, 2
    %s1967 = sor.u32 %s1965, %s1966
    %s1968 = sand.u32 15, %s1967
    %v1969 = vld [vmem:[%s1959] sm:%s1968]
    %v1970 = vunpack.c.l.bf16 %v1969
    %v1971 = vunpack.c.h.bf16 %v1969
    %s1972 = scalar_lea.vmem [#allocation1], 424
    %1973 = vst [vmem:[%s1972] sm:%s5] %v1970
    %s1974 = smul.addr 4, 52
    %s1975 = scalar_lea.vmem %s0, %s1974
    %s1976 = sshrl.u32 %s5, 1
    %s1977 = sor.u32 %s5, %s1976
    %s1978 = sand.u32 %s1977, 85
    %s1979 = sshrl.u32 %s1978, 1
    %s1980 = sor.u32 %s1978, %s1979
    %s1981 = sand.u32 51, %s1980
    %s1982 = sshrl.u32 %s1981, 2
    %s1983 = sor.u32 %s1981, %s1982
    %s1984 = sand.u32 15, %s1983
    %v1985 = vld [vmem:[%s1975] sm:%s1984]
    %v1986 = vunpack.c.l.bf16 %v1985
    %v1987 = vunpack.c.h.bf16 %v1985
    %s1988 = scalar_lea.vmem [#allocation1], 416
    %1989 = vst [vmem:[%s1988] sm:%s5] %v1986
    %s1990 = smul.addr 4, 51
    %s1991 = scalar_lea.vmem %s0, %s1990
    %s1992 = sshrl.u32 %s5, 1
    %s1993 = sor.u32 %s5, %s1992
    %s1994 = sand.u32 %s1993, 85
    %s1995 = sshrl.u32 %s1994, 1
    %s1996 = sor.u32 %s1994, %s1995
    %s1997 = sand.u32 51, %s1996
    %s1998 = sshrl.u32 %s1997, 2
    %s1999 = sor.u32 %s1997, %s1998
    %s2000 = sand.u32 15, %s1999
    %v2001 = vld [vmem:[%s1991] sm:%s2000]
    %v2002 = vunpack.c.l.bf16 %v2001
    %v2003 = vunpack.c.h.bf16 %v2001
    %s2004 = scalar_lea.vmem [#allocation1], 408
    %2005 = vst [vmem:[%s2004] sm:%s5] %v2002
    %s2006 = smul.addr 4, 50
    %s2007 = scalar_lea.vmem %s0, %s2006
    %s2008 = sshrl.u32 %s5, 1
    %s2009 = sor.u32 %s5, %s2008
    %s2010 = sand.u32 %s2009, 85
    %s2011 = sshrl.u32 %s2010, 1
    %s2012 = sor.u32 %s2010, %s2011
    %s2013 = sand.u32 51, %s2012
    %s2014 = sshrl.u32 %s2013, 2
    %s2015 = sor.u32 %s2013, %s2014
    %s2016 = sand.u32 15, %s2015
    %v2017 = vld [vmem:[%s2007] sm:%s2016]
    %v2018 = vunpack.c.l.bf16 %v2017
    %v2019 = vunpack.c.h.bf16 %v2017
    %s2020 = scalar_lea.vmem [#allocation1], 400
    %2021 = vst [vmem:[%s2020] sm:%s5] %v2018
    %s2022 = smul.addr 4, 49
    %s2023 = scalar_lea.vmem %s0, %s2022
    %s2024 = sshrl.u32 %s5, 1
    %s2025 = sor.u32 %s5, %s2024
    %s2026 = sand.u32 %s2025, 85
    %s2027 = sshrl.u32 %s2026, 1
    %s2028 = sor.u32 %s2026, %s2027
    %s2029 = sand.u32 51, %s2028
    %s2030 = sshrl.u32 %s2029, 2
    %s2031 = sor.u32 %s2029, %s2030
    %s2032 = sand.u32 15, %s2031
    %v2033 = vld [vmem:[%s2023] sm:%s2032]
    %v2034 = vunpack.c.l.bf16 %v2033
    %v2035 = vunpack.c.h.bf16 %v2033
    %s2036 = scalar_lea.vmem [#allocation1], 392
    %2037 = vst [vmem:[%s2036] sm:%s5] %v2034
    %s2038 = smul.addr 4, 48
    %s2039 = scalar_lea.vmem %s0, %s2038
    %s2040 = sshrl.u32 %s5, 1
    %s2041 = sor.u32 %s5, %s2040
    %s2042 = sand.u32 %s2041, 85
    %s2043 = sshrl.u32 %s2042, 1
    %s2044 = sor.u32 %s2042, %s2043
    %s2045 = sand.u32 51, %s2044
    %s2046 = sshrl.u32 %s2045, 2
    %s2047 = sor.u32 %s2045, %s2046
    %s2048 = sand.u32 15, %s2047
    %v2049 = vld [vmem:[%s2039] sm:%s2048]
    %v2050 = vunpack.c.l.bf16 %v2049
    %v2051 = vunpack.c.h.bf16 %v2049
    %s2052 = scalar_lea.vmem [#allocation1], 384
    %2053 = vst [vmem:[%s2052] sm:%s5] %v2050
    %s2054 = smul.addr 4, 47
    %s2055 = scalar_lea.vmem %s0, %s2054
    %s2056 = sshrl.u32 %s5, 1
    %s2057 = sor.u32 %s5, %s2056
    %s2058 = sand.u32 %s2057, 85
    %s2059 = sshrl.u32 %s2058, 1
    %s2060 = sor.u32 %s2058, %s2059
    %s2061 = sand.u32 51, %s2060
    %s2062 = sshrl.u32 %s2061, 2
    %s2063 = sor.u32 %s2061, %s2062
    %s2064 = sand.u32 15, %s2063
    %v2065 = vld [vmem:[%s2055] sm:%s2064]
    %v2066 = vunpack.c.l.bf16 %v2065
    %v2067 = vunpack.c.h.bf16 %v2065
    %s2068 = scalar_lea.vmem [#allocation1], 376
    %2069 = vst [vmem:[%s2068] sm:%s5] %v2066
    %s2070 = smul.addr 4, 46
    %s2071 = scalar_lea.vmem %s0, %s2070
    %s2072 = sshrl.u32 %s5, 1
    %s2073 = sor.u32 %s5, %s2072
    %s2074 = sand.u32 %s2073, 85
    %s2075 = sshrl.u32 %s2074, 1
    %s2076 = sor.u32 %s2074, %s2075
    %s2077 = sand.u32 51, %s2076
    %s2078 = sshrl.u32 %s2077, 2
    %s2079 = sor.u32 %s2077, %s2078
    %s2080 = sand.u32 15, %s2079
    %v2081 = vld [vmem:[%s2071] sm:%s2080]
    %v2082 = vunpack.c.l.bf16 %v2081
    %v2083 = vunpack.c.h.bf16 %v2081
    %s2084 = scalar_lea.vmem [#allocation1], 368
    %2085 = vst [vmem:[%s2084] sm:%s5] %v2082
    %s2086 = smul.addr 4, 45
    %s2087 = scalar_lea.vmem %s0, %s2086
    %s2088 = sshrl.u32 %s5, 1
    %s2089 = sor.u32 %s5, %s2088
    %s2090 = sand.u32 %s2089, 85
    %s2091 = sshrl.u32 %s2090, 1
    %s2092 = sor.u32 %s2090, %s2091
    %s2093 = sand.u32 51, %s2092
    %s2094 = sshrl.u32 %s2093, 2
    %s2095 = sor.u32 %s2093, %s2094
    %s2096 = sand.u32 15, %s2095
    %v2097 = vld [vmem:[%s2087] sm:%s2096]
    %v2098 = vunpack.c.l.bf16 %v2097
    %v2099 = vunpack.c.h.bf16 %v2097
    %s2100 = scalar_lea.vmem [#allocation1], 360
    %2101 = vst [vmem:[%s2100] sm:%s5] %v2098
    %s2102 = smul.addr 4, 44
    %s2103 = scalar_lea.vmem %s0, %s2102
    %s2104 = sshrl.u32 %s5, 1
    %s2105 = sor.u32 %s5, %s2104
    %s2106 = sand.u32 %s2105, 85
    %s2107 = sshrl.u32 %s2106, 1
    %s2108 = sor.u32 %s2106, %s2107
    %s2109 = sand.u32 51, %s2108
    %s2110 = sshrl.u32 %s2109, 2
    %s2111 = sor.u32 %s2109, %s2110
    %s2112 = sand.u32 15, %s2111
    %v2113 = vld [vmem:[%s2103] sm:%s2112]
    %v2114 = vunpack.c.l.bf16 %v2113
    %v2115 = vunpack.c.h.bf16 %v2113
    %s2116 = scalar_lea.vmem [#allocation1], 352
    %2117 = vst [vmem:[%s2116] sm:%s5] %v2114
    %s2118 = smul.addr 4, 43
    %s2119 = scalar_lea.vmem %s0, %s2118
    %s2120 = sshrl.u32 %s5, 1
    %s2121 = sor.u32 %s5, %s2120
    %s2122 = sand.u32 %s2121, 85
    %s2123 = sshrl.u32 %s2122, 1
    %s2124 = sor.u32 %s2122, %s2123
    %s2125 = sand.u32 51, %s2124
    %s2126 = sshrl.u32 %s2125, 2
    %s2127 = sor.u32 %s2125, %s2126
    %s2128 = sand.u32 15, %s2127
    %v2129 = vld [vmem:[%s2119] sm:%s2128]
    %v2130 = vunpack.c.l.bf16 %v2129
    %v2131 = vunpack.c.h.bf16 %v2129
    %s2132 = scalar_lea.vmem [#allocation1], 344
    %2133 = vst [vmem:[%s2132] sm:%s5] %v2130
    %s2134 = smul.addr 4, 42
    %s2135 = scalar_lea.vmem %s0, %s2134
    %s2136 = sshrl.u32 %s5, 1
    %s2137 = sor.u32 %s5, %s2136
    %s2138 = sand.u32 %s2137, 85
    %s2139 = sshrl.u32 %s2138, 1
    %s2140 = sor.u32 %s2138, %s2139
    %s2141 = sand.u32 51, %s2140
    %s2142 = sshrl.u32 %s2141, 2
    %s2143 = sor.u32 %s2141, %s2142
    %s2144 = sand.u32 15, %s2143
    %v2145 = vld [vmem:[%s2135] sm:%s2144]
    %v2146 = vunpack.c.l.bf16 %v2145
    %v2147 = vunpack.c.h.bf16 %v2145
    %s2148 = scalar_lea.vmem [#allocation1], 336
    %2149 = vst [vmem:[%s2148] sm:%s5] %v2146
    %s2150 = smul.addr 4, 41
    %s2151 = scalar_lea.vmem %s0, %s2150
    %s2152 = sshrl.u32 %s5, 1
    %s2153 = sor.u32 %s5, %s2152
    %s2154 = sand.u32 %s2153, 85
    %s2155 = sshrl.u32 %s2154, 1
    %s2156 = sor.u32 %s2154, %s2155
    %s2157 = sand.u32 51, %s2156
    %s2158 = sshrl.u32 %s2157, 2
    %s2159 = sor.u32 %s2157, %s2158
    %s2160 = sand.u32 15, %s2159
    %v2161 = vld [vmem:[%s2151] sm:%s2160]
    %v2162 = vunpack.c.l.bf16 %v2161
    %v2163 = vunpack.c.h.bf16 %v2161
    %s2164 = scalar_lea.vmem [#allocation1], 328
    %2165 = vst [vmem:[%s2164] sm:%s5] %v2162
    %s2166 = smul.addr 4, 40
    %s2167 = scalar_lea.vmem %s0, %s2166
    %s2168 = sshrl.u32 %s5, 1
    %s2169 = sor.u32 %s5, %s2168
    %s2170 = sand.u32 %s2169, 85
    %s2171 = sshrl.u32 %s2170, 1
    %s2172 = sor.u32 %s2170, %s2171
    %s2173 = sand.u32 51, %s2172
    %s2174 = sshrl.u32 %s2173, 2
    %s2175 = sor.u32 %s2173, %s2174
    %s2176 = sand.u32 15, %s2175
    %v2177 = vld [vmem:[%s2167] sm:%s2176]
    %v2178 = vunpack.c.l.bf16 %v2177
    %v2179 = vunpack.c.h.bf16 %v2177
    %s2180 = scalar_lea.vmem [#allocation1], 320
    %2181 = vst [vmem:[%s2180] sm:%s5] %v2178
    %s2182 = smul.addr 4, 39
    %s2183 = scalar_lea.vmem %s0, %s2182
    %s2184 = sshrl.u32 %s5, 1
    %s2185 = sor.u32 %s5, %s2184
    %s2186 = sand.u32 %s2185, 85
    %s2187 = sshrl.u32 %s2186, 1
    %s2188 = sor.u32 %s2186, %s2187
    %s2189 = sand.u32 51, %s2188
    %s2190 = sshrl.u32 %s2189, 2
    %s2191 = sor.u32 %s2189, %s2190
    %s2192 = sand.u32 15, %s2191
    %v2193 = vld [vmem:[%s2183] sm:%s2192]
    %v2194 = vunpack.c.l.bf16 %v2193
    %v2195 = vunpack.c.h.bf16 %v2193
    %s2196 = scalar_lea.vmem [#allocation1], 312
    %2197 = vst [vmem:[%s2196] sm:%s5] %v2194
    %s2198 = smul.addr 4, 38
    %s2199 = scalar_lea.vmem %s0, %s2198
    %s2200 = sshrl.u32 %s5, 1
    %s2201 = sor.u32 %s5, %s2200
    %s2202 = sand.u32 %s2201, 85
    %s2203 = sshrl.u32 %s2202, 1
    %s2204 = sor.u32 %s2202, %s2203
    %s2205 = sand.u32 51, %s2204
    %s2206 = sshrl.u32 %s2205, 2
    %s2207 = sor.u32 %s2205, %s2206
    %s2208 = sand.u32 15, %s2207
    %v2209 = vld [vmem:[%s2199] sm:%s2208]
    %v2210 = vunpack.c.l.bf16 %v2209
    %v2211 = vunpack.c.h.bf16 %v2209
    %s2212 = scalar_lea.vmem [#allocation1], 304
    %2213 = vst [vmem:[%s2212] sm:%s5] %v2210
    %s2214 = smul.addr 4, 37
    %s2215 = scalar_lea.vmem %s0, %s2214
    %s2216 = sshrl.u32 %s5, 1
    %s2217 = sor.u32 %s5, %s2216
    %s2218 = sand.u32 %s2217, 85
    %s2219 = sshrl.u32 %s2218, 1
    %s2220 = sor.u32 %s2218, %s2219
    %s2221 = sand.u32 51, %s2220
    %s2222 = sshrl.u32 %s2221, 2
    %s2223 = sor.u32 %s2221, %s2222
    %s2224 = sand.u32 15, %s2223
    %v2225 = vld [vmem:[%s2215] sm:%s2224]
    %v2226 = vunpack.c.l.bf16 %v2225
    %v2227 = vunpack.c.h.bf16 %v2225
    %s2228 = scalar_lea.vmem [#allocation1], 296
    %2229 = vst [vmem:[%s2228] sm:%s5] %v2226
    %s2230 = smul.addr 4, 36
    %s2231 = scalar_lea.vmem %s0, %s2230
    %s2232 = sshrl.u32 %s5, 1
    %s2233 = sor.u32 %s5, %s2232
    %s2234 = sand.u32 %s2233, 85
    %s2235 = sshrl.u32 %s2234, 1
    %s2236 = sor.u32 %s2234, %s2235
    %s2237 = sand.u32 51, %s2236
    %s2238 = sshrl.u32 %s2237, 2
    %s2239 = sor.u32 %s2237, %s2238
    %s2240 = sand.u32 15, %s2239
    %v2241 = vld [vmem:[%s2231] sm:%s2240]
    %v2242 = vunpack.c.l.bf16 %v2241
    %v2243 = vunpack.c.h.bf16 %v2241
    %s2244 = scalar_lea.vmem [#allocation1], 288
    %2245 = vst [vmem:[%s2244] sm:%s5] %v2242
    %s2246 = smul.addr 4, 35
    %s2247 = scalar_lea.vmem %s0, %s2246
    %s2248 = sshrl.u32 %s5, 1
    %s2249 = sor.u32 %s5, %s2248
    %s2250 = sand.u32 %s2249, 85
    %s2251 = sshrl.u32 %s2250, 1
    %s2252 = sor.u32 %s2250, %s2251
    %s2253 = sand.u32 51, %s2252
    %s2254 = sshrl.u32 %s2253, 2
    %s2255 = sor.u32 %s2253, %s2254
    %s2256 = sand.u32 15, %s2255
    %v2257 = vld [vmem:[%s2247] sm:%s2256]
    %v2258 = vunpack.c.l.bf16 %v2257
    %v2259 = vunpack.c.h.bf16 %v2257
    %s2260 = scalar_lea.vmem [#allocation1], 280
    %2261 = vst [vmem:[%s2260] sm:%s5] %v2258
    %s2262 = smul.addr 4, 34
    %s2263 = scalar_lea.vmem %s0, %s2262
    %s2264 = sshrl.u32 %s5, 1
    %s2265 = sor.u32 %s5, %s2264
    %s2266 = sand.u32 %s2265, 85
    %s2267 = sshrl.u32 %s2266, 1
    %s2268 = sor.u32 %s2266, %s2267
    %s2269 = sand.u32 51, %s2268
    %s2270 = sshrl.u32 %s2269, 2
    %s2271 = sor.u32 %s2269, %s2270
    %s2272 = sand.u32 15, %s2271
    %v2273 = vld [vmem:[%s2263] sm:%s2272]
    %v2274 = vunpack.c.l.bf16 %v2273
    %v2275 = vunpack.c.h.bf16 %v2273
    %s2276 = scalar_lea.vmem [#allocation1], 272
    %2277 = vst [vmem:[%s2276] sm:%s5] %v2274
    %s2278 = smul.addr 4, 33
    %s2279 = scalar_lea.vmem %s0, %s2278
    %s2280 = sshrl.u32 %s5, 1
    %s2281 = sor.u32 %s5, %s2280
    %s2282 = sand.u32 %s2281, 85
    %s2283 = sshrl.u32 %s2282, 1
    %s2284 = sor.u32 %s2282, %s2283
    %s2285 = sand.u32 51, %s2284
    %s2286 = sshrl.u32 %s2285, 2
    %s2287 = sor.u32 %s2285, %s2286
    %s2288 = sand.u32 15, %s2287
    %v2289 = vld [vmem:[%s2279] sm:%s2288]
    %v2290 = vunpack.c.l.bf16 %v2289
    %v2291 = vunpack.c.h.bf16 %v2289
    %s2292 = scalar_lea.vmem [#allocation1], 264
    %2293 = vst [vmem:[%s2292] sm:%s5] %v2290
    %s2294 = smul.addr 4, 32
    %s2295 = scalar_lea.vmem %s0, %s2294
    %s2296 = sshrl.u32 %s5, 1
    %s2297 = sor.u32 %s5, %s2296
    %s2298 = sand.u32 %s2297, 85
    %s2299 = sshrl.u32 %s2298, 1
    %s2300 = sor.u32 %s2298, %s2299
    %s2301 = sand.u32 51, %s2300
    %s2302 = sshrl.u32 %s2301, 2
    %s2303 = sor.u32 %s2301, %s2302
    %s2304 = sand.u32 15, %s2303
    %v2305 = vld [vmem:[%s2295] sm:%s2304]
    %v2306 = vunpack.c.l.bf16 %v2305
    %v2307 = vunpack.c.h.bf16 %v2305
    %s2308 = scalar_lea.vmem [#allocation1], 256
    %2309 = vst [vmem:[%s2308] sm:%s5] %v2306
    %s2310 = smul.addr 4, 31
    %s2311 = scalar_lea.vmem %s0, %s2310
    %s2312 = sshrl.u32 %s5, 1
    %s2313 = sor.u32 %s5, %s2312
    %s2314 = sand.u32 %s2313, 85
    %s2315 = sshrl.u32 %s2314, 1
    %s2316 = sor.u32 %s2314, %s2315
    %s2317 = sand.u32 51, %s2316
    %s2318 = sshrl.u32 %s2317, 2
    %s2319 = sor.u32 %s2317, %s2318
    %s2320 = sand.u32 15, %s2319
    %v2321 = vld [vmem:[%s2311] sm:%s2320]
    %v2322 = vunpack.c.l.bf16 %v2321
    %v2323 = vunpack.c.h.bf16 %v2321
    %s2324 = scalar_lea.vmem [#allocation1], 248
    %2325 = vst [vmem:[%s2324] sm:%s5] %v2322
    %s2326 = smul.addr 4, 30
    %s2327 = scalar_lea.vmem %s0, %s2326
    %s2328 = sshrl.u32 %s5, 1
    %s2329 = sor.u32 %s5, %s2328
    %s2330 = sand.u32 %s2329, 85
    %s2331 = sshrl.u32 %s2330, 1
    %s2332 = sor.u32 %s2330, %s2331
    %s2333 = sand.u32 51, %s2332
    %s2334 = sshrl.u32 %s2333, 2
    %s2335 = sor.u32 %s2333, %s2334
    %s2336 = sand.u32 15, %s2335
    %v2337 = vld [vmem:[%s2327] sm:%s2336]
    %v2338 = vunpack.c.l.bf16 %v2337
    %v2339 = vunpack.c.h.bf16 %v2337
    %s2340 = scalar_lea.vmem [#allocation1], 240
    %2341 = vst [vmem:[%s2340] sm:%s5] %v2338
    %s2342 = smul.addr 4, 29
    %s2343 = scalar_lea.vmem %s0, %s2342
    %s2344 = sshrl.u32 %s5, 1
    %s2345 = sor.u32 %s5, %s2344
    %s2346 = sand.u32 %s2345, 85
    %s2347 = sshrl.u32 %s2346, 1
    %s2348 = sor.u32 %s2346, %s2347
    %s2349 = sand.u32 51, %s2348
    %s2350 = sshrl.u32 %s2349, 2
    %s2351 = sor.u32 %s2349, %s2350
    %s2352 = sand.u32 15, %s2351
    %v2353 = vld [vmem:[%s2343] sm:%s2352]
    %v2354 = vunpack.c.l.bf16 %v2353
    %v2355 = vunpack.c.h.bf16 %v2353
    %s2356 = scalar_lea.vmem [#allocation1], 232
    %2357 = vst [vmem:[%s2356] sm:%s5] %v2354
    %s2358 = smul.addr 4, 28
    %s2359 = scalar_lea.vmem %s0, %s2358
    %s2360 = sshrl.u32 %s5, 1
    %s2361 = sor.u32 %s5, %s2360
    %s2362 = sand.u32 %s2361, 85
    %s2363 = sshrl.u32 %s2362, 1
    %s2364 = sor.u32 %s2362, %s2363
    %s2365 = sand.u32 51, %s2364
    %s2366 = sshrl.u32 %s2365, 2
    %s2367 = sor.u32 %s2365, %s2366
    %s2368 = sand.u32 15, %s2367
    %v2369 = vld [vmem:[%s2359] sm:%s2368]
    %v2370 = vunpack.c.l.bf16 %v2369
    %v2371 = vunpack.c.h.bf16 %v2369
    %s2372 = scalar_lea.vmem [#allocation1], 224
    %2373 = vst [vmem:[%s2372] sm:%s5] %v2370
    %s2374 = smul.addr 4, 27
    %s2375 = scalar_lea.vmem %s0, %s2374
    %s2376 = sshrl.u32 %s5, 1
    %s2377 = sor.u32 %s5, %s2376
    %s2378 = sand.u32 %s2377, 85
    %s2379 = sshrl.u32 %s2378, 1
    %s2380 = sor.u32 %s2378, %s2379
    %s2381 = sand.u32 51, %s2380
    %s2382 = sshrl.u32 %s2381, 2
    %s2383 = sor.u32 %s2381, %s2382
    %s2384 = sand.u32 15, %s2383
    %v2385 = vld [vmem:[%s2375] sm:%s2384]
    %v2386 = vunpack.c.l.bf16 %v2385
    %v2387 = vunpack.c.h.bf16 %v2385
    %s2388 = scalar_lea.vmem [#allocation1], 216
    %2389 = vst [vmem:[%s2388] sm:%s5] %v2386
    %s2390 = smul.addr 4, 26
    %s2391 = scalar_lea.vmem %s0, %s2390
    %s2392 = sshrl.u32 %s5, 1
    %s2393 = sor.u32 %s5, %s2392
    %s2394 = sand.u32 %s2393, 85
    %s2395 = sshrl.u32 %s2394, 1
    %s2396 = sor.u32 %s2394, %s2395
    %s2397 = sand.u32 51, %s2396
    %s2398 = sshrl.u32 %s2397, 2
    %s2399 = sor.u32 %s2397, %s2398
    %s2400 = sand.u32 15, %s2399
    %v2401 = vld [vmem:[%s2391] sm:%s2400]
    %v2402 = vunpack.c.l.bf16 %v2401
    %v2403 = vunpack.c.h.bf16 %v2401
    %s2404 = scalar_lea.vmem [#allocation1], 208
    %2405 = vst [vmem:[%s2404] sm:%s5] %v2402
    %s2406 = smul.addr 4, 25
    %s2407 = scalar_lea.vmem %s0, %s2406
    %s2408 = sshrl.u32 %s5, 1
    %s2409 = sor.u32 %s5, %s2408
    %s2410 = sand.u32 %s2409, 85
    %s2411 = sshrl.u32 %s2410, 1
    %s2412 = sor.u32 %s2410, %s2411
    %s2413 = sand.u32 51, %s2412
    %s2414 = sshrl.u32 %s2413, 2
    %s2415 = sor.u32 %s2413, %s2414
    %s2416 = sand.u32 15, %s2415
    %v2417 = vld [vmem:[%s2407] sm:%s2416]
    %v2418 = vunpack.c.l.bf16 %v2417
    %v2419 = vunpack.c.h.bf16 %v2417
    %s2420 = scalar_lea.vmem [#allocation1], 200
    %2421 = vst [vmem:[%s2420] sm:%s5] %v2418
    %s2422 = smul.addr 4, 24
    %s2423 = scalar_lea.vmem %s0, %s2422
    %s2424 = sshrl.u32 %s5, 1
    %s2425 = sor.u32 %s5, %s2424
    %s2426 = sand.u32 %s2425, 85
    %s2427 = sshrl.u32 %s2426, 1
    %s2428 = sor.u32 %s2426, %s2427
    %s2429 = sand.u32 51, %s2428
    %s2430 = sshrl.u32 %s2429, 2
    %s2431 = sor.u32 %s2429, %s2430
    %s2432 = sand.u32 15, %s2431
    %v2433 = vld [vmem:[%s2423] sm:%s2432]
    %v2434 = vunpack.c.l.bf16 %v2433
    %v2435 = vunpack.c.h.bf16 %v2433
    %s2436 = scalar_lea.vmem [#allocation1], 192
    %2437 = vst [vmem:[%s2436] sm:%s5] %v2434
    %s2438 = smul.addr 4, 23
    %s2439 = scalar_lea.vmem %s0, %s2438
    %s2440 = sshrl.u32 %s5, 1
    %s2441 = sor.u32 %s5, %s2440
    %s2442 = sand.u32 %s2441, 85
    %s2443 = sshrl.u32 %s2442, 1
    %s2444 = sor.u32 %s2442, %s2443
    %s2445 = sand.u32 51, %s2444
    %s2446 = sshrl.u32 %s2445, 2
    %s2447 = sor.u32 %s2445, %s2446
    %s2448 = sand.u32 15, %s2447
    %v2449 = vld [vmem:[%s2439] sm:%s2448]
    %v2450 = vunpack.c.l.bf16 %v2449
    %v2451 = vunpack.c.h.bf16 %v2449
    %s2452 = scalar_lea.vmem [#allocation1], 184
    %2453 = vst [vmem:[%s2452] sm:%s5] %v2450
    %s2454 = smul.addr 4, 22
    %s2455 = scalar_lea.vmem %s0, %s2454
    %s2456 = sshrl.u32 %s5, 1
    %s2457 = sor.u32 %s5, %s2456
    %s2458 = sand.u32 %s2457, 85
    %s2459 = sshrl.u32 %s2458, 1
    %s2460 = sor.u32 %s2458, %s2459
    %s2461 = sand.u32 51, %s2460
    %s2462 = sshrl.u32 %s2461, 2
    %s2463 = sor.u32 %s2461, %s2462
    %s2464 = sand.u32 15, %s2463
    %v2465 = vld [vmem:[%s2455] sm:%s2464]
    %v2466 = vunpack.c.l.bf16 %v2465
    %v2467 = vunpack.c.h.bf16 %v2465
    %s2468 = scalar_lea.vmem [#allocation1], 176
    %2469 = vst [vmem:[%s2468] sm:%s5] %v2466
    %s2470 = smul.addr 4, 21
    %s2471 = scalar_lea.vmem %s0, %s2470
    %s2472 = sshrl.u32 %s5, 1
    %s2473 = sor.u32 %s5, %s2472
    %s2474 = sand.u32 %s2473, 85
    %s2475 = sshrl.u32 %s2474, 1
    %s2476 = sor.u32 %s2474, %s2475
    %s2477 = sand.u32 51, %s2476
    %s2478 = sshrl.u32 %s2477, 2
    %s2479 = sor.u32 %s2477, %s2478
    %s2480 = sand.u32 15, %s2479
    %v2481 = vld [vmem:[%s2471] sm:%s2480]
    %v2482 = vunpack.c.l.bf16 %v2481
    %v2483 = vunpack.c.h.bf16 %v2481
    %s2484 = scalar_lea.vmem [#allocation1], 168
    %2485 = vst [vmem:[%s2484] sm:%s5] %v2482
    %s2486 = smul.addr 4, 20
    %s2487 = scalar_lea.vmem %s0, %s2486
    %s2488 = sshrl.u32 %s5, 1
    %s2489 = sor.u32 %s5, %s2488
    %s2490 = sand.u32 %s2489, 85
    %s2491 = sshrl.u32 %s2490, 1
    %s2492 = sor.u32 %s2490, %s2491
    %s2493 = sand.u32 51, %s2492
    %s2494 = sshrl.u32 %s2493, 2
    %s2495 = sor.u32 %s2493, %s2494
    %s2496 = sand.u32 15, %s2495
    %v2497 = vld [vmem:[%s2487] sm:%s2496]
    %v2498 = vunpack.c.l.bf16 %v2497
    %v2499 = vunpack.c.h.bf16 %v2497
    %s2500 = scalar_lea.vmem [#allocation1], 160
    %2501 = vst [vmem:[%s2500] sm:%s5] %v2498
    %s2502 = smul.addr 4, 19
    %s2503 = scalar_lea.vmem %s0, %s2502
    %s2504 = sshrl.u32 %s5, 1
    %s2505 = sor.u32 %s5, %s2504
    %s2506 = sand.u32 %s2505, 85
    %s2507 = sshrl.u32 %s2506, 1
    %s2508 = sor.u32 %s2506, %s2507
    %s2509 = sand.u32 51, %s2508
    %s2510 = sshrl.u32 %s2509, 2
    %s2511 = sor.u32 %s2509, %s2510
    %s2512 = sand.u32 15, %s2511
    %v2513 = vld [vmem:[%s2503] sm:%s2512]
    %v2514 = vunpack.c.l.bf16 %v2513
    %v2515 = vunpack.c.h.bf16 %v2513
    %s2516 = scalar_lea.vmem [#allocation1], 152
    %2517 = vst [vmem:[%s2516] sm:%s5] %v2514
    %s2518 = smul.addr 4, 18
    %s2519 = scalar_lea.vmem %s0, %s2518
    %s2520 = sshrl.u32 %s5, 1
    %s2521 = sor.u32 %s5, %s2520
    %s2522 = sand.u32 %s2521, 85
    %s2523 = sshrl.u32 %s2522, 1
    %s2524 = sor.u32 %s2522, %s2523
    %s2525 = sand.u32 51, %s2524
    %s2526 = sshrl.u32 %s2525, 2
    %s2527 = sor.u32 %s2525, %s2526
    %s2528 = sand.u32 15, %s2527
    %v2529 = vld [vmem:[%s2519] sm:%s2528]
    %v2530 = vunpack.c.l.bf16 %v2529
    %v2531 = vunpack.c.h.bf16 %v2529
    %s2532 = scalar_lea.vmem [#allocation1], 144
    %2533 = vst [vmem:[%s2532] sm:%s5] %v2530
    %s2534 = smul.addr 4, 17
    %s2535 = scalar_lea.vmem %s0, %s2534
    %s2536 = sshrl.u32 %s5, 1
    %s2537 = sor.u32 %s5, %s2536
    %s2538 = sand.u32 %s2537, 85
    %s2539 = sshrl.u32 %s2538, 1
    %s2540 = sor.u32 %s2538, %s2539
    %s2541 = sand.u32 51, %s2540
    %s2542 = sshrl.u32 %s2541, 2
    %s2543 = sor.u32 %s2541, %s2542
    %s2544 = sand.u32 15, %s2543
    %v2545 = vld [vmem:[%s2535] sm:%s2544]
    %v2546 = vunpack.c.l.bf16 %v2545
    %v2547 = vunpack.c.h.bf16 %v2545
    %s2548 = scalar_lea.vmem [#allocation1], 136
    %2549 = vst [vmem:[%s2548] sm:%s5] %v2546
    %s2550 = smul.addr 4, 16
    %s2551 = scalar_lea.vmem %s0, %s2550
    %s2552 = sshrl.u32 %s5, 1
    %s2553 = sor.u32 %s5, %s2552
    %s2554 = sand.u32 %s2553, 85
    %s2555 = sshrl.u32 %s2554, 1
    %s2556 = sor.u32 %s2554, %s2555
    %s2557 = sand.u32 51, %s2556
    %s2558 = sshrl.u32 %s2557, 2
    %s2559 = sor.u32 %s2557, %s2558
    %s2560 = sand.u32 15, %s2559
    %v2561 = vld [vmem:[%s2551] sm:%s2560]
    %v2562 = vunpack.c.l.bf16 %v2561
    %v2563 = vunpack.c.h.bf16 %v2561
    %s2564 = scalar_lea.vmem [#allocation1], 128
    %2565 = vst [vmem:[%s2564] sm:%s5] %v2562
    %s2566 = smul.addr 4, 15
    %s2567 = scalar_lea.vmem %s0, %s2566
    %s2568 = sshrl.u32 %s5, 1
    %s2569 = sor.u32 %s5, %s2568
    %s2570 = sand.u32 %s2569, 85
    %s2571 = sshrl.u32 %s2570, 1
    %s2572 = sor.u32 %s2570, %s2571
    %s2573 = sand.u32 51, %s2572
    %s2574 = sshrl.u32 %s2573, 2
    %s2575 = sor.u32 %s2573, %s2574
    %s2576 = sand.u32 15, %s2575
    %v2577 = vld [vmem:[%s2567] sm:%s2576]
    %v2578 = vunpack.c.l.bf16 %v2577
    %v2579 = vunpack.c.h.bf16 %v2577
    %s2580 = scalar_lea.vmem [#allocation1], 120
    %2581 = vst [vmem:[%s2580] sm:%s5] %v2578
    %s2582 = smul.addr 4, 14
    %s2583 = scalar_lea.vmem %s0, %s2582
    %s2584 = sshrl.u32 %s5, 1
    %s2585 = sor.u32 %s5, %s2584
    %s2586 = sand.u32 %s2585, 85
    %s2587 = sshrl.u32 %s2586, 1
    %s2588 = sor.u32 %s2586, %s2587
    %s2589 = sand.u32 51, %s2588
    %s2590 = sshrl.u32 %s2589, 2
    %s2591 = sor.u32 %s2589, %s2590
    %s2592 = sand.u32 15, %s2591
    %v2593 = vld [vmem:[%s2583] sm:%s2592]
    %v2594 = vunpack.c.l.bf16 %v2593
    %v2595 = vunpack.c.h.bf16 %v2593
    %s2596 = scalar_lea.vmem [#allocation1], 112
    %2597 = vst [vmem:[%s2596] sm:%s5] %v2594
    %s2598 = smul.addr 4, 13
    %s2599 = scalar_lea.vmem %s0, %s2598
    %s2600 = sshrl.u32 %s5, 1
    %s2601 = sor.u32 %s5, %s2600
    %s2602 = sand.u32 %s2601, 85
    %s2603 = sshrl.u32 %s2602, 1
    %s2604 = sor.u32 %s2602, %s2603
    %s2605 = sand.u32 51, %s2604
    %s2606 = sshrl.u32 %s2605, 2
    %s2607 = sor.u32 %s2605, %s2606
    %s2608 = sand.u32 15, %s2607
    %v2609 = vld [vmem:[%s2599] sm:%s2608]
    %v2610 = vunpack.c.l.bf16 %v2609
    %v2611 = vunpack.c.h.bf16 %v2609
    %s2612 = scalar_lea.vmem [#allocation1], 104
    %2613 = vst [vmem:[%s2612] sm:%s5] %v2610
    %s2614 = smul.addr 4, 12
    %s2615 = scalar_lea.vmem %s0, %s2614
    %s2616 = sshrl.u32 %s5, 1
    %s2617 = sor.u32 %s5, %s2616
    %s2618 = sand.u32 %s2617, 85
    %s2619 = sshrl.u32 %s2618, 1
    %s2620 = sor.u32 %s2618, %s2619
    %s2621 = sand.u32 51, %s2620
    %s2622 = sshrl.u32 %s2621, 2
    %s2623 = sor.u32 %s2621, %s2622
    %s2624 = sand.u32 15, %s2623
    %v2625 = vld [vmem:[%s2615] sm:%s2624]
    %v2626 = vunpack.c.l.bf16 %v2625
    %v2627 = vunpack.c.h.bf16 %v2625
    %s2628 = scalar_lea.vmem [#allocation1], 96
    %2629 = vst [vmem:[%s2628] sm:%s5] %v2626
    %s2630 = smul.addr 4, 11
    %s2631 = scalar_lea.vmem %s0, %s2630
    %s2632 = sshrl.u32 %s5, 1
    %s2633 = sor.u32 %s5, %s2632
    %s2634 = sand.u32 %s2633, 85
    %s2635 = sshrl.u32 %s2634, 1
    %s2636 = sor.u32 %s2634, %s2635
    %s2637 = sand.u32 51, %s2636
    %s2638 = sshrl.u32 %s2637, 2
    %s2639 = sor.u32 %s2637, %s2638
    %s2640 = sand.u32 15, %s2639
    %v2641 = vld [vmem:[%s2631] sm:%s2640]
    %v2642 = vunpack.c.l.bf16 %v2641
    %v2643 = vunpack.c.h.bf16 %v2641
    %s2644 = scalar_lea.vmem [#allocation1], 88
    %2645 = vst [vmem:[%s2644] sm:%s5] %v2642
    %s2646 = smul.addr 4, 10
    %s2647 = scalar_lea.vmem %s0, %s2646
    %s2648 = sshrl.u32 %s5, 1
    %s2649 = sor.u32 %s5, %s2648
    %s2650 = sand.u32 %s2649, 85
    %s2651 = sshrl.u32 %s2650, 1
    %s2652 = sor.u32 %s2650, %s2651
    %s2653 = sand.u32 51, %s2652
    %s2654 = sshrl.u32 %s2653, 2
    %s2655 = sor.u32 %s2653, %s2654
    %s2656 = sand.u32 15, %s2655
    %v2657 = vld [vmem:[%s2647] sm:%s2656]
    %v2658 = vunpack.c.l.bf16 %v2657
    %v2659 = vunpack.c.h.bf16 %v2657
    %s2660 = scalar_lea.vmem [#allocation1], 80
    %2661 = vst [vmem:[%s2660] sm:%s5] %v2658
    %s2662 = smul.addr 4, 9
    %s2663 = scalar_lea.vmem %s0, %s2662
    %s2664 = sshrl.u32 %s5, 1
    %s2665 = sor.u32 %s5, %s2664
    %s2666 = sand.u32 %s2665, 85
    %s2667 = sshrl.u32 %s2666, 1
    %s2668 = sor.u32 %s2666, %s2667
    %s2669 = sand.u32 51, %s2668
    %s2670 = sshrl.u32 %s2669, 2
    %s2671 = sor.u32 %s2669, %s2670
    %s2672 = sand.u32 15, %s2671
    %v2673 = vld [vmem:[%s2663] sm:%s2672]
    %v2674 = vunpack.c.l.bf16 %v2673
    %v2675 = vunpack.c.h.bf16 %v2673
    %s2676 = scalar_lea.vmem [#allocation1], 72
    %2677 = vst [vmem:[%s2676] sm:%s5] %v2674
    %s2678 = smul.addr 4, 8
    %s2679 = scalar_lea.vmem %s0, %s2678
    %s2680 = sshrl.u32 %s5, 1
    %s2681 = sor.u32 %s5, %s2680
    %s2682 = sand.u32 %s2681, 85
    %s2683 = sshrl.u32 %s2682, 1
    %s2684 = sor.u32 %s2682, %s2683
    %s2685 = sand.u32 51, %s2684
    %s2686 = sshrl.u32 %s2685, 2
    %s2687 = sor.u32 %s2685, %s2686
    %s2688 = sand.u32 15, %s2687
    %v2689 = vld [vmem:[%s2679] sm:%s2688]
    %v2690 = vunpack.c.l.bf16 %v2689
    %v2691 = vunpack.c.h.bf16 %v2689
    %s2692 = scalar_lea.vmem [#allocation1], 64
    %2693 = vst [vmem:[%s2692] sm:%s5] %v2690
    %s2694 = smul.addr 4, 7
    %s2695 = scalar_lea.vmem %s0, %s2694
    %s2696 = sshrl.u32 %s5, 1
    %s2697 = sor.u32 %s5, %s2696
    %s2698 = sand.u32 %s2697, 85
    %s2699 = sshrl.u32 %s2698, 1
    %s2700 = sor.u32 %s2698, %s2699
    %s2701 = sand.u32 51, %s2700
    %s2702 = sshrl.u32 %s2701, 2
    %s2703 = sor.u32 %s2701, %s2702
    %s2704 = sand.u32 15, %s2703
    %v2705 = vld [vmem:[%s2695] sm:%s2704]
    %v2706 = vunpack.c.l.bf16 %v2705
    %v2707 = vunpack.c.h.bf16 %v2705
    %s2708 = scalar_lea.vmem [#allocation1], 56
    %2709 = vst [vmem:[%s2708] sm:%s5] %v2706
    %s2710 = smul.addr 4, 6
    %s2711 = scalar_lea.vmem %s0, %s2710
    %s2712 = sshrl.u32 %s5, 1
    %s2713 = sor.u32 %s5, %s2712
    %s2714 = sand.u32 %s2713, 85
    %s2715 = sshrl.u32 %s2714, 1
    %s2716 = sor.u32 %s2714, %s2715
    %s2717 = sand.u32 51, %s2716
    %s2718 = sshrl.u32 %s2717, 2
    %s2719 = sor.u32 %s2717, %s2718
    %s2720 = sand.u32 15, %s2719
    %v2721 = vld [vmem:[%s2711] sm:%s2720]
    %v2722 = vunpack.c.l.bf16 %v2721
    %v2723 = vunpack.c.h.bf16 %v2721
    %s2724 = scalar_lea.vmem [#allocation1], 48
    %2725 = vst [vmem:[%s2724] sm:%s5] %v2722
    %s2726 = smul.addr 4, 5
    %s2727 = scalar_lea.vmem %s0, %s2726
    %s2728 = sshrl.u32 %s5, 1
    %s2729 = sor.u32 %s5, %s2728
    %s2730 = sand.u32 %s2729, 85
    %s2731 = sshrl.u32 %s2730, 1
    %s2732 = sor.u32 %s2730, %s2731
    %s2733 = sand.u32 51, %s2732
    %s2734 = sshrl.u32 %s2733, 2
    %s2735 = sor.u32 %s2733, %s2734
    %s2736 = sand.u32 15, %s2735
    %v2737 = vld [vmem:[%s2727] sm:%s2736]
    %v2738 = vunpack.c.l.bf16 %v2737
    %v2739 = vunpack.c.h.bf16 %v2737
    %s2740 = scalar_lea.vmem [#allocation1], 40
    %2741 = vst [vmem:[%s2740] sm:%s5] %v2738
    %s2742 = smul.addr 4, 4
    %s2743 = scalar_lea.vmem %s0, %s2742
    %s2744 = sshrl.u32 %s5, 1
    %s2745 = sor.u32 %s5, %s2744
    %s2746 = sand.u32 %s2745, 85
    %s2747 = sshrl.u32 %s2746, 1
    %s2748 = sor.u32 %s2746, %s2747
    %s2749 = sand.u32 51, %s2748
    %s2750 = sshrl.u32 %s2749, 2
    %s2751 = sor.u32 %s2749, %s2750
    %s2752 = sand.u32 15, %s2751
    %v2753 = vld [vmem:[%s2743] sm:%s2752]
    %v2754 = vunpack.c.l.bf16 %v2753
    %v2755 = vunpack.c.h.bf16 %v2753
    %s2756 = scalar_lea.vmem [#allocation1], 32
    %2757 = vst [vmem:[%s2756] sm:%s5] %v2754
    %s2758 = smul.addr 4, 3
    %s2759 = scalar_lea.vmem %s0, %s2758
    %s2760 = sshrl.u32 %s5, 1
    %s2761 = sor.u32 %s5, %s2760
    %s2762 = sand.u32 %s2761, 85
    %s2763 = sshrl.u32 %s2762, 1
    %s2764 = sor.u32 %s2762, %s2763
    %s2765 = sand.u32 51, %s2764
    %s2766 = sshrl.u32 %s2765, 2
    %s2767 = sor.u32 %s2765, %s2766
    %s2768 = sand.u32 15, %s2767
    %v2769 = vld [vmem:[%s2759] sm:%s2768]
    %v2770 = vunpack.c.l.bf16 %v2769
    %v2771 = vunpack.c.h.bf16 %v2769
    %s2772 = scalar_lea.vmem [#allocation1], 24
    %2773 = vst [vmem:[%s2772] sm:%s5] %v2770
    %s2774 = smul.addr 4, 2
    %s2775 = scalar_lea.vmem %s0, %s2774
    %s2776 = sshrl.u32 %s5, 1
    %s2777 = sor.u32 %s5, %s2776
    %s2778 = sand.u32 %s2777, 85
    %s2779 = sshrl.u32 %s2778, 1
    %s2780 = sor.u32 %s2778, %s2779
    %s2781 = sand.u32 51, %s2780
    %s2782 = sshrl.u32 %s2781, 2
    %s2783 = sor.u32 %s2781, %s2782
    %s2784 = sand.u32 15, %s2783
    %v2785 = vld [vmem:[%s2775] sm:%s2784]
    %v2786 = vunpack.c.l.bf16 %v2785
    %v2787 = vunpack.c.h.bf16 %v2785
    %s2788 = scalar_lea.vmem [#allocation1], 16
    %2789 = vst [vmem:[%s2788] sm:%s5] %v2786
    %s2790 = scalar_lea.vmem %s0, 4
    %s2791 = sshrl.u32 %s5, 1
    %s2792 = sor.u32 %s5, %s2791
    %s2793 = sand.u32 %s2792, 85
    %s2794 = sshrl.u32 %s2793, 1
    %s2795 = sor.u32 %s2793, %s2794
    %s2796 = sand.u32 51, %s2795
    %s2797 = sshrl.u32 %s2796, 2
    %s2798 = sor.u32 %s2796, %s2797
    %s2799 = sand.u32 15, %s2798
    %v2800 = vld [vmem:[%s2790] sm:%s2799]
    %v2801 = vunpack.c.l.bf16 %v2800
    %v2802 = vunpack.c.h.bf16 %v2800
    %s2803 = scalar_lea.vmem [#allocation1], 8
    %2804 = vst [vmem:[%s2803] sm:%s5] %v2801
    %s2805 = sshrl.u32 %s5, 1
    %s2806 = sor.u32 %s5, %s2805
    %s2807 = sand.u32 %s2806, 85
    %s2808 = sshrl.u32 %s2807, 1
    %s2809 = sor.u32 %s2807, %s2808
    %s2810 = sand.u32 51, %s2809
    %s2811 = sshrl.u32 %s2810, 2
    %s2812 = sor.u32 %s2810, %s2811
    %s2813 = sand.u32 15, %s2812
    %v2814 = vld [vmem:[%s0] sm:%s2813]
    %v2815 = vunpack.c.l.bf16 %v2814
    %v2816 = vunpack.c.h.bf16 %v2814
    %2817 = vst [vmem:[#allocation1] sm:%s5] %v2815
    %v2818 = vld [vmem:[#allocation1] ss:$8 sm:$0xf]
    %v2819 = vld [vmem:[#allocation1] ss:$8 sm:$0xf0]
    %vm2820 = vcmask 1047556
    %v2821 = vsel %vm2820, %v2819, %v2818
    %vm2822 = vcmask 105472
    %2823 = vst.msk [vmem:[#allocation0] sm:$0xff] %vm2822, %v2821
    %s2824 = scalar_lea.vmem [#allocation1], 64
    %v2825 = vld [vmem:[%s2824] ss:$8 sm:$0xf]
    %s2826 = scalar_lea.vmem [#allocation1], 64
    %v2827 = vld [vmem:[%s2826] ss:$8 sm:$0xf0]
    %vm2828 = vcmask 1047556
    %v2829 = vsel %vm2828, %v2827, %v2825
    %vm2830 = vcmask 105472
    %s2831 = scalar_lea.vmem [#allocation0], 8
    %2832 = vst.msk [vmem:[%s2831] sm:$0xff] %vm2830, %v2829
    %s2833 = scalar_lea.vmem [#allocation1], 128
    %v2834 = vld [vmem:[%s2833] ss:$8 sm:$0xf]
    %s2835 = scalar_lea.vmem [#allocation1], 128
    %v2836 = vld [vmem:[%s2835] ss:$8 sm:$0xf0]
    %vm2837 = vcmask 1047556
    %v2838 = vsel %vm2837, %v2836, %v2834
    %vm2839 = vcmask 105472
    %s2840 = scalar_lea.vmem [#allocation0], 16
    %2841 = vst.msk [vmem:[%s2840] sm:$0xff] %vm2839, %v2838
    %s2842 = scalar_lea.vmem [#allocation1], 192
    %v2843 = vld [vmem:[%s2842] ss:$8 sm:$0xf]
    %s2844 = scalar_lea.vmem [#allocation1], 192
    %v2845 = vld [vmem:[%s2844] ss:$8 sm:$0xf0]
    %vm2846 = vcmask 1047556
    %v2847 = vsel %vm2846, %v2845, %v2843
    %vm2848 = vcmask 105472
    %s2849 = scalar_lea.vmem [#allocation0], 24
    %2850 = vst.msk [vmem:[%s2849] sm:$0xff] %vm2848, %v2847
    %s2851 = scalar_lea.vmem [#allocation1], 256
    %v2852 = vld [vmem:[%s2851] ss:$8 sm:$0xf]
    %s2853 = scalar_lea.vmem [#allocation1], 256
    %v2854 = vld [vmem:[%s2853] ss:$8 sm:$0xf0]
    %vm2855 = vcmask 1047556
    %v2856 = vsel %vm2855, %v2854, %v2852
    %vm2857 = vcmask 105472
    %s2858 = scalar_lea.vmem [#allocation0], 32
    %2859 = vst.msk [vmem:[%s2858] sm:$0xff] %vm2857, %v2856
    %s2860 = scalar_lea.vmem [#allocation1], 320
    %v2861 = vld [vmem:[%s2860] ss:$8 sm:$0xf]
    %s2862 = scalar_lea.vmem [#allocation1], 320
    %v2863 = vld [vmem:[%s2862] ss:$8 sm:$0xf0]
    %vm2864 = vcmask 1047556
    %v2865 = vsel %vm2864, %v2863, %v2861
    %vm2866 = vcmask 105472
    %s2867 = scalar_lea.vmem [#allocation0], 40
    %2868 = vst.msk [vmem:[%s2867] sm:$0xff] %vm2866, %v2865
    %s2869 = scalar_lea.vmem [#allocation1], 384
    %v2870 = vld [vmem:[%s2869] ss:$8 sm:$0xf]
    %s2871 = scalar_lea.vmem [#allocation1], 384
    %v2872 = vld [vmem:[%s2871] ss:$8 sm:$0xf0]
    %vm2873 = vcmask 1047556
    %v2874 = vsel %vm2873, %v2872, %v2870
    %vm2875 = vcmask 105472
    %s2876 = scalar_lea.vmem [#allocation0], 48
    %2877 = vst.msk [vmem:[%s2876] sm:$0xff] %vm2875, %v2874
    %s2878 = scalar_lea.vmem [#allocation1], 448
    %v2879 = vld [vmem:[%s2878] ss:$8 sm:$0xf]
    %s2880 = scalar_lea.vmem [#allocation1], 448
    %v2881 = vld [vmem:[%s2880] ss:$8 sm:$0xf0]
    %vm2882 = vcmask 1047556
    %v2883 = vsel %vm2882, %v2881, %v2879
    %vm2884 = vcmask 105472
    %s2885 = scalar_lea.vmem [#allocation0], 56
    %2886 = vst.msk [vmem:[%s2885] sm:$0xff] %vm2884, %v2883
    %s2887 = scalar_lea.vmem [#allocation1], 512
    %v2888 = vld [vmem:[%s2887] ss:$8 sm:$0xf]
    %s2889 = scalar_lea.vmem [#allocation1], 512
    %v2890 = vld [vmem:[%s2889] ss:$8 sm:$0xf0]
    %vm2891 = vcmask 1047556
    %v2892 = vsel %vm2891, %v2890, %v2888
    %vm2893 = vcmask 105472
    %s2894 = scalar_lea.vmem [#allocation0], 64
    %2895 = vst.msk [vmem:[%s2894] sm:$0xff] %vm2893, %v2892
    %s2896 = scalar_lea.vmem [#allocation1], 576
    %v2897 = vld [vmem:[%s2896] ss:$8 sm:$0xf]
    %s2898 = scalar_lea.vmem [#allocation1], 576
    %v2899 = vld [vmem:[%s2898] ss:$8 sm:$0xf0]
    %vm2900 = vcmask 1047556
    %v2901 = vsel %vm2900, %v2899, %v2897
    %vm2902 = vcmask 105472
    %s2903 = scalar_lea.vmem [#allocation0], 72
    %2904 = vst.msk [vmem:[%s2903] sm:$0xff] %vm2902, %v2901
    %s2905 = scalar_lea.vmem [#allocation1], 640
    %v2906 = vld [vmem:[%s2905] ss:$8 sm:$0xf]
    %s2907 = scalar_lea.vmem [#allocation1], 640
    %v2908 = vld [vmem:[%s2907] ss:$8 sm:$0xf0]
    %vm2909 = vcmask 1047556
    %v2910 = vsel %vm2909, %v2908, %v2906
    %vm2911 = vcmask 105472
    %s2912 = scalar_lea.vmem [#allocation0], 80
    %2913 = vst.msk [vmem:[%s2912] sm:$0xff] %vm2911, %v2910
    %s2914 = scalar_lea.vmem [#allocation1], 704
    %v2915 = vld [vmem:[%s2914] ss:$8 sm:$0xf]
    %s2916 = scalar_lea.vmem [#allocation1], 704
    %v2917 = vld [vmem:[%s2916] ss:$8 sm:$0xf0]
    %vm2918 = vcmask 1047556
    %v2919 = vsel %vm2918, %v2917, %v2915
    %vm2920 = vcmask 105472
    %s2921 = scalar_lea.vmem [#allocation0], 88
    %2922 = vst.msk [vmem:[%s2921] sm:$0xff] %vm2920, %v2919
    %s2923 = scalar_lea.vmem [#allocation1], 768
    %v2924 = vld [vmem:[%s2923] ss:$8 sm:$0xf]
    %s2925 = scalar_lea.vmem [#allocation1], 768
    %v2926 = vld [vmem:[%s2925] ss:$8 sm:$0xf0]
    %vm2927 = vcmask 1047556
    %v2928 = vsel %vm2927, %v2926, %v2924
    %vm2929 = vcmask 105472
    %s2930 = scalar_lea.vmem [#allocation0], 96
    %2931 = vst.msk [vmem:[%s2930] sm:$0xff] %vm2929, %v2928
    %s2932 = scalar_lea.vmem [#allocation1], 832
    %v2933 = vld [vmem:[%s2932] ss:$8 sm:$0xf]
    %s2934 = scalar_lea.vmem [#allocation1], 832
    %v2935 = vld [vmem:[%s2934] ss:$8 sm:$0xf0]
    %vm2936 = vcmask 1047556
    %v2937 = vsel %vm2936, %v2935, %v2933
    %vm2938 = vcmask 105472
    %s2939 = scalar_lea.vmem [#allocation0], 104
    %2940 = vst.msk [vmem:[%s2939] sm:$0xff] %vm2938, %v2937
    %s2941 = scalar_lea.vmem [#allocation1], 896
    %v2942 = vld [vmem:[%s2941] ss:$8 sm:$0xf]
    %s2943 = scalar_lea.vmem [#allocation1], 896
    %v2944 = vld [vmem:[%s2943] ss:$8 sm:$0xf0]
    %vm2945 = vcmask 1047556
    %v2946 = vsel %vm2945, %v2944, %v2942
    %vm2947 = vcmask 105472
    %s2948 = scalar_lea.vmem [#allocation0], 112
    %2949 = vst.msk [vmem:[%s2948] sm:$0xff] %vm2947, %v2946
    %s2950 = scalar_lea.vmem [#allocation1], 960
    %v2951 = vld [vmem:[%s2950] ss:$8 sm:$0xf]
    %s2952 = scalar_lea.vmem [#allocation1], 960
    %v2953 = vld [vmem:[%s2952] ss:$8 sm:$0xf0]
    %vm2954 = vcmask 1047556
    %v2955 = vsel %vm2954, %v2953, %v2951
    %vm2956 = vcmask 105472
    %s2957 = scalar_lea.vmem [#allocation0], 120
    %2958 = vst.msk [vmem:[%s2957] sm:$0xff] %vm2956, %v2955
    %s2959 = scalar_lea.vmem [#allocation1], 1024
    %v2960 = vld [vmem:[%s2959] ss:$8 sm:$0xf]
    %s2961 = scalar_lea.vmem [#allocation1], 1024
    %v2962 = vld [vmem:[%s2961] ss:$8 sm:$0xf0]
    %vm2963 = vcmask 1047556
    %v2964 = vsel %vm2963, %v2962, %v2960
    %vm2965 = vcmask 105472
    %s2966 = scalar_lea.vmem [#allocation0], 128
    %2967 = vst.msk [vmem:[%s2966] sm:$0xff] %vm2965, %v2964
    %s2968 = scalar_lea.vmem [#allocation1], 1088
    %v2969 = vld [vmem:[%s2968] ss:$8 sm:$0xf]
    %s2970 = scalar_lea.vmem [#allocation1], 1088
    %v2971 = vld [vmem:[%s2970] ss:$8 sm:$0xf0]
    %vm2972 = vcmask 1047556
    %v2973 = vsel %vm2972, %v2971, %v2969
    %vm2974 = vcmask 105472
    %s2975 = scalar_lea.vmem [#allocation0], 136
    %2976 = vst.msk [vmem:[%s2975] sm:$0xff] %vm2974, %v2973
    %s2977 = scalar_lea.vmem [#allocation1], 1152
    %v2978 = vld [vmem:[%s2977] ss:$8 sm:$0xf]
    %s2979 = scalar_lea.vmem [#allocation1], 1152
    %v2980 = vld [vmem:[%s2979] ss:$8 sm:$0xf0]
    %vm2981 = vcmask 1047556
    %v2982 = vsel %vm2981, %v2980, %v2978
    %vm2983 = vcmask 105472
    %s2984 = scalar_lea.vmem [#allocation0], 144
    %2985 = vst.msk [vmem:[%s2984] sm:$0xff] %vm2983, %v2982
    %s2986 = scalar_lea.vmem [#allocation1], 1216
    %v2987 = vld [vmem:[%s2986] ss:$8 sm:$0xf]
    %s2988 = scalar_lea.vmem [#allocation1], 1216
    %v2989 = vld [vmem:[%s2988] ss:$8 sm:$0xf0]
    %vm2990 = vcmask 1047556
    %v2991 = vsel %vm2990, %v2989, %v2987
    %vm2992 = vcmask 105472
    %s2993 = scalar_lea.vmem [#allocation0], 152
    %2994 = vst.msk [vmem:[%s2993] sm:$0xff] %vm2992, %v2991
    %s2995 = scalar_lea.vmem [#allocation1], 1280
    %v2996 = vld [vmem:[%s2995] ss:$8 sm:$0xf]
    %s2997 = scalar_lea.vmem [#allocation1], 1280
    %v2998 = vld [vmem:[%s2997] ss:$8 sm:$0xf0]
    %vm2999 = vcmask 1047556
    %v3000 = vsel %vm2999, %v2998, %v2996
    %vm3001 = vcmask 105472
    %s3002 = scalar_lea.vmem [#allocation0], 160
    %3003 = vst.msk [vmem:[%s3002] sm:$0xff] %vm3001, %v3000
    %s3004 = scalar_lea.vmem [#allocation1], 1344
    %v3005 = vld [vmem:[%s3004] ss:$8 sm:$0xf]
    %s3006 = scalar_lea.vmem [#allocation1], 1344
    %v3007 = vld [vmem:[%s3006] ss:$8 sm:$0xf0]
    %vm3008 = vcmask 1047556
    %v3009 = vsel %vm3008, %v3007, %v3005
    %vm3010 = vcmask 105472
    %s3011 = scalar_lea.vmem [#allocation0], 168
    %3012 = vst.msk [vmem:[%s3011] sm:$0xff] %vm3010, %v3009
    %s3013 = scalar_lea.vmem [#allocation1], 7
    %v3014 = vld [vmem:[%s3013] ss:$8 sm:$0xf]
    %s3015 = scalar_lea.vmem [#allocation1], 7
    %v3016 = vld [vmem:[%s3015] ss:$8 sm:$0xf0]
    %vm3017 = vcmask 1047556
    %v3018 = vsel %vm3017, %v3016, %v3014
    %3019 = vrot.lane.b32.xlu0 %v3018, 91
    %v3020 = vpop.permute.xlu0 %3019
    %vm3021 = vcmask 851672
    %3022 = vst.msk [vmem:[#allocation0] sm:$0xff] %vm3021, %v3020
    %s3023 = scalar_lea.vmem [#allocation1], 263
    %v3024 = vld [vmem:[%s3023] ss:$8 sm:$0xf]
    %s3025 = scalar_lea.vmem [#allocation1], 263
    %v3026 = vld [vmem:[%s3025] ss:$8 sm:$0xf0]
    %vm3027 = vcmask 1047556
    %v3028 = vsel %vm3027, %v3026, %v3024
    %3029 = vrot.lane.b32.xlu0 %v3028, 91
    %v3030 = vpop.permute.xlu0 %3029
    %vm3031 = vcmask 851672
    %s3032 = scalar_lea.vmem [#allocation0], 32
    %3033 = vst.msk [vmem:[%s3032] sm:$0xff] %vm3031, %v3030
    %s3034 = scalar_lea.vmem [#allocation1], 519
    %v3035 = vld [vmem:[%s3034] ss:$8 sm:$0xf]
    %s3036 = scalar_lea.vmem [#allocation1], 519
    %v3037 = vld [vmem:[%s3036] ss:$8 sm:$0xf0]
    %vm3038 = vcmask 1047556
    %v3039 = vsel %vm3038, %v3037, %v3035
    %3040 = vrot.lane.b32.xlu0 %v3039, 91
    %v3041 = vpop.permute.xlu0 %3040
    %vm3042 = vcmask 851672
    %s3043 = scalar_lea.vmem [#allocation0], 64
    %3044 = vst.msk [vmem:[%s3043] sm:$0xff] %vm3042, %v3041
    %s3045 = scalar_lea.vmem [#allocation1], 775
    %v3046 = vld [vmem:[%s3045] ss:$8 sm:$0xf]
    %s3047 = scalar_lea.vmem [#allocation1], 775
    %v3048 = vld [vmem:[%s3047] ss:$8 sm:$0xf0]
    %vm3049 = vcmask 1047556
    %v3050 = vsel %vm3049, %v3048, %v3046
    %3051 = vrot.lane.b32.xlu0 %v3050, 91
    %v3052 = vpop.permute.xlu0 %3051
    %vm3053 = vcmask 851672
    %s3054 = scalar_lea.vmem [#allocation0], 96
    %3055 = vst.msk [vmem:[%s3054] sm:$0xff] %vm3053, %v3052
    %s3056 = scalar_lea.vmem [#allocation1], 1031
    %v3057 = vld [vmem:[%s3056] ss:$8 sm:$0xf]
    %s3058 = scalar_lea.vmem [#allocation1], 1031
    %v3059 = vld [vmem:[%s3058] ss:$8 sm:$0xf0]
    %vm3060 = vcmask 1047556
    %v3061 = vsel %vm3060, %v3059, %v3057
    %3062 = vrot.lane.b32.xlu0 %v3061, 91
    %v3063 = vpop.permute.xlu0 %3062
    %vm3064 = vcmask 851672
    %s3065 = scalar_lea.vmem [#allocation0], 128
    %3066 = vst.msk [vmem:[%s3065] sm:$0xff] %vm3064, %v3063
    %s3067 = scalar_lea.vmem [#allocation1], 1287
    %v3068 = vld [vmem:[%s3067] ss:$8 sm:$0xf]
    %s3069 = scalar_lea.vmem [#allocation1], 1287
    %v3070 = vld [vmem:[%s3069] ss:$8 sm:$0xf0]
    %vm3071 = vcmask 1047556
    %v3072 = vsel %vm3071, %v3070, %v3068
    %3073 = vrot.lane.b32.xlu0 %v3072, 91
    %v3074 = vpop.permute.xlu0 %3073
    %vm3075 = vcmask 851672
    %s3076 = scalar_lea.vmem [#allocation0], 160
    %3077 = vst.msk [vmem:[%s3076] sm:$0xff] %vm3075, %v3074
    %s3078 = scalar_lea.vmem [#allocation1], 71
    %v3079 = vld [vmem:[%s3078] ss:$8 sm:$0xf]
    %s3080 = scalar_lea.vmem [#allocation1], 71
    %v3081 = vld [vmem:[%s3080] ss:$8 sm:$0xf0]
    %vm3082 = vcmask 1047556
    %v3083 = vsel %vm3082, %v3081, %v3079
    %3084 = vrot.lane.b32.xlu0 %v3083, 91
    %v3085 = vpop.permute.xlu0 %3084
    %vm3086 = vcmask 851672
    %s3087 = scalar_lea.vmem [#allocation0], 8
    %3088 = vst.msk [vmem:[%s3087] sm:$0xff] %vm3086, %v3085
    %s3089 = scalar_lea.vmem [#allocation1], 327
    %v3090 = vld [vmem:[%s3089] ss:$8 sm:$0xf]
    %s3091 = scalar_lea.vmem [#allocation1], 327
    %v3092 = vld [vmem:[%s3091] ss:$8 sm:$0xf0]
    %vm3093 = vcmask 1047556
    %v3094 = vsel %vm3093, %v3092, %v3090
    %3095 = vrot.lane.b32.xlu0 %v3094, 91
    %v3096 = vpop.permute.xlu0 %3095
    %vm3097 = vcmask 851672
    %s3098 = scalar_lea.vmem [#allocation0], 40
    %3099 = vst.msk [vmem:[%s3098] sm:$0xff] %vm3097, %v3096
    %s3100 = scalar_lea.vmem [#allocation1], 583
    %v3101 = vld [vmem:[%s3100] ss:$8 sm:$0xf]
    %s3102 = scalar_lea.vmem [#allocation1], 583
    %v3103 = vld [vmem:[%s3102] ss:$8 sm:$0xf0]
    %vm3104 = vcmask 1047556
    %v3105 = vsel %vm3104, %v3103, %v3101
    %3106 = vrot.lane.b32.xlu0 %v3105, 91
    %v3107 = vpop.permute.xlu0 %3106
    %vm3108 = vcmask 851672
    %s3109 = scalar_lea.vmem [#allocation0], 72
    %3110 = vst.msk [vmem:[%s3109] sm:$0xff] %vm3108, %v3107
    %s3111 = scalar_lea.vmem [#allocation1], 839
    %v3112 = vld [vmem:[%s3111] ss:$8 sm:$0xf]
    %s3113 = scalar_lea.vmem [#allocation1], 839
    %v3114 = vld [vmem:[%s3113] ss:$8 sm:$0xf0]
    %vm3115 = vcmask 1047556
    %v3116 = vsel %vm3115, %v3114, %v3112
    %3117 = vrot.lane.b32.xlu0 %v3116, 91
    %v3118 = vpop.permute.xlu0 %3117
    %vm3119 = vcmask 851672
    %s3120 = scalar_lea.vmem [#allocation0], 104
    %3121 = vst.msk [vmem:[%s3120] sm:$0xff] %vm3119, %v3118
    %s3122 = scalar_lea.vmem [#allocation1], 1095
    %v3123 = vld [vmem:[%s3122] ss:$8 sm:$0xf]
    %s3124 = scalar_lea.vmem [#allocation1], 1095
    %v3125 = vld [vmem:[%s3124] ss:$8 sm:$0xf0]
    %vm3126 = vcmask 1047556
    %v3127 = vsel %vm3126, %v3125, %v3123
    %3128 = vrot.lane.b32.xlu0 %v3127, 91
    %v3129 = vpop.permute.xlu0 %3128
    %vm3130 = vcmask 851672
    %s3131 = scalar_lea.vmem [#allocation0], 136
    %3132 = vst.msk [vmem:[%s3131] sm:$0xff] %vm3130, %v3129
    %s3133 = scalar_lea.vmem [#allocation1], 1351
    %v3134 = vld [vmem:[%s3133] ss:$8 sm:$0xf]
    %s3135 = scalar_lea.vmem [#allocation1], 1351
    %v3136 = vld [vmem:[%s3135] ss:$8 sm:$0xf0]
    %vm3137 = vcmask 1047556
    %v3138 = vsel %vm3137, %v3136, %v3134
    %3139 = vrot.lane.b32.xlu0 %v3138, 91
    %v3140 = vpop.permute.xlu0 %3139
    %vm3141 = vcmask 851672
    %s3142 = scalar_lea.vmem [#allocation0], 168
    %3143 = vst.msk [vmem:[%s3142] sm:$0xff] %vm3141, %v3140
    %s3144 = scalar_lea.vmem [#allocation1], 135
    %v3145 = vld [vmem:[%s3144] ss:$8 sm:$0xf]
    %s3146 = scalar_lea.vmem [#allocation1], 135
    %v3147 = vld [vmem:[%s3146] ss:$8 sm:$0xf0]
    %vm3148 = vcmask 1047556
    %v3149 = vsel %vm3148, %v3147, %v3145
    %3150 = vrot.lane.b32.xlu0 %v3149, 91
    %v3151 = vpop.permute.xlu0 %3150
    %vm3152 = vcmask 851672
    %s3153 = scalar_lea.vmem [#allocation0], 16
    %3154 = vst.msk [vmem:[%s3153] sm:$0xff] %vm3152, %v3151
    %s3155 = scalar_lea.vmem [#allocation1], 391
    %v3156 = vld [vmem:[%s3155] ss:$8 sm:$0xf]
    %s3157 = scalar_lea.vmem [#allocation1], 391
    %v3158 = vld [vmem:[%s3157] ss:$8 sm:$0xf0]
    %vm3159 = vcmask 1047556
    %v3160 = vsel %vm3159, %v3158, %v3156
    %3161 = vrot.lane.b32.xlu0 %v3160, 91
    %v3162 = vpop.permute.xlu0 %3161
    %vm3163 = vcmask 851672
    %s3164 = scalar_lea.vmem [#allocation0], 48
    %3165 = vst.msk [vmem:[%s3164] sm:$0xff] %vm3163, %v3162
    %s3166 = scalar_lea.vmem [#allocation1], 647
    %v3167 = vld [vmem:[%s3166] ss:$8 sm:$0xf]
    %s3168 = scalar_lea.vmem [#allocation1], 647
    %v3169 = vld [vmem:[%s3168] ss:$8 sm:$0xf0]
    %vm3170 = vcmask 1047556
    %v3171 = vsel %vm3170, %v3169, %v3167
    %3172 = vrot.lane.b32.xlu0 %v3171, 91
    %v3173 = vpop.permute.xlu0 %3172
    %vm3174 = vcmask 851672
    %s3175 = scalar_lea.vmem [#allocation0], 80
    %3176 = vst.msk [vmem:[%s3175] sm:$0xff] %vm3174, %v3173
    %s3177 = scalar_lea.vmem [#allocation1], 903
    %v3178 = vld [vmem:[%s3177] ss:$8 sm:$0xf]
    %s3179 = scalar_lea.vmem [#allocation1], 903
    %v3180 = vld [vmem:[%s3179] ss:$8 sm:$0xf0]
    %vm3181 = vcmask 1047556
    %v3182 = vsel %vm3181, %v3180, %v3178
    %3183 = vrot.lane.b32.xlu0 %v3182, 91
    %v3184 = vpop.permute.xlu0 %3183
    %vm3185 = vcmask 851672
    %s3186 = scalar_lea.vmem [#allocation0], 112
    %3187 = vst.msk [vmem:[%s3186] sm:$0xff] %vm3185, %v3184
    %s3188 = scalar_lea.vmem [#allocation1], 1159
    %v3189 = vld [vmem:[%s3188] ss:$8 sm:$0xf]
    %s3190 = scalar_lea.vmem [#allocation1], 1159
    %v3191 = vld [vmem:[%s3190] ss:$8 sm:$0xf0]
    %vm3192 = vcmask 1047556
    %v3193 = vsel %vm3192, %v3191, %v3189
    %3194 = vrot.lane.b32.xlu0 %v3193, 91
    %v3195 = vpop.permute.xlu0 %3194
    %vm3196 = vcmask 851672
    %s3197 = scalar_lea.vmem [#allocation0], 144
    %3198 = vst.msk [vmem:[%s3197] sm:$0xff] %vm3196, %v3195
    %s3199 = scalar_lea.vmem [#allocation1], 199
    %v3200 = vld [vmem:[%s3199] ss:$8 sm:$0xf]
    %s3201 = scalar_lea.vmem [#allocation1], 199
    %v3202 = vld [vmem:[%s3201] ss:$8 sm:$0xf0]
    %vm3203 = vcmask 1047556
    %v3204 = vsel %vm3203, %v3202, %v3200
    %3205 = vrot.lane.b32.xlu0 %v3204, 91
    %v3206 = vpop.permute.xlu0 %3205
    %vm3207 = vcmask 851672
    %s3208 = scalar_lea.vmem [#allocation0], 24
    %3209 = vst.msk [vmem:[%s3208] sm:$0xff] %vm3207, %v3206
    %s3210 = scalar_lea.vmem [#allocation1], 455
    %v3211 = vld [vmem:[%s3210] ss:$8 sm:$0xf]
    %s3212 = scalar_lea.vmem [#allocation1], 455
    %v3213 = vld [vmem:[%s3212] ss:$8 sm:$0xf0]
    %vm3214 = vcmask 1047556
    %v3215 = vsel %vm3214, %v3213, %v3211
    %3216 = vrot.lane.b32.xlu0 %v3215, 91
    %v3217 = vpop.permute.xlu0 %3216
    %vm3218 = vcmask 851672
    %s3219 = scalar_lea.vmem [#allocation0], 56
    %3220 = vst.msk [vmem:[%s3219] sm:$0xff] %vm3218, %v3217
    %s3221 = scalar_lea.vmem [#allocation1], 711
    %v3222 = vld [vmem:[%s3221] ss:$8 sm:$0xf]
    %s3223 = scalar_lea.vmem [#allocation1], 711
    %v3224 = vld [vmem:[%s3223] ss:$8 sm:$0xf0]
    %vm3225 = vcmask 1047556
    %v3226 = vsel %vm3225, %v3224, %v3222
    %3227 = vrot.lane.b32.xlu0 %v3226, 91
    %v3228 = vpop.permute.xlu0 %3227
    %vm3229 = vcmask 851672
    %s3230 = scalar_lea.vmem [#allocation0], 88
    %3231 = vst.msk [vmem:[%s3230] sm:$0xff] %vm3229, %v3228
    %s3232 = scalar_lea.vmem [#allocation1], 967
    %v3233 = vld [vmem:[%s3232] ss:$8 sm:$0xf]
    %s3234 = scalar_lea.vmem [#allocation1], 967
    %v3235 = vld [vmem:[%s3234] ss:$8 sm:$0xf0]
    %vm3236 = vcmask 1047556
    %v3237 = vsel %vm3236, %v3235, %v3233
    %3238 = vrot.lane.b32.xlu0 %v3237, 91
    %v3239 = vpop.permute.xlu0 %3238
    %vm3240 = vcmask 851672
    %s3241 = scalar_lea.vmem [#allocation0], 120
    %3242 = vst.msk [vmem:[%s3241] sm:$0xff] %vm3240, %v3239
    %s3243 = scalar_lea.vmem [#allocation1], 1223
    %v3244 = vld [vmem:[%s3243] ss:$8 sm:$0xf]
    %s3245 = scalar_lea.vmem [#allocation1], 1223
    %v3246 = vld [vmem:[%s3245] ss:$8 sm:$0xf0]
    %vm3247 = vcmask 1047556
    %v3248 = vsel %vm3247, %v3246, %v3244
    %3249 = vrot.lane.b32.xlu0 %v3248, 91
    %v3250 = vpop.permute.xlu0 %3249
    %vm3251 = vcmask 851672
    %s3252 = scalar_lea.vmem [#allocation0], 152
    %3253 = vst.msk [vmem:[%s3252] sm:$0xff] %vm3251, %v3250
    %s3254 = scalar_lea.vmem [#allocation1], 6
    %v3255 = vld [vmem:[%s3254] ss:$8 sm:$0xf]
    %s3256 = scalar_lea.vmem [#allocation1], 6
    %v3257 = vld [vmem:[%s3256] ss:$8 sm:$0xf0]
    %vm3258 = vcmask 1047556
    %v3259 = vsel %vm3258, %v3257, %v3255
    %3260 = vrot.lane.b32.xlu0 %v3259, 78
    %v3261 = vpop.permute.xlu0 %3260
    %vm3262 = vcmask 745072
    %3263 = vst.msk [vmem:[#allocation0] sm:$0xff] %vm3262, %v3261
    %s3264 = scalar_lea.vmem [#allocation1], 262
    %v3265 = vld [vmem:[%s3264] ss:$8 sm:$0xf]
    %s3266 = scalar_lea.vmem [#allocation1], 262
    %v3267 = vld [vmem:[%s3266] ss:$8 sm:$0xf0]
    %vm3268 = vcmask 1047556
    %v3269 = vsel %vm3268, %v3267, %v3265
    %3270 = vrot.lane.b32.xlu0 %v3269, 78
    %v3271 = vpop.permute.xlu0 %3270
    %vm3272 = vcmask 745072
    %s3273 = scalar_lea.vmem [#allocation0], 32
    %3274 = vst.msk [vmem:[%s3273] sm:$0xff] %vm3272, %v3271
    %s3275 = scalar_lea.vmem [#allocation1], 518
    %v3276 = vld [vmem:[%s3275] ss:$8 sm:$0xf]
    %s3277 = scalar_lea.vmem [#allocation1], 518
    %v3278 = vld [vmem:[%s3277] ss:$8 sm:$0xf0]
    %vm3279 = vcmask 1047556
    %v3280 = vsel %vm3279, %v3278, %v3276
    %3281 = vrot.lane.b32.xlu0 %v3280, 78
    %v3282 = vpop.permute.xlu0 %3281
    %vm3283 = vcmask 745072
    %s3284 = scalar_lea.vmem [#allocation0], 64
    %3285 = vst.msk [vmem:[%s3284] sm:$0xff] %vm3283, %v3282
    %s3286 = scalar_lea.vmem [#allocation1], 774
    %v3287 = vld [vmem:[%s3286] ss:$8 sm:$0xf]
    %s3288 = scalar_lea.vmem [#allocation1], 774
    %v3289 = vld [vmem:[%s3288] ss:$8 sm:$0xf0]
    %vm3290 = vcmask 1047556
    %v3291 = vsel %vm3290, %v3289, %v3287
    %3292 = vrot.lane.b32.xlu0 %v3291, 78
    %v3293 = vpop.permute.xlu0 %3292
    %vm3294 = vcmask 745072
    %s3295 = scalar_lea.vmem [#allocation0], 96
    %3296 = vst.msk [vmem:[%s3295] sm:$0xff] %vm3294, %v3293
    %s3297 = scalar_lea.vmem [#allocation1], 1030
    %v3298 = vld [vmem:[%s3297] ss:$8 sm:$0xf]
    %s3299 = scalar_lea.vmem [#allocation1], 1030
    %v3300 = vld [vmem:[%s3299] ss:$8 sm:$0xf0]
    %vm3301 = vcmask 1047556
    %v3302 = vsel %vm3301, %v3300, %v3298
    %3303 = vrot.lane.b32.xlu0 %v3302, 78
    %v3304 = vpop.permute.xlu0 %3303
    %vm3305 = vcmask 745072
    %s3306 = scalar_lea.vmem [#allocation0], 128
    %3307 = vst.msk [vmem:[%s3306] sm:$0xff] %vm3305, %v3304
    %s3308 = scalar_lea.vmem [#allocation1], 1286
    %v3309 = vld [vmem:[%s3308] ss:$8 sm:$0xf]
    %s3310 = scalar_lea.vmem [#allocation1], 1286
    %v3311 = vld [vmem:[%s3310] ss:$8 sm:$0xf0]
    %vm3312 = vcmask 1047556
    %v3313 = vsel %vm3312, %v3311, %v3309
    %3314 = vrot.lane.b32.xlu0 %v3313, 78
    %v3315 = vpop.permute.xlu0 %3314
    %vm3316 = vcmask 745072
    %s3317 = scalar_lea.vmem [#allocation0], 160
    %3318 = vst.msk [vmem:[%s3317] sm:$0xff] %vm3316, %v3315
    %s3319 = scalar_lea.vmem [#allocation1], 70
    %v3320 = vld [vmem:[%s3319] ss:$8 sm:$0xf]
    %s3321 = scalar_lea.vmem [#allocation1], 70
    %v3322 = vld [vmem:[%s3321] ss:$8 sm:$0xf0]
    %vm3323 = vcmask 1047556
    %v3324 = vsel %vm3323, %v3322, %v3320
    %3325 = vrot.lane.b32.xlu0 %v3324, 78
    %v3326 = vpop.permute.xlu0 %3325
    %vm3327 = vcmask 745072
    %s3328 = scalar_lea.vmem [#allocation0], 8
    %3329 = vst.msk [vmem:[%s3328] sm:$0xff] %vm3327, %v3326
    %s3330 = scalar_lea.vmem [#allocation1], 326
    %v3331 = vld [vmem:[%s3330] ss:$8 sm:$0xf]
    %s3332 = scalar_lea.vmem [#allocation1], 326
    %v3333 = vld [vmem:[%s3332] ss:$8 sm:$0xf0]
    %vm3334 = vcmask 1047556
    %v3335 = vsel %vm3334, %v3333, %v3331
    %3336 = vrot.lane.b32.xlu0 %v3335, 78
    %v3337 = vpop.permute.xlu0 %3336
    %vm3338 = vcmask 745072
    %s3339 = scalar_lea.vmem [#allocation0], 40
    %3340 = vst.msk [vmem:[%s3339] sm:$0xff] %vm3338, %v3337
    %s3341 = scalar_lea.vmem [#allocation1], 582
    %v3342 = vld [vmem:[%s3341] ss:$8 sm:$0xf]
    %s3343 = scalar_lea.vmem [#allocation1], 582
    %v3344 = vld [vmem:[%s3343] ss:$8 sm:$0xf0]
    %vm3345 = vcmask 1047556
    %v3346 = vsel %vm3345, %v3344, %v3342
    %3347 = vrot.lane.b32.xlu0 %v3346, 78
    %v3348 = vpop.permute.xlu0 %3347
    %vm3349 = vcmask 745072
    %s3350 = scalar_lea.vmem [#allocation0], 72
    %3351 = vst.msk [vmem:[%s3350] sm:$0xff] %vm3349, %v3348
    %s3352 = scalar_lea.vmem [#allocation1], 838
    %v3353 = vld [vmem:[%s3352] ss:$8 sm:$0xf]
    %s3354 = scalar_lea.vmem [#allocation1], 838
    %v3355 = vld [vmem:[%s3354] ss:$8 sm:$0xf0]
    %vm3356 = vcmask 1047556
    %v3357 = vsel %vm3356, %v3355, %v3353
    %3358 = vrot.lane.b32.xlu0 %v3357, 78
    %v3359 = vpop.permute.xlu0 %3358
    %vm3360 = vcmask 745072
    %s3361 = scalar_lea.vmem [#allocation0], 104
    %3362 = vst.msk [vmem:[%s3361] sm:$0xff] %vm3360, %v3359
    %s3363 = scalar_lea.vmem [#allocation1], 1094
    %v3364 = vld [vmem:[%s3363] ss:$8 sm:$0xf]
    %s3365 = scalar_lea.vmem [#allocation1], 1094
    %v3366 = vld [vmem:[%s3365] ss:$8 sm:$0xf0]
    %vm3367 = vcmask 1047556
    %v3368 = vsel %vm3367, %v3366, %v3364
    %3369 = vrot.lane.b32.xlu0 %v3368, 78
    %v3370 = vpop.permute.xlu0 %3369
    %vm3371 = vcmask 745072
    %s3372 = scalar_lea.vmem [#allocation0], 136
    %3373 = vst.msk [vmem:[%s3372] sm:$0xff] %vm3371, %v3370
    %s3374 = scalar_lea.vmem [#allocation1], 1350
    %v3375 = vld [vmem:[%s3374] ss:$8 sm:$0xf]
    %s3376 = scalar_lea.vmem [#allocation1], 1350
    %v3377 = vld [vmem:[%s3376] ss:$8 sm:$0xf0]
    %vm3378 = vcmask 1047556
    %v3379 = vsel %vm3378, %v3377, %v3375
    %3380 = vrot.lane.b32.xlu0 %v3379, 78
    %v3381 = vpop.permute.xlu0 %3380
    %vm3382 = vcmask 745072
    %s3383 = scalar_lea.vmem [#allocation0], 168
    %3384 = vst.msk [vmem:[%s3383] sm:$0xff] %vm3382, %v3381
    %s3385 = scalar_lea.vmem [#allocation1], 134
    %v3386 = vld [vmem:[%s3385] ss:$8 sm:$0xf]
    %s3387 = scalar_lea.vmem [#allocation1], 134
    %v3388 = vld [vmem:[%s3387] ss:$8 sm:$0xf0]
    %vm3389 = vcmask 1047556
    %v3390 = vsel %vm3389, %v3388, %v3386
    %3391 = vrot.lane.b32.xlu0 %v3390, 78
    %v3392 = vpop.permute.xlu0 %3391
    %vm3393 = vcmask 745072
    %s3394 = scalar_lea.vmem [#allocation0], 16
    %3395 = vst.msk [vmem:[%s3394] sm:$0xff] %vm3393, %v3392
    %s3396 = scalar_lea.vmem [#allocation1], 390
    %v3397 = vld [vmem:[%s3396] ss:$8 sm:$0xf]
    %s3398 = scalar_lea.vmem [#allocation1], 390
    %v3399 = vld [vmem:[%s3398] ss:$8 sm:$0xf0]
    %vm3400 = vcmask 1047556
    %v3401 = vsel %vm3400, %v3399, %v3397
    %3402 = vrot.lane.b32.xlu0 %v3401, 78
    %v3403 = vpop.permute.xlu0 %3402
    %vm3404 = vcmask 745072
    %s3405 = scalar_lea.vmem [#allocation0], 48
    %3406 = vst.msk [vmem:[%s3405] sm:$0xff] %vm3404, %v3403
    %s3407 = scalar_lea.vmem [#allocation1], 646
    %v3408 = vld [vmem:[%s3407] ss:$8 sm:$0xf]
    %s3409 = scalar_lea.vmem [#allocation1], 646
    %v3410 = vld [vmem:[%s3409] ss:$8 sm:$0xf0]
    %vm3411 = vcmask 1047556
    %v3412 = vsel %vm3411, %v3410, %v3408
    %3413 = vrot.lane.b32.xlu0 %v3412, 78
    %v3414 = vpop.permute.xlu0 %3413
    %vm3415 = vcmask 745072
    %s3416 = scalar_lea.vmem [#allocation0], 80
    %3417 = vst.msk [vmem:[%s3416] sm:$0xff] %vm3415, %v3414
    %s3418 = scalar_lea.vmem [#allocation1], 902
    %v3419 = vld [vmem:[%s3418] ss:$8 sm:$0xf]
    %s3420 = scalar_lea.vmem [#allocation1], 902
    %v3421 = vld [vmem:[%s3420] ss:$8 sm:$0xf0]
    %vm3422 = vcmask 1047556
    %v3423 = vsel %vm3422, %v3421, %v3419
    %3424 = vrot.lane.b32.xlu0 %v3423, 78
    %v3425 = vpop.permute.xlu0 %3424
    %vm3426 = vcmask 745072
    %s3427 = scalar_lea.vmem [#allocation0], 112
    %3428 = vst.msk [vmem:[%s3427] sm:$0xff] %vm3426, %v3425
    %s3429 = scalar_lea.vmem [#allocation1], 1158
    %v3430 = vld [vmem:[%s3429] ss:$8 sm:$0xf]
    %s3431 = scalar_lea.vmem [#allocation1], 1158
    %v3432 = vld [vmem:[%s3431] ss:$8 sm:$0xf0]
    %vm3433 = vcmask 1047556
    %v3434 = vsel %vm3433, %v3432, %v3430
    %3435 = vrot.lane.b32.xlu0 %v3434, 78
    %v3436 = vpop.permute.xlu0 %3435
    %vm3437 = vcmask 745072
    %s3438 = scalar_lea.vmem [#allocation0], 144
    %3439 = vst.msk [vmem:[%s3438] sm:$0xff] %vm3437, %v3436
    %s3440 = scalar_lea.vmem [#allocation1], 198
    %v3441 = vld [vmem:[%s3440] ss:$8 sm:$0xf]
    %s3442 = scalar_lea.vmem [#allocation1], 198
    %v3443 = vld [vmem:[%s3442] ss:$8 sm:$0xf0]
    %vm3444 = vcmask 1047556
    %v3445 = vsel %vm3444, %v3443, %v3441
    %3446 = vrot.lane.b32.xlu0 %v3445, 78
    %v3447 = vpop.permute.xlu0 %3446
    %vm3448 = vcmask 745072
    %s3449 = scalar_lea.vmem [#allocation0], 24
    %3450 = vst.msk [vmem:[%s3449] sm:$0xff] %vm3448, %v3447
    %s3451 = scalar_lea.vmem [#allocation1], 454
    %v3452 = vld [vmem:[%s3451] ss:$8 sm:$0xf]
    %s3453 = scalar_lea.vmem [#allocation1], 454
    %v3454 = vld [vmem:[%s3453] ss:$8 sm:$0xf0]
    %vm3455 = vcmask 1047556
    %v3456 = vsel %vm3455, %v3454, %v3452
    %3457 = vrot.lane.b32.xlu0 %v3456, 78
    %v3458 = vpop.permute.xlu0 %3457
    %vm3459 = vcmask 745072
    %s3460 = scalar_lea.vmem [#allocation0], 56
    %3461 = vst.msk [vmem:[%s3460] sm:$0xff] %vm3459, %v3458
    %s3462 = scalar_lea.vmem [#allocation1], 710
    %v3463 = vld [vmem:[%s3462] ss:$8 sm:$0xf]
    %s3464 = scalar_lea.vmem [#allocation1], 710
    %v3465 = vld [vmem:[%s3464] ss:$8 sm:$0xf0]
    %vm3466 = vcmask 1047556
    %v3467 = vsel %vm3466, %v3465, %v3463
    %3468 = vrot.lane.b32.xlu0 %v3467, 78
    %v3469 = vpop.permute.xlu0 %3468
    %vm3470 = vcmask 745072
    %s3471 = scalar_lea.vmem [#allocation0], 88
    %3472 = vst.msk [vmem:[%s3471] sm:$0xff] %vm3470, %v3469
    %s3473 = scalar_lea.vmem [#allocation1], 966
    %v3474 = vld [vmem:[%s3473] ss:$8 sm:$0xf]
    %s3475 = scalar_lea.vmem [#allocation1], 966
    %v3476 = vld [vmem:[%s3475] ss:$8 sm:$0xf0]
    %vm3477 = vcmask 1047556
    %v3478 = vsel %vm3477, %v3476, %v3474
    %3479 = vrot.lane.b32.xlu0 %v3478, 78
    %v3480 = vpop.permute.xlu0 %3479
    %vm3481 = vcmask 745072
    %s3482 = scalar_lea.vmem [#allocation0], 120
    %3483 = vst.msk [vmem:[%s3482] sm:$0xff] %vm3481, %v3480
    %s3484 = scalar_lea.vmem [#allocation1], 1222
    %v3485 = vld [vmem:[%s3484] ss:$8 sm:$0xf]
    %s3486 = scalar_lea.vmem [#allocation1], 1222
    %v3487 = vld [vmem:[%s3486] ss:$8 sm:$0xf0]
    %vm3488 = vcmask 1047556
    %v3489 = vsel %vm3488, %v3487, %v3485
    %3490 = vrot.lane.b32.xlu0 %v3489, 78
    %v3491 = vpop.permute.xlu0 %3490
    %vm3492 = vcmask 745072
    %s3493 = scalar_lea.vmem [#allocation0], 152
    %3494 = vst.msk [vmem:[%s3493] sm:$0xff] %vm3492, %v3491
    %s3495 = scalar_lea.vmem [#allocation1], 5
    %v3496 = vld [vmem:[%s3495] ss:$8 sm:$0xf]
    %s3497 = scalar_lea.vmem [#allocation1], 5
    %v3498 = vld [vmem:[%s3497] ss:$8 sm:$0xf0]
    %vm3499 = vcmask 1047556
    %v3500 = vsel %vm3499, %v3498, %v3496
    %3501 = vrot.lane.b32.xlu0 %v3500, 65
    %v3502 = vpop.permute.xlu0 %3501
    %vm3503 = vcmask 638472
    %3504 = vst.msk [vmem:[#allocation0] sm:$0xff] %vm3503, %v3502
    %s3505 = scalar_lea.vmem [#allocation1], 261
    %v3506 = vld [vmem:[%s3505] ss:$8 sm:$0xf]
    %s3507 = scalar_lea.vmem [#allocation1], 261
    %v3508 = vld [vmem:[%s3507] ss:$8 sm:$0xf0]
    %vm3509 = vcmask 1047556
    %v3510 = vsel %vm3509, %v3508, %v3506
    %3511 = vrot.lane.b32.xlu0 %v3510, 65
    %v3512 = vpop.permute.xlu0 %3511
    %vm3513 = vcmask 638472
    %s3514 = scalar_lea.vmem [#allocation0], 32
    %3515 = vst.msk [vmem:[%s3514] sm:$0xff] %vm3513, %v3512
    %s3516 = scalar_lea.vmem [#allocation1], 517
    %v3517 = vld [vmem:[%s3516] ss:$8 sm:$0xf]
    %s3518 = scalar_lea.vmem [#allocation1], 517
    %v3519 = vld [vmem:[%s3518] ss:$8 sm:$0xf0]
    %vm3520 = vcmask 1047556
    %v3521 = vsel %vm3520, %v3519, %v3517
    %3522 = vrot.lane.b32.xlu0 %v3521, 65
    %v3523 = vpop.permute.xlu0 %3522
    %vm3524 = vcmask 638472
    %s3525 = scalar_lea.vmem [#allocation0], 64
    %3526 = vst.msk [vmem:[%s3525] sm:$0xff] %vm3524, %v3523
    %s3527 = scalar_lea.vmem [#allocation1], 773
    %v3528 = vld [vmem:[%s3527] ss:$8 sm:$0xf]
    %s3529 = scalar_lea.vmem [#allocation1], 773
    %v3530 = vld [vmem:[%s3529] ss:$8 sm:$0xf0]
    %vm3531 = vcmask 1047556
    %v3532 = vsel %vm3531, %v3530, %v3528
    %3533 = vrot.lane.b32.xlu0 %v3532, 65
    %v3534 = vpop.permute.xlu0 %3533
    %vm3535 = vcmask 638472
    %s3536 = scalar_lea.vmem [#allocation0], 96
    %3537 = vst.msk [vmem:[%s3536] sm:$0xff] %vm3535, %v3534
    %s3538 = scalar_lea.vmem [#allocation1], 1029
    %v3539 = vld [vmem:[%s3538] ss:$8 sm:$0xf]
    %s3540 = scalar_lea.vmem [#allocation1], 1029
    %v3541 = vld [vmem:[%s3540] ss:$8 sm:$0xf0]
    %vm3542 = vcmask 1047556
    %v3543 = vsel %vm3542, %v3541, %v3539
    %3544 = vrot.lane.b32.xlu0 %v3543, 65
    %v3545 = vpop.permute.xlu0 %3544
    %vm3546 = vcmask 638472
    %s3547 = scalar_lea.vmem [#allocation0], 128
    %3548 = vst.msk [vmem:[%s3547] sm:$0xff] %vm3546, %v3545
    %s3549 = scalar_lea.vmem [#allocation1], 1285
    %v3550 = vld [vmem:[%s3549] ss:$8 sm:$0xf]
    %s3551 = scalar_lea.vmem [#allocation1], 1285
    %v3552 = vld [vmem:[%s3551] ss:$8 sm:$0xf0]
    %vm3553 = vcmask 1047556
    %v3554 = vsel %vm3553, %v3552, %v3550
    %3555 = vrot.lane.b32.xlu0 %v3554, 65
    %v3556 = vpop.permute.xlu0 %3555
    %vm3557 = vcmask 638472
    %s3558 = scalar_lea.vmem [#allocation0], 160
    %3559 = vst.msk [vmem:[%s3558] sm:$0xff] %vm3557, %v3556
    %s3560 = scalar_lea.vmem [#allocation1], 69
    %v3561 = vld [vmem:[%s3560] ss:$8 sm:$0xf]
    %s3562 = scalar_lea.vmem [#allocation1], 69
    %v3563 = vld [vmem:[%s3562] ss:$8 sm:$0xf0]
    %vm3564 = vcmask 1047556
    %v3565 = vsel %vm3564, %v3563, %v3561
    %3566 = vrot.lane.b32.xlu0 %v3565, 65
    %v3567 = vpop.permute.xlu0 %3566
    %vm3568 = vcmask 638472
    %s3569 = scalar_lea.vmem [#allocation0], 8
    %3570 = vst.msk [vmem:[%s3569] sm:$0xff] %vm3568, %v3567
    %s3571 = scalar_lea.vmem [#allocation1], 325
    %v3572 = vld [vmem:[%s3571] ss:$8 sm:$0xf]
    %s3573 = scalar_lea.vmem [#allocation1], 325
    %v3574 = vld [vmem:[%s3573] ss:$8 sm:$0xf0]
    %vm3575 = vcmask 1047556
    %v3576 = vsel %vm3575, %v3574, %v3572
    %3577 = vrot.lane.b32.xlu0 %v3576, 65
    %v3578 = vpop.permute.xlu0 %3577
    %vm3579 = vcmask 638472
    %s3580 = scalar_lea.vmem [#allocation0], 40
    %3581 = vst.msk [vmem:[%s3580] sm:$0xff] %vm3579, %v3578
    %s3582 = scalar_lea.vmem [#allocation1], 581
    %v3583 = vld [vmem:[%s3582] ss:$8 sm:$0xf]
    %s3584 = scalar_lea.vmem [#allocation1], 581
    %v3585 = vld [vmem:[%s3584] ss:$8 sm:$0xf0]
    %vm3586 = vcmask 1047556
    %v3587 = vsel %vm3586, %v3585, %v3583
    %3588 = vrot.lane.b32.xlu0 %v3587, 65
    %v3589 = vpop.permute.xlu0 %3588
    %vm3590 = vcmask 638472
    %s3591 = scalar_lea.vmem [#allocation0], 72
    %3592 = vst.msk [vmem:[%s3591] sm:$0xff] %vm3590, %v3589
    %s3593 = scalar_lea.vmem [#allocation1], 837
    %v3594 = vld [vmem:[%s3593] ss:$8 sm:$0xf]
    %s3595 = scalar_lea.vmem [#allocation1], 837
    %v3596 = vld [vmem:[%s3595] ss:$8 sm:$0xf0]
    %vm3597 = vcmask 1047556
    %v3598 = vsel %vm3597, %v3596, %v3594
    %3599 = vrot.lane.b32.xlu0 %v3598, 65
    %v3600 = vpop.permute.xlu0 %3599
    %vm3601 = vcmask 638472
    %s3602 = scalar_lea.vmem [#allocation0], 104
    %3603 = vst.msk [vmem:[%s3602] sm:$0xff] %vm3601, %v3600
    %s3604 = scalar_lea.vmem [#allocation1], 1093
    %v3605 = vld [vmem:[%s3604] ss:$8 sm:$0xf]
    %s3606 = scalar_lea.vmem [#allocation1], 1093
    %v3607 = vld [vmem:[%s3606] ss:$8 sm:$0xf0]
    %vm3608 = vcmask 1047556
    %v3609 = vsel %vm3608, %v3607, %v3605
    %3610 = vrot.lane.b32.xlu0 %v3609, 65
    %v3611 = vpop.permute.xlu0 %3610
    %vm3612 = vcmask 638472
    %s3613 = scalar_lea.vmem [#allocation0], 136
    %3614 = vst.msk [vmem:[%s3613] sm:$0xff] %vm3612, %v3611
    %s3615 = scalar_lea.vmem [#allocation1], 1349
    %v3616 = vld [vmem:[%s3615] ss:$8 sm:$0xf]
    %s3617 = scalar_lea.vmem [#allocation1], 1349
    %v3618 = vld [vmem:[%s3617] ss:$8 sm:$0xf0]
    %vm3619 = vcmask 1047556
    %v3620 = vsel %vm3619, %v3618, %v3616
    %3621 = vrot.lane.b32.xlu0 %v3620, 65
    %v3622 = vpop.permute.xlu0 %3621
    %vm3623 = vcmask 638472
    %s3624 = scalar_lea.vmem [#allocation0], 168
    %3625 = vst.msk [vmem:[%s3624] sm:$0xff] %vm3623, %v3622
    %s3626 = scalar_lea.vmem [#allocation1], 133
    %v3627 = vld [vmem:[%s3626] ss:$8 sm:$0xf]
    %s3628 = scalar_lea.vmem [#allocation1], 133
    %v3629 = vld [vmem:[%s3628] ss:$8 sm:$0xf0]
    %vm3630 = vcmask 1047556
    %v3631 = vsel %vm3630, %v3629, %v3627
    %3632 = vrot.lane.b32.xlu0 %v3631, 65
    %v3633 = vpop.permute.xlu0 %3632
    %vm3634 = vcmask 638472
    %s3635 = scalar_lea.vmem [#allocation0], 16
    %3636 = vst.msk [vmem:[%s3635] sm:$0xff] %vm3634, %v3633
    %s3637 = scalar_lea.vmem [#allocation1], 389
    %v3638 = vld [vmem:[%s3637] ss:$8 sm:$0xf]
    %s3639 = scalar_lea.vmem [#allocation1], 389
    %v3640 = vld [vmem:[%s3639] ss:$8 sm:$0xf0]
    %vm3641 = vcmask 1047556
    %v3642 = vsel %vm3641, %v3640, %v3638
    %3643 = vrot.lane.b32.xlu0 %v3642, 65
    %v3644 = vpop.permute.xlu0 %3643
    %vm3645 = vcmask 638472
    %s3646 = scalar_lea.vmem [#allocation0], 48
    %3647 = vst.msk [vmem:[%s3646] sm:$0xff] %vm3645, %v3644
    %s3648 = scalar_lea.vmem [#allocation1], 645
    %v3649 = vld [vmem:[%s3648] ss:$8 sm:$0xf]
    %s3650 = scalar_lea.vmem [#allocation1], 645
    %v3651 = vld [vmem:[%s3650] ss:$8 sm:$0xf0]
    %vm3652 = vcmask 1047556
    %v3653 = vsel %vm3652, %v3651, %v3649
    %3654 = vrot.lane.b32.xlu0 %v3653, 65
    %v3655 = vpop.permute.xlu0 %3654
    %vm3656 = vcmask 638472
    %s3657 = scalar_lea.vmem [#allocation0], 80
    %3658 = vst.msk [vmem:[%s3657] sm:$0xff] %vm3656, %v3655
    %s3659 = scalar_lea.vmem [#allocation1], 901
    %v3660 = vld [vmem:[%s3659] ss:$8 sm:$0xf]
    %s3661 = scalar_lea.vmem [#allocation1], 901
    %v3662 = vld [vmem:[%s3661] ss:$8 sm:$0xf0]
    %vm3663 = vcmask 1047556
    %v3664 = vsel %vm3663, %v3662, %v3660
    %3665 = vrot.lane.b32.xlu0 %v3664, 65
    %v3666 = vpop.permute.xlu0 %3665
    %vm3667 = vcmask 638472
    %s3668 = scalar_lea.vmem [#allocation0], 112
    %3669 = vst.msk [vmem:[%s3668] sm:$0xff] %vm3667, %v3666
    %s3670 = scalar_lea.vmem [#allocation1], 1157
    %v3671 = vld [vmem:[%s3670] ss:$8 sm:$0xf]
    %s3672 = scalar_lea.vmem [#allocation1], 1157
    %v3673 = vld [vmem:[%s3672] ss:$8 sm:$0xf0]
    %vm3674 = vcmask 1047556
    %v3675 = vsel %vm3674, %v3673, %v3671
    %3676 = vrot.lane.b32.xlu0 %v3675, 65
    %v3677 = vpop.permute.xlu0 %3676
    %vm3678 = vcmask 638472
    %s3679 = scalar_lea.vmem [#allocation0], 144
    %3680 = vst.msk [vmem:[%s3679] sm:$0xff] %vm3678, %v3677
    %s3681 = scalar_lea.vmem [#allocation1], 197
    %v3682 = vld [vmem:[%s3681] ss:$8 sm:$0xf]
    %s3683 = scalar_lea.vmem [#allocation1], 197
    %v3684 = vld [vmem:[%s3683] ss:$8 sm:$0xf0]
    %vm3685 = vcmask 1047556
    %v3686 = vsel %vm3685, %v3684, %v3682
    %3687 = vrot.lane.b32.xlu0 %v3686, 65
    %v3688 = vpop.permute.xlu0 %3687
    %vm3689 = vcmask 638472
    %s3690 = scalar_lea.vmem [#allocation0], 24
    %3691 = vst.msk [vmem:[%s3690] sm:$0xff] %vm3689, %v3688
    %s3692 = scalar_lea.vmem [#allocation1], 453
    %v3693 = vld [vmem:[%s3692] ss:$8 sm:$0xf]
    %s3694 = scalar_lea.vmem [#allocation1], 453
    %v3695 = vld [vmem:[%s3694] ss:$8 sm:$0xf0]
    %vm3696 = vcmask 1047556
    %v3697 = vsel %vm3696, %v3695, %v3693
    %3698 = vrot.lane.b32.xlu0 %v3697, 65
    %v3699 = vpop.permute.xlu0 %3698
    %vm3700 = vcmask 638472
    %s3701 = scalar_lea.vmem [#allocation0], 56
    %3702 = vst.msk [vmem:[%s3701] sm:$0xff] %vm3700, %v3699
    %s3703 = scalar_lea.vmem [#allocation1], 709
    %v3704 = vld [vmem:[%s3703] ss:$8 sm:$0xf]
    %s3705 = scalar_lea.vmem [#allocation1], 709
    %v3706 = vld [vmem:[%s3705] ss:$8 sm:$0xf0]
    %vm3707 = vcmask 1047556
    %v3708 = vsel %vm3707, %v3706, %v3704
    %3709 = vrot.lane.b32.xlu0 %v3708, 65
    %v3710 = vpop.permute.xlu0 %3709
    %vm3711 = vcmask 638472
    %s3712 = scalar_lea.vmem [#allocation0], 88
    %3713 = vst.msk [vmem:[%s3712] sm:$0xff] %vm3711, %v3710
    %s3714 = scalar_lea.vmem [#allocation1], 965
    %v3715 = vld [vmem:[%s3714] ss:$8 sm:$0xf]
    %s3716 = scalar_lea.vmem [#allocation1], 965
    %v3717 = vld [vmem:[%s3716] ss:$8 sm:$0xf0]
    %vm3718 = vcmask 1047556
    %v3719 = vsel %vm3718, %v3717, %v3715
    %3720 = vrot.lane.b32.xlu0 %v3719, 65
    %v3721 = vpop.permute.xlu0 %3720
    %vm3722 = vcmask 638472
    %s3723 = scalar_lea.vmem [#allocation0], 120
    %3724 = vst.msk [vmem:[%s3723] sm:$0xff] %vm3722, %v3721
    %s3725 = scalar_lea.vmem [#allocation1], 1221
    %v3726 = vld [vmem:[%s3725] ss:$8 sm:$0xf]
    %s3727 = scalar_lea.vmem [#allocation1], 1221
    %v3728 = vld [vmem:[%s3727] ss:$8 sm:$0xf0]
    %vm3729 = vcmask 1047556
    %v3730 = vsel %vm3729, %v3728, %v3726
    %3731 = vrot.lane.b32.xlu0 %v3730, 65
    %v3732 = vpop.permute.xlu0 %3731
    %vm3733 = vcmask 638472
    %s3734 = scalar_lea.vmem [#allocation0], 152
    %3735 = vst.msk [vmem:[%s3734] sm:$0xff] %vm3733, %v3732
    %s3736 = scalar_lea.vmem [#allocation1], 4
    %v3737 = vld [vmem:[%s3736] ss:$8 sm:$0xf]
    %s3738 = scalar_lea.vmem [#allocation1], 4
    %v3739 = vld [vmem:[%s3738] ss:$8 sm:$0xf0]
    %vm3740 = vcmask 1047556
    %v3741 = vsel %vm3740, %v3739, %v3737
    %3742 = vrot.lane.b32.xlu0 %v3741, 52
    %v3743 = vpop.permute.xlu0 %3742
    %vm3744 = vcmask 531872
    %3745 = vst.msk [vmem:[#allocation0] sm:$0xff] %vm3744, %v3743
    %s3746 = scalar_lea.vmem [#allocation1], 260
    %v3747 = vld [vmem:[%s3746] ss:$8 sm:$0xf]
    %s3748 = scalar_lea.vmem [#allocation1], 260
    %v3749 = vld [vmem:[%s3748] ss:$8 sm:$0xf0]
    %vm3750 = vcmask 1047556
    %v3751 = vsel %vm3750, %v3749, %v3747
    %3752 = vrot.lane.b32.xlu0 %v3751, 52
    %v3753 = vpop.permute.xlu0 %3752
    %vm3754 = vcmask 531872
    %s3755 = scalar_lea.vmem [#allocation0], 32
    %3756 = vst.msk [vmem:[%s3755] sm:$0xff] %vm3754, %v3753
    %s3757 = scalar_lea.vmem [#allocation1], 516
    %v3758 = vld [vmem:[%s3757] ss:$8 sm:$0xf]
    %s3759 = scalar_lea.vmem [#allocation1], 516
    %v3760 = vld [vmem:[%s3759] ss:$8 sm:$0xf0]
    %vm3761 = vcmask 1047556
    %v3762 = vsel %vm3761, %v3760, %v3758
    %3763 = vrot.lane.b32.xlu0 %v3762, 52
    %v3764 = vpop.permute.xlu0 %3763
    %vm3765 = vcmask 531872
    %s3766 = scalar_lea.vmem [#allocation0], 64
    %3767 = vst.msk [vmem:[%s3766] sm:$0xff] %vm3765, %v3764
    %s3768 = scalar_lea.vmem [#allocation1], 772
    %v3769 = vld [vmem:[%s3768] ss:$8 sm:$0xf]
    %s3770 = scalar_lea.vmem [#allocation1], 772
    %v3771 = vld [vmem:[%s3770] ss:$8 sm:$0xf0]
    %vm3772 = vcmask 1047556
    %v3773 = vsel %vm3772, %v3771, %v3769
    %3774 = vrot.lane.b32.xlu0 %v3773, 52
    %v3775 = vpop.permute.xlu0 %3774
    %vm3776 = vcmask 531872
    %s3777 = scalar_lea.vmem [#allocation0], 96
    %3778 = vst.msk [vmem:[%s3777] sm:$0xff] %vm3776, %v3775
    %s3779 = scalar_lea.vmem [#allocation1], 1028
    %v3780 = vld [vmem:[%s3779] ss:$8 sm:$0xf]
    %s3781 = scalar_lea.vmem [#allocation1], 1028
    %v3782 = vld [vmem:[%s3781] ss:$8 sm:$0xf0]
    %vm3783 = vcmask 1047556
    %v3784 = vsel %vm3783, %v3782, %v3780
    %3785 = vrot.lane.b32.xlu0 %v3784, 52
    %v3786 = vpop.permute.xlu0 %3785
    %vm3787 = vcmask 531872
    %s3788 = scalar_lea.vmem [#allocation0], 128
    %3789 = vst.msk [vmem:[%s3788] sm:$0xff] %vm3787, %v3786
    %s3790 = scalar_lea.vmem [#allocation1], 1284
    %v3791 = vld [vmem:[%s3790] ss:$8 sm:$0xf]
    %s3792 = scalar_lea.vmem [#allocation1], 1284
    %v3793 = vld [vmem:[%s3792] ss:$8 sm:$0xf0]
    %vm3794 = vcmask 1047556
    %v3795 = vsel %vm3794, %v3793, %v3791
    %3796 = vrot.lane.b32.xlu0 %v3795, 52
    %v3797 = vpop.permute.xlu0 %3796
    %vm3798 = vcmask 531872
    %s3799 = scalar_lea.vmem [#allocation0], 160
    %3800 = vst.msk [vmem:[%s3799] sm:$0xff] %vm3798, %v3797
    %s3801 = scalar_lea.vmem [#allocation1], 68
    %v3802 = vld [vmem:[%s3801] ss:$8 sm:$0xf]
    %s3803 = scalar_lea.vmem [#allocation1], 68
    %v3804 = vld [vmem:[%s3803] ss:$8 sm:$0xf0]
    %vm3805 = vcmask 1047556
    %v3806 = vsel %vm3805, %v3804, %v3802
    %3807 = vrot.lane.b32.xlu0 %v3806, 52
    %v3808 = vpop.permute.xlu0 %3807
    %vm3809 = vcmask 531872
    %s3810 = scalar_lea.vmem [#allocation0], 8
    %3811 = vst.msk [vmem:[%s3810] sm:$0xff] %vm3809, %v3808
    %s3812 = scalar_lea.vmem [#allocation1], 324
    %v3813 = vld [vmem:[%s3812] ss:$8 sm:$0xf]
    %s3814 = scalar_lea.vmem [#allocation1], 324
    %v3815 = vld [vmem:[%s3814] ss:$8 sm:$0xf0]
    %vm3816 = vcmask 1047556
    %v3817 = vsel %vm3816, %v3815, %v3813
    %3818 = vrot.lane.b32.xlu0 %v3817, 52
    %v3819 = vpop.permute.xlu0 %3818
    %vm3820 = vcmask 531872
    %s3821 = scalar_lea.vmem [#allocation0], 40
    %3822 = vst.msk [vmem:[%s3821] sm:$0xff] %vm3820, %v3819
    %s3823 = scalar_lea.vmem [#allocation1], 580
    %v3824 = vld [vmem:[%s3823] ss:$8 sm:$0xf]
    %s3825 = scalar_lea.vmem [#allocation1], 580
    %v3826 = vld [vmem:[%s3825] ss:$8 sm:$0xf0]
    %vm3827 = vcmask 1047556
    %v3828 = vsel %vm3827, %v3826, %v3824
    %3829 = vrot.lane.b32.xlu0 %v3828, 52
    %v3830 = vpop.permute.xlu0 %3829
    %vm3831 = vcmask 531872
    %s3832 = scalar_lea.vmem [#allocation0], 72
    %3833 = vst.msk [vmem:[%s3832] sm:$0xff] %vm3831, %v3830
    %s3834 = scalar_lea.vmem [#allocation1], 836
    %v3835 = vld [vmem:[%s3834] ss:$8 sm:$0xf]
    %s3836 = scalar_lea.vmem [#allocation1], 836
    %v3837 = vld [vmem:[%s3836] ss:$8 sm:$0xf0]
    %vm3838 = vcmask 1047556
    %v3839 = vsel %vm3838, %v3837, %v3835
    %3840 = vrot.lane.b32.xlu0 %v3839, 52
    %v3841 = vpop.permute.xlu0 %3840
    %vm3842 = vcmask 531872
    %s3843 = scalar_lea.vmem [#allocation0], 104
    %3844 = vst.msk [vmem:[%s3843] sm:$0xff] %vm3842, %v3841
    %s3845 = scalar_lea.vmem [#allocation1], 1092
    %v3846 = vld [vmem:[%s3845] ss:$8 sm:$0xf]
    %s3847 = scalar_lea.vmem [#allocation1], 1092
    %v3848 = vld [vmem:[%s3847] ss:$8 sm:$0xf0]
    %vm3849 = vcmask 1047556
    %v3850 = vsel %vm3849, %v3848, %v3846
    %3851 = vrot.lane.b32.xlu0 %v3850, 52
    %v3852 = vpop.permute.xlu0 %3851
    %vm3853 = vcmask 531872
    %s3854 = scalar_lea.vmem [#allocation0], 136
    %3855 = vst.msk [vmem:[%s3854] sm:$0xff] %vm3853, %v3852
    %s3856 = scalar_lea.vmem [#allocation1], 1348
    %v3857 = vld [vmem:[%s3856] ss:$8 sm:$0xf]
    %s3858 = scalar_lea.vmem [#allocation1], 1348
    %v3859 = vld [vmem:[%s3858] ss:$8 sm:$0xf0]
    %vm3860 = vcmask 1047556
    %v3861 = vsel %vm3860, %v3859, %v3857
    %3862 = vrot.lane.b32.xlu0 %v3861, 52
    %v3863 = vpop.permute.xlu0 %3862
    %vm3864 = vcmask 531872
    %s3865 = scalar_lea.vmem [#allocation0], 168
    %3866 = vst.msk [vmem:[%s3865] sm:$0xff] %vm3864, %v3863
    %s3867 = scalar_lea.vmem [#allocation1], 132
    %v3868 = vld [vmem:[%s3867] ss:$8 sm:$0xf]
    %s3869 = scalar_lea.vmem [#allocation1], 132
    %v3870 = vld [vmem:[%s3869] ss:$8 sm:$0xf0]
    %vm3871 = vcmask 1047556
    %v3872 = vsel %vm3871, %v3870, %v3868
    %3873 = vrot.lane.b32.xlu0 %v3872, 52
    %v3874 = vpop.permute.xlu0 %3873
    %vm3875 = vcmask 531872
    %s3876 = scalar_lea.vmem [#allocation0], 16
    %3877 = vst.msk [vmem:[%s3876] sm:$0xff] %vm3875, %v3874
    %s3878 = scalar_lea.vmem [#allocation1], 388
    %v3879 = vld [vmem:[%s3878] ss:$8 sm:$0xf]
    %s3880 = scalar_lea.vmem [#allocation1], 388
    %v3881 = vld [vmem:[%s3880] ss:$8 sm:$0xf0]
    %vm3882 = vcmask 1047556
    %v3883 = vsel %vm3882, %v3881, %v3879
    %3884 = vrot.lane.b32.xlu0 %v3883, 52
    %v3885 = vpop.permute.xlu0 %3884
    %vm3886 = vcmask 531872
    %s3887 = scalar_lea.vmem [#allocation0], 48
    %3888 = vst.msk [vmem:[%s3887] sm:$0xff] %vm3886, %v3885
    %s3889 = scalar_lea.vmem [#allocation1], 644
    %v3890 = vld [vmem:[%s3889] ss:$8 sm:$0xf]
    %s3891 = scalar_lea.vmem [#allocation1], 644
    %v3892 = vld [vmem:[%s3891] ss:$8 sm:$0xf0]
    %vm3893 = vcmask 1047556
    %v3894 = vsel %vm3893, %v3892, %v3890
    %3895 = vrot.lane.b32.xlu0 %v3894, 52
    %v3896 = vpop.permute.xlu0 %3895
    %vm3897 = vcmask 531872
    %s3898 = scalar_lea.vmem [#allocation0], 80
    %3899 = vst.msk [vmem:[%s3898] sm:$0xff] %vm3897, %v3896
    %s3900 = scalar_lea.vmem [#allocation1], 900
    %v3901 = vld [vmem:[%s3900] ss:$8 sm:$0xf]
    %s3902 = scalar_lea.vmem [#allocation1], 900
    %v3903 = vld [vmem:[%s3902] ss:$8 sm:$0xf0]
    %vm3904 = vcmask 1047556
    %v3905 = vsel %vm3904, %v3903, %v3901
    %3906 = vrot.lane.b32.xlu0 %v3905, 52
    %v3907 = vpop.permute.xlu0 %3906
    %vm3908 = vcmask 531872
    %s3909 = scalar_lea.vmem [#allocation0], 112
    %3910 = vst.msk [vmem:[%s3909] sm:$0xff] %vm3908, %v3907
    %s3911 = scalar_lea.vmem [#allocation1], 1156
    %v3912 = vld [vmem:[%s3911] ss:$8 sm:$0xf]
    %s3913 = scalar_lea.vmem [#allocation1], 1156
    %v3914 = vld [vmem:[%s3913] ss:$8 sm:$0xf0]
    %vm3915 = vcmask 1047556
    %v3916 = vsel %vm3915, %v3914, %v3912
    %3917 = vrot.lane.b32.xlu0 %v3916, 52
    %v3918 = vpop.permute.xlu0 %3917
    %vm3919 = vcmask 531872
    %s3920 = scalar_lea.vmem [#allocation0], 144
    %3921 = vst.msk [vmem:[%s3920] sm:$0xff] %vm3919, %v3918
    %s3922 = scalar_lea.vmem [#allocation1], 196
    %v3923 = vld [vmem:[%s3922] ss:$8 sm:$0xf]
    %s3924 = scalar_lea.vmem [#allocation1], 196
    %v3925 = vld [vmem:[%s3924] ss:$8 sm:$0xf0]
    %vm3926 = vcmask 1047556
    %v3927 = vsel %vm3926, %v3925, %v3923
    %3928 = vrot.lane.b32.xlu0 %v3927, 52
    %v3929 = vpop.permute.xlu0 %3928
    %vm3930 = vcmask 531872
    %s3931 = scalar_lea.vmem [#allocation0], 24
    %3932 = vst.msk [vmem:[%s3931] sm:$0xff] %vm3930, %v3929
    %s3933 = scalar_lea.vmem [#allocation1], 452
    %v3934 = vld [vmem:[%s3933] ss:$8 sm:$0xf]
    %s3935 = scalar_lea.vmem [#allocation1], 452
    %v3936 = vld [vmem:[%s3935] ss:$8 sm:$0xf0]
    %vm3937 = vcmask 1047556
    %v3938 = vsel %vm3937, %v3936, %v3934
    %3939 = vrot.lane.b32.xlu0 %v3938, 52
    %v3940 = vpop.permute.xlu0 %3939
    %vm3941 = vcmask 531872
    %s3942 = scalar_lea.vmem [#allocation0], 56
    %3943 = vst.msk [vmem:[%s3942] sm:$0xff] %vm3941, %v3940
    %s3944 = scalar_lea.vmem [#allocation1], 708
    %v3945 = vld [vmem:[%s3944] ss:$8 sm:$0xf]
    %s3946 = scalar_lea.vmem [#allocation1], 708
    %v3947 = vld [vmem:[%s3946] ss:$8 sm:$0xf0]
    %vm3948 = vcmask 1047556
    %v3949 = vsel %vm3948, %v3947, %v3945
    %3950 = vrot.lane.b32.xlu0 %v3949, 52
    %v3951 = vpop.permute.xlu0 %3950
    %vm3952 = vcmask 531872
    %s3953 = scalar_lea.vmem [#allocation0], 88
    %3954 = vst.msk [vmem:[%s3953] sm:$0xff] %vm3952, %v3951
    %s3955 = scalar_lea.vmem [#allocation1], 964
    %v3956 = vld [vmem:[%s3955] ss:$8 sm:$0xf]
    %s3957 = scalar_lea.vmem [#allocation1], 964
    %v3958 = vld [vmem:[%s3957] ss:$8 sm:$0xf0]
    %vm3959 = vcmask 1047556
    %v3960 = vsel %vm3959, %v3958, %v3956
    %3961 = vrot.lane.b32.xlu0 %v3960, 52
    %v3962 = vpop.permute.xlu0 %3961
    %vm3963 = vcmask 531872
    %s3964 = scalar_lea.vmem [#allocation0], 120
    %3965 = vst.msk [vmem:[%s3964] sm:$0xff] %vm3963, %v3962
    %s3966 = scalar_lea.vmem [#allocation1], 1220
    %v3967 = vld [vmem:[%s3966] ss:$8 sm:$0xf]
    %s3968 = scalar_lea.vmem [#allocation1], 1220
    %v3969 = vld [vmem:[%s3968] ss:$8 sm:$0xf0]
    %vm3970 = vcmask 1047556
    %v3971 = vsel %vm3970, %v3969, %v3967
    %3972 = vrot.lane.b32.xlu0 %v3971, 52
    %v3973 = vpop.permute.xlu0 %3972
    %vm3974 = vcmask 531872
    %s3975 = scalar_lea.vmem [#allocation0], 152
    %3976 = vst.msk [vmem:[%s3975] sm:$0xff] %vm3974, %v3973
    %s3977 = scalar_lea.vmem [#allocation1], 3
    %v3978 = vld [vmem:[%s3977] ss:$8 sm:$0xf]
    %s3979 = scalar_lea.vmem [#allocation1], 3
    %v3980 = vld [vmem:[%s3979] ss:$8 sm:$0xf0]
    %vm3981 = vcmask 1047556
    %v3982 = vsel %vm3981, %v3980, %v3978
    %3983 = vrot.lane.b32.xlu0 %v3982, 39
    %v3984 = vpop.permute.xlu0 %3983
    %vm3985 = vcmask 425272
    %3986 = vst.msk [vmem:[#allocation0] sm:$0xff] %vm3985, %v3984
    %s3987 = scalar_lea.vmem [#allocation1], 259
    %v3988 = vld [vmem:[%s3987] ss:$8 sm:$0xf]
    %s3989 = scalar_lea.vmem [#allocation1], 259
    %v3990 = vld [vmem:[%s3989] ss:$8 sm:$0xf0]
    %vm3991 = vcmask 1047556
    %v3992 = vsel %vm3991, %v3990, %v3988
    %3993 = vrot.lane.b32.xlu0 %v3992, 39
    %v3994 = vpop.permute.xlu0 %3993
    %vm3995 = vcmask 425272
    %s3996 = scalar_lea.vmem [#allocation0], 32
    %3997 = vst.msk [vmem:[%s3996] sm:$0xff] %vm3995, %v3994
    %s3998 = scalar_lea.vmem [#allocation1], 515
    %v3999 = vld [vmem:[%s3998] ss:$8 sm:$0xf]
    %s4000 = scalar_lea.vmem [#allocation1], 515
    %v4001 = vld [vmem:[%s4000] ss:$8 sm:$0xf0]
    %vm4002 = vcmask 1047556
    %v4003 = vsel %vm4002, %v4001, %v3999
    %4004 = vrot.lane.b32.xlu0 %v4003, 39
    %v4005 = vpop.permute.xlu0 %4004
    %vm4006 = vcmask 425272
    %s4007 = scalar_lea.vmem [#allocation0], 64
    %4008 = vst.msk [vmem:[%s4007] sm:$0xff] %vm4006, %v4005
    %s4009 = scalar_lea.vmem [#allocation1], 771
    %v4010 = vld [vmem:[%s4009] ss:$8 sm:$0xf]
    %s4011 = scalar_lea.vmem [#allocation1], 771
    %v4012 = vld [vmem:[%s4011] ss:$8 sm:$0xf0]
    %vm4013 = vcmask 1047556
    %v4014 = vsel %vm4013, %v4012, %v4010
    %4015 = vrot.lane.b32.xlu0 %v4014, 39
    %v4016 = vpop.permute.xlu0 %4015
    %vm4017 = vcmask 425272
    %s4018 = scalar_lea.vmem [#allocation0], 96
    %4019 = vst.msk [vmem:[%s4018] sm:$0xff] %vm4017, %v4016
    %s4020 = scalar_lea.vmem [#allocation1], 1027
    %v4021 = vld [vmem:[%s4020] ss:$8 sm:$0xf]
    %s4022 = scalar_lea.vmem [#allocation1], 1027
    %v4023 = vld [vmem:[%s4022] ss:$8 sm:$0xf0]
    %vm4024 = vcmask 1047556
    %v4025 = vsel %vm4024, %v4023, %v4021
    %4026 = vrot.lane.b32.xlu0 %v4025, 39
    %v4027 = vpop.permute.xlu0 %4026
    %vm4028 = vcmask 425272
    %s4029 = scalar_lea.vmem [#allocation0], 128
    %4030 = vst.msk [vmem:[%s4029] sm:$0xff] %vm4028, %v4027
    %s4031 = scalar_lea.vmem [#allocation1], 1283
    %v4032 = vld [vmem:[%s4031] ss:$8 sm:$0xf]
    %s4033 = scalar_lea.vmem [#allocation1], 1283
    %v4034 = vld [vmem:[%s4033] ss:$8 sm:$0xf0]
    %vm4035 = vcmask 1047556
    %v4036 = vsel %vm4035, %v4034, %v4032
    %4037 = vrot.lane.b32.xlu0 %v4036, 39
    %v4038 = vpop.permute.xlu0 %4037
    %vm4039 = vcmask 425272
    %s4040 = scalar_lea.vmem [#allocation0], 160
    %4041 = vst.msk [vmem:[%s4040] sm:$0xff] %vm4039, %v4038
    %s4042 = scalar_lea.vmem [#allocation1], 67
    %v4043 = vld [vmem:[%s4042] ss:$8 sm:$0xf]
    %s4044 = scalar_lea.vmem [#allocation1], 67
    %v4045 = vld [vmem:[%s4044] ss:$8 sm:$0xf0]
    %vm4046 = vcmask 1047556
    %v4047 = vsel %vm4046, %v4045, %v4043
    %4048 = vrot.lane.b32.xlu0 %v4047, 39
    %v4049 = vpop.permute.xlu0 %4048
    %vm4050 = vcmask 425272
    %s4051 = scalar_lea.vmem [#allocation0], 8
    %4052 = vst.msk [vmem:[%s4051] sm:$0xff] %vm4050, %v4049
    %s4053 = scalar_lea.vmem [#allocation1], 323
    %v4054 = vld [vmem:[%s4053] ss:$8 sm:$0xf]
    %s4055 = scalar_lea.vmem [#allocation1], 323
    %v4056 = vld [vmem:[%s4055] ss:$8 sm:$0xf0]
    %vm4057 = vcmask 1047556
    %v4058 = vsel %vm4057, %v4056, %v4054
    %4059 = vrot.lane.b32.xlu0 %v4058, 39
    %v4060 = vpop.permute.xlu0 %4059
    %vm4061 = vcmask 425272
    %s4062 = scalar_lea.vmem [#allocation0], 40
    %4063 = vst.msk [vmem:[%s4062] sm:$0xff] %vm4061, %v4060
    %s4064 = scalar_lea.vmem [#allocation1], 579
    %v4065 = vld [vmem:[%s4064] ss:$8 sm:$0xf]
    %s4066 = scalar_lea.vmem [#allocation1], 579
    %v4067 = vld [vmem:[%s4066] ss:$8 sm:$0xf0]
    %vm4068 = vcmask 1047556
    %v4069 = vsel %vm4068, %v4067, %v4065
    %4070 = vrot.lane.b32.xlu0 %v4069, 39
    %v4071 = vpop.permute.xlu0 %4070
    %vm4072 = vcmask 425272
    %s4073 = scalar_lea.vmem [#allocation0], 72
    %4074 = vst.msk [vmem:[%s4073] sm:$0xff] %vm4072, %v4071
    %s4075 = scalar_lea.vmem [#allocation1], 835
    %v4076 = vld [vmem:[%s4075] ss:$8 sm:$0xf]
    %s4077 = scalar_lea.vmem [#allocation1], 835
    %v4078 = vld [vmem:[%s4077] ss:$8 sm:$0xf0]
    %vm4079 = vcmask 1047556
    %v4080 = vsel %vm4079, %v4078, %v4076
    %4081 = vrot.lane.b32.xlu0 %v4080, 39
    %v4082 = vpop.permute.xlu0 %4081
    %vm4083 = vcmask 425272
    %s4084 = scalar_lea.vmem [#allocation0], 104
    %4085 = vst.msk [vmem:[%s4084] sm:$0xff] %vm4083, %v4082
    %s4086 = scalar_lea.vmem [#allocation1], 1091
    %v4087 = vld [vmem:[%s4086] ss:$8 sm:$0xf]
    %s4088 = scalar_lea.vmem [#allocation1], 1091
    %v4089 = vld [vmem:[%s4088] ss:$8 sm:$0xf0]
    %vm4090 = vcmask 1047556
    %v4091 = vsel %vm4090, %v4089, %v4087
    %4092 = vrot.lane.b32.xlu0 %v4091, 39
    %v4093 = vpop.permute.xlu0 %4092
    %vm4094 = vcmask 425272
    %s4095 = scalar_lea.vmem [#allocation0], 136
    %4096 = vst.msk [vmem:[%s4095] sm:$0xff] %vm4094, %v4093
    %s4097 = scalar_lea.vmem [#allocation1], 1347
    %v4098 = vld [vmem:[%s4097] ss:$8 sm:$0xf]
    %s4099 = scalar_lea.vmem [#allocation1], 1347
    %v4100 = vld [vmem:[%s4099] ss:$8 sm:$0xf0]
    %vm4101 = vcmask 1047556
    %v4102 = vsel %vm4101, %v4100, %v4098
    %4103 = vrot.lane.b32.xlu0 %v4102, 39
    %v4104 = vpop.permute.xlu0 %4103
    %vm4105 = vcmask 425272
    %s4106 = scalar_lea.vmem [#allocation0], 168
    %4107 = vst.msk [vmem:[%s4106] sm:$0xff] %vm4105, %v4104
    %s4108 = scalar_lea.vmem [#allocation1], 131
    %v4109 = vld [vmem:[%s4108] ss:$8 sm:$0xf]
    %s4110 = scalar_lea.vmem [#allocation1], 131
    %v4111 = vld [vmem:[%s4110] ss:$8 sm:$0xf0]
    %vm4112 = vcmask 1047556
    %v4113 = vsel %vm4112, %v4111, %v4109
    %4114 = vrot.lane.b32.xlu0 %v4113, 39
    %v4115 = vpop.permute.xlu0 %4114
    %vm4116 = vcmask 425272
    %s4117 = scalar_lea.vmem [#allocation0], 16
    %4118 = vst.msk [vmem:[%s4117] sm:$0xff] %vm4116, %v4115
    %s4119 = scalar_lea.vmem [#allocation1], 387
    %v4120 = vld [vmem:[%s4119] ss:$8 sm:$0xf]
    %s4121 = scalar_lea.vmem [#allocation1], 387
    %v4122 = vld [vmem:[%s4121] ss:$8 sm:$0xf0]
    %vm4123 = vcmask 1047556
    %v4124 = vsel %vm4123, %v4122, %v4120
    %4125 = vrot.lane.b32.xlu0 %v4124, 39
    %v4126 = vpop.permute.xlu0 %4125
    %vm4127 = vcmask 425272
    %s4128 = scalar_lea.vmem [#allocation0], 48
    %4129 = vst.msk [vmem:[%s4128] sm:$0xff] %vm4127, %v4126
    %s4130 = scalar_lea.vmem [#allocation1], 643
    %v4131 = vld [vmem:[%s4130] ss:$8 sm:$0xf]
    %s4132 = scalar_lea.vmem [#allocation1], 643
    %v4133 = vld [vmem:[%s4132] ss:$8 sm:$0xf0]
    %vm4134 = vcmask 1047556
    %v4135 = vsel %vm4134, %v4133, %v4131
    %4136 = vrot.lane.b32.xlu0 %v4135, 39
    %v4137 = vpop.permute.xlu0 %4136
    %vm4138 = vcmask 425272
    %s4139 = scalar_lea.vmem [#allocation0], 80
    %4140 = vst.msk [vmem:[%s4139] sm:$0xff] %vm4138, %v4137
    %s4141 = scalar_lea.vmem [#allocation1], 899
    %v4142 = vld [vmem:[%s4141] ss:$8 sm:$0xf]
    %s4143 = scalar_lea.vmem [#allocation1], 899
    %v4144 = vld [vmem:[%s4143] ss:$8 sm:$0xf0]
    %vm4145 = vcmask 1047556
    %v4146 = vsel %vm4145, %v4144, %v4142
    %4147 = vrot.lane.b32.xlu0 %v4146, 39
    %v4148 = vpop.permute.xlu0 %4147
    %vm4149 = vcmask 425272
    %s4150 = scalar_lea.vmem [#allocation0], 112
    %4151 = vst.msk [vmem:[%s4150] sm:$0xff] %vm4149, %v4148
    %s4152 = scalar_lea.vmem [#allocation1], 1155
    %v4153 = vld [vmem:[%s4152] ss:$8 sm:$0xf]
    %s4154 = scalar_lea.vmem [#allocation1], 1155
    %v4155 = vld [vmem:[%s4154] ss:$8 sm:$0xf0]
    %vm4156 = vcmask 1047556
    %v4157 = vsel %vm4156, %v4155, %v4153
    %4158 = vrot.lane.b32.xlu0 %v4157, 39
    %v4159 = vpop.permute.xlu0 %4158
    %vm4160 = vcmask 425272
    %s4161 = scalar_lea.vmem [#allocation0], 144
    %4162 = vst.msk [vmem:[%s4161] sm:$0xff] %vm4160, %v4159
    %s4163 = scalar_lea.vmem [#allocation1], 195
    %v4164 = vld [vmem:[%s4163] ss:$8 sm:$0xf]
    %s4165 = scalar_lea.vmem [#allocation1], 195
    %v4166 = vld [vmem:[%s4165] ss:$8 sm:$0xf0]
    %vm4167 = vcmask 1047556
    %v4168 = vsel %vm4167, %v4166, %v4164
    %4169 = vrot.lane.b32.xlu0 %v4168, 39
    %v4170 = vpop.permute.xlu0 %4169
    %vm4171 = vcmask 425272
    %s4172 = scalar_lea.vmem [#allocation0], 24
    %4173 = vst.msk [vmem:[%s4172] sm:$0xff] %vm4171, %v4170
    %s4174 = scalar_lea.vmem [#allocation1], 451
    %v4175 = vld [vmem:[%s4174] ss:$8 sm:$0xf]
    %s4176 = scalar_lea.vmem [#allocation1], 451
    %v4177 = vld [vmem:[%s4176] ss:$8 sm:$0xf0]
    %vm4178 = vcmask 1047556
    %v4179 = vsel %vm4178, %v4177, %v4175
    %4180 = vrot.lane.b32.xlu0 %v4179, 39
    %v4181 = vpop.permute.xlu0 %4180
    %vm4182 = vcmask 425272
    %s4183 = scalar_lea.vmem [#allocation0], 56
    %4184 = vst.msk [vmem:[%s4183] sm:$0xff] %vm4182, %v4181
    %s4185 = scalar_lea.vmem [#allocation1], 707
    %v4186 = vld [vmem:[%s4185] ss:$8 sm:$0xf]
    %s4187 = scalar_lea.vmem [#allocation1], 707
    %v4188 = vld [vmem:[%s4187] ss:$8 sm:$0xf0]
    %vm4189 = vcmask 1047556
    %v4190 = vsel %vm4189, %v4188, %v4186
    %4191 = vrot.lane.b32.xlu0 %v4190, 39
    %v4192 = vpop.permute.xlu0 %4191
    %vm4193 = vcmask 425272
    %s4194 = scalar_lea.vmem [#allocation0], 88
    %4195 = vst.msk [vmem:[%s4194] sm:$0xff] %vm4193, %v4192
    %s4196 = scalar_lea.vmem [#allocation1], 963
    %v4197 = vld [vmem:[%s4196] ss:$8 sm:$0xf]
    %s4198 = scalar_lea.vmem [#allocation1], 963
    %v4199 = vld [vmem:[%s4198] ss:$8 sm:$0xf0]
    %vm4200 = vcmask 1047556
    %v4201 = vsel %vm4200, %v4199, %v4197
    %4202 = vrot.lane.b32.xlu0 %v4201, 39
    %v4203 = vpop.permute.xlu0 %4202
    %vm4204 = vcmask 425272
    %s4205 = scalar_lea.vmem [#allocation0], 120
    %4206 = vst.msk [vmem:[%s4205] sm:$0xff] %vm4204, %v4203
    %s4207 = scalar_lea.vmem [#allocation1], 1219
    %v4208 = vld [vmem:[%s4207] ss:$8 sm:$0xf]
    %s4209 = scalar_lea.vmem [#allocation1], 1219
    %v4210 = vld [vmem:[%s4209] ss:$8 sm:$0xf0]
    %vm4211 = vcmask 1047556
    %v4212 = vsel %vm4211, %v4210, %v4208
    %4213 = vrot.lane.b32.xlu0 %v4212, 39
    %v4214 = vpop.permute.xlu0 %4213
    %vm4215 = vcmask 425272
    %s4216 = scalar_lea.vmem [#allocation0], 152
    %4217 = vst.msk [vmem:[%s4216] sm:$0xff] %vm4215, %v4214
    %s4218 = scalar_lea.vmem [#allocation1], 2
    %v4219 = vld [vmem:[%s4218] ss:$8 sm:$0xf]
    %s4220 = scalar_lea.vmem [#allocation1], 2
    %v4221 = vld [vmem:[%s4220] ss:$8 sm:$0xf0]
    %vm4222 = vcmask 1047556
    %v4223 = vsel %vm4222, %v4221, %v4219
    %4224 = vrot.lane.b32.xlu0 %v4223, 26
    %v4225 = vpop.permute.xlu0 %4224
    %vm4226 = vcmask 318672
    %4227 = vst.msk [vmem:[#allocation0] sm:$0xff] %vm4226, %v4225
    %s4228 = scalar_lea.vmem [#allocation1], 258
    %v4229 = vld [vmem:[%s4228] ss:$8 sm:$0xf]
    %s4230 = scalar_lea.vmem [#allocation1], 258
    %v4231 = vld [vmem:[%s4230] ss:$8 sm:$0xf0]
    %vm4232 = vcmask 1047556
    %v4233 = vsel %vm4232, %v4231, %v4229
    %4234 = vrot.lane.b32.xlu0 %v4233, 26
    %v4235 = vpop.permute.xlu0 %4234
    %vm4236 = vcmask 318672
    %s4237 = scalar_lea.vmem [#allocation0], 32
    %4238 = vst.msk [vmem:[%s4237] sm:$0xff] %vm4236, %v4235
    %s4239 = scalar_lea.vmem [#allocation1], 514
    %v4240 = vld [vmem:[%s4239] ss:$8 sm:$0xf]
    %s4241 = scalar_lea.vmem [#allocation1], 514
    %v4242 = vld [vmem:[%s4241] ss:$8 sm:$0xf0]
    %vm4243 = vcmask 1047556
    %v4244 = vsel %vm4243, %v4242, %v4240
    %4245 = vrot.lane.b32.xlu0 %v4244, 26
    %v4246 = vpop.permute.xlu0 %4245
    %vm4247 = vcmask 318672
    %s4248 = scalar_lea.vmem [#allocation0], 64
    %4249 = vst.msk [vmem:[%s4248] sm:$0xff] %vm4247, %v4246
    %s4250 = scalar_lea.vmem [#allocation1], 770
    %v4251 = vld [vmem:[%s4250] ss:$8 sm:$0xf]
    %s4252 = scalar_lea.vmem [#allocation1], 770
    %v4253 = vld [vmem:[%s4252] ss:$8 sm:$0xf0]
    %vm4254 = vcmask 1047556
    %v4255 = vsel %vm4254, %v4253, %v4251
    %4256 = vrot.lane.b32.xlu0 %v4255, 26
    %v4257 = vpop.permute.xlu0 %4256
    %vm4258 = vcmask 318672
    %s4259 = scalar_lea.vmem [#allocation0], 96
    %4260 = vst.msk [vmem:[%s4259] sm:$0xff] %vm4258, %v4257
    %s4261 = scalar_lea.vmem [#allocation1], 1026
    %v4262 = vld [vmem:[%s4261] ss:$8 sm:$0xf]
    %s4263 = scalar_lea.vmem [#allocation1], 1026
    %v4264 = vld [vmem:[%s4263] ss:$8 sm:$0xf0]
    %vm4265 = vcmask 1047556
    %v4266 = vsel %vm4265, %v4264, %v4262
    %4267 = vrot.lane.b32.xlu0 %v4266, 26
    %v4268 = vpop.permute.xlu0 %4267
    %vm4269 = vcmask 318672
    %s4270 = scalar_lea.vmem [#allocation0], 128
    %4271 = vst.msk [vmem:[%s4270] sm:$0xff] %vm4269, %v4268
    %s4272 = scalar_lea.vmem [#allocation1], 1282
    %v4273 = vld [vmem:[%s4272] ss:$8 sm:$0xf]
    %s4274 = scalar_lea.vmem [#allocation1], 1282
    %v4275 = vld [vmem:[%s4274] ss:$8 sm:$0xf0]
    %vm4276 = vcmask 1047556
    %v4277 = vsel %vm4276, %v4275, %v4273
    %4278 = vrot.lane.b32.xlu0 %v4277, 26
    %v4279 = vpop.permute.xlu0 %4278
    %vm4280 = vcmask 318672
    %s4281 = scalar_lea.vmem [#allocation0], 160
    %4282 = vst.msk [vmem:[%s4281] sm:$0xff] %vm4280, %v4279
    %s4283 = scalar_lea.vmem [#allocation1], 66
    %v4284 = vld [vmem:[%s4283] ss:$8 sm:$0xf]
    %s4285 = scalar_lea.vmem [#allocation1], 66
    %v4286 = vld [vmem:[%s4285] ss:$8 sm:$0xf0]
    %vm4287 = vcmask 1047556
    %v4288 = vsel %vm4287, %v4286, %v4284
    %4289 = vrot.lane.b32.xlu0 %v4288, 26
    %v4290 = vpop.permute.xlu0 %4289
    %vm4291 = vcmask 318672
    %s4292 = scalar_lea.vmem [#allocation0], 8
    %4293 = vst.msk [vmem:[%s4292] sm:$0xff] %vm4291, %v4290
    %s4294 = scalar_lea.vmem [#allocation1], 322
    %v4295 = vld [vmem:[%s4294] ss:$8 sm:$0xf]
    %s4296 = scalar_lea.vmem [#allocation1], 322
    %v4297 = vld [vmem:[%s4296] ss:$8 sm:$0xf0]
    %vm4298 = vcmask 1047556
    %v4299 = vsel %vm4298, %v4297, %v4295
    %4300 = vrot.lane.b32.xlu0 %v4299, 26
    %v4301 = vpop.permute.xlu0 %4300
    %vm4302 = vcmask 318672
    %s4303 = scalar_lea.vmem [#allocation0], 40
    %4304 = vst.msk [vmem:[%s4303] sm:$0xff] %vm4302, %v4301
    %s4305 = scalar_lea.vmem [#allocation1], 578
    %v4306 = vld [vmem:[%s4305] ss:$8 sm:$0xf]
    %s4307 = scalar_lea.vmem [#allocation1], 578
    %v4308 = vld [vmem:[%s4307] ss:$8 sm:$0xf0]
    %vm4309 = vcmask 1047556
    %v4310 = vsel %vm4309, %v4308, %v4306
    %4311 = vrot.lane.b32.xlu0 %v4310, 26
    %v4312 = vpop.permute.xlu0 %4311
    %vm4313 = vcmask 318672
    %s4314 = scalar_lea.vmem [#allocation0], 72
    %4315 = vst.msk [vmem:[%s4314] sm:$0xff] %vm4313, %v4312
    %s4316 = scalar_lea.vmem [#allocation1], 834
    %v4317 = vld [vmem:[%s4316] ss:$8 sm:$0xf]
    %s4318 = scalar_lea.vmem [#allocation1], 834
    %v4319 = vld [vmem:[%s4318] ss:$8 sm:$0xf0]
    %vm4320 = vcmask 1047556
    %v4321 = vsel %vm4320, %v4319, %v4317
    %4322 = vrot.lane.b32.xlu0 %v4321, 26
    %v4323 = vpop.permute.xlu0 %4322
    %vm4324 = vcmask 318672
    %s4325 = scalar_lea.vmem [#allocation0], 104
    %4326 = vst.msk [vmem:[%s4325] sm:$0xff] %vm4324, %v4323
    %s4327 = scalar_lea.vmem [#allocation1], 1090
    %v4328 = vld [vmem:[%s4327] ss:$8 sm:$0xf]
    %s4329 = scalar_lea.vmem [#allocation1], 1090
    %v4330 = vld [vmem:[%s4329] ss:$8 sm:$0xf0]
    %vm4331 = vcmask 1047556
    %v4332 = vsel %vm4331, %v4330, %v4328
    %4333 = vrot.lane.b32.xlu0 %v4332, 26
    %v4334 = vpop.permute.xlu0 %4333
    %vm4335 = vcmask 318672
    %s4336 = scalar_lea.vmem [#allocation0], 136
    %4337 = vst.msk [vmem:[%s4336] sm:$0xff] %vm4335, %v4334
    %s4338 = scalar_lea.vmem [#allocation1], 1346
    %v4339 = vld [vmem:[%s4338] ss:$8 sm:$0xf]
    %s4340 = scalar_lea.vmem [#allocation1], 1346
    %v4341 = vld [vmem:[%s4340] ss:$8 sm:$0xf0]
    %vm4342 = vcmask 1047556
    %v4343 = vsel %vm4342, %v4341, %v4339
    %4344 = vrot.lane.b32.xlu0 %v4343, 26
    %v4345 = vpop.permute.xlu0 %4344
    %vm4346 = vcmask 318672
    %s4347 = scalar_lea.vmem [#allocation0], 168
    %4348 = vst.msk [vmem:[%s4347] sm:$0xff] %vm4346, %v4345
    %s4349 = scalar_lea.vmem [#allocation1], 130
    %v4350 = vld [vmem:[%s4349] ss:$8 sm:$0xf]
    %s4351 = scalar_lea.vmem [#allocation1], 130
    %v4352 = vld [vmem:[%s4351] ss:$8 sm:$0xf0]
    %vm4353 = vcmask 1047556
    %v4354 = vsel %vm4353, %v4352, %v4350
    %4355 = vrot.lane.b32.xlu0 %v4354, 26
    %v4356 = vpop.permute.xlu0 %4355
    %vm4357 = vcmask 318672
    %s4358 = scalar_lea.vmem [#allocation0], 16
    %4359 = vst.msk [vmem:[%s4358] sm:$0xff] %vm4357, %v4356
    %s4360 = scalar_lea.vmem [#allocation1], 386
    %v4361 = vld [vmem:[%s4360] ss:$8 sm:$0xf]
    %s4362 = scalar_lea.vmem [#allocation1], 386
    %v4363 = vld [vmem:[%s4362] ss:$8 sm:$0xf0]
    %vm4364 = vcmask 1047556
    %v4365 = vsel %vm4364, %v4363, %v4361
    %4366 = vrot.lane.b32.xlu0 %v4365, 26
    %v4367 = vpop.permute.xlu0 %4366
    %vm4368 = vcmask 318672
    %s4369 = scalar_lea.vmem [#allocation0], 48
    %4370 = vst.msk [vmem:[%s4369] sm:$0xff] %vm4368, %v4367
    %s4371 = scalar_lea.vmem [#allocation1], 642
    %v4372 = vld [vmem:[%s4371] ss:$8 sm:$0xf]
    %s4373 = scalar_lea.vmem [#allocation1], 642
    %v4374 = vld [vmem:[%s4373] ss:$8 sm:$0xf0]
    %vm4375 = vcmask 1047556
    %v4376 = vsel %vm4375, %v4374, %v4372
    %4377 = vrot.lane.b32.xlu0 %v4376, 26
    %v4378 = vpop.permute.xlu0 %4377
    %vm4379 = vcmask 318672
    %s4380 = scalar_lea.vmem [#allocation0], 80
    %4381 = vst.msk [vmem:[%s4380] sm:$0xff] %vm4379, %v4378
    %s4382 = scalar_lea.vmem [#allocation1], 898
    %v4383 = vld [vmem:[%s4382] ss:$8 sm:$0xf]
    %s4384 = scalar_lea.vmem [#allocation1], 898
    %v4385 = vld [vmem:[%s4384] ss:$8 sm:$0xf0]
    %vm4386 = vcmask 1047556
    %v4387 = vsel %vm4386, %v4385, %v4383
    %4388 = vrot.lane.b32.xlu0 %v4387, 26
    %v4389 = vpop.permute.xlu0 %4388
    %vm4390 = vcmask 318672
    %s4391 = scalar_lea.vmem [#allocation0], 112
    %4392 = vst.msk [vmem:[%s4391] sm:$0xff] %vm4390, %v4389
    %s4393 = scalar_lea.vmem [#allocation1], 1154
    %v4394 = vld [vmem:[%s4393] ss:$8 sm:$0xf]
    %s4395 = scalar_lea.vmem [#allocation1], 1154
    %v4396 = vld [vmem:[%s4395] ss:$8 sm:$0xf0]
    %vm4397 = vcmask 1047556
    %v4398 = vsel %vm4397, %v4396, %v4394
    %4399 = vrot.lane.b32.xlu0 %v4398, 26
    %v4400 = vpop.permute.xlu0 %4399
    %vm4401 = vcmask 318672
    %s4402 = scalar_lea.vmem [#allocation0], 144
    %4403 = vst.msk [vmem:[%s4402] sm:$0xff] %vm4401, %v4400
    %s4404 = scalar_lea.vmem [#allocation1], 194
    %v4405 = vld [vmem:[%s4404] ss:$8 sm:$0xf]
    %s4406 = scalar_lea.vmem [#allocation1], 194
    %v4407 = vld [vmem:[%s4406] ss:$8 sm:$0xf0]
    %vm4408 = vcmask 1047556
    %v4409 = vsel %vm4408, %v4407, %v4405
    %4410 = vrot.lane.b32.xlu0 %v4409, 26
    %v4411 = vpop.permute.xlu0 %4410
    %vm4412 = vcmask 318672
    %s4413 = scalar_lea.vmem [#allocation0], 24
    %4414 = vst.msk [vmem:[%s4413] sm:$0xff] %vm4412, %v4411
    %s4415 = scalar_lea.vmem [#allocation1], 450
    %v4416 = vld [vmem:[%s4415] ss:$8 sm:$0xf]
    %s4417 = scalar_lea.vmem [#allocation1], 450
    %v4418 = vld [vmem:[%s4417] ss:$8 sm:$0xf0]
    %vm4419 = vcmask 1047556
    %v4420 = vsel %vm4419, %v4418, %v4416
    %4421 = vrot.lane.b32.xlu0 %v4420, 26
    %v4422 = vpop.permute.xlu0 %4421
    %vm4423 = vcmask 318672
    %s4424 = scalar_lea.vmem [#allocation0], 56
    %4425 = vst.msk [vmem:[%s4424] sm:$0xff] %vm4423, %v4422
    %s4426 = scalar_lea.vmem [#allocation1], 706
    %v4427 = vld [vmem:[%s4426] ss:$8 sm:$0xf]
    %s4428 = scalar_lea.vmem [#allocation1], 706
    %v4429 = vld [vmem:[%s4428] ss:$8 sm:$0xf0]
    %vm4430 = vcmask 1047556
    %v4431 = vsel %vm4430, %v4429, %v4427
    %4432 = vrot.lane.b32.xlu0 %v4431, 26
    %v4433 = vpop.permute.xlu0 %4432
    %vm4434 = vcmask 318672
    %s4435 = scalar_lea.vmem [#allocation0], 88
    %4436 = vst.msk [vmem:[%s4435] sm:$0xff] %vm4434, %v4433
    %s4437 = scalar_lea.vmem [#allocation1], 962
    %v4438 = vld [vmem:[%s4437] ss:$8 sm:$0xf]
    %s4439 = scalar_lea.vmem [#allocation1], 962
    %v4440 = vld [vmem:[%s4439] ss:$8 sm:$0xf0]
    %vm4441 = vcmask 1047556
    %v4442 = vsel %vm4441, %v4440, %v4438
    %4443 = vrot.lane.b32.xlu0 %v4442, 26
    %v4444 = vpop.permute.xlu0 %4443
    %vm4445 = vcmask 318672
    %s4446 = scalar_lea.vmem [#allocation0], 120
    %4447 = vst.msk [vmem:[%s4446] sm:$0xff] %vm4445, %v4444
    %s4448 = scalar_lea.vmem [#allocation1], 1218
    %v4449 = vld [vmem:[%s4448] ss:$8 sm:$0xf]
    %s4450 = scalar_lea.vmem [#allocation1], 1218
    %v4451 = vld [vmem:[%s4450] ss:$8 sm:$0xf0]
    %vm4452 = vcmask 1047556
    %v4453 = vsel %vm4452, %v4451, %v4449
    %4454 = vrot.lane.b32.xlu0 %v4453, 26
    %v4455 = vpop.permute.xlu0 %4454
    %vm4456 = vcmask 318672
    %s4457 = scalar_lea.vmem [#allocation0], 152
    %4458 = vst.msk [vmem:[%s4457] sm:$0xff] %vm4456, %v4455
    %s4459 = scalar_lea.vmem [#allocation1], 1
    %v4460 = vld [vmem:[%s4459] ss:$8 sm:$0xf]
    %s4461 = scalar_lea.vmem [#allocation1], 1
    %v4462 = vld [vmem:[%s4461] ss:$8 sm:$0xf0]
    %vm4463 = vcmask 1047556
    %v4464 = vsel %vm4463, %v4462, %v4460
    %4465 = vrot.lane.b32.xlu0 %v4464, 13
    %v4466 = vpop.permute.xlu0 %4465
    %vm4467 = vcmask 212072
    %4468 = vst.msk [vmem:[#allocation0] sm:$0xff] %vm4467, %v4466
    %s4469 = scalar_lea.vmem [#allocation1], 257
    %v4470 = vld [vmem:[%s4469] ss:$8 sm:$0xf]
    %s4471 = scalar_lea.vmem [#allocation1], 257
    %v4472 = vld [vmem:[%s4471] ss:$8 sm:$0xf0]
    %vm4473 = vcmask 1047556
    %v4474 = vsel %vm4473, %v4472, %v4470
    %4475 = vrot.lane.b32.xlu0 %v4474, 13
    %v4476 = vpop.permute.xlu0 %4475
    %vm4477 = vcmask 212072
    %s4478 = scalar_lea.vmem [#allocation0], 32
    %4479 = vst.msk [vmem:[%s4478] sm:$0xff] %vm4477, %v4476
    %s4480 = scalar_lea.vmem [#allocation1], 513
    %v4481 = vld [vmem:[%s4480] ss:$8 sm:$0xf]
    %s4482 = scalar_lea.vmem [#allocation1], 513
    %v4483 = vld [vmem:[%s4482] ss:$8 sm:$0xf0]
    %vm4484 = vcmask 1047556
    %v4485 = vsel %vm4484, %v4483, %v4481
    %4486 = vrot.lane.b32.xlu0 %v4485, 13
    %v4487 = vpop.permute.xlu0 %4486
    %vm4488 = vcmask 212072
    %s4489 = scalar_lea.vmem [#allocation0], 64
    %4490 = vst.msk [vmem:[%s4489] sm:$0xff] %vm4488, %v4487
    %s4491 = scalar_lea.vmem [#allocation1], 769
    %v4492 = vld [vmem:[%s4491] ss:$8 sm:$0xf]
    %s4493 = scalar_lea.vmem [#allocation1], 769
    %v4494 = vld [vmem:[%s4493] ss:$8 sm:$0xf0]
    %vm4495 = vcmask 1047556
    %v4496 = vsel %vm4495, %v4494, %v4492
    %4497 = vrot.lane.b32.xlu0 %v4496, 13
    %v4498 = vpop.permute.xlu0 %4497
    %vm4499 = vcmask 212072
    %s4500 = scalar_lea.vmem [#allocation0], 96
    %4501 = vst.msk [vmem:[%s4500] sm:$0xff] %vm4499, %v4498
    %s4502 = scalar_lea.vmem [#allocation1], 1025
    %v4503 = vld [vmem:[%s4502] ss:$8 sm:$0xf]
    %s4504 = scalar_lea.vmem [#allocation1], 1025
    %v4505 = vld [vmem:[%s4504] ss:$8 sm:$0xf0]
    %vm4506 = vcmask 1047556
    %v4507 = vsel %vm4506, %v4505, %v4503
    %4508 = vrot.lane.b32.xlu0 %v4507, 13
    %v4509 = vpop.permute.xlu0 %4508
    %vm4510 = vcmask 212072
    %s4511 = scalar_lea.vmem [#allocation0], 128
    %4512 = vst.msk [vmem:[%s4511] sm:$0xff] %vm4510, %v4509
    %s4513 = scalar_lea.vmem [#allocation1], 1281
    %v4514 = vld [vmem:[%s4513] ss:$8 sm:$0xf]
    %s4515 = scalar_lea.vmem [#allocation1], 1281
    %v4516 = vld [vmem:[%s4515] ss:$8 sm:$0xf0]
    %vm4517 = vcmask 1047556
    %v4518 = vsel %vm4517, %v4516, %v4514
    %4519 = vrot.lane.b32.xlu0 %v4518, 13
    %v4520 = vpop.permute.xlu0 %4519
    %vm4521 = vcmask 212072
    %s4522 = scalar_lea.vmem [#allocation0], 160
    %4523 = vst.msk [vmem:[%s4522] sm:$0xff] %vm4521, %v4520
    %s4524 = scalar_lea.vmem [#allocation1], 65
    %v4525 = vld [vmem:[%s4524] ss:$8 sm:$0xf]
    %s4526 = scalar_lea.vmem [#allocation1], 65
    %v4527 = vld [vmem:[%s4526] ss:$8 sm:$0xf0]
    %vm4528 = vcmask 1047556
    %v4529 = vsel %vm4528, %v4527, %v4525
    %4530 = vrot.lane.b32.xlu0 %v4529, 13
    %v4531 = vpop.permute.xlu0 %4530
    %vm4532 = vcmask 212072
    %s4533 = scalar_lea.vmem [#allocation0], 8
    %4534 = vst.msk [vmem:[%s4533] sm:$0xff] %vm4532, %v4531
    %s4535 = scalar_lea.vmem [#allocation1], 321
    %v4536 = vld [vmem:[%s4535] ss:$8 sm:$0xf]
    %s4537 = scalar_lea.vmem [#allocation1], 321
    %v4538 = vld [vmem:[%s4537] ss:$8 sm:$0xf0]
    %vm4539 = vcmask 1047556
    %v4540 = vsel %vm4539, %v4538, %v4536
    %4541 = vrot.lane.b32.xlu0 %v4540, 13
    %v4542 = vpop.permute.xlu0 %4541
    %vm4543 = vcmask 212072
    %s4544 = scalar_lea.vmem [#allocation0], 40
    %4545 = vst.msk [vmem:[%s4544] sm:$0xff] %vm4543, %v4542
    %s4546 = scalar_lea.vmem [#allocation1], 577
    %v4547 = vld [vmem:[%s4546] ss:$8 sm:$0xf]
    %s4548 = scalar_lea.vmem [#allocation1], 577
    %v4549 = vld [vmem:[%s4548] ss:$8 sm:$0xf0]
    %vm4550 = vcmask 1047556
    %v4551 = vsel %vm4550, %v4549, %v4547
    %4552 = vrot.lane.b32.xlu0 %v4551, 13
    %v4553 = vpop.permute.xlu0 %4552
    %vm4554 = vcmask 212072
    %s4555 = scalar_lea.vmem [#allocation0], 72
    %4556 = vst.msk [vmem:[%s4555] sm:$0xff] %vm4554, %v4553
    %s4557 = scalar_lea.vmem [#allocation1], 833
    %v4558 = vld [vmem:[%s4557] ss:$8 sm:$0xf]
    %s4559 = scalar_lea.vmem [#allocation1], 833
    %v4560 = vld [vmem:[%s4559] ss:$8 sm:$0xf0]
    %vm4561 = vcmask 1047556
    %v4562 = vsel %vm4561, %v4560, %v4558
    %4563 = vrot.lane.b32.xlu0 %v4562, 13
    %v4564 = vpop.permute.xlu0 %4563
    %vm4565 = vcmask 212072
    %s4566 = scalar_lea.vmem [#allocation0], 104
    %4567 = vst.msk [vmem:[%s4566] sm:$0xff] %vm4565, %v4564
    %s4568 = scalar_lea.vmem [#allocation1], 1089
    %v4569 = vld [vmem:[%s4568] ss:$8 sm:$0xf]
    %s4570 = scalar_lea.vmem [#allocation1], 1089
    %v4571 = vld [vmem:[%s4570] ss:$8 sm:$0xf0]
    %vm4572 = vcmask 1047556
    %v4573 = vsel %vm4572, %v4571, %v4569
    %4574 = vrot.lane.b32.xlu0 %v4573, 13
    %v4575 = vpop.permute.xlu0 %4574
    %vm4576 = vcmask 212072
    %s4577 = scalar_lea.vmem [#allocation0], 136
    %4578 = vst.msk [vmem:[%s4577] sm:$0xff] %vm4576, %v4575
    %s4579 = scalar_lea.vmem [#allocation1], 1345
    %v4580 = vld [vmem:[%s4579] ss:$8 sm:$0xf]
    %s4581 = scalar_lea.vmem [#allocation1], 1345
    %v4582 = vld [vmem:[%s4581] ss:$8 sm:$0xf0]
    %vm4583 = vcmask 1047556
    %v4584 = vsel %vm4583, %v4582, %v4580
    %4585 = vrot.lane.b32.xlu0 %v4584, 13
    %v4586 = vpop.permute.xlu0 %4585
    %vm4587 = vcmask 212072
    %s4588 = scalar_lea.vmem [#allocation0], 168
    %4589 = vst.msk [vmem:[%s4588] sm:$0xff] %vm4587, %v4586
    %s4590 = scalar_lea.vmem [#allocation1], 129
    %v4591 = vld [vmem:[%s4590] ss:$8 sm:$0xf]
    %s4592 = scalar_lea.vmem [#allocation1], 129
    %v4593 = vld [vmem:[%s4592] ss:$8 sm:$0xf0]
    %vm4594 = vcmask 1047556
    %v4595 = vsel %vm4594, %v4593, %v4591
    %4596 = vrot.lane.b32.xlu0 %v4595, 13
    %v4597 = vpop.permute.xlu0 %4596
    %vm4598 = vcmask 212072
    %s4599 = scalar_lea.vmem [#allocation0], 16
    %4600 = vst.msk [vmem:[%s4599] sm:$0xff] %vm4598, %v4597
    %s4601 = scalar_lea.vmem [#allocation1], 385
    %v4602 = vld [vmem:[%s4601] ss:$8 sm:$0xf]
    %s4603 = scalar_lea.vmem [#allocation1], 385
    %v4604 = vld [vmem:[%s4603] ss:$8 sm:$0xf0]
    %vm4605 = vcmask 1047556
    %v4606 = vsel %vm4605, %v4604, %v4602
    %4607 = vrot.lane.b32.xlu0 %v4606, 13
    %v4608 = vpop.permute.xlu0 %4607
    %vm4609 = vcmask 212072
    %s4610 = scalar_lea.vmem [#allocation0], 48
    %4611 = vst.msk [vmem:[%s4610] sm:$0xff] %vm4609, %v4608
    %s4612 = scalar_lea.vmem [#allocation1], 641
    %v4613 = vld [vmem:[%s4612] ss:$8 sm:$0xf]
    %s4614 = scalar_lea.vmem [#allocation1], 641
    %v4615 = vld [vmem:[%s4614] ss:$8 sm:$0xf0]
    %vm4616 = vcmask 1047556
    %v4617 = vsel %vm4616, %v4615, %v4613
    %4618 = vrot.lane.b32.xlu0 %v4617, 13
    %v4619 = vpop.permute.xlu0 %4618
    %vm4620 = vcmask 212072
    %s4621 = scalar_lea.vmem [#allocation0], 80
    %4622 = vst.msk [vmem:[%s4621] sm:$0xff] %vm4620, %v4619
    %s4623 = scalar_lea.vmem [#allocation1], 897
    %v4624 = vld [vmem:[%s4623] ss:$8 sm:$0xf]
    %s4625 = scalar_lea.vmem [#allocation1], 897
    %v4626 = vld [vmem:[%s4625] ss:$8 sm:$0xf0]
    %vm4627 = vcmask 1047556
    %v4628 = vsel %vm4627, %v4626, %v4624
    %4629 = vrot.lane.b32.xlu0 %v4628, 13
    %v4630 = vpop.permute.xlu0 %4629
    %vm4631 = vcmask 212072
    %s4632 = scalar_lea.vmem [#allocation0], 112
    %4633 = vst.msk [vmem:[%s4632] sm:$0xff] %vm4631, %v4630
    %s4634 = scalar_lea.vmem [#allocation1], 1153
    %v4635 = vld [vmem:[%s4634] ss:$8 sm:$0xf]
    %s4636 = scalar_lea.vmem [#allocation1], 1153
    %v4637 = vld [vmem:[%s4636] ss:$8 sm:$0xf0]
    %vm4638 = vcmask 1047556
    %v4639 = vsel %vm4638, %v4637, %v4635
    %4640 = vrot.lane.b32.xlu0 %v4639, 13
    %v4641 = vpop.permute.xlu0 %4640
    %vm4642 = vcmask 212072
    %s4643 = scalar_lea.vmem [#allocation0], 144
    %4644 = vst.msk [vmem:[%s4643] sm:$0xff] %vm4642, %v4641
    %s4645 = scalar_lea.vmem [#allocation1], 193
    %v4646 = vld [vmem:[%s4645] ss:$8 sm:$0xf]
    %s4647 = scalar_lea.vmem [#allocation1], 193
    %v4648 = vld [vmem:[%s4647] ss:$8 sm:$0xf0]
    %vm4649 = vcmask 1047556
    %v4650 = vsel %vm4649, %v4648, %v4646
    %4651 = vrot.lane.b32.xlu0 %v4650, 13
    %v4652 = vpop.permute.xlu0 %4651
    %vm4653 = vcmask 212072
    %s4654 = scalar_lea.vmem [#allocation0], 24
    %4655 = vst.msk [vmem:[%s4654] sm:$0xff] %vm4653, %v4652
    %s4656 = scalar_lea.vmem [#allocation1], 449
    %v4657 = vld [vmem:[%s4656] ss:$8 sm:$0xf]
    %s4658 = scalar_lea.vmem [#allocation1], 449
    %v4659 = vld [vmem:[%s4658] ss:$8 sm:$0xf0]
    %vm4660 = vcmask 1047556
    %v4661 = vsel %vm4660, %v4659, %v4657
    %4662 = vrot.lane.b32.xlu0 %v4661, 13
    %v4663 = vpop.permute.xlu0 %4662
    %vm4664 = vcmask 212072
    %s4665 = scalar_lea.vmem [#allocation0], 56
    %4666 = vst.msk [vmem:[%s4665] sm:$0xff] %vm4664, %v4663
    %s4667 = scalar_lea.vmem [#allocation1], 705
    %v4668 = vld [vmem:[%s4667] ss:$8 sm:$0xf]
    %s4669 = scalar_lea.vmem [#allocation1], 705
    %v4670 = vld [vmem:[%s4669] ss:$8 sm:$0xf0]
    %vm4671 = vcmask 1047556
    %v4672 = vsel %vm4671, %v4670, %v4668
    %4673 = vrot.lane.b32.xlu0 %v4672, 13
    %v4674 = vpop.permute.xlu0 %4673
    %vm4675 = vcmask 212072
    %s4676 = scalar_lea.vmem [#allocation0], 88
    %4677 = vst.msk [vmem:[%s4676] sm:$0xff] %vm4675, %v4674
    %s4678 = scalar_lea.vmem [#allocation1], 961
    %v4679 = vld [vmem:[%s4678] ss:$8 sm:$0xf]
    %s4680 = scalar_lea.vmem [#allocation1], 961
    %v4681 = vld [vmem:[%s4680] ss:$8 sm:$0xf0]
    %vm4682 = vcmask 1047556
    %v4683 = vsel %vm4682, %v4681, %v4679
    %4684 = vrot.lane.b32.xlu0 %v4683, 13
    %v4685 = vpop.permute.xlu0 %4684
    %vm4686 = vcmask 212072
    %s4687 = scalar_lea.vmem [#allocation0], 120
    %4688 = vst.msk [vmem:[%s4687] sm:$0xff] %vm4686, %v4685
    %s4689 = scalar_lea.vmem [#allocation1], 1217
    %v4690 = vld [vmem:[%s4689] ss:$8 sm:$0xf]
    %s4691 = scalar_lea.vmem [#allocation1], 1217
    %v4692 = vld [vmem:[%s4691] ss:$8 sm:$0xf0]
    %vm4693 = vcmask 1047556
    %v4694 = vsel %vm4693, %v4692, %v4690
    %4695 = vrot.lane.b32.xlu0 %v4694, 13
    %v4696 = vpop.permute.xlu0 %4695
    %vm4697 = vcmask 212072
    %s4698 = scalar_lea.vmem [#allocation0], 152
    %4699 = vst.msk [vmem:[%s4698] sm:$0xff] %vm4697, %v4696
    %s4701 = smul.u32 4, 2
    %s4702 = sshll.u32 1, %s4701
    %s4703 = ssub.s32 %s4702, 1
    %s4704 = sshrl.u32 %s4701, 1
    %v4705 = vld [vmem:[#allocation0] sm:%s4703]
    %v4706 = vpack.c.bf16 0.0, %v4705
    %s4707 = sshll.u32 1, %s4704
    %s4708 = ssub.s32 %s4707, 1
    %4709 = vst [vmem:[%s1] sm:%s4708] %v4706
    %s4710 = scalar_lea.vmem [#allocation0], 8
    %v4711 = vld [vmem:[%s4710] sm:%s4703]
    %v4712 = vpack.c.bf16 0.0, %v4711
    %s4713 = sshll.u32 1, %s4704
    %s4714 = ssub.s32 %s4713, 1
    %s4715 = scalar_lea.vmem %s1, 4
    %4716 = vst [vmem:[%s4715] sm:%s4714] %v4712
    %s4717 = scalar_lea.vmem [#allocation0], 16
    %v4718 = vld [vmem:[%s4717] sm:%s4703]
    %v4719 = vpack.c.bf16 0.0, %v4718
    %s4720 = sshll.u32 1, %s4704
    %s4721 = ssub.s32 %s4720, 1
    %s4722 = smul.addr 4, 2
    %s4723 = scalar_lea.vmem %s1, %s4722
    %4724 = vst [vmem:[%s4723] sm:%s4721] %v4719
    %s4725 = scalar_lea.vmem [#allocation0], 24
    %v4726 = vld [vmem:[%s4725] sm:%s4703]
    %v4727 = vpack.c.bf16 0.0, %v4726
    %s4728 = sshll.u32 1, %s4704
    %s4729 = ssub.s32 %s4728, 1
    %s4730 = smul.addr 4, 3
    %s4731 = scalar_lea.vmem %s1, %s4730
    %4732 = vst [vmem:[%s4731] sm:%s4729] %v4727
    %s4733 = scalar_lea.vmem [#allocation0], 32
    %v4734 = vld [vmem:[%s4733] sm:%s4703]
    %v4735 = vpack.c.bf16 0.0, %v4734
    %s4736 = sshll.u32 1, %s4704
    %s4737 = ssub.s32 %s4736, 1
    %s4738 = smul.addr 4, 4
    %s4739 = scalar_lea.vmem %s1, %s4738
    %4740 = vst [vmem:[%s4739] sm:%s4737] %v4735
    %s4741 = scalar_lea.vmem [#allocation0], 40
    %v4742 = vld [vmem:[%s4741] sm:%s4703]
    %v4743 = vpack.c.bf16 0.0, %v4742
    %s4744 = sshll.u32 1, %s4704
    %s4745 = ssub.s32 %s4744, 1
    %s4746 = smul.addr 4, 5
    %s4747 = scalar_lea.vmem %s1, %s4746
    %4748 = vst [vmem:[%s4747] sm:%s4745] %v4743
    %s4749 = scalar_lea.vmem [#allocation0], 48
    %v4750 = vld [vmem:[%s4749] sm:%s4703]
    %v4751 = vpack.c.bf16 0.0, %v4750
    %s4752 = sshll.u32 1, %s4704
    %s4753 = ssub.s32 %s4752, 1
    %s4754 = smul.addr 4, 6
    %s4755 = scalar_lea.vmem %s1, %s4754
    %4756 = vst [vmem:[%s4755] sm:%s4753] %v4751
    %s4757 = scalar_lea.vmem [#allocation0], 56
    %v4758 = vld [vmem:[%s4757] sm:%s4703]
    %v4759 = vpack.c.bf16 0.0, %v4758
    %s4760 = sshll.u32 1, %s4704
    %s4761 = ssub.s32 %s4760, 1
    %s4762 = smul.addr 4, 7
    %s4763 = scalar_lea.vmem %s1, %s4762
    %4764 = vst [vmem:[%s4763] sm:%s4761] %v4759
    %s4765 = scalar_lea.vmem [#allocation0], 64
    %v4766 = vld [vmem:[%s4765] sm:%s4703]
    %v4767 = vpack.c.bf16 0.0, %v4766
    %s4768 = sshll.u32 1, %s4704
    %s4769 = ssub.s32 %s4768, 1
    %s4770 = smul.addr 4, 8
    %s4771 = scalar_lea.vmem %s1, %s4770
    %4772 = vst [vmem:[%s4771] sm:%s4769] %v4767
    %s4773 = scalar_lea.vmem [#allocation0], 72
    %v4774 = vld [vmem:[%s4773] sm:%s4703]
    %v4775 = vpack.c.bf16 0.0, %v4774
    %s4776 = sshll.u32 1, %s4704
    %s4777 = ssub.s32 %s4776, 1
    %s4778 = smul.addr 4, 9
    %s4779 = scalar_lea.vmem %s1, %s4778
    %4780 = vst [vmem:[%s4779] sm:%s4777] %v4775
    %s4781 = scalar_lea.vmem [#allocation0], 80
    %v4782 = vld [vmem:[%s4781] sm:%s4703]
    %v4783 = vpack.c.bf16 0.0, %v4782
    %s4784 = sshll.u32 1, %s4704
    %s4785 = ssub.s32 %s4784, 1
    %s4786 = smul.addr 4, 10
    %s4787 = scalar_lea.vmem %s1, %s4786
    %4788 = vst [vmem:[%s4787] sm:%s4785] %v4783
    %s4789 = scalar_lea.vmem [#allocation0], 88
    %v4790 = vld [vmem:[%s4789] sm:%s4703]
    %v4791 = vpack.c.bf16 0.0, %v4790
    %s4792 = sshll.u32 1, %s4704
    %s4793 = ssub.s32 %s4792, 1
    %s4794 = smul.addr 4, 11
    %s4795 = scalar_lea.vmem %s1, %s4794
    %4796 = vst [vmem:[%s4795] sm:%s4793] %v4791
    %s4797 = scalar_lea.vmem [#allocation0], 96
    %v4798 = vld [vmem:[%s4797] sm:%s4703]
    %v4799 = vpack.c.bf16 0.0, %v4798
    %s4800 = sshll.u32 1, %s4704
    %s4801 = ssub.s32 %s4800, 1
    %s4802 = smul.addr 4, 12
    %s4803 = scalar_lea.vmem %s1, %s4802
    %4804 = vst [vmem:[%s4803] sm:%s4801] %v4799
    %s4805 = scalar_lea.vmem [#allocation0], 104
    %v4806 = vld [vmem:[%s4805] sm:%s4703]
    %v4807 = vpack.c.bf16 0.0, %v4806
    %s4808 = sshll.u32 1, %s4704
    %s4809 = ssub.s32 %s4808, 1
    %s4810 = smul.addr 4, 13
    %s4811 = scalar_lea.vmem %s1, %s4810
    %4812 = vst [vmem:[%s4811] sm:%s4809] %v4807
    %s4813 = scalar_lea.vmem [#allocation0], 112
    %v4814 = vld [vmem:[%s4813] sm:%s4703]
    %v4815 = vpack.c.bf16 0.0, %v4814
    %s4816 = sshll.u32 1, %s4704
    %s4817 = ssub.s32 %s4816, 1
    %s4818 = smul.addr 4, 14
    %s4819 = scalar_lea.vmem %s1, %s4818
    %4820 = vst [vmem:[%s4819] sm:%s4817] %v4815
    %s4821 = scalar_lea.vmem [#allocation0], 120
    %v4822 = vld [vmem:[%s4821] sm:%s4703]
    %v4823 = vpack.c.bf16 0.0, %v4822
    %s4824 = sshll.u32 1, %s4704
    %s4825 = ssub.s32 %s4824, 1
    %s4826 = smul.addr 4, 15
    %s4827 = scalar_lea.vmem %s1, %s4826
    %4828 = vst [vmem:[%s4827] sm:%s4825] %v4823
    %s4829 = scalar_lea.vmem [#allocation0], 128
    %v4830 = vld [vmem:[%s4829] sm:%s4703]
    %v4831 = vpack.c.bf16 0.0, %v4830
    %s4832 = sshll.u32 1, %s4704
    %s4833 = ssub.s32 %s4832, 1
    %s4834 = smul.addr 4, 16
    %s4835 = scalar_lea.vmem %s1, %s4834
    %4836 = vst [vmem:[%s4835] sm:%s4833] %v4831
    %s4837 = scalar_lea.vmem [#allocation0], 136
    %v4838 = vld [vmem:[%s4837] sm:%s4703]
    %v4839 = vpack.c.bf16 0.0, %v4838
    %s4840 = sshll.u32 1, %s4704
    %s4841 = ssub.s32 %s4840, 1
    %s4842 = smul.addr 4, 17
    %s4843 = scalar_lea.vmem %s1, %s4842
    %4844 = vst [vmem:[%s4843] sm:%s4841] %v4839
    %s4845 = scalar_lea.vmem [#allocation0], 144
    %v4846 = vld [vmem:[%s4845] sm:%s4703]
    %v4847 = vpack.c.bf16 0.0, %v4846
    %s4848 = sshll.u32 1, %s4704
    %s4849 = ssub.s32 %s4848, 1
    %s4850 = smul.addr 4, 18
    %s4851 = scalar_lea.vmem %s1, %s4850
    %4852 = vst [vmem:[%s4851] sm:%s4849] %v4847
    %s4853 = scalar_lea.vmem [#allocation0], 152
    %v4854 = vld [vmem:[%s4853] sm:%s4703]
    %v4855 = vpack.c.bf16 0.0, %v4854
    %s4856 = sshll.u32 1, %s4704
    %s4857 = ssub.s32 %s4856, 1
    %s4858 = smul.addr 4, 19
    %s4859 = scalar_lea.vmem %s1, %s4858
    %4860 = vst [vmem:[%s4859] sm:%s4857] %v4855
    %s4861 = scalar_lea.vmem [#allocation0], 160
    %v4862 = vld [vmem:[%s4861] sm:%s4703]
    %v4863 = vpack.c.bf16 0.0, %v4862
    %s4864 = sshll.u32 1, %s4704
    %s4865 = ssub.s32 %s4864, 1
    %s4866 = smul.addr 4, 20
    %s4867 = scalar_lea.vmem %s1, %s4866
    %4868 = vst [vmem:[%s4867] sm:%s4865] %v4863
    %s4869 = scalar_lea.vmem [#allocation0], 168
    %v4870 = vld [vmem:[%s4869] sm:%s4703]
    %v4871 = vpack.c.bf16 0.0, %v4870
    %s4872 = sshll.u32 1, %s4704
    %s4873 = ssub.s32 %s4872, 1
    %s4874 = smul.addr 4, 21
    %s4875 = scalar_lea.vmem %s1, %s4874
    %4876 = vst [vmem:[%s4875] sm:%s4873] %v4871

// kernel: _lambda_.1
$region0: #{_lambda_.1}
  #allocation0 [shape = 'u32[]', space=smem, size = 0x4, offset = 0x4, fixed_abs, tag = 'smem constant byte address 0x4 - core index']
  #allocation1 [shape = 'u32[144,128]{1,0:T(1,128)}', space=vmem, size = 0x12000, scoped, tag = 'internal scratch']
  %s0 = inlined_call_operand.vmem [shape: bf16[28,512], index: 0, kind: input, shape index: {}]
  %s1 = inlined_call_operand.vmem [shape: bf16[208,85], index: 1, kind: input, shape index: {}]
  %s2 = inlined_call_operand.vmem [shape: bf16[176,313], index: 2, kind: input, shape index: {}]
  %s3 = inlined_call_operand.vmem [shape: bf16[2,104,208], index: 3, kind: input, shape index: {}]
  %s4 = inlined_call_operand.vmem [shape: bf16[2,510,256], index: 4, kind: input, shape index: {}]
  %s5 = inlined_call_operand.vmem [shape: bf16[2,80,176], index: 5, kind: input, shape index: {}]
  %s6 = inlined_call_operand.vmem [shape: bf16[2,254,128], index: 6, kind: input, shape index: {}]
  %s7 = inlined_call_operand.vmem [shape: bf16[5,32,80], index: 7, kind: input, shape index: {}]
  %s8 = inlined_call_operand.vmem [shape: bf16[5,128,16], index: 8, kind: input, shape index: {}]
  %s9 = inlined_call_operand.vmem [shape: f32[32,16], index: 9, kind: input, shape index: {}]
  %s10 = inlined_call_operand.vmem [shape: bf16[16,32], index: 10, kind: input, shape index: {}]
  %s11 = inlined_call_operand.vmem [shape: f32[16,16], index: 11, kind: input, shape index: {}]
  %s12 = inlined_call_operand.vmem [shape: f32[16,128], index: 12, kind: output, shape index: {}]
  %s13 = sld [smem:[#allocation0]]
  $region58: #{_lambda_.1} parent=0
    _
  %s15 = ssub.s32 1, %s13
  %s16 = scalar_select 0, %s15, %s13
  // Predicated region
  $region2: #{_lambda_.1} parent=0 // pred_check
    _
  $region3: #{_lambda_.1} parent=0 // pred_check_branch
    %18 = sbr.rel (0) target = $region5
  $region4: #{_lambda_.1} parent=0 // pred_region
    _
  $region5: #{_lambda_.1} parent=0 // pred_fallthru
    _
  // Predicated region
  $region6: #{_lambda_.1} parent=0 // pred_check
    _
  $region7: #{_lambda_.1} parent=0 // pred_check_branch
    %20 = sbr.rel (0) target = $region9
  $region8: #{_lambda_.1} parent=0 // pred_region
    _
  $region9: #{_lambda_.1} parent=0 // pred_fallthru
    _
  // Predicated region
  $region10: #{_lambda_.1} parent=0 // pred_check
    _
  $region11: #{_lambda_.1} parent=0 // pred_check_branch
    %22 = sbr.rel (0) target = $region13
  $region12: #{_lambda_.1} parent=0 // pred_region
    _
  $region13: #{_lambda_.1} parent=0 // pred_fallthru
    _
  // Predicated region
  $region14: #{_lambda_.1} parent=0 // pred_check
    _
  $region15: #{_lambda_.1} parent=0 // pred_check_branch
    %24 = sbr.rel (0) target = $region17
  $region16: #{_lambda_.1} parent=0 // pred_region
    _
  $region17: #{_lambda_.1} parent=0 // pred_fallthru
    _
  // Predicated region
  $region18: #{_lambda_.1} parent=0 // pred_check
    _
  $region19: #{_lambda_.1} parent=0 // pred_check_branch
    %26 = sbr.rel (0) target = $region21
  $region20: #{_lambda_.1} parent=0 // pred_region
    _
  $region21: #{_lambda_.1} parent=0 // pred_fallthru
    _
  // Predicated region
  $region22: #{_lambda_.1} parent=0 // pred_check
    _
  $region23: #{_lambda_.1} parent=0 // pred_check_branch
    %28 = sbr.rel (0) target = $region25
  $region24: #{_lambda_.1} parent=0 // pred_region
    _
  $region25: #{_lambda_.1} parent=0 // pred_fallthru
    _
  // Predicated region
  $region26: #{_lambda_.1} parent=0 // pred_check
    _
  $region27: #{_lambda_.1} parent=0 // pred_check_branch
    %30 = sbr.rel (0) target = $region29
  $region28: #{_lambda_.1} parent=0 // pred_region
    _
  $region29: #{_lambda_.1} parent=0 // pred_fallthru
    _
  // Predicated region
  $region30: #{_lambda_.1} parent=0 // pred_check
    _
  $region31: #{_lambda_.1} parent=0 // pred_check_branch
    %32 = sbr.rel (0) target = $region33
  $region32: #{_lambda_.1} parent=0 // pred_region
    _
  $region33: #{_lambda_.1} parent=0 // pred_fallthru
    _
  // Predicated region
  $region34: #{_lambda_.1} parent=0 // pred_check
    _
  $region35: #{_lambda_.1} parent=0 // pred_check_branch
    %34 = sbr.rel (0) target = $region37
  $region36: #{_lambda_.1} parent=0 // pred_region
    _
  $region37: #{_lambda_.1} parent=0 // pred_fallthru
    _
  // Predicated region
  $region38: #{_lambda_.1} parent=0 // pred_check
    _
  $region39: #{_lambda_.1} parent=0 // pred_check_branch
    %36 = sbr.rel (0) target = $region41
  $region40: #{_lambda_.1} parent=0 // pred_region
    _
  $region41: #{_lambda_.1} parent=0 // pred_fallthru
    _
  // Predicated region
  $region42: #{_lambda_.1} parent=0 // pred_check
    _
  $region43: #{_lambda_.1} parent=0 // pred_check_branch
    %38 = sbr.rel (0) target = $region45
  $region44: #{_lambda_.1} parent=0 // pred_region
    _
  $region45: #{_lambda_.1} parent=0 // pred_fallthru
    _
  // Predicated region
  $region46: #{_lambda_.1} parent=0 // pred_check
    _
  $region47: #{_lambda_.1} parent=0 // pred_check_branch
    %40 = sbr.rel (0) target = $region49
  $region48: #{_lambda_.1} parent=0 // pred_region
    _
  $region49: #{_lambda_.1} parent=0 // pred_fallthru
    _
  %v43 = vld [vmem:[%s0] sm:$0xff]
  %v44 = vld [vmem:[%s0 + $0x8] sm:$0xff]
  %v45 = vld [vmem:[%s0 + $0x10] sm:$0xff]
  %v46 = vld [vmem:[%s0 + $0x18] sm:$0xff]
  %v47 = vld [vmem:[%s0 + $0x20] sm:$0xff]
  %v48 = vld [vmem:[%s0 + $0x28] sm:$0xff]
  %v49 = vld [vmem:[%s0 + $0x30] sm:$0x33]
  %v50 = vld [vmem:[%s0 + $0x38] sm:$0x33]
  %v59 = vunpack.c.l.b16 %v43
  %v60 = vunpack.c.h.b16 %v43
  %v61 = vunpack.c.l.b16 %v44
  %v62 = vunpack.c.h.b16 %v44
  %v63 = vunpack.c.l.b16 %v45
  %v64 = vunpack.c.h.b16 %v45
  %v65 = vunpack.c.l.b16 %v46
  %v66 = vunpack.c.h.b16 %v46
  %v67 = vunpack.c.l.b16 %v47
  %v68 = vunpack.c.h.b16 %v47
  %v69 = vunpack.c.l.b16 %v48
  %v70 = vunpack.c.h.b16 %v48
  %v71 = vunpack.c.l.b16 %v49
  %v72 = vunpack.c.h.b16 %v49
  %v73 = vunpack.c.l.b16 %v50
  %v74 = vunpack.c.h.b16 %v50
  %v75 = vpack.c.b16 %v63, %v59
  %v76 = vpack.c.b16 %v64, %v60
  %v77 = vpack.c.b16 %v65, %v61
  %v78 = vpack.c.b16 %v66, %v62
  %v79 = vpack.c.b16 %v71, %v67
  %v80 = vpack.c.b16 %v72, %v68
  %v81 = vpack.c.b16 %v73, %v69
  %v82 = vpack.c.b16 %v74, %v70
  %vm87 = vcmask 1045504
  %v88 = vrot.slane %v75, 2
  %v89 = vrot.slane %v76, 2
  %v90 = vrot.slane %v77, 2
  %v91 = vrot.slane %v78, 2
  %v92 = vrot.slane %v79, 2
  %v93 = vsel %vm87, %v88, %v92
  %v94 = vrot.slane %v80, 2
  %v95 = vsel %vm87, %v89, %v94
  %v96 = vrot.slane %v81, 2
  %v97 = vsel %vm87, %v90, %v96
  %v98 = vrot.slane %v82, 2
  %v99 = vsel %vm87, %v91, %v98
  %100 = vrot.lane.b32.xlu0 %v88, 127
  %v101 = vpop.permute.xlu0 %100
  %102 = vrot.lane.b32.xlu0 %v89, 127
  %v103 = vpop.permute.xlu0 %102
  %104 = vrot.lane.b32.xlu0 %v90, 127
  %v105 = vpop.permute.xlu0 %104
  %106 = vrot.lane.b32.xlu0 %v91, 127
  %v107 = vpop.permute.xlu0 %106
  %108 = vrot.lane.b32.xlu0 %v93, 127
  %v109 = vpop.permute.xlu0 %108
  %110 = vrot.lane.b32.xlu0 %v95, 127
  %v111 = vpop.permute.xlu0 %110
  %112 = vrot.lane.b32.xlu0 %v97, 127
  %v113 = vpop.permute.xlu0 %112
  %114 = vrot.lane.b32.xlu0 %v99, 127
  %v115 = vpop.permute.xlu0 %114
  %116 = vrot.lane.b32.xlu0 %v92, 127
  %v117 = vpop.permute.xlu0 %116
  %118 = vrot.lane.b32.xlu0 %v94, 127
  %v119 = vpop.permute.xlu0 %118
  %120 = vrot.lane.b32.xlu0 %v96, 127
  %v121 = vpop.permute.xlu0 %120
  %122 = vrot.lane.b32.xlu0 %v98, 127
  %v123 = vpop.permute.xlu0 %122
  %vm124 = vcmask 1039360
  %v125 = vsel %vm124, %v101, %v103
  %v126 = vsel %vm124, %v103, %v105
  %v127 = vsel %vm124, %v105, %v107
  %v128 = vsel %vm124, %v109, %v111
  %v129 = vsel %vm124, %v111, %v113
  %v130 = vsel %vm124, %v113, %v115
  %v131 = vsel %vm124, %v117, %v119
  %v132 = vsel %vm124, %v119, %v121
  %v133 = vsel %vm124, %v121, %v123
  %v138 = vpack.c.b16 %v59, %v59
  %v139 = vpack.c.b16 %v60, %v60
  %v140 = vpack.c.b16 %v61, %v61
  %v141 = vpack.c.b16 %v62, %v62
  %v142 = vpack.c.b16 %v67, %v63
  %v143 = vpack.c.b16 %v68, %v64
  %v144 = vpack.c.b16 %v69, %v65
  %v145 = vpack.c.b16 %v70, %v66
  %v146 = vpack.c.b16 %v71, %v71
  %v147 = vpack.c.b16 %v72, %v72
  %v148 = vpack.c.b16 %v73, %v73
  %v149 = vpack.c.b16 %v74, %v74
  %150 = vrot.lane.b32.xlu0 %v138, 126
  %v151 = vpop.permute.xlu0 %150
  %152 = vrot.lane.b32.xlu0 %v139, 126
  %v153 = vpop.permute.xlu0 %152
  %154 = vrot.lane.b32.xlu0 %v140, 126
  %v155 = vpop.permute.xlu0 %154
  %156 = vrot.lane.b32.xlu0 %v141, 126
  %v157 = vpop.permute.xlu0 %156
  %158 = vrot.lane.b32.xlu0 %v142, 126
  %v159 = vpop.permute.xlu0 %158
  %160 = vrot.lane.b32.xlu0 %v143, 126
  %v161 = vpop.permute.xlu0 %160
  %162 = vrot.lane.b32.xlu0 %v144, 126
  %v163 = vpop.permute.xlu0 %162
  %164 = vrot.lane.b32.xlu0 %v145, 126
  %v165 = vpop.permute.xlu0 %164
  %166 = vrot.lane.b32.xlu0 %v146, 126
  %v167 = vpop.permute.xlu0 %166
  %168 = vrot.lane.b32.xlu0 %v147, 126
  %v169 = vpop.permute.xlu0 %168
  %170 = vrot.lane.b32.xlu0 %v148, 126
  %v171 = vpop.permute.xlu0 %170
  %172 = vrot.lane.b32.xlu0 %v149, 126
  %v173 = vpop.permute.xlu0 %172
  %vm174 = vcmask 1031168
  %v175 = vsel %vm174, %v151, %v153
  %v176 = vsel %vm174, %v153, %v155
  %v177 = vsel %vm174, %v155, %v157
  %v178 = vsel %vm174, %v159, %v161
  %v179 = vsel %vm174, %v161, %v163
  %v180 = vsel %vm174, %v163, %v165
  %v181 = vsel %vm174, %v167, %v169
  %v182 = vsel %vm174, %v169, %v171
  %v183 = vsel %vm174, %v171, %v173
  %vm188 = vcmask 1045504
  %v191 = vsel %vm188, %v79, %v125
  %v195 = vsel %vm188, %v80, %v126
  %v199 = vsel %vm188, %v81, %v127
  %v203 = vsel %vm188, %v82, %v107
  %vm205 = vcmask 1043456
  %v208 = vsel %vm205, %v131, %v175
  %v212 = vsel %vm205, %v132, %v176
  %v216 = vsel %vm205, %v133, %v177
  %v220 = vsel %vm205, %v123, %v157
  %vm222 = vcmask 1041408
  %v225 = vsel %vm222, %v181, 1065369472
  %v227 = vsel %vm222, %v182, 1065369472
  %v229 = vsel %vm222, %v183, 1065369472
  %v231 = vsel %vm222, %v173, 1065369472
  %v232 = vld [vmem:[%s1] sm:$0xf]
  %v233 = vld [vmem:[%s1 + $0x4] sm:$0xf]
  %v234 = vld [vmem:[%s1 + $0x8] sm:$0xf]
  %v235 = vld [vmem:[%s1 + $0xc] sm:$0xf]
  %v236 = vld [vmem:[%s1 + $0x10] sm:$0xf]
  %v237 = vld [vmem:[%s1 + $0x14] sm:$0xf]
  %v238 = vld [vmem:[%s1 + $0x18] sm:$0xf]
  %v239 = vld [vmem:[%s1 + $0x1c] sm:$0xf]
  %v240 = vld [vmem:[%s1 + $0x20] sm:$0xf]
  %v241 = vld [vmem:[%s1 + $0x24] sm:$0xf]
  %v242 = vld [vmem:[%s1 + $0x28] sm:$0xf]
  %v243 = vld [vmem:[%s1 + $0x2c] sm:$0xf]
  %v244 = vld [vmem:[%s1 + $0x30] sm:$0xf]
  %v245 = vld [vmem:[%s1 + $0x34] sm:$0xf]
  %v246 = vld [vmem:[%s1 + $0x38] sm:$0xf]
  %v247 = vld [vmem:[%s1 + $0x3c] sm:$0xf]
  %v248 = vld [vmem:[%s1 + $0x40] sm:$0xf]
  %v249 = vld [vmem:[%s1 + $0x44] sm:$0xf]
  %v250 = vld [vmem:[%s1 + $0x48] sm:$0xf]
  %v251 = vld [vmem:[%s1 + $0x4c] sm:$0xf]
  %v252 = vld [vmem:[%s1 + $0x50] sm:$0xf]
  %v253 = vld [vmem:[%s1 + $0x54] sm:$0xf]
  %v254 = vld [vmem:[%s1 + $0x58] sm:$0xf]
  %v255 = vld [vmem:[%s1 + $0x5c] sm:$0xf]
  %v256 = vld [vmem:[%s1 + $0x60] sm:$0xf]
  %v257 = vld [vmem:[%s1 + $0x64] sm:$0xf]
  %v284 = vunpack.c.l.b16 %v232
  %v285 = vunpack.c.l.b16 %v233
  %v286 = vunpack.c.l.b16 %v234
  %v287 = vunpack.c.l.b16 %v235
  %v288 = vunpack.c.l.b16 %v236
  %v289 = vunpack.c.l.b16 %v237
  %v290 = vunpack.c.l.b16 %v238
  %v291 = vunpack.c.l.b16 %v239
  %v292 = vunpack.c.l.b16 %v240
  %v293 = vunpack.c.l.b16 %v241
  %v294 = vunpack.c.l.b16 %v242
  %v295 = vunpack.c.l.b16 %v243
  %v296 = vunpack.c.l.b16 %v244
  %v297 = vunpack.c.l.b16 %v245
  %v298 = vunpack.c.l.b16 %v246
  %v299 = vunpack.c.l.b16 %v247
  %v300 = vunpack.c.l.b16 %v248
  %v301 = vunpack.c.l.b16 %v249
  %v302 = vunpack.c.l.b16 %v250
  %v303 = vunpack.c.l.b16 %v251
  %v304 = vunpack.c.l.b16 %v252
  %v305 = vunpack.c.l.b16 %v253
  %v306 = vunpack.c.l.b16 %v254
  %v307 = vunpack.c.l.b16 %v255
  %v308 = vunpack.c.l.b16 %v256
  %v309 = vunpack.c.l.b16 %v257
  %v310 = vpack.c.b16 %v285, %v284
  %v311 = vpack.c.b16 %v287, %v286
  %v312 = vpack.c.b16 %v289, %v288
  %v313 = vpack.c.b16 %v291, %v290
  %v314 = vpack.c.b16 %v293, %v292
  %v315 = vpack.c.b16 %v295, %v294
  %v316 = vpack.c.b16 %v297, %v296
  %v317 = vpack.c.b16 %v299, %v298
  %v318 = vpack.c.b16 %v301, %v300
  %v319 = vpack.c.b16 %v303, %v302
  %v320 = vpack.c.b16 %v305, %v304
  %v321 = vpack.c.b16 %v307, %v306
  %v322 = vpack.c.b16 %v309, %v308
  %vm323 = vcmask 695296
  %v325 = vsel %vm323, %v310, 0
  %v328 = vsel %vm323, %v311, 0
  %v331 = vsel %vm323, %v312, 0
  %v334 = vsel %vm323, %v313, 0
  %v337 = vsel %vm323, %v314, 0
  %v340 = vsel %vm323, %v315, 0
  %v343 = vsel %vm323, %v316, 0
  %v346 = vsel %vm323, %v317, 0
  %v349 = vsel %vm323, %v318, 0
  %v352 = vsel %vm323, %v319, 0
  %v355 = vsel %vm323, %v320, 0
  %v358 = vsel %vm323, %v321, 0
  %v361 = vsel %vm323, %v322, 0
  %vm363 = vcmask 1042432
  %v364 = vsel %vm222, 4294967295, 65535
  %v365 = vsel %vm363, %v364, 0
  %v366 = vand.u32 %v225, %v365
  %v368 = vand.u32 %v227, %v365
  %v370 = vand.u32 %v229, %v365
  %v372 = vand.u32 %v231, %v365
  %374 = vmatprep.subr.bf16.mxu0 0
  %375 = vmatpush1.bf16.msra.mxu0 0
  %376 = vmatprep.subr.bf16.mxu0 0
  %377 = vmatpush1.bf16.msra.mxu0 0
  %378 = vmatprep.subr.bf16.mxu0 %v368
  %379 = vmatpush1.bf16.msra.mxu0 %v366
  %380 = vmatprep.subr.bf16.mxu0 %v179
  %381 = vmatpush1.bf16.msra.mxu0 %v178
  %382 = vmatprep.subr.bf16.mxu0 %v212
  %383 = vmatpush1.bf16.msra.mxu0 %v208
  %384 = vmatprep.subr.bf16.mxu0 %v129
  %385 = vmatpush1.bf16.msra.mxu0 %v128
  %386 = vmatprep.subr.bf16.mxu0 %v195
  %387 = vmatpush1.bf16.msra.mxu0 %v191
  %388 = vmatprep.subr.bf16.mxu0 %v76
  %389 = vmatpush1.bf16.msra.mxu0 %v75
  %390 = vmatprep.subr.bf16.mxu0 0
  %391 = vmatpush2.bf16.msra.mxu0 0
  %392 = vmatprep.subr.bf16.mxu0 0
  %393 = vmatpush2.bf16.msra.mxu0 0
  %394 = vmatprep.subr.bf16.mxu0 0
  %395 = vmatpush2.bf16.msra.mxu0 0
  %396 = vmatprep.subr.bf16.mxu0 0
  %397 = vmatpush2.bf16.msra.mxu0 0
  %398 = vmatprep.subr.bf16.mxu0 0
  %399 = vmatpush2.bf16.msra.mxu0 0
  %400 = vmatprep.subr.bf16.mxu0 0
  %401 = vmatpush2.bf16.msra.mxu0 0
  %402 = vmatprep.subr.bf16.mxu0 0
  %403 = vmatpush2.bf16.msra.mxu0 0
  %404 = vmatprep.subr.bf16.mxu0 0
  %405 = vmatpush2.bf16.msra.mxu0 0
  %406 = vmatprep.mubr.bf16.mxu0 0
  %407 = vmatmul.mubr.bf16.gmra.mxu0 %v325
  %v408 = vpop.f32.mrf.mxu0
  %v409 = vadd.f32 0.0, %v408
  %v410 = vpop.f32.mrf.mxu0
  %v411 = vadd.f32 0.0, %v410
  %v412 = vpop.f32.mrf.mxu0
  %v413 = vadd.f32 0.0, %v412
  %v414 = vpop.f32.mrf.mxu0
  %v415 = vadd.f32 0.0, %v414
  %416 = vmatprep.mubr.bf16.mxu0 0
  %417 = vmatmul.mubr.bf16.gmra.mxu0 %v328
  %v418 = vpop.f32.mrf.mxu0
  %v419 = vadd.f32 0.0, %v418
  %v420 = vpop.f32.mrf.mxu0
  %v421 = vadd.f32 0.0, %v420
  %v422 = vpop.f32.mrf.mxu0
  %v423 = vadd.f32 0.0, %v422
  %v424 = vpop.f32.mrf.mxu0
  %v425 = vadd.f32 0.0, %v424
  %426 = vmatprep.mubr.bf16.mxu0 0
  %427 = vmatmul.mubr.bf16.gmra.mxu0 %v331
  %v428 = vpop.f32.mrf.mxu0
  %v429 = vadd.f32 0.0, %v428
  %v430 = vpop.f32.mrf.mxu0
  %v431 = vadd.f32 0.0, %v430
  %v432 = vpop.f32.mrf.mxu0
  %v433 = vadd.f32 0.0, %v432
  %v434 = vpop.f32.mrf.mxu0
  %v435 = vadd.f32 0.0, %v434
  %436 = vmatprep.mubr.bf16.mxu0 0
  %437 = vmatmul.mubr.bf16.gmra.mxu0 %v334
  %v438 = vpop.f32.mrf.mxu0
  %v439 = vadd.f32 0.0, %v438
  %v440 = vpop.f32.mrf.mxu0
  %v441 = vadd.f32 0.0, %v440
  %v442 = vpop.f32.mrf.mxu0
  %v443 = vadd.f32 0.0, %v442
  %v444 = vpop.f32.mrf.mxu0
  %v445 = vadd.f32 0.0, %v444
  %446 = vmatprep.mubr.bf16.mxu0 0
  %447 = vmatmul.mubr.bf16.gmra.mxu0 %v337
  %v448 = vpop.f32.mrf.mxu0
  %v449 = vadd.f32 0.0, %v448
  %v450 = vpop.f32.mrf.mxu0
  %v451 = vadd.f32 0.0, %v450
  %v452 = vpop.f32.mrf.mxu0
  %v453 = vadd.f32 0.0, %v452
  %v454 = vpop.f32.mrf.mxu0
  %v455 = vadd.f32 0.0, %v454
  %456 = vmatprep.mubr.bf16.mxu0 0
  %457 = vmatmul.mubr.bf16.gmra.mxu0 %v340
  %v458 = vpop.f32.mrf.mxu0
  %v459 = vadd.f32 0.0, %v458
  %v460 = vpop.f32.mrf.mxu0
  %v461 = vadd.f32 0.0, %v460
  %v462 = vpop.f32.mrf.mxu0
  %v463 = vadd.f32 0.0, %v462
  %v464 = vpop.f32.mrf.mxu0
  %v465 = vadd.f32 0.0, %v464
  %466 = vmatprep.mubr.bf16.mxu0 0
  %467 = vmatmul.mubr.bf16.gmra.mxu0 %v343
  %v468 = vpop.f32.mrf.mxu0
  %v469 = vadd.f32 0.0, %v468
  %v470 = vpop.f32.mrf.mxu0
  %v471 = vadd.f32 0.0, %v470
  %v472 = vpop.f32.mrf.mxu0
  %v473 = vadd.f32 0.0, %v472
  %v474 = vpop.f32.mrf.mxu0
  %v475 = vadd.f32 0.0, %v474
  %476 = vmatprep.mubr.bf16.mxu0 0
  %477 = vmatmul.mubr.bf16.gmra.mxu0 %v346
  %v478 = vpop.f32.mrf.mxu0
  %v479 = vadd.f32 0.0, %v478
  %v480 = vpop.f32.mrf.mxu0
  %v481 = vadd.f32 0.0, %v480
  %v482 = vpop.f32.mrf.mxu0
  %v483 = vadd.f32 0.0, %v482
  %v484 = vpop.f32.mrf.mxu0
  %v485 = vadd.f32 0.0, %v484
  %486 = vmatprep.mubr.bf16.mxu0 0
  %487 = vmatmul.mubr.bf16.gmra.mxu0 %v349
  %v488 = vpop.f32.mrf.mxu0
  %v489 = vadd.f32 0.0, %v488
  %v490 = vpop.f32.mrf.mxu0
  %v491 = vadd.f32 0.0, %v490
  %v492 = vpop.f32.mrf.mxu0
  %v493 = vadd.f32 0.0, %v492
  %v494 = vpop.f32.mrf.mxu0
  %v495 = vadd.f32 0.0, %v494
  %496 = vmatprep.mubr.bf16.mxu0 0
  %497 = vmatmul.mubr.bf16.gmra.mxu0 %v352
  %v498 = vpop.f32.mrf.mxu0
  %v499 = vadd.f32 0.0, %v498
  %v500 = vpop.f32.mrf.mxu0
  %v501 = vadd.f32 0.0, %v500
  %v502 = vpop.f32.mrf.mxu0
  %v503 = vadd.f32 0.0, %v502
  %v504 = vpop.f32.mrf.mxu0
  %v505 = vadd.f32 0.0, %v504
  %506 = vmatprep.mubr.bf16.mxu0 0
  %507 = vmatmul.mubr.bf16.gmra.mxu0 %v355
  %v508 = vpop.f32.mrf.mxu0
  %v509 = vadd.f32 0.0, %v508
  %v510 = vpop.f32.mrf.mxu0
  %v511 = vadd.f32 0.0, %v510
  %v512 = vpop.f32.mrf.mxu0
  %v513 = vadd.f32 0.0, %v512
  %v514 = vpop.f32.mrf.mxu0
  %v515 = vadd.f32 0.0, %v514
  %516 = vmatprep.mubr.bf16.mxu0 0
  %517 = vmatmul.mubr.bf16.gmra.mxu0 %v358
  %v518 = vpop.f32.mrf.mxu0
  %v519 = vadd.f32 0.0, %v518
  %v520 = vpop.f32.mrf.mxu0
  %v521 = vadd.f32 0.0, %v520
  %v522 = vpop.f32.mrf.mxu0
  %v523 = vadd.f32 0.0, %v522
  %v524 = vpop.f32.mrf.mxu0
  %v525 = vadd.f32 0.0, %v524
  %526 = vmatprep.mubr.bf16.mxu0 0
  %527 = vmatmul.mubr.bf16.gmra.mxu0 %v361
  %v528 = vpop.f32.mrf.mxu0
  %v529 = vadd.f32 0.0, %v528
  %v530 = vpop.f32.mrf.mxu0
  %v531 = vadd.f32 0.0, %v530
  %v532 = vpop.f32.mrf.mxu0
  %v533 = vadd.f32 0.0, %v532
  %v534 = vpop.f32.mrf.mxu0
  %v535 = vadd.f32 0.0, %v534
  %536 = vdwg.mxu0
  %537 = vmatprep.subr.bf16.mxu0 0
  %538 = vmatpush1.bf16.msra.mxu0 0
  %539 = vmatprep.subr.bf16.mxu0 0
  %540 = vmatpush1.bf16.msra.mxu0 0
  %541 = vmatprep.subr.bf16.mxu0 %v372
  %542 = vmatpush1.bf16.msra.mxu0 %v370
  %543 = vmatprep.subr.bf16.mxu0 %v165
  %544 = vmatpush1.bf16.msra.mxu0 %v180
  %545 = vmatprep.subr.bf16.mxu0 %v220
  %546 = vmatpush1.bf16.msra.mxu0 %v216
  %547 = vmatprep.subr.bf16.mxu0 %v115
  %548 = vmatpush1.bf16.msra.mxu0 %v130
  %549 = vmatprep.subr.bf16.mxu0 %v203
  %550 = vmatpush1.bf16.msra.mxu0 %v199
  %551 = vmatprep.subr.bf16.mxu0 %v78
  %552 = vmatpush1.bf16.msra.mxu0 %v77
  %553 = vmatprep.subr.bf16.mxu0 0
  %554 = vmatpush2.bf16.msra.mxu0 0
  %555 = vmatprep.subr.bf16.mxu0 0
  %556 = vmatpush2.bf16.msra.mxu0 0
  %557 = vmatprep.subr.bf16.mxu0 0
  %558 = vmatpush2.bf16.msra.mxu0 0
  %559 = vmatprep.subr.bf16.mxu0 0
  %560 = vmatpush2.bf16.msra.mxu0 0
  %561 = vmatprep.subr.bf16.mxu0 0
  %562 = vmatpush2.bf16.msra.mxu0 0
  %563 = vmatprep.subr.bf16.mxu0 0
  %564 = vmatpush2.bf16.msra.mxu0 0
  %565 = vmatprep.subr.bf16.mxu0 0
  %566 = vmatpush2.bf16.msra.mxu0 0
  %567 = vmatprep.subr.bf16.mxu0 0
  %568 = vmatpush2.bf16.msra.mxu0 0
  %569 = vmatprep.mubr.bf16.mxu0 0
  %570 = vmatmul.mubr.bf16.gmra.mxu0 %v325
  %v571 = vpop.f32.mrf.mxu0
  %v572 = vadd.f32 0.0, %v571
  %v573 = vpop.f32.mrf.mxu0
  %v574 = vadd.f32 0.0, %v573
  %v575 = vpop.f32.mrf.mxu0
  %v576 = vadd.f32 0.0, %v575
  %v577 = vpop.f32.mrf.mxu0
  %v578 = vadd.f32 0.0, %v577
  %579 = vmatprep.mubr.bf16.mxu0 0
  %580 = vmatmul.mubr.bf16.gmra.mxu0 %v328
  %v581 = vpop.f32.mrf.mxu0
  %v582 = vadd.f32 0.0, %v581
  %v583 = vpop.f32.mrf.mxu0
  %v584 = vadd.f32 0.0, %v583
  %v585 = vpop.f32.mrf.mxu0
  %v586 = vadd.f32 0.0, %v585
  %v587 = vpop.f32.mrf.mxu0
  %v588 = vadd.f32 0.0, %v587
  %589 = vmatprep.mubr.bf16.mxu0 0
  %590 = vmatmul.mubr.bf16.gmra.mxu0 %v331
  %v591 = vpop.f32.mrf.mxu0
  %v592 = vadd.f32 0.0, %v591
  %v593 = vpop.f32.mrf.mxu0
  %v594 = vadd.f32 0.0, %v593
  %v595 = vpop.f32.mrf.mxu0
  %v596 = vadd.f32 0.0, %v595
  %v597 = vpop.f32.mrf.mxu0
  %v598 = vadd.f32 0.0, %v597
  %599 = vmatprep.mubr.bf16.mxu0 0
  %600 = vmatmul.mubr.bf16.gmra.mxu0 %v334
  %v601 = vpop.f32.mrf.mxu0
  %v602 = vadd.f32 0.0, %v601
  %v603 = vpop.f32.mrf.mxu0
  %v604 = vadd.f32 0.0, %v603
  %v605 = vpop.f32.mrf.mxu0
  %v606 = vadd.f32 0.0, %v605
  %v607 = vpop.f32.mrf.mxu0
  %v608 = vadd.f32 0.0, %v607
  %609 = vmatprep.mubr.bf16.mxu0 0
  %610 = vmatmul.mubr.bf16.gmra.mxu0 %v337
  %v611 = vpop.f32.mrf.mxu0
  %v612 = vadd.f32 0.0, %v611
  %v613 = vpop.f32.mrf.mxu0
  %v614 = vadd.f32 0.0, %v613
  %v615 = vpop.f32.mrf.mxu0
  %v616 = vadd.f32 0.0, %v615
  %v617 = vpop.f32.mrf.mxu0
  %v618 = vadd.f32 0.0, %v617
  %619 = vmatprep.mubr.bf16.mxu0 0
  %620 = vmatmul.mubr.bf16.gmra.mxu0 %v340
  %v621 = vpop.f32.mrf.mxu0
  %v622 = vadd.f32 0.0, %v621
  %v623 = vpop.f32.mrf.mxu0
  %v624 = vadd.f32 0.0, %v623
  %v625 = vpop.f32.mrf.mxu0
  %v626 = vadd.f32 0.0, %v625
  %v627 = vpop.f32.mrf.mxu0
  %v628 = vadd.f32 0.0, %v627
  %629 = vmatprep.mubr.bf16.mxu0 0
  %630 = vmatmul.mubr.bf16.gmra.mxu0 %v343
  %v631 = vpop.f32.mrf.mxu0
  %v632 = vadd.f32 0.0, %v631
  %v633 = vpop.f32.mrf.mxu0
  %v634 = vadd.f32 0.0, %v633
  %v635 = vpop.f32.mrf.mxu0
  %v636 = vadd.f32 0.0, %v635
  %v637 = vpop.f32.mrf.mxu0
  %v638 = vadd.f32 0.0, %v637
  %639 = vmatprep.mubr.bf16.mxu0 0
  %640 = vmatmul.mubr.bf16.gmra.mxu0 %v346
  %v641 = vpop.f32.mrf.mxu0
  %v642 = vadd.f32 0.0, %v641
  %v643 = vpop.f32.mrf.mxu0
  %v644 = vadd.f32 0.0, %v643
  %v645 = vpop.f32.mrf.mxu0
  %v646 = vadd.f32 0.0, %v645
  %v647 = vpop.f32.mrf.mxu0
  %v648 = vadd.f32 0.0, %v647
  %649 = vmatprep.mubr.bf16.mxu0 0
  %650 = vmatmul.mubr.bf16.gmra.mxu0 %v349
  %v651 = vpop.f32.mrf.mxu0
  %v652 = vadd.f32 0.0, %v651
  %v653 = vpop.f32.mrf.mxu0
  %v654 = vadd.f32 0.0, %v653
  %v655 = vpop.f32.mrf.mxu0
  %v656 = vadd.f32 0.0, %v655
  %v657 = vpop.f32.mrf.mxu0
  %v658 = vadd.f32 0.0, %v657
  %659 = vmatprep.mubr.bf16.mxu0 0
  %660 = vmatmul.mubr.bf16.gmra.mxu0 %v352
  %v661 = vpop.f32.mrf.mxu0
  %v662 = vadd.f32 0.0, %v661
  %v663 = vpop.f32.mrf.mxu0
  %v664 = vadd.f32 0.0, %v663
  %v665 = vpop.f32.mrf.mxu0
  %v666 = vadd.f32 0.0, %v665
  %v667 = vpop.f32.mrf.mxu0
  %v668 = vadd.f32 0.0, %v667
  %669 = vmatprep.mubr.bf16.mxu0 0
  %670 = vmatmul.mubr.bf16.gmra.mxu0 %v355
  %v671 = vpop.f32.mrf.mxu0
  %v672 = vadd.f32 0.0, %v671
  %v673 = vpop.f32.mrf.mxu0
  %v674 = vadd.f32 0.0, %v673
  %v675 = vpop.f32.mrf.mxu0
  %v676 = vadd.f32 0.0, %v675
  %v677 = vpop.f32.mrf.mxu0
  %v678 = vadd.f32 0.0, %v677
  %679 = vmatprep.mubr.bf16.mxu0 0
  %680 = vmatmul.mubr.bf16.gmra.mxu0 %v358
  %v681 = vpop.f32.mrf.mxu0
  %v682 = vadd.f32 0.0, %v681
  %v683 = vpop.f32.mrf.mxu0
  %v684 = vadd.f32 0.0, %v683
  %v685 = vpop.f32.mrf.mxu0
  %v686 = vadd.f32 0.0, %v685
  %v687 = vpop.f32.mrf.mxu0
  %v688 = vadd.f32 0.0, %v687
  %689 = vmatprep.mubr.bf16.mxu0 0
  %690 = vmatmul.mubr.bf16.gmra.mxu0 %v361
  %v691 = vpop.f32.mrf.mxu0
  %v692 = vadd.f32 0.0, %v691
  %v693 = vpop.f32.mrf.mxu0
  %v694 = vadd.f32 0.0, %v693
  %v695 = vpop.f32.mrf.mxu0
  %v696 = vadd.f32 0.0, %v695
  %v697 = vpop.f32.mrf.mxu0
  %v698 = vadd.f32 0.0, %v697
  %699 = vdwg.mxu0
  %v700 = vmax.f32 %v409, 0.0
  %v701 = vmax.f32 %v411, 0.0
  %v702 = vmax.f32 %v572, 0.0
  %v703 = vmax.f32 %v574, 0.0
  %v704 = vmax.f32 %v413, 0.0
  %v705 = vmax.f32 %v415, 0.0
  %v706 = vmax.f32 %v576, 0.0
  %v707 = vmax.f32 %v578, 0.0
  %v708 = vmax.f32 %v419, 0.0
  %v709 = vmax.f32 %v421, 0.0
  %v710 = vmax.f32 %v582, 0.0
  %v711 = vmax.f32 %v584, 0.0
  %v712 = vmax.f32 %v423, 0.0
  %v713 = vmax.f32 %v425, 0.0
  %v714 = vmax.f32 %v586, 0.0
  %v715 = vmax.f32 %v588, 0.0
  %v716 = vmax.f32 %v429, 0.0
  %v717 = vmax.f32 %v431, 0.0
  %v718 = vmax.f32 %v592, 0.0
  %v719 = vmax.f32 %v594, 0.0
  %v720 = vmax.f32 %v433, 0.0
  %v721 = vmax.f32 %v435, 0.0
  %v722 = vmax.f32 %v596, 0.0
  %v723 = vmax.f32 %v598, 0.0
  %v724 = vmax.f32 %v439, 0.0
  %v725 = vmax.f32 %v441, 0.0
  %v726 = vmax.f32 %v602, 0.0
  %v727 = vmax.f32 %v604, 0.0
  %v728 = vmax.f32 %v443, 0.0
  %v729 = vmax.f32 %v445, 0.0
  %v730 = vmax.f32 %v606, 0.0
  %v731 = vmax.f32 %v608, 0.0
  %v732 = vmax.f32 %v449, 0.0
  %v733 = vmax.f32 %v451, 0.0
  %v734 = vmax.f32 %v612, 0.0
  %v735 = vmax.f32 %v614, 0.0
  %v736 = vmax.f32 %v453, 0.0
  %v737 = vmax.f32 %v455, 0.0
  %v738 = vmax.f32 %v616, 0.0
  %v739 = vmax.f32 %v618, 0.0
  %v740 = vmax.f32 %v459, 0.0
  %v741 = vmax.f32 %v461, 0.0
  %v742 = vmax.f32 %v622, 0.0
  %v743 = vmax.f32 %v624, 0.0
  %v744 = vmax.f32 %v463, 0.0
  %v745 = vmax.f32 %v465, 0.0
  %v746 = vmax.f32 %v626, 0.0
  %v747 = vmax.f32 %v628, 0.0
  %v748 = vmax.f32 %v469, 0.0
  %v749 = vmax.f32 %v471, 0.0
  %v750 = vmax.f32 %v632, 0.0
  %v751 = vmax.f32 %v634, 0.0
  %v752 = vmax.f32 %v473, 0.0
  %v753 = vmax.f32 %v475, 0.0
  %v754 = vmax.f32 %v636, 0.0
  %v755 = vmax.f32 %v638, 0.0
  %v756 = vmax.f32 %v479, 0.0
  %v757 = vmax.f32 %v481, 0.0
  %v758 = vmax.f32 %v642, 0.0
  %v759 = vmax.f32 %v644, 0.0
  %v760 = vmax.f32 %v483, 0.0
  %v761 = vmax.f32 %v485, 0.0
  %v762 = vmax.f32 %v646, 0.0
  %v763 = vmax.f32 %v648, 0.0
  %v764 = vmax.f32 %v489, 0.0
  %v765 = vmax.f32 %v491, 0.0
  %v766 = vmax.f32 %v652, 0.0
  %v767 = vmax.f32 %v654, 0.0
  %v768 = vmax.f32 %v493, 0.0
  %v769 = vmax.f32 %v495, 0.0
  %v770 = vmax.f32 %v656, 0.0
  %v771 = vmax.f32 %v658, 0.0
  %v772 = vmax.f32 %v499, 0.0
  %v773 = vmax.f32 %v501, 0.0
  %v774 = vmax.f32 %v662, 0.0
  %v775 = vmax.f32 %v664, 0.0
  %v776 = vmax.f32 %v503, 0.0
  %v777 = vmax.f32 %v505, 0.0
  %v778 = vmax.f32 %v666, 0.0
  %v779 = vmax.f32 %v668, 0.0
  %v780 = vmax.f32 %v509, 0.0
  %v781 = vmax.f32 %v511, 0.0
  %v782 = vmax.f32 %v672, 0.0
  %v783 = vmax.f32 %v674, 0.0
  %v784 = vmax.f32 %v513, 0.0
  %v785 = vmax.f32 %v515, 0.0
  %v786 = vmax.f32 %v676, 0.0
  %v787 = vmax.f32 %v678, 0.0
  %v788 = vmax.f32 %v519, 0.0
  %v789 = vmax.f32 %v521, 0.0
  %v790 = vmax.f32 %v682, 0.0
  %v791 = vmax.f32 %v684, 0.0
  %v792 = vmax.f32 %v523, 0.0
  %v793 = vmax.f32 %v525, 0.0
  %v794 = vmax.f32 %v686, 0.0
  %v795 = vmax.f32 %v688, 0.0
  %v796 = vmax.f32 %v529, 0.0
  %v797 = vmax.f32 %v531, 0.0
  %v798 = vmax.f32 %v692, 0.0
  %v799 = vmax.f32 %v694, 0.0
  %v800 = vmax.f32 %v533, 0.0
  %v801 = vmax.f32 %v535, 0.0
  %v802 = vmax.f32 %v696, 0.0
  %v803 = vmax.f32 %v698, 0.0
  %v804 = vpack.c.bf16 %v704, %v700
  %v805 = vpack.c.bf16 %v705, %v701
  %v806 = vpack.c.bf16 %v706, %v702
  %v807 = vpack.c.bf16 %v707, %v703
  %v808 = vpack.c.bf16 %v712, %v708
  %v809 = vpack.c.bf16 %v713, %v709
  %v810 = vpack.c.bf16 %v714, %v710
  %v811 = vpack.c.bf16 %v715, %v711
  %v812 = vpack.c.bf16 %v720, %v716
  %v813 = vpack.c.bf16 %v721, %v717
  %v814 = vpack.c.bf16 %v722, %v718
  %v815 = vpack.c.bf16 %v723, %v719
  %v816 = vpack.c.bf16 %v728, %v724
  %v817 = vpack.c.bf16 %v729, %v725
  %v818 = vpack.c.bf16 %v730, %v726
  %v819 = vpack.c.bf16 %v731, %v727
  %v820 = vpack.c.bf16 %v736, %v732
  %v821 = vpack.c.bf16 %v737, %v733
  %v822 = vpack.c.bf16 %v738, %v734
  %v823 = vpack.c.bf16 %v739, %v735
  %v824 = vpack.c.bf16 %v744, %v740
  %v825 = vpack.c.bf16 %v745, %v741
  %v826 = vpack.c.bf16 %v746, %v742
  %v827 = vpack.c.bf16 %v747, %v743
  %v828 = vpack.c.bf16 %v752, %v748
  %v829 = vpack.c.bf16 %v753, %v749
  %v830 = vpack.c.bf16 %v754, %v750
  %v831 = vpack.c.bf16 %v755, %v751
  %v832 = vpack.c.bf16 %v760, %v756
  %v833 = vpack.c.bf16 %v761, %v757
  %v834 = vpack.c.bf16 %v762, %v758
  %v835 = vpack.c.bf16 %v763, %v759
  %v836 = vpack.c.bf16 %v768, %v764
  %v837 = vpack.c.bf16 %v769, %v765
  %v838 = vpack.c.bf16 %v770, %v766
  %v839 = vpack.c.bf16 %v771, %v767
  %v840 = vpack.c.bf16 %v776, %v772
  %v841 = vpack.c.bf16 %v777, %v773
  %v842 = vpack.c.bf16 %v778, %v774
  %v843 = vpack.c.bf16 %v779, %v775
  %v844 = vpack.c.bf16 %v784, %v780
  %v845 = vpack.c.bf16 %v785, %v781
  %v846 = vpack.c.bf16 %v786, %v782
  %v847 = vpack.c.bf16 %v787, %v783
  %v848 = vpack.c.bf16 %v792, %v788
  %v849 = vpack.c.bf16 %v793, %v789
  %v850 = vpack.c.bf16 %v794, %v790
  %v851 = vpack.c.bf16 %v795, %v791
  %v852 = vpack.c.bf16 %v800, %v796
  %v853 = vpack.c.bf16 %v801, %v797
  %v854 = vpack.c.bf16 %v802, %v798
  %v855 = vpack.c.bf16 %v803, %v799
  %v856 = vld [vmem:[%s3] sm:$0xff]
  %v857 = vld [vmem:[%s3 + $0x8] sm:$0xff]
  %v858 = vld [vmem:[%s3 + $0x10] sm:$0xff]
  %v859 = vld [vmem:[%s3 + $0x18] sm:$0xff]
  %v860 = vld [vmem:[%s3 + $0x20] sm:$0xff]
  %v861 = vld [vmem:[%s3 + $0x28] sm:$0xff]
  %v862 = vld [vmem:[%s3 + $0x30] sm:$0xff]
  %v863 = vld [vmem:[%s3 + $0x38] sm:$0xff]
  %v864 = vld [vmem:[%s3 + $0x40] sm:$0xff]
  %v865 = vld [vmem:[%s3 + $0x48] sm:$0xff]
  %v866 = vld [vmem:[%s3 + $0x50] sm:$0xff]
  %v867 = vld [vmem:[%s3 + $0x58] sm:$0xff]
  %v868 = vld [vmem:[%s3 + $0x60] sm:$0xff]
  %v882 = vunpack.c.l.b16 %v856
  %v883 = vunpack.c.h.b16 %v856
  %v884 = vunpack.c.l.b16 %v857
  %v885 = vunpack.c.h.b16 %v857
  %v886 = vunpack.c.l.b16 %v858
  %v887 = vunpack.c.h.b16 %v858
  %v888 = vunpack.c.l.b16 %v859
  %v889 = vunpack.c.h.b16 %v859
  %v890 = vunpack.c.l.b16 %v860
  %v891 = vunpack.c.h.b16 %v860
  %v892 = vunpack.c.l.b16 %v861
  %v893 = vunpack.c.h.b16 %v861
  %v894 = vunpack.c.l.b16 %v862
  %v895 = vunpack.c.h.b16 %v862
  %v896 = vunpack.c.l.b16 %v863
  %v897 = vunpack.c.h.b16 %v863
  %v898 = vunpack.c.l.b16 %v864
  %v899 = vunpack.c.h.b16 %v864
  %v900 = vunpack.c.l.b16 %v865
  %v901 = vunpack.c.h.b16 %v865
  %v902 = vunpack.c.l.b16 %v866
  %v903 = vunpack.c.h.b16 %v866
  %v904 = vunpack.c.l.b16 %v867
  %v905 = vunpack.c.h.b16 %v867
  %v906 = vunpack.c.l.b16 %v868
  %v907 = vunpack.c.h.b16 %v868
  %v908 = vpack.c.b16 %v884, %v882
  %v909 = vpack.c.b16 %v885, %v883
  %v910 = vpack.c.b16 %v888, %v886
  %v911 = vpack.c.b16 %v889, %v887
  %v912 = vpack.c.b16 %v892, %v890
  %v913 = vpack.c.b16 %v893, %v891
  %v914 = vpack.c.b16 %v896, %v894
  %v915 = vpack.c.b16 %v897, %v895
  %v916 = vpack.c.b16 %v900, %v898
  %v917 = vpack.c.b16 %v901, %v899
  %v918 = vpack.c.b16 %v904, %v902
  %v919 = vpack.c.b16 %v905, %v903
  %v920 = vpack.c.b16 %v906, %v906
  %v921 = vpack.c.b16 %v907, %v907
  %vm929 = vcmask 654336
  %v931 = vsel %vm929, %v909, 0
  %v934 = vsel %vm929, %v911, 0
  %v937 = vsel %vm929, %v913, 0
  %v940 = vsel %vm929, %v915, 0
  %v943 = vsel %vm929, %v917, 0
  %v946 = vsel %vm929, %v919, 0
  %v949 = vsel %vm929, %v921, 0
  %951 = vmatprep.subr.bf16.mxu0 %v833
  %952 = vmatpush1.bf16.msra.mxu0 %v832
  %953 = vmatprep.subr.bf16.mxu0 %v829
  %954 = vmatpush1.bf16.msra.mxu0 %v828
  %955 = vmatprep.subr.bf16.mxu0 %v825
  %956 = vmatpush1.bf16.msra.mxu0 %v824
  %957 = vmatprep.subr.bf16.mxu0 %v821
  %958 = vmatpush1.bf16.msra.mxu0 %v820
  %959 = vmatprep.subr.bf16.mxu0 %v817
  %960 = vmatpush1.bf16.msra.mxu0 %v816
  %961 = vmatprep.subr.bf16.mxu0 %v813
  %962 = vmatpush1.bf16.msra.mxu0 %v812
  %963 = vmatprep.subr.bf16.mxu0 %v809
  %964 = vmatpush1.bf16.msra.mxu0 %v808
  %965 = vmatprep.subr.bf16.mxu0 %v805
  %966 = vmatpush1.bf16.msra.mxu0 %v804
  %967 = vmatprep.subr.bf16.mxu0 0
  %968 = vmatpush2.bf16.msra.mxu0 0
  %969 = vmatprep.subr.bf16.mxu0 0
  %970 = vmatpush2.bf16.msra.mxu0 0
  %971 = vmatprep.subr.bf16.mxu0 0
  %972 = vmatpush2.bf16.msra.mxu0 0
  %973 = vmatprep.subr.bf16.mxu0 %v853
  %974 = vmatpush2.bf16.msra.mxu0 %v852
  %975 = vmatprep.subr.bf16.mxu0 %v849
  %976 = vmatpush2.bf16.msra.mxu0 %v848
  %977 = vmatprep.subr.bf16.mxu0 %v845
  %978 = vmatpush2.bf16.msra.mxu0 %v844
  %979 = vmatprep.subr.bf16.mxu0 %v841
  %980 = vmatpush2.bf16.msra.mxu0 %v840
  %981 = vmatprep.subr.bf16.mxu0 %v837
  %982 = vmatpush2.bf16.msra.mxu0 %v836
  %983 = vmatprep.mubr.bf16.mxu0 %v931
  %984 = vmatmul.mubr.bf16.gmra.mxu0 %v908
  %v985 = vpop.f32.mrf.mxu0
  %v986 = vadd.f32 0.0, %v985
  %v987 = vpop.f32.mrf.mxu0
  %v988 = vadd.f32 0.0, %v987
  %v989 = vpop.f32.mrf.mxu0
  %v990 = vadd.f32 0.0, %v989
  %v991 = vpop.f32.mrf.mxu0
  %v992 = vadd.f32 0.0, %v991
  %993 = vmatprep.mubr.bf16.mxu0 %v934
  %994 = vmatmul.mubr.bf16.gmra.mxu0 %v910
  %v995 = vpop.f32.mrf.mxu0
  %v996 = vadd.f32 0.0, %v995
  %v997 = vpop.f32.mrf.mxu0
  %v998 = vadd.f32 0.0, %v997
  %v999 = vpop.f32.mrf.mxu0
  %v1000 = vadd.f32 0.0, %v999
  %v1001 = vpop.f32.mrf.mxu0
  %v1002 = vadd.f32 0.0, %v1001
  %1003 = vmatprep.mubr.bf16.mxu0 %v937
  %1004 = vmatmul.mubr.bf16.gmra.mxu0 %v912
  %v1005 = vpop.f32.mrf.mxu0
  %v1006 = vadd.f32 0.0, %v1005
  %v1007 = vpop.f32.mrf.mxu0
  %v1008 = vadd.f32 0.0, %v1007
  %v1009 = vpop.f32.mrf.mxu0
  %v1010 = vadd.f32 0.0, %v1009
  %v1011 = vpop.f32.mrf.mxu0
  %v1012 = vadd.f32 0.0, %v1011
  %1013 = vmatprep.mubr.bf16.mxu0 %v940
  %1014 = vmatmul.mubr.bf16.gmra.mxu0 %v914
  %v1015 = vpop.f32.mrf.mxu0
  %v1016 = vadd.f32 0.0, %v1015
  %v1017 = vpop.f32.mrf.mxu0
  %v1018 = vadd.f32 0.0, %v1017
  %v1019 = vpop.f32.mrf.mxu0
  %v1020 = vadd.f32 0.0, %v1019
  %v1021 = vpop.f32.mrf.mxu0
  %v1022 = vadd.f32 0.0, %v1021
  %1023 = vmatprep.mubr.bf16.mxu0 %v943
  %1024 = vmatmul.mubr.bf16.gmra.mxu0 %v916
  %v1025 = vpop.f32.mrf.mxu0
  %v1026 = vadd.f32 0.0, %v1025
  %v1027 = vpop.f32.mrf.mxu0
  %v1028 = vadd.f32 0.0, %v1027
  %v1029 = vpop.f32.mrf.mxu0
  %v1030 = vadd.f32 0.0, %v1029
  %v1031 = vpop.f32.mrf.mxu0
  %v1032 = vadd.f32 0.0, %v1031
  %1033 = vmatprep.mubr.bf16.mxu0 %v946
  %1034 = vmatmul.mubr.bf16.gmra.mxu0 %v918
  %v1035 = vpop.f32.mrf.mxu0
  %v1036 = vadd.f32 0.0, %v1035
  %v1037 = vpop.f32.mrf.mxu0
  %v1038 = vadd.f32 0.0, %v1037
  %v1039 = vpop.f32.mrf.mxu0
  %v1040 = vadd.f32 0.0, %v1039
  %v1041 = vpop.f32.mrf.mxu0
  %v1042 = vadd.f32 0.0, %v1041
  %1043 = vmatprep.mubr.bf16.mxu0 %v949
  %1044 = vmatmul.mubr.bf16.gmra.mxu0 %v920
  %v1045 = vpop.f32.mrf.mxu0
  %v1046 = vadd.f32 0.0, %v1045
  %v1047 = vpop.f32.mrf.mxu0
  %v1048 = vadd.f32 0.0, %v1047
  %v1049 = vpop.f32.mrf.mxu0
  %v1050 = vpop.f32.mrf.mxu0
  %1051 = vdwg.mxu0
  %1052 = vmatprep.subr.bf16.mxu0 %v835
  %1053 = vmatpush1.bf16.msra.mxu0 %v834
  %1054 = vmatprep.subr.bf16.mxu0 %v831
  %1055 = vmatpush1.bf16.msra.mxu0 %v830
  %1056 = vmatprep.subr.bf16.mxu0 %v827
  %1057 = vmatpush1.bf16.msra.mxu0 %v826
  %1058 = vmatprep.subr.bf16.mxu0 %v823
  %1059 = vmatpush1.bf16.msra.mxu0 %v822
  %1060 = vmatprep.subr.bf16.mxu0 %v819
  %1061 = vmatpush1.bf16.msra.mxu0 %v818
  %1062 = vmatprep.subr.bf16.mxu0 %v815
  %1063 = vmatpush1.bf16.msra.mxu0 %v814
  %1064 = vmatprep.subr.bf16.mxu0 %v811
  %1065 = vmatpush1.bf16.msra.mxu0 %v810
  %1066 = vmatprep.subr.bf16.mxu0 %v807
  %1067 = vmatpush1.bf16.msra.mxu0 %v806
  %1068 = vmatprep.subr.bf16.mxu0 0
  %1069 = vmatpush2.bf16.msra.mxu0 0
  %1070 = vmatprep.subr.bf16.mxu0 0
  %1071 = vmatpush2.bf16.msra.mxu0 0
  %1072 = vmatprep.subr.bf16.mxu0 0
  %1073 = vmatpush2.bf16.msra.mxu0 0
  %1074 = vmatprep.subr.bf16.mxu0 %v855
  %1075 = vmatpush2.bf16.msra.mxu0 %v854
  %1076 = vmatprep.subr.bf16.mxu0 %v851
  %1077 = vmatpush2.bf16.msra.mxu0 %v850
  %1078 = vmatprep.subr.bf16.mxu0 %v847
  %1079 = vmatpush2.bf16.msra.mxu0 %v846
  %1080 = vmatprep.subr.bf16.mxu0 %v843
  %1081 = vmatpush2.bf16.msra.mxu0 %v842
  %1082 = vmatprep.subr.bf16.mxu0 %v839
  %1083 = vmatpush2.bf16.msra.mxu0 %v838
  %1084 = vmatprep.mubr.bf16.mxu0 %v931
  %1085 = vmatmul.mubr.bf16.gmra.mxu0 %v908
  %v1086 = vpop.f32.mrf.mxu0
  %v1087 = vadd.f32 0.0, %v1086
  %v1088 = vpop.f32.mrf.mxu0
  %v1089 = vadd.f32 0.0, %v1088
  %v1090 = vpop.f32.mrf.mxu0
  %v1091 = vadd.f32 0.0, %v1090
  %v1092 = vpop.f32.mrf.mxu0
  %v1093 = vadd.f32 0.0, %v1092
  %1094 = vmatprep.mubr.bf16.mxu0 %v934
  %1095 = vmatmul.mubr.bf16.gmra.mxu0 %v910
  %v1096 = vpop.f32.mrf.mxu0
  %v1097 = vadd.f32 0.0, %v1096
  %v1098 = vpop.f32.mrf.mxu0
  %v1099 = vadd.f32 0.0, %v1098
  %v1100 = vpop.f32.mrf.mxu0
  %v1101 = vadd.f32 0.0, %v1100
  %v1102 = vpop.f32.mrf.mxu0
  %v1103 = vadd.f32 0.0, %v1102
  %1104 = vmatprep.mubr.bf16.mxu0 %v937
  %1105 = vmatmul.mubr.bf16.gmra.mxu0 %v912
  %v1106 = vpop.f32.mrf.mxu0
  %v1107 = vadd.f32 0.0, %v1106
  %v1108 = vpop.f32.mrf.mxu0
  %v1109 = vadd.f32 0.0, %v1108
  %v1110 = vpop.f32.mrf.mxu0
  %v1111 = vadd.f32 0.0, %v1110
  %v1112 = vpop.f32.mrf.mxu0
  %v1113 = vadd.f32 0.0, %v1112
  %1114 = vmatprep.mubr.bf16.mxu0 %v940
  %1115 = vmatmul.mubr.bf16.gmra.mxu0 %v914
  %v1116 = vpop.f32.mrf.mxu0
  %v1117 = vadd.f32 0.0, %v1116
  %v1118 = vpop.f32.mrf.mxu0
  %v1119 = vadd.f32 0.0, %v1118
  %v1120 = vpop.f32.mrf.mxu0
  %v1121 = vadd.f32 0.0, %v1120
  %v1122 = vpop.f32.mrf.mxu0
  %v1123 = vadd.f32 0.0, %v1122
  %1124 = vmatprep.mubr.bf16.mxu0 %v943
  %1125 = vmatmul.mubr.bf16.gmra.mxu0 %v916
  %v1126 = vpop.f32.mrf.mxu0
  %v1127 = vadd.f32 0.0, %v1126
  %v1128 = vpop.f32.mrf.mxu0
  %v1129 = vadd.f32 0.0, %v1128
  %v1130 = vpop.f32.mrf.mxu0
  %v1131 = vadd.f32 0.0, %v1130
  %v1132 = vpop.f32.mrf.mxu0
  %v1133 = vadd.f32 0.0, %v1132
  %1134 = vmatprep.mubr.bf16.mxu0 %v946
  %1135 = vmatmul.mubr.bf16.gmra.mxu0 %v918
  %v1136 = vpop.f32.mrf.mxu0
  %v1137 = vadd.f32 0.0, %v1136
  %v1138 = vpop.f32.mrf.mxu0
  %v1139 = vadd.f32 0.0, %v1138
  %v1140 = vpop.f32.mrf.mxu0
  %v1141 = vadd.f32 0.0, %v1140
  %v1142 = vpop.f32.mrf.mxu0
  %v1143 = vadd.f32 0.0, %v1142
  %1144 = vmatprep.mubr.bf16.mxu0 %v949
  %1145 = vmatmul.mubr.bf16.gmra.mxu0 %v920
  %v1146 = vpop.f32.mrf.mxu0
  %v1147 = vadd.f32 0.0, %v1146
  %v1148 = vpop.f32.mrf.mxu0
  %v1149 = vadd.f32 0.0, %v1148
  %v1150 = vpop.f32.mrf.mxu0
  %v1151 = vpop.f32.mrf.mxu0
  %1152 = vdwg.mxu0
  %s1153 = scalar_lea.vmem %s3, 104
  %v1154 = vld [vmem:[%s1153] sm:$0xff]
  %v1155 = vld [vmem:[%s1153 + $0x8] sm:$0xff]
  %v1156 = vld [vmem:[%s1153 + $0x10] sm:$0xff]
  %v1157 = vld [vmem:[%s1153 + $0x18] sm:$0xff]
  %v1158 = vld [vmem:[%s1153 + $0x20] sm:$0xff]
  %v1159 = vld [vmem:[%s1153 + $0x28] sm:$0xff]
  %v1160 = vld [vmem:[%s1153 + $0x30] sm:$0xff]
  %v1161 = vld [vmem:[%s1153 + $0x38] sm:$0xff]
  %v1162 = vld [vmem:[%s1153 + $0x40] sm:$0xff]
  %v1163 = vld [vmem:[%s1153 + $0x48] sm:$0xff]
  %v1164 = vld [vmem:[%s1153 + $0x50] sm:$0xff]
  %v1165 = vld [vmem:[%s1153 + $0x58] sm:$0xff]
  %v1166 = vld [vmem:[%s1153 + $0x60] sm:$0xff]
  %v1180 = vunpack.c.l.b16 %v1154
  %v1181 = vunpack.c.h.b16 %v1154
  %v1182 = vunpack.c.l.b16 %v1155
  %v1183 = vunpack.c.h.b16 %v1155
  %v1184 = vunpack.c.l.b16 %v1156
  %v1185 = vunpack.c.h.b16 %v1156
  %v1186 = vunpack.c.l.b16 %v1157
  %v1187 = vunpack.c.h.b16 %v1157
  %v1188 = vunpack.c.l.b16 %v1158
  %v1189 = vunpack.c.h.b16 %v1158
  %v1190 = vunpack.c.l.b16 %v1159
  %v1191 = vunpack.c.h.b16 %v1159
  %v1192 = vunpack.c.l.b16 %v1160
  %v1193 = vunpack.c.h.b16 %v1160
  %v1194 = vunpack.c.l.b16 %v1161
  %v1195 = vunpack.c.h.b16 %v1161
  %v1196 = vunpack.c.l.b16 %v1162
  %v1197 = vunpack.c.h.b16 %v1162
  %v1198 = vunpack.c.l.b16 %v1163
  %v1199 = vunpack.c.h.b16 %v1163
  %v1200 = vunpack.c.l.b16 %v1164
  %v1201 = vunpack.c.h.b16 %v1164
  %v1202 = vunpack.c.l.b16 %v1165
  %v1203 = vunpack.c.h.b16 %v1165
  %v1204 = vunpack.c.l.b16 %v1166
  %v1205 = vunpack.c.h.b16 %v1166
  %v1206 = vpack.c.b16 %v1182, %v1180
  %v1207 = vpack.c.b16 %v1183, %v1181
  %v1208 = vpack.c.b16 %v1186, %v1184
  %v1209 = vpack.c.b16 %v1187, %v1185
  %v1210 = vpack.c.b16 %v1190, %v1188
  %v1211 = vpack.c.b16 %v1191, %v1189
  %v1212 = vpack.c.b16 %v1194, %v1192
  %v1213 = vpack.c.b16 %v1195, %v1193
  %v1214 = vpack.c.b16 %v1198, %v1196
  %v1215 = vpack.c.b16 %v1199, %v1197
  %v1216 = vpack.c.b16 %v1202, %v1200
  %v1217 = vpack.c.b16 %v1203, %v1201
  %v1218 = vpack.c.b16 %v1204, %v1204
  %v1219 = vpack.c.b16 %v1205, %v1205
  %v1228 = vsel %vm929, %v1207, 0
  %v1231 = vsel %vm929, %v1209, 0
  %v1234 = vsel %vm929, %v1211, 0
  %v1237 = vsel %vm929, %v1213, 0
  %v1240 = vsel %vm929, %v1215, 0
  %v1243 = vsel %vm929, %v1217, 0
  %v1246 = vsel %vm929, %v1219, 0
  %1248 = vmatprep.subr.bf16.mxu0 %v833
  %1249 = vmatpush1.bf16.msra.mxu0 %v832
  %1250 = vmatprep.subr.bf16.mxu0 %v829
  %1251 = vmatpush1.bf16.msra.mxu0 %v828
  %1252 = vmatprep.subr.bf16.mxu0 %v825
  %1253 = vmatpush1.bf16.msra.mxu0 %v824
  %1254 = vmatprep.subr.bf16.mxu0 %v821
  %1255 = vmatpush1.bf16.msra.mxu0 %v820
  %1256 = vmatprep.subr.bf16.mxu0 %v817
  %1257 = vmatpush1.bf16.msra.mxu0 %v816
  %1258 = vmatprep.subr.bf16.mxu0 %v813
  %1259 = vmatpush1.bf16.msra.mxu0 %v812
  %1260 = vmatprep.subr.bf16.mxu0 %v809
  %1261 = vmatpush1.bf16.msra.mxu0 %v808
  %1262 = vmatprep.subr.bf16.mxu0 %v805
  %1263 = vmatpush1.bf16.msra.mxu0 %v804
  %1264 = vmatprep.subr.bf16.mxu0 0
  %1265 = vmatpush2.bf16.msra.mxu0 0
  %1266 = vmatprep.subr.bf16.mxu0 0
  %1267 = vmatpush2.bf16.msra.mxu0 0
  %1268 = vmatprep.subr.bf16.mxu0 0
  %1269 = vmatpush2.bf16.msra.mxu0 0
  %1270 = vmatprep.subr.bf16.mxu0 %v853
  %1271 = vmatpush2.bf16.msra.mxu0 %v852
  %1272 = vmatprep.subr.bf16.mxu0 %v849
  %1273 = vmatpush2.bf16.msra.mxu0 %v848
  %1274 = vmatprep.subr.bf16.mxu0 %v845
  %1275 = vmatpush2.bf16.msra.mxu0 %v844
  %1276 = vmatprep.subr.bf16.mxu0 %v841
  %1277 = vmatpush2.bf16.msra.mxu0 %v840
  %1278 = vmatprep.subr.bf16.mxu0 %v837
  %1279 = vmatpush2.bf16.msra.mxu0 %v836
  %1280 = vmatprep.mubr.bf16.mxu0 %v1228
  %1281 = vmatmul.mubr.bf16.gmra.mxu0 %v1206
  %v1282 = vpop.f32.mrf.mxu0
  %v1283 = vadd.f32 0.0, %v1282
  %v1284 = vpop.f32.mrf.mxu0
  %v1285 = vadd.f32 0.0, %v1284
  %v1286 = vpop.f32.mrf.mxu0
  %v1287 = vadd.f32 0.0, %v1286
  %v1288 = vpop.f32.mrf.mxu0
  %v1289 = vadd.f32 0.0, %v1288
  %1290 = vmatprep.mubr.bf16.mxu0 %v1231
  %1291 = vmatmul.mubr.bf16.gmra.mxu0 %v1208
  %v1292 = vpop.f32.mrf.mxu0
  %v1293 = vadd.f32 0.0, %v1292
  %v1294 = vpop.f32.mrf.mxu0
  %v1295 = vadd.f32 0.0, %v1294
  %v1296 = vpop.f32.mrf.mxu0
  %v1297 = vadd.f32 0.0, %v1296
  %v1298 = vpop.f32.mrf.mxu0
  %v1299 = vadd.f32 0.0, %v1298
  %1300 = vmatprep.mubr.bf16.mxu0 %v1234
  %1301 = vmatmul.mubr.bf16.gmra.mxu0 %v1210
  %v1302 = vpop.f32.mrf.mxu0
  %v1303 = vadd.f32 0.0, %v1302
  %v1304 = vpop.f32.mrf.mxu0
  %v1305 = vadd.f32 0.0, %v1304
  %v1306 = vpop.f32.mrf.mxu0
  %v1307 = vadd.f32 0.0, %v1306
  %v1308 = vpop.f32.mrf.mxu0
  %v1309 = vadd.f32 0.0, %v1308
  %1310 = vmatprep.mubr.bf16.mxu0 %v1237
  %1311 = vmatmul.mubr.bf16.gmra.mxu0 %v1212
  %v1312 = vpop.f32.mrf.mxu0
  %v1313 = vadd.f32 0.0, %v1312
  %v1314 = vpop.f32.mrf.mxu0
  %v1315 = vadd.f32 0.0, %v1314
  %v1316 = vpop.f32.mrf.mxu0
  %v1317 = vadd.f32 0.0, %v1316
  %v1318 = vpop.f32.mrf.mxu0
  %v1319 = vadd.f32 0.0, %v1318
  %1320 = vmatprep.mubr.bf16.mxu0 %v1240
  %1321 = vmatmul.mubr.bf16.gmra.mxu0 %v1214
  %v1322 = vpop.f32.mrf.mxu0
  %v1323 = vadd.f32 0.0, %v1322
  %v1324 = vpop.f32.mrf.mxu0
  %v1325 = vadd.f32 0.0, %v1324
  %v1326 = vpop.f32.mrf.mxu0
  %v1327 = vadd.f32 0.0, %v1326
  %v1328 = vpop.f32.mrf.mxu0
  %v1329 = vadd.f32 0.0, %v1328
  %1330 = vmatprep.mubr.bf16.mxu0 %v1243
  %1331 = vmatmul.mubr.bf16.gmra.mxu0 %v1216
  %v1332 = vpop.f32.mrf.mxu0
  %v1333 = vadd.f32 0.0, %v1332
  %v1334 = vpop.f32.mrf.mxu0
  %v1335 = vadd.f32 0.0, %v1334
  %v1336 = vpop.f32.mrf.mxu0
  %v1337 = vadd.f32 0.0, %v1336
  %v1338 = vpop.f32.mrf.mxu0
  %v1339 = vadd.f32 0.0, %v1338
  %1340 = vmatprep.mubr.bf16.mxu0 %v1246
  %1341 = vmatmul.mubr.bf16.gmra.mxu0 %v1218
  %v1342 = vpop.f32.mrf.mxu0
  %v1343 = vadd.f32 0.0, %v1342
  %v1344 = vpop.f32.mrf.mxu0
  %v1345 = vadd.f32 0.0, %v1344
  %v1346 = vpop.f32.mrf.mxu0
  %v1347 = vpop.f32.mrf.mxu0
  %1348 = vdwg.mxu0
  %1349 = vmatprep.subr.bf16.mxu0 %v835
  %1350 = vmatpush1.bf16.msra.mxu0 %v834
  %1351 = vmatprep.subr.bf16.mxu0 %v831
  %1352 = vmatpush1.bf16.msra.mxu0 %v830
  %1353 = vmatprep.subr.bf16.mxu0 %v827
  %1354 = vmatpush1.bf16.msra.mxu0 %v826
  %1355 = vmatprep.subr.bf16.mxu0 %v823
  %1356 = vmatpush1.bf16.msra.mxu0 %v822
  %1357 = vmatprep.subr.bf16.mxu0 %v819
  %1358 = vmatpush1.bf16.msra.mxu0 %v818
  %1359 = vmatprep.subr.bf16.mxu0 %v815
  %1360 = vmatpush1.bf16.msra.mxu0 %v814
  %1361 = vmatprep.subr.bf16.mxu0 %v811
  %1362 = vmatpush1.bf16.msra.mxu0 %v810
  %1363 = vmatprep.subr.bf16.mxu0 %v807
  %1364 = vmatpush1.bf16.msra.mxu0 %v806
  %1365 = vmatprep.subr.bf16.mxu0 0
  %1366 = vmatpush2.bf16.msra.mxu0 0
  %1367 = vmatprep.subr.bf16.mxu0 0
  %1368 = vmatpush2.bf16.msra.mxu0 0
  %1369 = vmatprep.subr.bf16.mxu0 0
  %1370 = vmatpush2.bf16.msra.mxu0 0
  %1371 = vmatprep.subr.bf16.mxu0 %v855
  %1372 = vmatpush2.bf16.msra.mxu0 %v854
  %1373 = vmatprep.subr.bf16.mxu0 %v851
  %1374 = vmatpush2.bf16.msra.mxu0 %v850
  %1375 = vmatprep.subr.bf16.mxu0 %v847
  %1376 = vmatpush2.bf16.msra.mxu0 %v846
  %1377 = vmatprep.subr.bf16.mxu0 %v843
  %1378 = vmatpush2.bf16.msra.mxu0 %v842
  %1379 = vmatprep.subr.bf16.mxu0 %v839
  %1380 = vmatpush2.bf16.msra.mxu0 %v838
  %1381 = vmatprep.mubr.bf16.mxu0 %v1228
  %1382 = vmatmul.mubr.bf16.gmra.mxu0 %v1206
  %v1383 = vpop.f32.mrf.mxu0
  %v1384 = vadd.f32 0.0, %v1383
  %v1385 = vpop.f32.mrf.mxu0
  %v1386 = vadd.f32 0.0, %v1385
  %v1387 = vpop.f32.mrf.mxu0
  %v1388 = vadd.f32 0.0, %v1387
  %v1389 = vpop.f32.mrf.mxu0
  %v1390 = vadd.f32 0.0, %v1389
  %1391 = vmatprep.mubr.bf16.mxu0 %v1231
  %1392 = vmatmul.mubr.bf16.gmra.mxu0 %v1208
  %v1393 = vpop.f32.mrf.mxu0
  %v1394 = vadd.f32 0.0, %v1393
  %v1395 = vpop.f32.mrf.mxu0
  %v1396 = vadd.f32 0.0, %v1395
  %v1397 = vpop.f32.mrf.mxu0
  %v1398 = vadd.f32 0.0, %v1397
  %v1399 = vpop.f32.mrf.mxu0
  %v1400 = vadd.f32 0.0, %v1399
  %1401 = vmatprep.mubr.bf16.mxu0 %v1234
  %1402 = vmatmul.mubr.bf16.gmra.mxu0 %v1210
  %v1403 = vpop.f32.mrf.mxu0
  %v1404 = vadd.f32 0.0, %v1403
  %v1405 = vpop.f32.mrf.mxu0
  %v1406 = vadd.f32 0.0, %v1405
  %v1407 = vpop.f32.mrf.mxu0
  %v1408 = vadd.f32 0.0, %v1407
  %v1409 = vpop.f32.mrf.mxu0
  %v1410 = vadd.f32 0.0, %v1409
  %1411 = vmatprep.mubr.bf16.mxu0 %v1237
  %1412 = vmatmul.mubr.bf16.gmra.mxu0 %v1212
  %v1413 = vpop.f32.mrf.mxu0
  %v1414 = vadd.f32 0.0, %v1413
  %v1415 = vpop.f32.mrf.mxu0
  %v1416 = vadd.f32 0.0, %v1415
  %v1417 = vpop.f32.mrf.mxu0
  %v1418 = vadd.f32 0.0, %v1417
  %v1419 = vpop.f32.mrf.mxu0
  %v1420 = vadd.f32 0.0, %v1419
  %1421 = vmatprep.mubr.bf16.mxu0 %v1240
  %1422 = vmatmul.mubr.bf16.gmra.mxu0 %v1214
  %v1423 = vpop.f32.mrf.mxu0
  %v1424 = vadd.f32 0.0, %v1423
  %v1425 = vpop.f32.mrf.mxu0
  %v1426 = vadd.f32 0.0, %v1425
  %v1427 = vpop.f32.mrf.mxu0
  %v1428 = vadd.f32 0.0, %v1427
  %v1429 = vpop.f32.mrf.mxu0
  %v1430 = vadd.f32 0.0, %v1429
  %1431 = vmatprep.mubr.bf16.mxu0 %v1243
  %1432 = vmatmul.mubr.bf16.gmra.mxu0 %v1216
  %v1433 = vpop.f32.mrf.mxu0
  %v1434 = vadd.f32 0.0, %v1433
  %v1435 = vpop.f32.mrf.mxu0
  %v1436 = vadd.f32 0.0, %v1435
  %v1437 = vpop.f32.mrf.mxu0
  %v1438 = vadd.f32 0.0, %v1437
  %v1439 = vpop.f32.mrf.mxu0
  %v1440 = vadd.f32 0.0, %v1439
  %1441 = vmatprep.mubr.bf16.mxu0 %v1246
  %1442 = vmatmul.mubr.bf16.gmra.mxu0 %v1218
  %v1443 = vpop.f32.mrf.mxu0
  %v1444 = vadd.f32 0.0, %v1443
  %v1445 = vpop.f32.mrf.mxu0
  %v1446 = vadd.f32 0.0, %v1445
  %v1447 = vpop.f32.mrf.mxu0
  %v1448 = vpop.f32.mrf.mxu0
  %1449 = vdwg.mxu0
  %v1450 = vmax.f32 %v986, %v1283
  %v1451 = vmax.f32 %v988, %v1285
  %v1452 = vmax.f32 %v1087, %v1384
  %v1453 = vmax.f32 %v1089, %v1386
  %v1454 = vmax.f32 %v990, %v1287
  %v1455 = vmax.f32 %v992, %v1289
  %v1456 = vmax.f32 %v1091, %v1388
  %v1457 = vmax.f32 %v1093, %v1390
  %v1458 = vmax.f32 %v996, %v1293
  %v1459 = vmax.f32 %v998, %v1295
  %v1460 = vmax.f32 %v1097, %v1394
  %v1461 = vmax.f32 %v1099, %v1396
  %v1462 = vmax.f32 %v1000, %v1297
  %v1463 = vmax.f32 %v1002, %v1299
  %v1464 = vmax.f32 %v1101, %v1398
  %v1465 = vmax.f32 %v1103, %v1400
  %v1466 = vmax.f32 %v1006, %v1303
  %v1467 = vmax.f32 %v1008, %v1305
  %v1468 = vmax.f32 %v1107, %v1404
  %v1469 = vmax.f32 %v1109, %v1406
  %v1470 = vmax.f32 %v1010, %v1307
  %v1471 = vmax.f32 %v1012, %v1309
  %v1472 = vmax.f32 %v1111, %v1408
  %v1473 = vmax.f32 %v1113, %v1410
  %v1474 = vmax.f32 %v1016, %v1313
  %v1475 = vmax.f32 %v1018, %v1315
  %v1476 = vmax.f32 %v1117, %v1414
  %v1477 = vmax.f32 %v1119, %v1416
  %v1478 = vmax.f32 %v1020, %v1317
  %v1479 = vmax.f32 %v1022, %v1319
  %v1480 = vmax.f32 %v1121, %v1418
  %v1481 = vmax.f32 %v1123, %v1420
  %v1482 = vmax.f32 %v1026, %v1323
  %v1483 = vmax.f32 %v1028, %v1325
  %v1484 = vmax.f32 %v1127, %v1424
  %v1485 = vmax.f32 %v1129, %v1426
  %v1486 = vmax.f32 %v1030, %v1327
  %v1487 = vmax.f32 %v1032, %v1329
  %v1488 = vmax.f32 %v1131, %v1428
  %v1489 = vmax.f32 %v1133, %v1430
  %v1490 = vmax.f32 %v1036, %v1333
  %v1491 = vmax.f32 %v1038, %v1335
  %v1492 = vmax.f32 %v1137, %v1434
  %v1493 = vmax.f32 %v1139, %v1436
  %v1494 = vmax.f32 %v1040, %v1337
  %v1495 = vmax.f32 %v1042, %v1339
  %v1496 = vmax.f32 %v1141, %v1438
  %v1497 = vmax.f32 %v1143, %v1440
  %v1498 = vmax.f32 %v1046, %v1343
  %v1499 = vmax.f32 %v1048, %v1345
  %v1500 = vmax.f32 %v1147, %v1444
  %v1501 = vmax.f32 %v1149, %v1446
  %v1502 = vpack.c.bf16 %v1454, %v1450
  %v1503 = vpack.c.bf16 %v1455, %v1451
  %v1504 = vpack.c.bf16 %v1456, %v1452
  %v1505 = vpack.c.bf16 %v1457, %v1453
  %v1506 = vpack.c.bf16 %v1462, %v1458
  %v1507 = vpack.c.bf16 %v1463, %v1459
  %v1508 = vpack.c.bf16 %v1464, %v1460
  %v1509 = vpack.c.bf16 %v1465, %v1461
  %v1510 = vpack.c.bf16 %v1470, %v1466
  %v1511 = vpack.c.bf16 %v1471, %v1467
  %v1512 = vpack.c.bf16 %v1472, %v1468
  %v1513 = vpack.c.bf16 %v1473, %v1469
  %v1514 = vpack.c.bf16 %v1478, %v1474
  %v1515 = vpack.c.bf16 %v1479, %v1475
  %v1516 = vpack.c.bf16 %v1480, %v1476
  %v1517 = vpack.c.bf16 %v1481, %v1477
  %v1518 = vpack.c.bf16 %v1486, %v1482
  %v1519 = vpack.c.bf16 %v1487, %v1483
  %v1520 = vpack.c.bf16 %v1488, %v1484
  %v1521 = vpack.c.bf16 %v1489, %v1485
  %v1522 = vpack.c.bf16 %v1494, %v1490
  %v1523 = vpack.c.bf16 %v1495, %v1491
  %v1524 = vpack.c.bf16 %v1496, %v1492
  %v1525 = vpack.c.bf16 %v1497, %v1493
  %v1526 = vpack.c.bf16 %v1498, %v1498
  %v1527 = vpack.c.bf16 %v1499, %v1499
  %v1528 = vpack.c.bf16 %v1500, %v1500
  %v1529 = vpack.c.bf16 %v1501, %v1501
  %v1530 = vld [vmem:[%s4] sm:$0xff]
  %v1531 = vld [vmem:[%s4 + $0x8] sm:$0xff]
  %v1532 = vld [vmem:[%s4 + $0x10] sm:$0xff]
  %v1533 = vld [vmem:[%s4 + $0x18] sm:$0xff]
  %v1534 = vld [vmem:[%s4 + $0x20] sm:$0xff]
  %v1535 = vld [vmem:[%s4 + $0x28] sm:$0xff]
  %v1536 = vld [vmem:[%s4 + $0x30] sm:$0xff]
  %v1537 = vld [vmem:[%s4 + $0x38] sm:$0xff]
  %v1538 = vld [vmem:[%s4 + $0x40] sm:$0xff]
  %v1539 = vld [vmem:[%s4 + $0x48] sm:$0xff]
  %v1540 = vld [vmem:[%s4 + $0x50] sm:$0xff]
  %v1541 = vld [vmem:[%s4 + $0x58] sm:$0xff]
  %v1542 = vld [vmem:[%s4 + $0x60] sm:$0xff]
  %v1543 = vld [vmem:[%s4 + $0x68] sm:$0xff]
  %v1544 = vld [vmem:[%s4 + $0x70] sm:$0xff]
  %v1545 = vld [vmem:[%s4 + $0x78] sm:$0xff]
  %v1546 = vld [vmem:[%s4 + $0x80] sm:$0xff]
  %v1547 = vld [vmem:[%s4 + $0x88] sm:$0xff]
  %v1548 = vld [vmem:[%s4 + $0x90] sm:$0xff]
  %v1549 = vld [vmem:[%s4 + $0x98] sm:$0xff]
  %v1550 = vld [vmem:[%s4 + $0xa0] sm:$0xff]
  %v1551 = vld [vmem:[%s4 + $0xa8] sm:$0xff]
  %v1552 = vld [vmem:[%s4 + $0xb0] sm:$0xff]
  %v1553 = vld [vmem:[%s4 + $0xb8] sm:$0xff]
  %v1554 = vld [vmem:[%s4 + $0xc0] sm:$0xff]
  %v1555 = vld [vmem:[%s4 + $0xc8] sm:$0xff]
  %v1556 = vld [vmem:[%s4 + $0xd0] sm:$0xff]
  %v1557 = vld [vmem:[%s4 + $0xd8] sm:$0xff]
  %v1558 = vld [vmem:[%s4 + $0xe0] sm:$0xff]
  %v1559 = vld [vmem:[%s4 + $0xe8] sm:$0xff]
  %v1560 = vld [vmem:[%s4 + $0xf0] sm:$0xff]
  %v1561 = vld [vmem:[%s4 + $0xf8] sm:$0xff]
  %v1562 = vld [vmem:[%s4 + $0x100] sm:$0xff]
  %v1563 = vld [vmem:[%s4 + $0x108] sm:$0xff]
  %v1564 = vld [vmem:[%s4 + $0x110] sm:$0xff]
  %v1565 = vld [vmem:[%s4 + $0x118] sm:$0xff]
  %v1566 = vld [vmem:[%s4 + $0x120] sm:$0xff]
  %v1567 = vld [vmem:[%s4 + $0x128] sm:$0xff]
  %v1568 = vld [vmem:[%s4 + $0x130] sm:$0xff]
  %v1569 = vld [vmem:[%s4 + $0x138] sm:$0xff]
  %v1570 = vld [vmem:[%s4 + $0x140] sm:$0xff]
  %v1571 = vld [vmem:[%s4 + $0x148] sm:$0xff]
  %v1572 = vld [vmem:[%s4 + $0x150] sm:$0xff]
  %v1573 = vld [vmem:[%s4 + $0x158] sm:$0xff]
  %v1574 = vld [vmem:[%s4 + $0x160] sm:$0xff]
  %v1575 = vld [vmem:[%s4 + $0x168] sm:$0xff]
  %v1576 = vld [vmem:[%s4 + $0x170] sm:$0xff]
  %v1577 = vld [vmem:[%s4 + $0x178] sm:$0xff]
  %v1578 = vld [vmem:[%s4 + $0x180] sm:$0xff]
  %v1579 = vld [vmem:[%s4 + $0x188] sm:$0xff]
  %v1580 = vld [vmem:[%s4 + $0x190] sm:$0xff]
  %v1581 = vld [vmem:[%s4 + $0x198] sm:$0xff]
  %v1582 = vld [vmem:[%s4 + $0x1a0] sm:$0xff]
  %v1583 = vld [vmem:[%s4 + $0x1a8] sm:$0xff]
  %v1584 = vld [vmem:[%s4 + $0x1b0] sm:$0xff]
  %v1585 = vld [vmem:[%s4 + $0x1b8] sm:$0xff]
  %v1586 = vld [vmem:[%s4 + $0x1c0] sm:$0xff]
  %v1587 = vld [vmem:[%s4 + $0x1c8] sm:$0xff]
  %v1588 = vld [vmem:[%s4 + $0x1d0] sm:$0xff]
  %v1589 = vld [vmem:[%s4 + $0x1d8] sm:$0xff]
  %v1590 = vld [vmem:[%s4 + $0x1e0] sm:$0xff]
  %v1591 = vld [vmem:[%s4 + $0x1e8] sm:$0xff]
  %v1592 = vld [vmem:[%s4 + $0x1f0] sm:$0xff]
  %v1593 = vld [vmem:[%s4 + $0x1f8] sm:$0x77]
  %v1658 = vunpack.c.l.b16 %v1530
  %v1659 = vunpack.c.h.b16 %v1530
  %v1660 = vunpack.c.l.b16 %v1531
  %v1661 = vunpack.c.h.b16 %v1531
  %v1662 = vunpack.c.l.b16 %v1532
  %v1663 = vunpack.c.h.b16 %v1532
  %v1664 = vunpack.c.l.b16 %v1533
  %v1665 = vunpack.c.h.b16 %v1533
  %v1666 = vunpack.c.l.b16 %v1534
  %v1667 = vunpack.c.h.b16 %v1534
  %v1668 = vunpack.c.l.b16 %v1535
  %v1669 = vunpack.c.h.b16 %v1535
  %v1670 = vunpack.c.l.b16 %v1536
  %v1671 = vunpack.c.h.b16 %v1536
  %v1672 = vunpack.c.l.b16 %v1537
  %v1673 = vunpack.c.h.b16 %v1537
  %v1674 = vunpack.c.l.b16 %v1538
  %v1675 = vunpack.c.h.b16 %v1538
  %v1676 = vunpack.c.l.b16 %v1539
  %v1677 = vunpack.c.h.b16 %v1539
  %v1678 = vunpack.c.l.b16 %v1540
  %v1679 = vunpack.c.h.b16 %v1540
  %v1680 = vunpack.c.l.b16 %v1541
  %v1681 = vunpack.c.h.b16 %v1541
  %v1682 = vunpack.c.l.b16 %v1542
  %v1683 = vunpack.c.h.b16 %v1542
  %v1684 = vunpack.c.l.b16 %v1543
  %v1685 = vunpack.c.h.b16 %v1543
  %v1686 = vunpack.c.l.b16 %v1544
  %v1687 = vunpack.c.h.b16 %v1544
  %v1688 = vunpack.c.l.b16 %v1545
  %v1689 = vunpack.c.h.b16 %v1545
  %v1690 = vunpack.c.l.b16 %v1546
  %v1691 = vunpack.c.h.b16 %v1546
  %v1692 = vunpack.c.l.b16 %v1547
  %v1693 = vunpack.c.h.b16 %v1547
  %v1694 = vunpack.c.l.b16 %v1548
  %v1695 = vunpack.c.h.b16 %v1548
  %v1696 = vunpack.c.l.b16 %v1549
  %v1697 = vunpack.c.h.b16 %v1549
  %v1698 = vunpack.c.l.b16 %v1550
  %v1699 = vunpack.c.h.b16 %v1550
  %v1700 = vunpack.c.l.b16 %v1551
  %v1701 = vunpack.c.h.b16 %v1551
  %v1702 = vunpack.c.l.b16 %v1552
  %v1703 = vunpack.c.h.b16 %v1552
  %v1704 = vunpack.c.l.b16 %v1553
  %v1705 = vunpack.c.h.b16 %v1553
  %v1706 = vunpack.c.l.b16 %v1554
  %v1707 = vunpack.c.h.b16 %v1554
  %v1708 = vunpack.c.l.b16 %v1555
  %v1709 = vunpack.c.h.b16 %v1555
  %v1710 = vunpack.c.l.b16 %v1556
  %v1711 = vunpack.c.h.b16 %v1556
  %v1712 = vunpack.c.l.b16 %v1557
  %v1713 = vunpack.c.h.b16 %v1557
  %v1714 = vunpack.c.l.b16 %v1558
  %v1715 = vunpack.c.h.b16 %v1558
  %v1716 = vunpack.c.l.b16 %v1559
  %v1717 = vunpack.c.h.b16 %v1559
  %v1718 = vunpack.c.l.b16 %v1560
  %v1719 = vunpack.c.h.b16 %v1560
  %v1720 = vunpack.c.l.b16 %v1561
  %v1721 = vunpack.c.h.b16 %v1561
  %v1722 = vunpack.c.l.b16 %v1562
  %v1723 = vunpack.c.h.b16 %v1562
  %v1724 = vunpack.c.l.b16 %v1563
  %v1725 = vunpack.c.h.b16 %v1563
  %v1726 = vunpack.c.l.b16 %v1564
  %v1727 = vunpack.c.h.b16 %v1564
  %v1728 = vunpack.c.l.b16 %v1565
  %v1729 = vunpack.c.h.b16 %v1565
  %v1730 = vunpack.c.l.b16 %v1566
  %v1731 = vunpack.c.h.b16 %v1566
  %v1732 = vunpack.c.l.b16 %v1567
  %v1733 = vunpack.c.h.b16 %v1567
  %v1734 = vunpack.c.l.b16 %v1568
  %v1735 = vunpack.c.h.b16 %v1568
  %v1736 = vunpack.c.l.b16 %v1569
  %v1737 = vunpack.c.h.b16 %v1569
  %v1738 = vunpack.c.l.b16 %v1570
  %v1739 = vunpack.c.h.b16 %v1570
  %v1740 = vunpack.c.l.b16 %v1571
  %v1741 = vunpack.c.h.b16 %v1571
  %v1742 = vunpack.c.l.b16 %v1572
  %v1743 = vunpack.c.h.b16 %v1572
  %v1744 = vunpack.c.l.b16 %v1573
  %v1745 = vunpack.c.h.b16 %v1573
  %v1746 = vunpack.c.l.b16 %v1574
  %v1747 = vunpack.c.h.b16 %v1574
  %v1748 = vunpack.c.l.b16 %v1575
  %v1749 = vunpack.c.h.b16 %v1575
  %v1750 = vunpack.c.l.b16 %v1576
  %v1751 = vunpack.c.h.b16 %v1576
  %v1752 = vunpack.c.l.b16 %v1577
  %v1753 = vunpack.c.h.b16 %v1577
  %v1754 = vunpack.c.l.b16 %v1578
  %v1755 = vunpack.c.h.b16 %v1578
  %v1756 = vunpack.c.l.b16 %v1579
  %v1757 = vunpack.c.h.b16 %v1579
  %v1758 = vunpack.c.l.b16 %v1580
  %v1759 = vunpack.c.h.b16 %v1580
  %v1760 = vunpack.c.l.b16 %v1581
  %v1761 = vunpack.c.h.b16 %v1581
  %v1762 = vunpack.c.l.b16 %v1582
  %v1763 = vunpack.c.h.b16 %v1582
  %v1764 = vunpack.c.l.b16 %v1583
  %v1765 = vunpack.c.h.b16 %v1583
  %v1766 = vunpack.c.l.b16 %v1584
  %v1767 = vunpack.c.h.b16 %v1584
  %v1768 = vunpack.c.l.b16 %v1585
  %v1769 = vunpack.c.h.b16 %v1585
  %v1770 = vunpack.c.l.b16 %v1586
  %v1771 = vunpack.c.h.b16 %v1586
  %v1772 = vunpack.c.l.b16 %v1587
  %v1773 = vunpack.c.h.b16 %v1587
  %v1774 = vunpack.c.l.b16 %v1588
  %v1775 = vunpack.c.h.b16 %v1588
  %v1776 = vunpack.c.l.b16 %v1589
  %v1777 = vunpack.c.h.b16 %v1589
  %v1778 = vunpack.c.l.b16 %v1590
  %v1779 = vunpack.c.h.b16 %v1590
  %v1780 = vunpack.c.l.b16 %v1591
  %v1781 = vunpack.c.h.b16 %v1591
  %v1782 = vunpack.c.l.b16 %v1592
  %v1783 = vunpack.c.h.b16 %v1592
  %v1784 = vunpack.c.l.b16 %v1593
  %v1785 = vunpack.c.h.b16 %v1593
  %v1786 = vpack.c.b16 %v1660, %v1658
  %v1787 = vpack.c.b16 %v1661, %v1659
  %v1788 = vpack.c.b16 %v1664, %v1662
  %v1789 = vpack.c.b16 %v1665, %v1663
  %v1790 = vpack.c.b16 %v1668, %v1666
  %v1791 = vpack.c.b16 %v1669, %v1667
  %v1792 = vpack.c.b16 %v1672, %v1670
  %v1793 = vpack.c.b16 %v1673, %v1671
  %v1794 = vpack.c.b16 %v1676, %v1674
  %v1795 = vpack.c.b16 %v1677, %v1675
  %v1796 = vpack.c.b16 %v1680, %v1678
  %v1797 = vpack.c.b16 %v1681, %v1679
  %v1798 = vpack.c.b16 %v1684, %v1682
  %v1799 = vpack.c.b16 %v1685, %v1683
  %v1800 = vpack.c.b16 %v1688, %v1686
  %v1801 = vpack.c.b16 %v1689, %v1687
  %v1802 = vpack.c.b16 %v1692, %v1690
  %v1803 = vpack.c.b16 %v1693, %v1691
  %v1804 = vpack.c.b16 %v1696, %v1694
  %v1805 = vpack.c.b16 %v1697, %v1695
  %v1806 = vpack.c.b16 %v1700, %v1698
  %v1807 = vpack.c.b16 %v1701, %v1699
  %v1808 = vpack.c.b16 %v1704, %v1702
  %v1809 = vpack.c.b16 %v1705, %v1703
  %v1810 = vpack.c.b16 %v1708, %v1706
  %v1811 = vpack.c.b16 %v1709, %v1707
  %v1812 = vpack.c.b16 %v1712, %v1710
  %v1813 = vpack.c.b16 %v1713, %v1711
  %v1814 = vpack.c.b16 %v1716, %v1714
  %v1815 = vpack.c.b16 %v1717, %v1715
  %v1816 = vpack.c.b16 %v1720, %v1718
  %v1817 = vpack.c.b16 %v1721, %v1719
  %v1818 = vpack.c.b16 %v1724, %v1722
  %v1819 = vpack.c.b16 %v1725, %v1723
  %v1820 = vpack.c.b16 %v1728, %v1726
  %v1821 = vpack.c.b16 %v1729, %v1727
  %v1822 = vpack.c.b16 %v1732, %v1730
  %v1823 = vpack.c.b16 %v1733, %v1731
  %v1824 = vpack.c.b16 %v1736, %v1734
  %v1825 = vpack.c.b16 %v1737, %v1735
  %v1826 = vpack.c.b16 %v1740, %v1738
  %v1827 = vpack.c.b16 %v1741, %v1739
  %v1828 = vpack.c.b16 %v1744, %v1742
  %v1829 = vpack.c.b16 %v1745, %v1743
  %v1830 = vpack.c.b16 %v1748, %v1746
  %v1831 = vpack.c.b16 %v1749, %v1747
  %v1832 = vpack.c.b16 %v1752, %v1750
  %v1833 = vpack.c.b16 %v1753, %v1751
  %v1834 = vpack.c.b16 %v1756, %v1754
  %v1835 = vpack.c.b16 %v1757, %v1755
  %v1836 = vpack.c.b16 %v1760, %v1758
  %v1837 = vpack.c.b16 %v1761, %v1759
  %v1838 = vpack.c.b16 %v1764, %v1762
  %v1839 = vpack.c.b16 %v1765, %v1763
  %v1840 = vpack.c.b16 %v1768, %v1766
  %v1841 = vpack.c.b16 %v1769, %v1767
  %v1842 = vpack.c.b16 %v1772, %v1770
  %v1843 = vpack.c.b16 %v1773, %v1771
  %v1844 = vpack.c.b16 %v1776, %v1774
  %v1845 = vpack.c.b16 %v1777, %v1775
  %v1846 = vpack.c.b16 %v1780, %v1778
  %v1847 = vpack.c.b16 %v1781, %v1779
  %v1848 = vpack.c.b16 %v1784, %v1782
  %v1849 = vpack.c.b16 %v1785, %v1783
  %vm1912 = vcmask 1031168
  %v1914 = vsel %vm1912, %v1505, 0
  %v1917 = vsel %vm1912, %v1509, 0
  %v1920 = vsel %vm1912, %v1513, 0
  %v1923 = vsel %vm1912, %v1517, 0
  %v1926 = vsel %vm1912, %v1521, 0
  %v1929 = vsel %vm1912, %v1525, 0
  %v1932 = vsel %vm1912, %v1529, 0
  %vm1934 = vcmask 1046528
  %v1936 = vsel %vm1934, %v1848, 0
  %v1939 = vsel %vm1934, %v1849, 0
  %1941 = vmatprep.subr.bf16.mxu0 %v1801
  %1942 = vmatpush1.bf16.msra.mxu0 %v1800
  %1943 = vmatprep.subr.bf16.mxu0 %v1799
  %1944 = vmatpush1.bf16.msra.mxu0 %v1798
  %1945 = vmatprep.subr.bf16.mxu0 %v1797
  %1946 = vmatpush1.bf16.msra.mxu0 %v1796
  %1947 = vmatprep.subr.bf16.mxu0 %v1795
  %1948 = vmatpush1.bf16.msra.mxu0 %v1794
  %1949 = vmatprep.subr.bf16.mxu0 %v1793
  %1950 = vmatpush1.bf16.msra.mxu0 %v1792
  %1951 = vmatprep.subr.bf16.mxu0 %v1791
  %1952 = vmatpush1.bf16.msra.mxu0 %v1790
  %1953 = vmatprep.subr.bf16.mxu0 %v1789
  %1954 = vmatpush1.bf16.msra.mxu0 %v1788
  %1955 = vmatprep.subr.bf16.mxu0 %v1787
  %1956 = vmatpush1.bf16.msra.mxu0 %v1786
  %1957 = vmatprep.subr.bf16.mxu0 %v1817
  %1958 = vmatpush2.bf16.msra.mxu0 %v1816
  %1959 = vmatprep.subr.bf16.mxu0 %v1815
  %1960 = vmatpush2.bf16.msra.mxu0 %v1814
  %1961 = vmatprep.subr.bf16.mxu0 %v1813
  %1962 = vmatpush2.bf16.msra.mxu0 %v1812
  %1963 = vmatprep.subr.bf16.mxu0 %v1811
  %1964 = vmatpush2.bf16.msra.mxu0 %v1810
  %1965 = vmatprep.subr.bf16.mxu0 %v1809
  %1966 = vmatpush2.bf16.msra.mxu0 %v1808
  %1967 = vmatprep.subr.bf16.mxu0 %v1807
  %1968 = vmatpush2.bf16.msra.mxu0 %v1806
  %1969 = vmatprep.subr.bf16.mxu0 %v1805
  %1970 = vmatpush2.bf16.msra.mxu0 %v1804
  %1971 = vmatprep.subr.bf16.mxu0 %v1803
  %1972 = vmatpush2.bf16.msra.mxu0 %v1802
  %1973 = vmatprep.mubr.bf16.mxu0 %v1503
  %1974 = vmatmul.mubr.bf16.gmra.mxu0 %v1502
  %v1975 = vpop.f32.mrf.mxu0
  %v1976 = vadd.f32 0.0, %v1975
  %v1977 = vpop.f32.mrf.mxu0
  %v1978 = vadd.f32 0.0, %v1977
  %v1979 = vpop.f32.mrf.mxu0
  %v1980 = vadd.f32 0.0, %v1979
  %v1981 = vpop.f32.mrf.mxu0
  %v1982 = vadd.f32 0.0, %v1981
  %1983 = vmatprep.mubr.bf16.mxu0 %v1507
  %1984 = vmatmul.mubr.bf16.gmra.mxu0 %v1506
  %v1985 = vpop.f32.mrf.mxu0
  %v1986 = vadd.f32 0.0, %v1985
  %v1987 = vpop.f32.mrf.mxu0
  %v1988 = vadd.f32 0.0, %v1987
  %v1989 = vpop.f32.mrf.mxu0
  %v1990 = vadd.f32 0.0, %v1989
  %v1991 = vpop.f32.mrf.mxu0
  %v1992 = vadd.f32 0.0, %v1991
  %1993 = vmatprep.mubr.bf16.mxu0 %v1511
  %1994 = vmatmul.mubr.bf16.gmra.mxu0 %v1510
  %v1995 = vpop.f32.mrf.mxu0
  %v1996 = vadd.f32 0.0, %v1995
  %v1997 = vpop.f32.mrf.mxu0
  %v1998 = vadd.f32 0.0, %v1997
  %v1999 = vpop.f32.mrf.mxu0
  %v2000 = vadd.f32 0.0, %v1999
  %v2001 = vpop.f32.mrf.mxu0
  %v2002 = vadd.f32 0.0, %v2001
  %2003 = vmatprep.mubr.bf16.mxu0 %v1515
  %2004 = vmatmul.mubr.bf16.gmra.mxu0 %v1514
  %v2005 = vpop.f32.mrf.mxu0
  %v2006 = vadd.f32 0.0, %v2005
  %v2007 = vpop.f32.mrf.mxu0
  %v2008 = vadd.f32 0.0, %v2007
  %v2009 = vpop.f32.mrf.mxu0
  %v2010 = vadd.f32 0.0, %v2009
  %v2011 = vpop.f32.mrf.mxu0
  %v2012 = vadd.f32 0.0, %v2011
  %2013 = vmatprep.mubr.bf16.mxu0 %v1519
  %2014 = vmatmul.mubr.bf16.gmra.mxu0 %v1518
  %v2015 = vpop.f32.mrf.mxu0
  %v2016 = vadd.f32 0.0, %v2015
  %v2017 = vpop.f32.mrf.mxu0
  %v2018 = vadd.f32 0.0, %v2017
  %v2019 = vpop.f32.mrf.mxu0
  %v2020 = vadd.f32 0.0, %v2019
  %v2021 = vpop.f32.mrf.mxu0
  %v2022 = vadd.f32 0.0, %v2021
  %2023 = vmatprep.mubr.bf16.mxu0 %v1523
  %2024 = vmatmul.mubr.bf16.gmra.mxu0 %v1522
  %v2025 = vpop.f32.mrf.mxu0
  %v2026 = vadd.f32 0.0, %v2025
  %v2027 = vpop.f32.mrf.mxu0
  %v2028 = vadd.f32 0.0, %v2027
  %v2029 = vpop.f32.mrf.mxu0
  %v2030 = vadd.f32 0.0, %v2029
  %v2031 = vpop.f32.mrf.mxu0
  %v2032 = vadd.f32 0.0, %v2031
  %2033 = vmatprep.mubr.bf16.mxu0 %v1527
  %2034 = vmatmul.mubr.bf16.gmra.mxu0 %v1526
  %v2035 = vpop.f32.mrf.mxu0
  %v2036 = vadd.f32 0.0, %v2035
  %v2037 = vpop.f32.mrf.mxu0
  %v2038 = vadd.f32 0.0, %v2037
  %v2039 = vpop.f32.mrf.mxu0
  %v2040 = vpop.f32.mrf.mxu0
  %2041 = vdwg.mxu0
  %2042 = vmatprep.subr.bf16.mxu0 %v1833
  %2043 = vmatpush1.bf16.msra.mxu0 %v1832
  %2044 = vmatprep.subr.bf16.mxu0 %v1831
  %2045 = vmatpush1.bf16.msra.mxu0 %v1830
  %2046 = vmatprep.subr.bf16.mxu0 %v1829
  %2047 = vmatpush1.bf16.msra.mxu0 %v1828
  %2048 = vmatprep.subr.bf16.mxu0 %v1827
  %2049 = vmatpush1.bf16.msra.mxu0 %v1826
  %2050 = vmatprep.subr.bf16.mxu0 %v1825
  %2051 = vmatpush1.bf16.msra.mxu0 %v1824
  %2052 = vmatprep.subr.bf16.mxu0 %v1823
  %2053 = vmatpush1.bf16.msra.mxu0 %v1822
  %2054 = vmatprep.subr.bf16.mxu0 %v1821
  %2055 = vmatpush1.bf16.msra.mxu0 %v1820
  %2056 = vmatprep.subr.bf16.mxu0 %v1819
  %2057 = vmatpush1.bf16.msra.mxu0 %v1818
  %2058 = vmatprep.subr.bf16.mxu0 %v1939
  %2059 = vmatpush2.bf16.msra.mxu0 %v1936
  %2060 = vmatprep.subr.bf16.mxu0 %v1847
  %2061 = vmatpush2.bf16.msra.mxu0 %v1846
  %2062 = vmatprep.subr.bf16.mxu0 %v1845
  %2063 = vmatpush2.bf16.msra.mxu0 %v1844
  %2064 = vmatprep.subr.bf16.mxu0 %v1843
  %2065 = vmatpush2.bf16.msra.mxu0 %v1842
  %2066 = vmatprep.subr.bf16.mxu0 %v1841
  %2067 = vmatpush2.bf16.msra.mxu0 %v1840
  %2068 = vmatprep.subr.bf16.mxu0 %v1839
  %2069 = vmatpush2.bf16.msra.mxu0 %v1838
  %2070 = vmatprep.subr.bf16.mxu0 %v1837
  %2071 = vmatpush2.bf16.msra.mxu0 %v1836
  %2072 = vmatprep.subr.bf16.mxu0 %v1835
  %2073 = vmatpush2.bf16.msra.mxu0 %v1834
  %2074 = vmatprep.mubr.bf16.mxu0 %v1914
  %2075 = vmatmul.mubr.bf16.gmra.mxu0 %v1504
  %v2076 = vpop.f32.mrf.mxu0
  %v2077 = vadd.f32 %v1976, %v2076
  %v2078 = vpop.f32.mrf.mxu0
  %v2079 = vadd.f32 %v1978, %v2078
  %v2080 = vpop.f32.mrf.mxu0
  %v2081 = vadd.f32 %v1980, %v2080
  %v2082 = vpop.f32.mrf.mxu0
  %v2083 = vadd.f32 %v1982, %v2082
  %2084 = vmatprep.mubr.bf16.mxu0 %v1917
  %2085 = vmatmul.mubr.bf16.gmra.mxu0 %v1508
  %v2086 = vpop.f32.mrf.mxu0
  %v2087 = vadd.f32 %v1986, %v2086
  %v2088 = vpop.f32.mrf.mxu0
  %v2089 = vadd.f32 %v1988, %v2088
  %v2090 = vpop.f32.mrf.mxu0
  %v2091 = vadd.f32 %v1990, %v2090
  %v2092 = vpop.f32.mrf.mxu0
  %v2093 = vadd.f32 %v1992, %v2092
  %2094 = vmatprep.mubr.bf16.mxu0 %v1920
  %2095 = vmatmul.mubr.bf16.gmra.mxu0 %v1512
  %v2096 = vpop.f32.mrf.mxu0
  %v2097 = vadd.f32 %v1996, %v2096
  %v2098 = vpop.f32.mrf.mxu0
  %v2099 = vadd.f32 %v1998, %v2098
  %v2100 = vpop.f32.mrf.mxu0
  %v2101 = vadd.f32 %v2000, %v2100
  %v2102 = vpop.f32.mrf.mxu0
  %v2103 = vadd.f32 %v2002, %v2102
  %2104 = vmatprep.mubr.bf16.mxu0 %v1923
  %2105 = vmatmul.mubr.bf16.gmra.mxu0 %v1516
  %v2106 = vpop.f32.mrf.mxu0
  %v2107 = vadd.f32 %v2006, %v2106
  %v2108 = vpop.f32.mrf.mxu0
  %v2109 = vadd.f32 %v2008, %v2108
  %v2110 = vpop.f32.mrf.mxu0
  %v2111 = vadd.f32 %v2010, %v2110
  %v2112 = vpop.f32.mrf.mxu0
  %v2113 = vadd.f32 %v2012, %v2112
  %2114 = vmatprep.mubr.bf16.mxu0 %v1926
  %2115 = vmatmul.mubr.bf16.gmra.mxu0 %v1520
  %v2116 = vpop.f32.mrf.mxu0
  %v2117 = vadd.f32 %v2016, %v2116
  %v2118 = vpop.f32.mrf.mxu0
  %v2119 = vadd.f32 %v2018, %v2118
  %v2120 = vpop.f32.mrf.mxu0
  %v2121 = vadd.f32 %v2020, %v2120
  %v2122 = vpop.f32.mrf.mxu0
  %v2123 = vadd.f32 %v2022, %v2122
  %2124 = vmatprep.mubr.bf16.mxu0 %v1929
  %2125 = vmatmul.mubr.bf16.gmra.mxu0 %v1524
  %v2126 = vpop.f32.mrf.mxu0
  %v2127 = vadd.f32 %v2026, %v2126
  %v2128 = vpop.f32.mrf.mxu0
  %v2129 = vadd.f32 %v2028, %v2128
  %v2130 = vpop.f32.mrf.mxu0
  %v2131 = vadd.f32 %v2030, %v2130
  %v2132 = vpop.f32.mrf.mxu0
  %v2133 = vadd.f32 %v2032, %v2132
  %2134 = vmatprep.mubr.bf16.mxu0 %v1932
  %2135 = vmatmul.mubr.bf16.gmra.mxu0 %v1528
  %v2136 = vpop.f32.mrf.mxu0
  %v2137 = vadd.f32 %v2036, %v2136
  %v2138 = vpop.f32.mrf.mxu0
  %v2139 = vadd.f32 %v2038, %v2138
  %v2140 = vpop.f32.mrf.mxu0
  %v2141 = vpop.f32.mrf.mxu0
  %2142 = vdwg.mxu0
  %s2143 = scalar_lea.vmem %s4, 512
  %v2144 = vld [vmem:[%s2143] sm:$0xff]
  %v2145 = vld [vmem:[%s2143 + $0x8] sm:$0xff]
  %v2146 = vld [vmem:[%s2143 + $0x10] sm:$0xff]
  %v2147 = vld [vmem:[%s2143 + $0x18] sm:$0xff]
  %v2148 = vld [vmem:[%s2143 + $0x20] sm:$0xff]
  %v2149 = vld [vmem:[%s2143 + $0x28] sm:$0xff]
  %v2150 = vld [vmem:[%s2143 + $0x30] sm:$0xff]
  %v2151 = vld [vmem:[%s2143 + $0x38] sm:$0xff]
  %v2152 = vld [vmem:[%s2143 + $0x40] sm:$0xff]
  %v2153 = vld [vmem:[%s2143 + $0x48] sm:$0xff]
  %v2154 = vld [vmem:[%s2143 + $0x50] sm:$0xff]
  %v2155 = vld [vmem:[%s2143 + $0x58] sm:$0xff]
  %v2156 = vld [vmem:[%s2143 + $0x60] sm:$0xff]
  %v2157 = vld [vmem:[%s2143 + $0x68] sm:$0xff]
  %v2158 = vld [vmem:[%s2143 + $0x70] sm:$0xff]
  %v2159 = vld [vmem:[%s2143 + $0x78] sm:$0xff]
  %v2160 = vld [vmem:[%s2143 + $0x80] sm:$0xff]
  %v2161 = vld [vmem:[%s2143 + $0x88] sm:$0xff]
  %v2162 = vld [vmem:[%s2143 + $0x90] sm:$0xff]
  %v2163 = vld [vmem:[%s2143 + $0x98] sm:$0xff]
  %v2164 = vld [vmem:[%s2143 + $0xa0] sm:$0xff]
  %v2165 = vld [vmem:[%s2143 + $0xa8] sm:$0xff]
  %v2166 = vld [vmem:[%s2143 + $0xb0] sm:$0xff]
  %v2167 = vld [vmem:[%s2143 + $0xb8] sm:$0xff]
  %v2168 = vld [vmem:[%s2143 + $0xc0] sm:$0xff]
  %v2169 = vld [vmem:[%s2143 + $0xc8] sm:$0xff]
  %v2170 = vld [vmem:[%s2143 + $0xd0] sm:$0xff]
  %v2171 = vld [vmem:[%s2143 + $0xd8] sm:$0xff]
  %v2172 = vld [vmem:[%s2143 + $0xe0] sm:$0xff]
  %v2173 = vld [vmem:[%s2143 + $0xe8] sm:$0xff]
  %v2174 = vld [vmem:[%s2143 + $0xf0] sm:$0xff]
  %v2175 = vld [vmem:[%s2143 + $0xf8] sm:$0xff]
  %v2176 = vld [vmem:[%s2143 + $0x100] sm:$0xff]
  %v2177 = vld [vmem:[%s2143 + $0x108] sm:$0xff]
  %v2178 = vld [vmem:[%s2143 + $0x110] sm:$0xff]
  %v2179 = vld [vmem:[%s2143 + $0x118] sm:$0xff]
  %v2180 = vld [vmem:[%s2143 + $0x120] sm:$0xff]
  %v2181 = vld [vmem:[%s2143 + $0x128] sm:$0xff]
  %v2182 = vld [vmem:[%s2143 + $0x130] sm:$0xff]
  %v2183 = vld [vmem:[%s2143 + $0x138] sm:$0xff]
  %v2184 = vld [vmem:[%s2143 + $0x140] sm:$0xff]
  %v2185 = vld [vmem:[%s2143 + $0x148] sm:$0xff]
  %v2186 = vld [vmem:[%s2143 + $0x150] sm:$0xff]
  %v2187 = vld [vmem:[%s2143 + $0x158] sm:$0xff]
  %v2188 = vld [vmem:[%s2143 + $0x160] sm:$0xff]
  %v2189 = vld [vmem:[%s2143 + $0x168] sm:$0xff]
  %v2190 = vld [vmem:[%s2143 + $0x170] sm:$0xff]
  %v2191 = vld [vmem:[%s2143 + $0x178] sm:$0xff]
  %v2192 = vld [vmem:[%s2143 + $0x180] sm:$0xff]
  %v2193 = vld [vmem:[%s2143 + $0x188] sm:$0xff]
  %v2194 = vld [vmem:[%s2143 + $0x190] sm:$0xff]
  %v2195 = vld [vmem:[%s2143 + $0x198] sm:$0xff]
  %v2196 = vld [vmem:[%s2143 + $0x1a0] sm:$0xff]
  %v2197 = vld [vmem:[%s2143 + $0x1a8] sm:$0xff]
  %v2198 = vld [vmem:[%s2143 + $0x1b0] sm:$0xff]
  %v2199 = vld [vmem:[%s2143 + $0x1b8] sm:$0xff]
  %v2200 = vld [vmem:[%s2143 + $0x1c0] sm:$0xff]
  %v2201 = vld [vmem:[%s2143 + $0x1c8] sm:$0xff]
  %v2202 = vld [vmem:[%s2143 + $0x1d0] sm:$0xff]
  %v2203 = vld [vmem:[%s2143 + $0x1d8] sm:$0xff]
  %v2204 = vld [vmem:[%s2143 + $0x1e0] sm:$0xff]
  %v2205 = vld [vmem:[%s2143 + $0x1e8] sm:$0xff]
  %v2206 = vld [vmem:[%s2143 + $0x1f0] sm:$0xff]
  %v2207 = vld [vmem:[%s2143 + $0x1f8] sm:$0x77]
  %v2272 = vunpack.c.l.b16 %v2144
  %v2273 = vunpack.c.h.b16 %v2144
  %v2274 = vunpack.c.l.b16 %v2145
  %v2275 = vunpack.c.h.b16 %v2145
  %v2276 = vunpack.c.l.b16 %v2146
  %v2277 = vunpack.c.h.b16 %v2146
  %v2278 = vunpack.c.l.b16 %v2147
  %v2279 = vunpack.c.h.b16 %v2147
  %v2280 = vunpack.c.l.b16 %v2148
  %v2281 = vunpack.c.h.b16 %v2148
  %v2282 = vunpack.c.l.b16 %v2149
  %v2283 = vunpack.c.h.b16 %v2149
  %v2284 = vunpack.c.l.b16 %v2150
  %v2285 = vunpack.c.h.b16 %v2150
  %v2286 = vunpack.c.l.b16 %v2151
  %v2287 = vunpack.c.h.b16 %v2151
  %v2288 = vunpack.c.l.b16 %v2152
  %v2289 = vunpack.c.h.b16 %v2152
  %v2290 = vunpack.c.l.b16 %v2153
  %v2291 = vunpack.c.h.b16 %v2153
  %v2292 = vunpack.c.l.b16 %v2154
  %v2293 = vunpack.c.h.b16 %v2154
  %v2294 = vunpack.c.l.b16 %v2155
  %v2295 = vunpack.c.h.b16 %v2155
  %v2296 = vunpack.c.l.b16 %v2156
  %v2297 = vunpack.c.h.b16 %v2156
  %v2298 = vunpack.c.l.b16 %v2157
  %v2299 = vunpack.c.h.b16 %v2157
  %v2300 = vunpack.c.l.b16 %v2158
  %v2301 = vunpack.c.h.b16 %v2158
  %v2302 = vunpack.c.l.b16 %v2159
  %v2303 = vunpack.c.h.b16 %v2159
  %v2304 = vunpack.c.l.b16 %v2160
  %v2305 = vunpack.c.h.b16 %v2160
  %v2306 = vunpack.c.l.b16 %v2161
  %v2307 = vunpack.c.h.b16 %v2161
  %v2308 = vunpack.c.l.b16 %v2162
  %v2309 = vunpack.c.h.b16 %v2162
  %v2310 = vunpack.c.l.b16 %v2163
  %v2311 = vunpack.c.h.b16 %v2163
  %v2312 = vunpack.c.l.b16 %v2164
  %v2313 = vunpack.c.h.b16 %v2164
  %v2314 = vunpack.c.l.b16 %v2165
  %v2315 = vunpack.c.h.b16 %v2165
  %v2316 = vunpack.c.l.b16 %v2166
  %v2317 = vunpack.c.h.b16 %v2166
  %v2318 = vunpack.c.l.b16 %v2167
  %v2319 = vunpack.c.h.b16 %v2167
  %v2320 = vunpack.c.l.b16 %v2168
  %v2321 = vunpack.c.h.b16 %v2168
  %v2322 = vunpack.c.l.b16 %v2169
  %v2323 = vunpack.c.h.b16 %v2169
  %v2324 = vunpack.c.l.b16 %v2170
  %v2325 = vunpack.c.h.b16 %v2170
  %v2326 = vunpack.c.l.b16 %v2171
  %v2327 = vunpack.c.h.b16 %v2171
  %v2328 = vunpack.c.l.b16 %v2172
  %v2329 = vunpack.c.h.b16 %v2172
  %v2330 = vunpack.c.l.b16 %v2173
  %v2331 = vunpack.c.h.b16 %v2173
  %v2332 = vunpack.c.l.b16 %v2174
  %v2333 = vunpack.c.h.b16 %v2174
  %v2334 = vunpack.c.l.b16 %v2175
  %v2335 = vunpack.c.h.b16 %v2175
  %v2336 = vunpack.c.l.b16 %v2176
  %v2337 = vunpack.c.h.b16 %v2176
  %v2338 = vunpack.c.l.b16 %v2177
  %v2339 = vunpack.c.h.b16 %v2177
  %v2340 = vunpack.c.l.b16 %v2178
  %v2341 = vunpack.c.h.b16 %v2178
  %v2342 = vunpack.c.l.b16 %v2179
  %v2343 = vunpack.c.h.b16 %v2179
  %v2344 = vunpack.c.l.b16 %v2180
  %v2345 = vunpack.c.h.b16 %v2180
  %v2346 = vunpack.c.l.b16 %v2181
  %v2347 = vunpack.c.h.b16 %v2181
  %v2348 = vunpack.c.l.b16 %v2182
  %v2349 = vunpack.c.h.b16 %v2182
  %v2350 = vunpack.c.l.b16 %v2183
  %v2351 = vunpack.c.h.b16 %v2183
  %v2352 = vunpack.c.l.b16 %v2184
  %v2353 = vunpack.c.h.b16 %v2184
  %v2354 = vunpack.c.l.b16 %v2185
  %v2355 = vunpack.c.h.b16 %v2185
  %v2356 = vunpack.c.l.b16 %v2186
  %v2357 = vunpack.c.h.b16 %v2186
  %v2358 = vunpack.c.l.b16 %v2187
  %v2359 = vunpack.c.h.b16 %v2187
  %v2360 = vunpack.c.l.b16 %v2188
  %v2361 = vunpack.c.h.b16 %v2188
  %v2362 = vunpack.c.l.b16 %v2189
  %v2363 = vunpack.c.h.b16 %v2189
  %v2364 = vunpack.c.l.b16 %v2190
  %v2365 = vunpack.c.h.b16 %v2190
  %v2366 = vunpack.c.l.b16 %v2191
  %v2367 = vunpack.c.h.b16 %v2191
  %v2368 = vunpack.c.l.b16 %v2192
  %v2369 = vunpack.c.h.b16 %v2192
  %v2370 = vunpack.c.l.b16 %v2193
  %v2371 = vunpack.c.h.b16 %v2193
  %v2372 = vunpack.c.l.b16 %v2194
  %v2373 = vunpack.c.h.b16 %v2194
  %v2374 = vunpack.c.l.b16 %v2195
  %v2375 = vunpack.c.h.b16 %v2195
  %v2376 = vunpack.c.l.b16 %v2196
  %v2377 = vunpack.c.h.b16 %v2196
  %v2378 = vunpack.c.l.b16 %v2197
  %v2379 = vunpack.c.h.b16 %v2197
  %v2380 = vunpack.c.l.b16 %v2198
  %v2381 = vunpack.c.h.b16 %v2198
  %v2382 = vunpack.c.l.b16 %v2199
  %v2383 = vunpack.c.h.b16 %v2199
  %v2384 = vunpack.c.l.b16 %v2200
  %v2385 = vunpack.c.h.b16 %v2200
  %v2386 = vunpack.c.l.b16 %v2201
  %v2387 = vunpack.c.h.b16 %v2201
  %v2388 = vunpack.c.l.b16 %v2202
  %v2389 = vunpack.c.h.b16 %v2202
  %v2390 = vunpack.c.l.b16 %v2203
  %v2391 = vunpack.c.h.b16 %v2203
  %v2392 = vunpack.c.l.b16 %v2204
  %v2393 = vunpack.c.h.b16 %v2204
  %v2394 = vunpack.c.l.b16 %v2205
  %v2395 = vunpack.c.h.b16 %v2205
  %v2396 = vunpack.c.l.b16 %v2206
  %v2397 = vunpack.c.h.b16 %v2206
  %v2398 = vunpack.c.l.b16 %v2207
  %v2399 = vunpack.c.h.b16 %v2207
  %v2400 = vpack.c.b16 %v2274, %v2272
  %v2401 = vpack.c.b16 %v2275, %v2273
  %v2402 = vpack.c.b16 %v2278, %v2276
  %v2403 = vpack.c.b16 %v2279, %v2277
  %v2404 = vpack.c.b16 %v2282, %v2280
  %v2405 = vpack.c.b16 %v2283, %v2281
  %v2406 = vpack.c.b16 %v2286, %v2284
  %v2407 = vpack.c.b16 %v2287, %v2285
  %v2408 = vpack.c.b16 %v2290, %v2288
  %v2409 = vpack.c.b16 %v2291, %v2289
  %v2410 = vpack.c.b16 %v2294, %v2292
  %v2411 = vpack.c.b16 %v2295, %v2293
  %v2412 = vpack.c.b16 %v2298, %v2296
  %v2413 = vpack.c.b16 %v2299, %v2297
  %v2414 = vpack.c.b16 %v2302, %v2300
  %v2415 = vpack.c.b16 %v2303, %v2301
  %v2416 = vpack.c.b16 %v2306, %v2304
  %v2417 = vpack.c.b16 %v2307, %v2305
  %v2418 = vpack.c.b16 %v2310, %v2308
  %v2419 = vpack.c.b16 %v2311, %v2309
  %v2420 = vpack.c.b16 %v2314, %v2312
  %v2421 = vpack.c.b16 %v2315, %v2313
  %v2422 = vpack.c.b16 %v2318, %v2316
  %v2423 = vpack.c.b16 %v2319, %v2317
  %v2424 = vpack.c.b16 %v2322, %v2320
  %v2425 = vpack.c.b16 %v2323, %v2321
  %v2426 = vpack.c.b16 %v2326, %v2324
  %v2427 = vpack.c.b16 %v2327, %v2325
  %v2428 = vpack.c.b16 %v2330, %v2328
  %v2429 = vpack.c.b16 %v2331, %v2329
  %v2430 = vpack.c.b16 %v2334, %v2332
  %v2431 = vpack.c.b16 %v2335, %v2333
  %v2432 = vpack.c.b16 %v2338, %v2336
  %v2433 = vpack.c.b16 %v2339, %v2337
  %v2434 = vpack.c.b16 %v2342, %v2340
  %v2435 = vpack.c.b16 %v2343, %v2341
  %v2436 = vpack.c.b16 %v2346, %v2344
  %v2437 = vpack.c.b16 %v2347, %v2345
  %v2438 = vpack.c.b16 %v2350, %v2348
  %v2439 = vpack.c.b16 %v2351, %v2349
  %v2440 = vpack.c.b16 %v2354, %v2352
  %v2441 = vpack.c.b16 %v2355, %v2353
  %v2442 = vpack.c.b16 %v2358, %v2356
  %v2443 = vpack.c.b16 %v2359, %v2357
  %v2444 = vpack.c.b16 %v2362, %v2360
  %v2445 = vpack.c.b16 %v2363, %v2361
  %v2446 = vpack.c.b16 %v2366, %v2364
  %v2447 = vpack.c.b16 %v2367, %v2365
  %v2448 = vpack.c.b16 %v2370, %v2368
  %v2449 = vpack.c.b16 %v2371, %v2369
  %v2450 = vpack.c.b16 %v2374, %v2372
  %v2451 = vpack.c.b16 %v2375, %v2373
  %v2452 = vpack.c.b16 %v2378, %v2376
  %v2453 = vpack.c.b16 %v2379, %v2377
  %v2454 = vpack.c.b16 %v2382, %v2380
  %v2455 = vpack.c.b16 %v2383, %v2381
  %v2456 = vpack.c.b16 %v2386, %v2384
  %v2457 = vpack.c.b16 %v2387, %v2385
  %v2458 = vpack.c.b16 %v2390, %v2388
  %v2459 = vpack.c.b16 %v2391, %v2389
  %v2460 = vpack.c.b16 %v2394, %v2392
  %v2461 = vpack.c.b16 %v2395, %v2393
  %v2462 = vpack.c.b16 %v2398, %v2396
  %v2463 = vpack.c.b16 %v2399, %v2397
  %v2527 = vsel %vm1934, %v2462, 0
  %v2530 = vsel %vm1934, %v2463, 0
  %2532 = vmatprep.subr.bf16.mxu0 %v2415
  %2533 = vmatpush1.bf16.msra.mxu0 %v2414
  %2534 = vmatprep.subr.bf16.mxu0 %v2413
  %2535 = vmatpush1.bf16.msra.mxu0 %v2412
  %2536 = vmatprep.subr.bf16.mxu0 %v2411
  %2537 = vmatpush1.bf16.msra.mxu0 %v2410
  %2538 = vmatprep.subr.bf16.mxu0 %v2409
  %2539 = vmatpush1.bf16.msra.mxu0 %v2408
  %2540 = vmatprep.subr.bf16.mxu0 %v2407
  %2541 = vmatpush1.bf16.msra.mxu0 %v2406
  %2542 = vmatprep.subr.bf16.mxu0 %v2405
  %2543 = vmatpush1.bf16.msra.mxu0 %v2404
  %2544 = vmatprep.subr.bf16.mxu0 %v2403
  %2545 = vmatpush1.bf16.msra.mxu0 %v2402
  %2546 = vmatprep.subr.bf16.mxu0 %v2401
  %2547 = vmatpush1.bf16.msra.mxu0 %v2400
  %2548 = vmatprep.subr.bf16.mxu0 %v2431
  %2549 = vmatpush2.bf16.msra.mxu0 %v2430
  %2550 = vmatprep.subr.bf16.mxu0 %v2429
  %2551 = vmatpush2.bf16.msra.mxu0 %v2428
  %2552 = vmatprep.subr.bf16.mxu0 %v2427
  %2553 = vmatpush2.bf16.msra.mxu0 %v2426
  %2554 = vmatprep.subr.bf16.mxu0 %v2425
  %2555 = vmatpush2.bf16.msra.mxu0 %v2424
  %2556 = vmatprep.subr.bf16.mxu0 %v2423
  %2557 = vmatpush2.bf16.msra.mxu0 %v2422
  %2558 = vmatprep.subr.bf16.mxu0 %v2421
  %2559 = vmatpush2.bf16.msra.mxu0 %v2420
  %2560 = vmatprep.subr.bf16.mxu0 %v2419
  %2561 = vmatpush2.bf16.msra.mxu0 %v2418
  %2562 = vmatprep.subr.bf16.mxu0 %v2417
  %2563 = vmatpush2.bf16.msra.mxu0 %v2416
  %2564 = vmatprep.mubr.bf16.mxu0 %v1503
  %2565 = vmatmul.mubr.bf16.gmra.mxu0 %v1502
  %v2566 = vpop.f32.mrf.mxu0
  %v2567 = vadd.f32 0.0, %v2566
  %v2568 = vpop.f32.mrf.mxu0
  %v2569 = vadd.f32 0.0, %v2568
  %v2570 = vpop.f32.mrf.mxu0
  %v2571 = vadd.f32 0.0, %v2570
  %v2572 = vpop.f32.mrf.mxu0
  %v2573 = vadd.f32 0.0, %v2572
  %2574 = vmatprep.mubr.bf16.mxu0 %v1507
  %2575 = vmatmul.mubr.bf16.gmra.mxu0 %v1506
  %v2576 = vpop.f32.mrf.mxu0
  %v2577 = vadd.f32 0.0, %v2576
  %v2578 = vpop.f32.mrf.mxu0
  %v2579 = vadd.f32 0.0, %v2578
  %v2580 = vpop.f32.mrf.mxu0
  %v2581 = vadd.f32 0.0, %v2580
  %v2582 = vpop.f32.mrf.mxu0
  %v2583 = vadd.f32 0.0, %v2582
  %2584 = vmatprep.mubr.bf16.mxu0 %v1511
  %2585 = vmatmul.mubr.bf16.gmra.mxu0 %v1510
  %v2586 = vpop.f32.mrf.mxu0
  %v2587 = vadd.f32 0.0, %v2586
  %v2588 = vpop.f32.mrf.mxu0
  %v2589 = vadd.f32 0.0, %v2588
  %v2590 = vpop.f32.mrf.mxu0
  %v2591 = vadd.f32 0.0, %v2590
  %v2592 = vpop.f32.mrf.mxu0
  %v2593 = vadd.f32 0.0, %v2592
  %2594 = vmatprep.mubr.bf16.mxu0 %v1515
  %2595 = vmatmul.mubr.bf16.gmra.mxu0 %v1514
  %v2596 = vpop.f32.mrf.mxu0
  %v2597 = vadd.f32 0.0, %v2596
  %v2598 = vpop.f32.mrf.mxu0
  %v2599 = vadd.f32 0.0, %v2598
  %v2600 = vpop.f32.mrf.mxu0
  %v2601 = vadd.f32 0.0, %v2600
  %v2602 = vpop.f32.mrf.mxu0
  %v2603 = vadd.f32 0.0, %v2602
  %2604 = vmatprep.mubr.bf16.mxu0 %v1519
  %2605 = vmatmul.mubr.bf16.gmra.mxu0 %v1518
  %v2606 = vpop.f32.mrf.mxu0
  %v2607 = vadd.f32 0.0, %v2606
  %v2608 = vpop.f32.mrf.mxu0
  %v2609 = vadd.f32 0.0, %v2608
  %v2610 = vpop.f32.mrf.mxu0
  %v2611 = vadd.f32 0.0, %v2610
  %v2612 = vpop.f32.mrf.mxu0
  %v2613 = vadd.f32 0.0, %v2612
  %2614 = vmatprep.mubr.bf16.mxu0 %v1523
  %2615 = vmatmul.mubr.bf16.gmra.mxu0 %v1522
  %v2616 = vpop.f32.mrf.mxu0
  %v2617 = vadd.f32 0.0, %v2616
  %v2618 = vpop.f32.mrf.mxu0
  %v2619 = vadd.f32 0.0, %v2618
  %v2620 = vpop.f32.mrf.mxu0
  %v2621 = vadd.f32 0.0, %v2620
  %v2622 = vpop.f32.mrf.mxu0
  %v2623 = vadd.f32 0.0, %v2622
  %2624 = vmatprep.mubr.bf16.mxu0 %v1527
  %2625 = vmatmul.mubr.bf16.gmra.mxu0 %v1526
  %v2626 = vpop.f32.mrf.mxu0
  %v2627 = vadd.f32 0.0, %v2626
  %v2628 = vpop.f32.mrf.mxu0
  %v2629 = vadd.f32 0.0, %v2628
  %v2630 = vpop.f32.mrf.mxu0
  %v2631 = vpop.f32.mrf.mxu0
  %2632 = vdwg.mxu0
  %2633 = vmatprep.subr.bf16.mxu0 %v2447
  %2634 = vmatpush1.bf16.msra.mxu0 %v2446
  %2635 = vmatprep.subr.bf16.mxu0 %v2445
  %2636 = vmatpush1.bf16.msra.mxu0 %v2444
  %2637 = vmatprep.subr.bf16.mxu0 %v2443
  %2638 = vmatpush1.bf16.msra.mxu0 %v2442
  %2639 = vmatprep.subr.bf16.mxu0 %v2441
  %2640 = vmatpush1.bf16.msra.mxu0 %v2440
  %2641 = vmatprep.subr.bf16.mxu0 %v2439
  %2642 = vmatpush1.bf16.msra.mxu0 %v2438
  %2643 = vmatprep.subr.bf16.mxu0 %v2437
  %2644 = vmatpush1.bf16.msra.mxu0 %v2436
  %2645 = vmatprep.subr.bf16.mxu0 %v2435
  %2646 = vmatpush1.bf16.msra.mxu0 %v2434
  %2647 = vmatprep.subr.bf16.mxu0 %v2433
  %2648 = vmatpush1.bf16.msra.mxu0 %v2432
  %2649 = vmatprep.subr.bf16.mxu0 %v2530
  %2650 = vmatpush2.bf16.msra.mxu0 %v2527
  %2651 = vmatprep.subr.bf16.mxu0 %v2461
  %2652 = vmatpush2.bf16.msra.mxu0 %v2460
  %2653 = vmatprep.subr.bf16.mxu0 %v2459
  %2654 = vmatpush2.bf16.msra.mxu0 %v2458
  %2655 = vmatprep.subr.bf16.mxu0 %v2457
  %2656 = vmatpush2.bf16.msra.mxu0 %v2456
  %2657 = vmatprep.subr.bf16.mxu0 %v2455
  %2658 = vmatpush2.bf16.msra.mxu0 %v2454
  %2659 = vmatprep.subr.bf16.mxu0 %v2453
  %2660 = vmatpush2.bf16.msra.mxu0 %v2452
  %2661 = vmatprep.subr.bf16.mxu0 %v2451
  %2662 = vmatpush2.bf16.msra.mxu0 %v2450
  %2663 = vmatprep.subr.bf16.mxu0 %v2449
  %2664 = vmatpush2.bf16.msra.mxu0 %v2448
  %2665 = vmatprep.mubr.bf16.mxu0 %v1914
  %2666 = vmatmul.mubr.bf16.gmra.mxu0 %v1504
  %v2667 = vpop.f32.mrf.mxu0
  %v2668 = vadd.f32 %v2567, %v2667
  %v2669 = vpop.f32.mrf.mxu0
  %v2670 = vadd.f32 %v2569, %v2669
  %v2671 = vpop.f32.mrf.mxu0
  %v2672 = vadd.f32 %v2571, %v2671
  %v2673 = vpop.f32.mrf.mxu0
  %v2674 = vadd.f32 %v2573, %v2673
  %2675 = vmatprep.mubr.bf16.mxu0 %v1917
  %2676 = vmatmul.mubr.bf16.gmra.mxu0 %v1508
  %v2677 = vpop.f32.mrf.mxu0
  %v2678 = vadd.f32 %v2577, %v2677
  %v2679 = vpop.f32.mrf.mxu0
  %v2680 = vadd.f32 %v2579, %v2679
  %v2681 = vpop.f32.mrf.mxu0
  %v2682 = vadd.f32 %v2581, %v2681
  %v2683 = vpop.f32.mrf.mxu0
  %v2684 = vadd.f32 %v2583, %v2683
  %2685 = vmatprep.mubr.bf16.mxu0 %v1920
  %2686 = vmatmul.mubr.bf16.gmra.mxu0 %v1512
  %v2687 = vpop.f32.mrf.mxu0
  %v2688 = vadd.f32 %v2587, %v2687
  %v2689 = vpop.f32.mrf.mxu0
  %v2690 = vadd.f32 %v2589, %v2689
  %v2691 = vpop.f32.mrf.mxu0
  %v2692 = vadd.f32 %v2591, %v2691
  %v2693 = vpop.f32.mrf.mxu0
  %v2694 = vadd.f32 %v2593, %v2693
  %2695 = vmatprep.mubr.bf16.mxu0 %v1923
  %2696 = vmatmul.mubr.bf16.gmra.mxu0 %v1516
  %v2697 = vpop.f32.mrf.mxu0
  %v2698 = vadd.f32 %v2597, %v2697
  %v2699 = vpop.f32.mrf.mxu0
  %v2700 = vadd.f32 %v2599, %v2699
  %v2701 = vpop.f32.mrf.mxu0
  %v2702 = vadd.f32 %v2601, %v2701
  %v2703 = vpop.f32.mrf.mxu0
  %v2704 = vadd.f32 %v2603, %v2703
  %2705 = vmatprep.mubr.bf16.mxu0 %v1926
  %2706 = vmatmul.mubr.bf16.gmra.mxu0 %v1520
  %v2707 = vpop.f32.mrf.mxu0
  %v2708 = vadd.f32 %v2607, %v2707
  %v2709 = vpop.f32.mrf.mxu0
  %v2710 = vadd.f32 %v2609, %v2709
  %v2711 = vpop.f32.mrf.mxu0
  %v2712 = vadd.f32 %v2611, %v2711
  %v2713 = vpop.f32.mrf.mxu0
  %v2714 = vadd.f32 %v2613, %v2713
  %2715 = vmatprep.mubr.bf16.mxu0 %v1929
  %2716 = vmatmul.mubr.bf16.gmra.mxu0 %v1524
  %v2717 = vpop.f32.mrf.mxu0
  %v2718 = vadd.f32 %v2617, %v2717
  %v2719 = vpop.f32.mrf.mxu0
  %v2720 = vadd.f32 %v2619, %v2719
  %v2721 = vpop.f32.mrf.mxu0
  %v2722 = vadd.f32 %v2621, %v2721
  %v2723 = vpop.f32.mrf.mxu0
  %v2724 = vadd.f32 %v2623, %v2723
  %2725 = vmatprep.mubr.bf16.mxu0 %v1932
  %2726 = vmatmul.mubr.bf16.gmra.mxu0 %v1528
  %v2727 = vpop.f32.mrf.mxu0
  %v2728 = vadd.f32 %v2627, %v2727
  %v2729 = vpop.f32.mrf.mxu0
  %v2730 = vadd.f32 %v2629, %v2729
  %v2731 = vpop.f32.mrf.mxu0
  %v2732 = vpop.f32.mrf.mxu0
  %2733 = vdwg.mxu0
  %v2734 = vmax.f32 %v2077, %v2668
  %v2735 = vmax.f32 %v2079, %v2670
  %v2736 = vmax.f32 %v2081, %v2672
  %v2737 = vmax.f32 %v2083, %v2674
  %v2738 = vmax.f32 %v2087, %v2678
  %v2739 = vmax.f32 %v2089, %v2680
  %v2740 = vmax.f32 %v2091, %v2682
  %v2741 = vmax.f32 %v2093, %v2684
  %v2742 = vmax.f32 %v2097, %v2688
  %v2743 = vmax.f32 %v2099, %v2690
  %v2744 = vmax.f32 %v2101, %v2692
  %v2745 = vmax.f32 %v2103, %v2694
  %v2746 = vmax.f32 %v2107, %v2698
  %v2747 = vmax.f32 %v2109, %v2700
  %v2748 = vmax.f32 %v2111, %v2702
  %v2749 = vmax.f32 %v2113, %v2704
  %v2750 = vmax.f32 %v2117, %v2708
  %v2751 = vmax.f32 %v2119, %v2710
  %v2752 = vmax.f32 %v2121, %v2712
  %v2753 = vmax.f32 %v2123, %v2714
  %v2754 = vmax.f32 %v2127, %v2718
  %v2755 = vmax.f32 %v2129, %v2720
  %v2756 = vmax.f32 %v2131, %v2722
  %v2757 = vmax.f32 %v2133, %v2724
  %v2758 = vmax.f32 %v2137, %v2728
  %v2759 = vmax.f32 %v2139, %v2730
  %v2760 = vpack.c.bf16 %v2736, %v2734
  %v2761 = vpack.c.bf16 %v2737, %v2735
  %v2762 = vpack.c.bf16 %v2740, %v2738
  %v2763 = vpack.c.bf16 %v2741, %v2739
  %v2764 = vpack.c.bf16 %v2744, %v2742
  %v2765 = vpack.c.bf16 %v2745, %v2743
  %v2766 = vpack.c.bf16 %v2748, %v2746
  %v2767 = vpack.c.bf16 %v2749, %v2747
  %v2768 = vpack.c.bf16 %v2752, %v2750
  %v2769 = vpack.c.bf16 %v2753, %v2751
  %v2770 = vpack.c.bf16 %v2756, %v2754
  %v2771 = vpack.c.bf16 %v2757, %v2755
  %v2772 = vpack.c.bf16 %v2758, %v2758
  %v2773 = vpack.c.bf16 %v2759, %v2759
  %vm2788 = vcmask 1043456
  %v2789 = vrot.slane %v2760, 4
  %v2790 = vrot.slane %v2761, 4
  %v2791 = vrot.slane %v2762, 4
  %v2792 = vsel %vm2788, %v2789, %v2791
  %v2793 = vrot.slane %v2763, 4
  %v2794 = vsel %vm2788, %v2790, %v2793
  %v2795 = vrot.slane %v2764, 4
  %v2796 = vsel %vm2788, %v2791, %v2795
  %v2797 = vrot.slane %v2765, 4
  %v2798 = vsel %vm2788, %v2793, %v2797
  %v2799 = vrot.slane %v2766, 4
  %v2800 = vsel %vm2788, %v2795, %v2799
  %v2801 = vrot.slane %v2767, 4
  %v2802 = vsel %vm2788, %v2797, %v2801
  %v2803 = vrot.slane %v2768, 4
  %v2804 = vsel %vm2788, %v2799, %v2803
  %v2805 = vrot.slane %v2769, 4
  %v2806 = vsel %vm2788, %v2801, %v2805
  %v2807 = vrot.slane %v2770, 4
  %v2808 = vsel %vm2788, %v2803, %v2807
  %v2809 = vrot.slane %v2771, 4
  %v2810 = vsel %vm2788, %v2805, %v2809
  %v2811 = vrot.slane %v2772, 4
  %v2812 = vsel %vm2788, %v2807, %v2811
  %v2813 = vrot.slane %v2773, 4
  %v2814 = vsel %vm2788, %v2809, %v2813
  %2815 = vrot.lane.b32.xlu0 %v2789, 127
  %v2816 = vpop.permute.xlu0 %2815
  %2817 = vrot.lane.b32.xlu0 %v2790, 127
  %v2818 = vpop.permute.xlu0 %2817
  %2819 = vrot.lane.b32.xlu0 %v2792, 127
  %v2820 = vpop.permute.xlu0 %2819
  %2821 = vrot.lane.b32.xlu0 %v2794, 127
  %v2822 = vpop.permute.xlu0 %2821
  %2823 = vrot.lane.b32.xlu0 %v2796, 127
  %v2824 = vpop.permute.xlu0 %2823
  %2825 = vrot.lane.b32.xlu0 %v2798, 127
  %v2826 = vpop.permute.xlu0 %2825
  %2827 = vrot.lane.b32.xlu0 %v2800, 127
  %v2828 = vpop.permute.xlu0 %2827
  %2829 = vrot.lane.b32.xlu0 %v2802, 127
  %v2830 = vpop.permute.xlu0 %2829
  %2831 = vrot.lane.b32.xlu0 %v2804, 127
  %v2832 = vpop.permute.xlu0 %2831
  %2833 = vrot.lane.b32.xlu0 %v2806, 127
  %v2834 = vpop.permute.xlu0 %2833
  %2835 = vrot.lane.b32.xlu0 %v2808, 127
  %v2836 = vpop.permute.xlu0 %2835
  %2837 = vrot.lane.b32.xlu0 %v2810, 127
  %v2838 = vpop.permute.xlu0 %2837
  %2839 = vrot.lane.b32.xlu0 %v2812, 127
  %v2840 = vpop.permute.xlu0 %2839
  %2841 = vrot.lane.b32.xlu0 %v2814, 127
  %v2842 = vpop.permute.xlu0 %2841
  %v2843 = vsel %vm124, %v2816, %v2818
  %v2844 = vsel %vm124, %v2820, %v2822
  %v2845 = vsel %vm124, %v2824, %v2826
  %v2846 = vsel %vm124, %v2828, %v2830
  %v2847 = vsel %vm124, %v2832, %v2834
  %v2848 = vsel %vm124, %v2836, %v2838
  %v2849 = vsel %vm124, %v2840, %v2842
  %2862 = vrot.lane.b32.xlu0 %v2760, 126
  %v2863 = vpop.permute.xlu0 %2862
  %2864 = vrot.lane.b32.xlu0 %v2761, 126
  %v2865 = vpop.permute.xlu0 %2864
  %2866 = vrot.lane.b32.xlu0 %v2762, 126
  %v2867 = vpop.permute.xlu0 %2866
  %2868 = vrot.lane.b32.xlu0 %v2763, 126
  %v2869 = vpop.permute.xlu0 %2868
  %2870 = vrot.lane.b32.xlu0 %v2764, 126
  %v2871 = vpop.permute.xlu0 %2870
  %2872 = vrot.lane.b32.xlu0 %v2765, 126
  %v2873 = vpop.permute.xlu0 %2872
  %2874 = vrot.lane.b32.xlu0 %v2766, 126
  %v2875 = vpop.permute.xlu0 %2874
  %2876 = vrot.lane.b32.xlu0 %v2767, 126
  %v2877 = vpop.permute.xlu0 %2876
  %2878 = vrot.lane.b32.xlu0 %v2768, 126
  %v2879 = vpop.permute.xlu0 %2878
  %2880 = vrot.lane.b32.xlu0 %v2769, 126
  %v2881 = vpop.permute.xlu0 %2880
  %2882 = vrot.lane.b32.xlu0 %v2770, 126
  %v2883 = vpop.permute.xlu0 %2882
  %2884 = vrot.lane.b32.xlu0 %v2771, 126
  %v2885 = vpop.permute.xlu0 %2884
  %2886 = vrot.lane.b32.xlu0 %v2772, 126
  %v2887 = vpop.permute.xlu0 %2886
  %2888 = vrot.lane.b32.xlu0 %v2773, 126
  %v2889 = vpop.permute.xlu0 %2888
  %v2890 = vsel %vm174, %v2863, %v2865
  %v2891 = vsel %vm174, %v2867, %v2869
  %v2892 = vsel %vm174, %v2871, %v2873
  %v2893 = vsel %vm174, %v2875, %v2877
  %v2894 = vsel %vm174, %v2879, %v2881
  %v2895 = vsel %vm174, %v2883, %v2885
  %v2896 = vsel %vm174, %v2887, %v2889
  %v2911 = vsel %vm205, %v2772, %v2843
  %v2915 = vsel %vm205, %v2773, %v2818
  %v2918 = vsel %vm205, %v2896, 1065369472
  %v2920 = vsel %vm205, %v2889, 1065369472
  %v2921 = vld [vmem:[%s2] sm:$0xff]
  %v2922 = vld [vmem:[%s2 + $0x8] sm:$0xf]
  %v2923 = vld [vmem:[%s2 + $0xc] sm:$0xff]
  %v2924 = vld [vmem:[%s2 + $0x14] sm:$0xf]
  %v2925 = vld [vmem:[%s2 + $0x18] sm:$0xff]
  %v2926 = vld [vmem:[%s2 + $0x20] sm:$0xf]
  %v2927 = vld [vmem:[%s2 + $0x24] sm:$0xff]
  %v2928 = vld [vmem:[%s2 + $0x2c] sm:$0xf]
  %v2929 = vld [vmem:[%s2 + $0x30] sm:$0xff]
  %v2930 = vld [vmem:[%s2 + $0x38] sm:$0xf]
  %v2931 = vld [vmem:[%s2 + $0x3c] sm:$0xff]
  %v2932 = vld [vmem:[%s2 + $0x44] sm:$0xf]
  %v2933 = vld [vmem:[%s2 + $0x48] sm:$0xff]
  %v2934 = vld [vmem:[%s2 + $0x50] sm:$0xf]
  %v2935 = vld [vmem:[%s2 + $0x54] sm:$0xff]
  %v2936 = vld [vmem:[%s2 + $0x5c] sm:$0xf]
  %v2937 = vld [vmem:[%s2 + $0x60] sm:$0xff]
  %v2938 = vld [vmem:[%s2 + $0x68] sm:$0xf]
  %v2939 = vld [vmem:[%s2 + $0x6c] sm:$0xff]
  %v2940 = vld [vmem:[%s2 + $0x74] sm:$0xf]
  %v2941 = vld [vmem:[%s2 + $0x78] sm:$0xff]
  %v2942 = vld [vmem:[%s2 + $0x80] sm:$0xf]
  %v2943 = vld [vmem:[%s2 + $0x84] sm:$0xff]
  %v2944 = vld [vmem:[%s2 + $0x8c] sm:$0xf]
  %v2945 = vld [vmem:[%s2 + $0x90] sm:$0xff]
  %v2946 = vld [vmem:[%s2 + $0x98] sm:$0xf]
  %v2947 = vld [vmem:[%s2 + $0x9c] sm:$0xff]
  %v2948 = vld [vmem:[%s2 + $0xa4] sm:$0xf]
  %v2949 = vld [vmem:[%s2 + $0xa8] sm:$0xff]
  %v2950 = vld [vmem:[%s2 + $0xb0] sm:$0xf]
  %v2951 = vld [vmem:[%s2 + $0xb4] sm:$0xff]
  %v2952 = vld [vmem:[%s2 + $0xbc] sm:$0xf]
  %v2953 = vld [vmem:[%s2 + $0xc0] sm:$0xff]
  %v2954 = vld [vmem:[%s2 + $0xc8] sm:$0xf]
  %v2955 = vld [vmem:[%s2 + $0xcc] sm:$0xff]
  %v2956 = vld [vmem:[%s2 + $0xd4] sm:$0xf]
  %v2957 = vld [vmem:[%s2 + $0xd8] sm:$0xff]
  %v2958 = vld [vmem:[%s2 + $0xe0] sm:$0xf]
  %v2959 = vld [vmem:[%s2 + $0xe4] sm:$0xff]
  %v2960 = vld [vmem:[%s2 + $0xec] sm:$0xf]
  %v2961 = vld [vmem:[%s2 + $0xf0] sm:$0xff]
  %v2962 = vld [vmem:[%s2 + $0xf8] sm:$0xf]
  %v2963 = vld [vmem:[%s2 + $0xfc] sm:$0xff]
  %v2964 = vld [vmem:[%s2 + $0x104] sm:$0xf]
  %v3009 = vunpack.c.l.b16 %v2921
  %v3010 = vunpack.c.h.b16 %v2921
  %v3011 = vunpack.c.l.b16 %v2922
  %v3012 = vunpack.c.l.b16 %v2923
  %v3013 = vunpack.c.h.b16 %v2923
  %v3014 = vunpack.c.l.b16 %v2924
  %v3015 = vunpack.c.l.b16 %v2925
  %v3016 = vunpack.c.h.b16 %v2925
  %v3017 = vunpack.c.l.b16 %v2926
  %v3018 = vunpack.c.l.b16 %v2927
  %v3019 = vunpack.c.h.b16 %v2927
  %v3020 = vunpack.c.l.b16 %v2928
  %v3021 = vunpack.c.l.b16 %v2929
  %v3022 = vunpack.c.h.b16 %v2929
  %v3023 = vunpack.c.l.b16 %v2930
  %v3024 = vunpack.c.l.b16 %v2931
  %v3025 = vunpack.c.h.b16 %v2931
  %v3026 = vunpack.c.l.b16 %v2932
  %v3027 = vunpack.c.l.b16 %v2933
  %v3028 = vunpack.c.h.b16 %v2933
  %v3029 = vunpack.c.l.b16 %v2934
  %v3030 = vunpack.c.l.b16 %v2935
  %v3031 = vunpack.c.h.b16 %v2935
  %v3032 = vunpack.c.l.b16 %v2936
  %v3033 = vunpack.c.l.b16 %v2937
  %v3034 = vunpack.c.h.b16 %v2937
  %v3035 = vunpack.c.l.b16 %v2938
  %v3036 = vunpack.c.l.b16 %v2939
  %v3037 = vunpack.c.h.b16 %v2939
  %v3038 = vunpack.c.l.b16 %v2940
  %v3039 = vunpack.c.l.b16 %v2941
  %v3040 = vunpack.c.h.b16 %v2941
  %v3041 = vunpack.c.l.b16 %v2942
  %v3042 = vunpack.c.l.b16 %v2943
  %v3043 = vunpack.c.h.b16 %v2943
  %v3044 = vunpack.c.l.b16 %v2944
  %v3045 = vunpack.c.l.b16 %v2945
  %v3046 = vunpack.c.h.b16 %v2945
  %v3047 = vunpack.c.l.b16 %v2946
  %v3048 = vunpack.c.l.b16 %v2947
  %v3049 = vunpack.c.h.b16 %v2947
  %v3050 = vunpack.c.l.b16 %v2948
  %v3051 = vunpack.c.l.b16 %v2949
  %v3052 = vunpack.c.h.b16 %v2949
  %v3053 = vunpack.c.l.b16 %v2950
  %v3054 = vunpack.c.l.b16 %v2951
  %v3055 = vunpack.c.h.b16 %v2951
  %v3056 = vunpack.c.l.b16 %v2952
  %v3057 = vunpack.c.l.b16 %v2953
  %v3058 = vunpack.c.h.b16 %v2953
  %v3059 = vunpack.c.l.b16 %v2954
  %v3060 = vunpack.c.l.b16 %v2955
  %v3061 = vunpack.c.h.b16 %v2955
  %v3062 = vunpack.c.l.b16 %v2956
  %v3063 = vunpack.c.l.b16 %v2957
  %v3064 = vunpack.c.h.b16 %v2957
  %v3065 = vunpack.c.l.b16 %v2958
  %v3066 = vunpack.c.l.b16 %v2959
  %v3067 = vunpack.c.h.b16 %v2959
  %v3068 = vunpack.c.l.b16 %v2960
  %v3069 = vunpack.c.l.b16 %v2961
  %v3070 = vunpack.c.h.b16 %v2961
  %v3071 = vunpack.c.l.b16 %v2962
  %v3072 = vunpack.c.l.b16 %v2963
  %v3073 = vunpack.c.h.b16 %v2963
  %v3074 = vunpack.c.l.b16 %v2964
  %v3075 = vpack.c.b16 %v3012, %v3009
  %v3076 = vpack.c.b16 %v3013, %v3010
  %v3077 = vpack.c.b16 %v3014, %v3011
  %v3078 = vpack.c.b16 %v3018, %v3015
  %v3079 = vpack.c.b16 %v3019, %v3016
  %v3080 = vpack.c.b16 %v3020, %v3017
  %v3081 = vpack.c.b16 %v3024, %v3021
  %v3082 = vpack.c.b16 %v3025, %v3022
  %v3083 = vpack.c.b16 %v3026, %v3023
  %v3084 = vpack.c.b16 %v3030, %v3027
  %v3085 = vpack.c.b16 %v3031, %v3028
  %v3086 = vpack.c.b16 %v3032, %v3029
  %v3087 = vpack.c.b16 %v3036, %v3033
  %v3088 = vpack.c.b16 %v3037, %v3034
  %v3089 = vpack.c.b16 %v3038, %v3035
  %v3090 = vpack.c.b16 %v3042, %v3039
  %v3091 = vpack.c.b16 %v3043, %v3040
  %v3092 = vpack.c.b16 %v3044, %v3041
  %v3093 = vpack.c.b16 %v3048, %v3045
  %v3094 = vpack.c.b16 %v3049, %v3046
  %v3095 = vpack.c.b16 %v3050, %v3047
  %v3096 = vpack.c.b16 %v3054, %v3051
  %v3097 = vpack.c.b16 %v3055, %v3052
  %v3098 = vpack.c.b16 %v3056, %v3053
  %v3099 = vpack.c.b16 %v3060, %v3057
  %v3100 = vpack.c.b16 %v3061, %v3058
  %v3101 = vpack.c.b16 %v3062, %v3059
  %v3102 = vpack.c.b16 %v3066, %v3063
  %v3103 = vpack.c.b16 %v3067, %v3064
  %v3104 = vpack.c.b16 %v3068, %v3065
  %v3105 = vpack.c.b16 %v3072, %v3069
  %v3106 = vpack.c.b16 %v3073, %v3070
  %v3107 = vpack.c.b16 %v3074, %v3071
  %vm3130 = vcmask 465920
  %v3132 = vsel %vm3130, %v3077, 0
  %v3135 = vsel %vm3130, %v3080, 0
  %v3138 = vsel %vm3130, %v3083, 0
  %v3141 = vsel %vm3130, %v3086, 0
  %v3144 = vsel %vm3130, %v3089, 0
  %v3147 = vsel %vm3130, %v3092, 0
  %v3150 = vsel %vm3130, %v3095, 0
  %v3153 = vsel %vm3130, %v3098, 0
  %v3156 = vsel %vm3130, %v3101, 0
  %v3159 = vsel %vm3130, %v3104, 0
  %v3162 = vsel %vm3130, %v3107, 0
  %vm3164 = vcmask 1044480
  %v3165 = vsel %vm205, 4294967295, 65535
  %v3166 = vsel %vm3164, %v3165, 0
  %v3167 = vand.u32 %v2918, %v3166
  %v3169 = vand.u32 %v2920, %v3166
  %3171 = vmatprep.subr.bf16.mxu0 %v2822
  %3172 = vmatpush1.bf16.msra.mxu0 %v2844
  %3173 = vmatprep.subr.bf16.mxu0 %v2915
  %3174 = vmatpush1.bf16.msra.mxu0 %v2911
  %3175 = vmatprep.subr.bf16.mxu0 %v2771
  %3176 = vmatpush1.bf16.msra.mxu0 %v2770
  %3177 = vmatprep.subr.bf16.mxu0 %v2769
  %3178 = vmatpush1.bf16.msra.mxu0 %v2768
  %3179 = vmatprep.subr.bf16.mxu0 %v2767
  %3180 = vmatpush1.bf16.msra.mxu0 %v2766
  %3181 = vmatprep.subr.bf16.mxu0 %v2765
  %3182 = vmatpush1.bf16.msra.mxu0 %v2764
  %3183 = vmatprep.subr.bf16.mxu0 %v2763
  %3184 = vmatpush1.bf16.msra.mxu0 %v2762
  %3185 = vmatprep.subr.bf16.mxu0 %v2761
  %3186 = vmatpush1.bf16.msra.mxu0 %v2760
  %3187 = vmatprep.subr.bf16.mxu0 %v2873
  %3188 = vmatpush2.bf16.msra.mxu0 %v2892
  %3189 = vmatprep.subr.bf16.mxu0 %v2869
  %3190 = vmatpush2.bf16.msra.mxu0 %v2891
  %3191 = vmatprep.subr.bf16.mxu0 %v2865
  %3192 = vmatpush2.bf16.msra.mxu0 %v2890
  %3193 = vmatprep.subr.bf16.mxu0 %v2842
  %3194 = vmatpush2.bf16.msra.mxu0 %v2849
  %3195 = vmatprep.subr.bf16.mxu0 %v2838
  %3196 = vmatpush2.bf16.msra.mxu0 %v2848
  %3197 = vmatprep.subr.bf16.mxu0 %v2834
  %3198 = vmatpush2.bf16.msra.mxu0 %v2847
  %3199 = vmatprep.subr.bf16.mxu0 %v2830
  %3200 = vmatpush2.bf16.msra.mxu0 %v2846
  %3201 = vmatprep.subr.bf16.mxu0 %v2826
  %3202 = vmatpush2.bf16.msra.mxu0 %v2845
  %3203 = vmatprep.mubr.bf16.mxu0 %v3076
  %3204 = vmatmul.mubr.bf16.gmra.mxu0 %v3075
  %v3205 = vpop.f32.mrf.mxu0
  %v3206 = vadd.f32 0.0, %v3205
  %v3207 = vpop.f32.mrf.mxu0
  %v3208 = vadd.f32 0.0, %v3207
  %v3209 = vpop.f32.mrf.mxu0
  %v3210 = vadd.f32 0.0, %v3209
  %v3211 = vpop.f32.mrf.mxu0
  %v3212 = vadd.f32 0.0, %v3211
  %3213 = vmatprep.mubr.bf16.mxu0 %v3079
  %3214 = vmatmul.mubr.bf16.gmra.mxu0 %v3078
  %v3215 = vpop.f32.mrf.mxu0
  %v3216 = vadd.f32 0.0, %v3215
  %v3217 = vpop.f32.mrf.mxu0
  %v3218 = vadd.f32 0.0, %v3217
  %v3219 = vpop.f32.mrf.mxu0
  %v3220 = vadd.f32 0.0, %v3219
  %v3221 = vpop.f32.mrf.mxu0
  %v3222 = vadd.f32 0.0, %v3221
  %3223 = vmatprep.mubr.bf16.mxu0 %v3082
  %3224 = vmatmul.mubr.bf16.gmra.mxu0 %v3081
  %v3225 = vpop.f32.mrf.mxu0
  %v3226 = vadd.f32 0.0, %v3225
  %v3227 = vpop.f32.mrf.mxu0
  %v3228 = vadd.f32 0.0, %v3227
  %v3229 = vpop.f32.mrf.mxu0
  %v3230 = vadd.f32 0.0, %v3229
  %v3231 = vpop.f32.mrf.mxu0
  %v3232 = vadd.f32 0.0, %v3231
  %3233 = vmatprep.mubr.bf16.mxu0 %v3085
  %3234 = vmatmul.mubr.bf16.gmra.mxu0 %v3084
  %v3235 = vpop.f32.mrf.mxu0
  %v3236 = vadd.f32 0.0, %v3235
  %v3237 = vpop.f32.mrf.mxu0
  %v3238 = vadd.f32 0.0, %v3237
  %v3239 = vpop.f32.mrf.mxu0
  %v3240 = vadd.f32 0.0, %v3239
  %v3241 = vpop.f32.mrf.mxu0
  %v3242 = vadd.f32 0.0, %v3241
  %3243 = vmatprep.mubr.bf16.mxu0 %v3088
  %3244 = vmatmul.mubr.bf16.gmra.mxu0 %v3087
  %v3245 = vpop.f32.mrf.mxu0
  %v3246 = vadd.f32 0.0, %v3245
  %v3247 = vpop.f32.mrf.mxu0
  %v3248 = vadd.f32 0.0, %v3247
  %v3249 = vpop.f32.mrf.mxu0
  %v3250 = vadd.f32 0.0, %v3249
  %v3251 = vpop.f32.mrf.mxu0
  %v3252 = vadd.f32 0.0, %v3251
  %3253 = vmatprep.mubr.bf16.mxu0 %v3091
  %3254 = vmatmul.mubr.bf16.gmra.mxu0 %v3090
  %v3255 = vpop.f32.mrf.mxu0
  %v3256 = vadd.f32 0.0, %v3255
  %v3257 = vpop.f32.mrf.mxu0
  %v3258 = vadd.f32 0.0, %v3257
  %v3259 = vpop.f32.mrf.mxu0
  %v3260 = vadd.f32 0.0, %v3259
  %v3261 = vpop.f32.mrf.mxu0
  %v3262 = vadd.f32 0.0, %v3261
  %3263 = vmatprep.mubr.bf16.mxu0 %v3094
  %3264 = vmatmul.mubr.bf16.gmra.mxu0 %v3093
  %v3265 = vpop.f32.mrf.mxu0
  %v3266 = vadd.f32 0.0, %v3265
  %v3267 = vpop.f32.mrf.mxu0
  %v3268 = vadd.f32 0.0, %v3267
  %v3269 = vpop.f32.mrf.mxu0
  %v3270 = vadd.f32 0.0, %v3269
  %v3271 = vpop.f32.mrf.mxu0
  %v3272 = vadd.f32 0.0, %v3271
  %3273 = vmatprep.mubr.bf16.mxu0 %v3097
  %3274 = vmatmul.mubr.bf16.gmra.mxu0 %v3096
  %v3275 = vpop.f32.mrf.mxu0
  %v3276 = vadd.f32 0.0, %v3275
  %v3277 = vpop.f32.mrf.mxu0
  %v3278 = vadd.f32 0.0, %v3277
  %v3279 = vpop.f32.mrf.mxu0
  %v3280 = vadd.f32 0.0, %v3279
  %v3281 = vpop.f32.mrf.mxu0
  %v3282 = vadd.f32 0.0, %v3281
  %3283 = vmatprep.mubr.bf16.mxu0 %v3100
  %3284 = vmatmul.mubr.bf16.gmra.mxu0 %v3099
  %v3285 = vpop.f32.mrf.mxu0
  %v3286 = vadd.f32 0.0, %v3285
  %v3287 = vpop.f32.mrf.mxu0
  %v3288 = vadd.f32 0.0, %v3287
  %v3289 = vpop.f32.mrf.mxu0
  %v3290 = vadd.f32 0.0, %v3289
  %v3291 = vpop.f32.mrf.mxu0
  %v3292 = vadd.f32 0.0, %v3291
  %3293 = vmatprep.mubr.bf16.mxu0 %v3103
  %3294 = vmatmul.mubr.bf16.gmra.mxu0 %v3102
  %v3295 = vpop.f32.mrf.mxu0
  %v3296 = vadd.f32 0.0, %v3295
  %v3297 = vpop.f32.mrf.mxu0
  %v3298 = vadd.f32 0.0, %v3297
  %v3299 = vpop.f32.mrf.mxu0
  %v3300 = vadd.f32 0.0, %v3299
  %v3301 = vpop.f32.mrf.mxu0
  %v3302 = vadd.f32 0.0, %v3301
  %3303 = vmatprep.mubr.bf16.mxu0 %v3106
  %3304 = vmatmul.mubr.bf16.gmra.mxu0 %v3105
  %v3305 = vpop.f32.mrf.mxu0
  %v3306 = vadd.f32 0.0, %v3305
  %v3307 = vpop.f32.mrf.mxu0
  %v3308 = vadd.f32 0.0, %v3307
  %v3309 = vpop.f32.mrf.mxu0
  %v3310 = vadd.f32 0.0, %v3309
  %v3311 = vpop.f32.mrf.mxu0
  %v3312 = vadd.f32 0.0, %v3311
  %3313 = vdwg.mxu0
  %3314 = vmatprep.subr.bf16.mxu0 0
  %3315 = vmatpush1.bf16.msra.mxu0 0
  %3316 = vmatprep.subr.bf16.mxu0 0
  %3317 = vmatpush1.bf16.msra.mxu0 0
  %3318 = vmatprep.subr.bf16.mxu0 0
  %3319 = vmatpush1.bf16.msra.mxu0 0
  %3320 = vmatprep.subr.bf16.mxu0 0
  %3321 = vmatpush1.bf16.msra.mxu0 0
  %3322 = vmatprep.subr.bf16.mxu0 %v3169
  %3323 = vmatpush1.bf16.msra.mxu0 %v3167
  %3324 = vmatprep.subr.bf16.mxu0 %v2885
  %3325 = vmatpush1.bf16.msra.mxu0 %v2895
  %3326 = vmatprep.subr.bf16.mxu0 %v2881
  %3327 = vmatpush1.bf16.msra.mxu0 %v2894
  %3328 = vmatprep.subr.bf16.mxu0 %v2877
  %3329 = vmatpush1.bf16.msra.mxu0 %v2893
  %3330 = vmatprep.subr.bf16.mxu0 0
  %3331 = vmatpush2.bf16.msra.mxu0 0
  %3332 = vmatprep.subr.bf16.mxu0 0
  %3333 = vmatpush2.bf16.msra.mxu0 0
  %3334 = vmatprep.subr.bf16.mxu0 0
  %3335 = vmatpush2.bf16.msra.mxu0 0
  %3336 = vmatprep.subr.bf16.mxu0 0
  %3337 = vmatpush2.bf16.msra.mxu0 0
  %3338 = vmatprep.subr.bf16.mxu0 0
  %3339 = vmatpush2.bf16.msra.mxu0 0
  %3340 = vmatprep.subr.bf16.mxu0 0
  %3341 = vmatpush2.bf16.msra.mxu0 0
  %3342 = vmatprep.subr.bf16.mxu0 0
  %3343 = vmatpush2.bf16.msra.mxu0 0
  %3344 = vmatprep.subr.bf16.mxu0 0
  %3345 = vmatpush2.bf16.msra.mxu0 0
  %3346 = vmatprep.mubr.bf16.mxu0 0
  %3347 = vmatmul.mubr.bf16.gmra.mxu0 %v3132
  %v3348 = vpop.f32.mrf.mxu0
  %v3349 = vadd.f32 %v3206, %v3348
  %v3350 = vpop.f32.mrf.mxu0
  %v3351 = vadd.f32 %v3208, %v3350
  %v3352 = vpop.f32.mrf.mxu0
  %v3353 = vadd.f32 %v3210, %v3352
  %v3354 = vpop.f32.mrf.mxu0
  %v3355 = vadd.f32 %v3212, %v3354
  %3356 = vmatprep.mubr.bf16.mxu0 0
  %3357 = vmatmul.mubr.bf16.gmra.mxu0 %v3135
  %v3358 = vpop.f32.mrf.mxu0
  %v3359 = vadd.f32 %v3216, %v3358
  %v3360 = vpop.f32.mrf.mxu0
  %v3361 = vadd.f32 %v3218, %v3360
  %v3362 = vpop.f32.mrf.mxu0
  %v3363 = vadd.f32 %v3220, %v3362
  %v3364 = vpop.f32.mrf.mxu0
  %v3365 = vadd.f32 %v3222, %v3364
  %3366 = vmatprep.mubr.bf16.mxu0 0
  %3367 = vmatmul.mubr.bf16.gmra.mxu0 %v3138
  %v3368 = vpop.f32.mrf.mxu0
  %v3369 = vadd.f32 %v3226, %v3368
  %v3370 = vpop.f32.mrf.mxu0
  %v3371 = vadd.f32 %v3228, %v3370
  %v3372 = vpop.f32.mrf.mxu0
  %v3373 = vadd.f32 %v3230, %v3372
  %v3374 = vpop.f32.mrf.mxu0
  %v3375 = vadd.f32 %v3232, %v3374
  %3376 = vmatprep.mubr.bf16.mxu0 0
  %3377 = vmatmul.mubr.bf16.gmra.mxu0 %v3141
  %v3378 = vpop.f32.mrf.mxu0
  %v3379 = vadd.f32 %v3236, %v3378
  %v3380 = vpop.f32.mrf.mxu0
  %v3381 = vadd.f32 %v3238, %v3380
  %v3382 = vpop.f32.mrf.mxu0
  %v3383 = vadd.f32 %v3240, %v3382
  %v3384 = vpop.f32.mrf.mxu0
  %v3385 = vadd.f32 %v3242, %v3384
  %3386 = vmatprep.mubr.bf16.mxu0 0
  %3387 = vmatmul.mubr.bf16.gmra.mxu0 %v3144
  %v3388 = vpop.f32.mrf.mxu0
  %v3389 = vadd.f32 %v3246, %v3388
  %v3390 = vpop.f32.mrf.mxu0
  %v3391 = vadd.f32 %v3248, %v3390
  %v3392 = vpop.f32.mrf.mxu0
  %v3393 = vadd.f32 %v3250, %v3392
  %v3394 = vpop.f32.mrf.mxu0
  %v3395 = vadd.f32 %v3252, %v3394
  %3396 = vmatprep.mubr.bf16.mxu0 0
  %3397 = vmatmul.mubr.bf16.gmra.mxu0 %v3147
  %v3398 = vpop.f32.mrf.mxu0
  %v3399 = vadd.f32 %v3256, %v3398
  %v3400 = vpop.f32.mrf.mxu0
  %v3401 = vadd.f32 %v3258, %v3400
  %v3402 = vpop.f32.mrf.mxu0
  %v3403 = vadd.f32 %v3260, %v3402
  %v3404 = vpop.f32.mrf.mxu0
  %v3405 = vadd.f32 %v3262, %v3404
  %3406 = vmatprep.mubr.bf16.mxu0 0
  %3407 = vmatmul.mubr.bf16.gmra.mxu0 %v3150
  %v3408 = vpop.f32.mrf.mxu0
  %v3409 = vadd.f32 %v3266, %v3408
  %v3410 = vpop.f32.mrf.mxu0
  %v3411 = vadd.f32 %v3268, %v3410
  %v3412 = vpop.f32.mrf.mxu0
  %v3413 = vadd.f32 %v3270, %v3412
  %v3414 = vpop.f32.mrf.mxu0
  %v3415 = vadd.f32 %v3272, %v3414
  %3416 = vmatprep.mubr.bf16.mxu0 0
  %3417 = vmatmul.mubr.bf16.gmra.mxu0 %v3153
  %v3418 = vpop.f32.mrf.mxu0
  %v3419 = vadd.f32 %v3276, %v3418
  %v3420 = vpop.f32.mrf.mxu0
  %v3421 = vadd.f32 %v3278, %v3420
  %v3422 = vpop.f32.mrf.mxu0
  %v3423 = vadd.f32 %v3280, %v3422
  %v3424 = vpop.f32.mrf.mxu0
  %v3425 = vadd.f32 %v3282, %v3424
  %3426 = vmatprep.mubr.bf16.mxu0 0
  %3427 = vmatmul.mubr.bf16.gmra.mxu0 %v3156
  %v3428 = vpop.f32.mrf.mxu0
  %v3429 = vadd.f32 %v3286, %v3428
  %v3430 = vpop.f32.mrf.mxu0
  %v3431 = vadd.f32 %v3288, %v3430
  %v3432 = vpop.f32.mrf.mxu0
  %v3433 = vadd.f32 %v3290, %v3432
  %v3434 = vpop.f32.mrf.mxu0
  %v3435 = vadd.f32 %v3292, %v3434
  %3436 = vmatprep.mubr.bf16.mxu0 0
  %3437 = vmatmul.mubr.bf16.gmra.mxu0 %v3159
  %v3438 = vpop.f32.mrf.mxu0
  %v3439 = vadd.f32 %v3296, %v3438
  %v3440 = vpop.f32.mrf.mxu0
  %v3441 = vadd.f32 %v3298, %v3440
  %v3442 = vpop.f32.mrf.mxu0
  %v3443 = vadd.f32 %v3300, %v3442
  %v3444 = vpop.f32.mrf.mxu0
  %v3445 = vadd.f32 %v3302, %v3444
  %3446 = vmatprep.mubr.bf16.mxu0 0
  %3447 = vmatmul.mubr.bf16.gmra.mxu0 %v3162
  %v3448 = vpop.f32.mrf.mxu0
  %v3449 = vadd.f32 %v3306, %v3448
  %v3450 = vpop.f32.mrf.mxu0
  %v3451 = vadd.f32 %v3308, %v3450
  %v3452 = vpop.f32.mrf.mxu0
  %v3453 = vadd.f32 %v3310, %v3452
  %v3454 = vpop.f32.mrf.mxu0
  %v3455 = vadd.f32 %v3312, %v3454
  %3456 = vdwg.mxu0
  %v3457 = vmax.f32 %v3349, 0.0
  %v3458 = vmax.f32 %v3351, 0.0
  %v3459 = vmax.f32 %v3353, 0.0
  %v3460 = vmax.f32 %v3355, 0.0
  %v3461 = vmax.f32 %v3359, 0.0
  %v3462 = vmax.f32 %v3361, 0.0
  %v3463 = vmax.f32 %v3363, 0.0
  %v3464 = vmax.f32 %v3365, 0.0
  %v3465 = vmax.f32 %v3369, 0.0
  %v3466 = vmax.f32 %v3371, 0.0
  %v3467 = vmax.f32 %v3373, 0.0
  %v3468 = vmax.f32 %v3375, 0.0
  %v3469 = vmax.f32 %v3379, 0.0
  %v3470 = vmax.f32 %v3381, 0.0
  %v3471 = vmax.f32 %v3383, 0.0
  %v3472 = vmax.f32 %v3385, 0.0
  %v3473 = vmax.f32 %v3389, 0.0
  %v3474 = vmax.f32 %v3391, 0.0
  %v3475 = vmax.f32 %v3393, 0.0
  %v3476 = vmax.f32 %v3395, 0.0
  %v3477 = vmax.f32 %v3399, 0.0
  %v3478 = vmax.f32 %v3401, 0.0
  %v3479 = vmax.f32 %v3403, 0.0
  %v3480 = vmax.f32 %v3405, 0.0
  %v3481 = vmax.f32 %v3409, 0.0
  %v3482 = vmax.f32 %v3411, 0.0
  %v3483 = vmax.f32 %v3413, 0.0
  %v3484 = vmax.f32 %v3415, 0.0
  %v3485 = vmax.f32 %v3419, 0.0
  %v3486 = vmax.f32 %v3421, 0.0
  %v3487 = vmax.f32 %v3423, 0.0
  %v3488 = vmax.f32 %v3425, 0.0
  %v3489 = vmax.f32 %v3429, 0.0
  %v3490 = vmax.f32 %v3431, 0.0
  %v3491 = vmax.f32 %v3433, 0.0
  %v3492 = vmax.f32 %v3435, 0.0
  %v3493 = vmax.f32 %v3439, 0.0
  %v3494 = vmax.f32 %v3441, 0.0
  %v3495 = vmax.f32 %v3443, 0.0
  %v3496 = vmax.f32 %v3445, 0.0
  %v3497 = vmax.f32 %v3449, 0.0
  %v3498 = vmax.f32 %v3451, 0.0
  %v3499 = vmax.f32 %v3453, 0.0
  %v3500 = vmax.f32 %v3455, 0.0
  %v3501 = vpack.c.bf16 %v3459, %v3457
  %v3502 = vpack.c.bf16 %v3460, %v3458
  %v3503 = vpack.c.bf16 %v3463, %v3461
  %v3504 = vpack.c.bf16 %v3464, %v3462
  %v3505 = vpack.c.bf16 %v3467, %v3465
  %v3506 = vpack.c.bf16 %v3468, %v3466
  %v3507 = vpack.c.bf16 %v3471, %v3469
  %v3508 = vpack.c.bf16 %v3472, %v3470
  %v3509 = vpack.c.bf16 %v3475, %v3473
  %v3510 = vpack.c.bf16 %v3476, %v3474
  %v3511 = vpack.c.bf16 %v3479, %v3477
  %v3512 = vpack.c.bf16 %v3480, %v3478
  %v3513 = vpack.c.bf16 %v3483, %v3481
  %v3514 = vpack.c.bf16 %v3484, %v3482
  %v3515 = vpack.c.bf16 %v3487, %v3485
  %v3516 = vpack.c.bf16 %v3488, %v3486
  %v3517 = vpack.c.bf16 %v3491, %v3489
  %v3518 = vpack.c.bf16 %v3492, %v3490
  %v3519 = vpack.c.bf16 %v3495, %v3493
  %v3520 = vpack.c.bf16 %v3496, %v3494
  %v3521 = vpack.c.bf16 %v3499, %v3497
  %v3522 = vpack.c.bf16 %v3500, %v3498
  %v3523 = vld [vmem:[%s5] sm:$0xff]
  %v3524 = vld [vmem:[%s5 + $0x8] sm:$0xff]
  %v3525 = vld [vmem:[%s5 + $0x10] sm:$0xff]
  %v3526 = vld [vmem:[%s5 + $0x18] sm:$0xff]
  %v3527 = vld [vmem:[%s5 + $0x20] sm:$0xff]
  %v3528 = vld [vmem:[%s5 + $0x28] sm:$0xff]
  %v3529 = vld [vmem:[%s5 + $0x30] sm:$0xff]
  %v3530 = vld [vmem:[%s5 + $0x38] sm:$0xff]
  %v3531 = vld [vmem:[%s5 + $0x40] sm:$0xff]
  %v3532 = vld [vmem:[%s5 + $0x48] sm:$0xff]
  %v3543 = vunpack.c.l.b16 %v3523
  %v3544 = vunpack.c.h.b16 %v3523
  %v3545 = vunpack.c.l.b16 %v3524
  %v3546 = vunpack.c.h.b16 %v3524
  %v3547 = vunpack.c.l.b16 %v3525
  %v3548 = vunpack.c.h.b16 %v3525
  %v3549 = vunpack.c.l.b16 %v3526
  %v3550 = vunpack.c.h.b16 %v3526
  %v3551 = vunpack.c.l.b16 %v3527
  %v3552 = vunpack.c.h.b16 %v3527
  %v3553 = vunpack.c.l.b16 %v3528
  %v3554 = vunpack.c.h.b16 %v3528
  %v3555 = vunpack.c.l.b16 %v3529
  %v3556 = vunpack.c.h.b16 %v3529
  %v3557 = vunpack.c.l.b16 %v3530
  %v3558 = vunpack.c.h.b16 %v3530
  %v3559 = vunpack.c.l.b16 %v3531
  %v3560 = vunpack.c.h.b16 %v3531
  %v3561 = vunpack.c.l.b16 %v3532
  %v3562 = vunpack.c.h.b16 %v3532
  %v3563 = vpack.c.b16 %v3545, %v3543
  %v3564 = vpack.c.b16 %v3546, %v3544
  %v3565 = vpack.c.b16 %v3549, %v3547
  %v3566 = vpack.c.b16 %v3550, %v3548
  %v3567 = vpack.c.b16 %v3553, %v3551
  %v3568 = vpack.c.b16 %v3554, %v3552
  %v3569 = vpack.c.b16 %v3557, %v3555
  %v3570 = vpack.c.b16 %v3558, %v3556
  %v3571 = vpack.c.b16 %v3561, %v3559
  %v3572 = vpack.c.b16 %v3562, %v3560
  %vm3578 = vcmask 392192
  %v3580 = vsel %vm3578, %v3564, 0
  %v3583 = vsel %vm3578, %v3566, 0
  %v3586 = vsel %vm3578, %v3568, 0
  %v3589 = vsel %vm3578, %v3570, 0
  %v3592 = vsel %vm3578, %v3572, 0
  %3594 = vmatprep.subr.bf16.mxu0 %v3516
  %3595 = vmatpush1.bf16.msra.mxu0 %v3515
  %3596 = vmatprep.subr.bf16.mxu0 %v3514
  %3597 = vmatpush1.bf16.msra.mxu0 %v3513
  %3598 = vmatprep.subr.bf16.mxu0 %v3512
  %3599 = vmatpush1.bf16.msra.mxu0 %v3511
  %3600 = vmatprep.subr.bf16.mxu0 %v3510
  %3601 = vmatpush1.bf16.msra.mxu0 %v3509
  %3602 = vmatprep.subr.bf16.mxu0 %v3508
  %3603 = vmatpush1.bf16.msra.mxu0 %v3507
  %3604 = vmatprep.subr.bf16.mxu0 %v3506
  %3605 = vmatpush1.bf16.msra.mxu0 %v3505
  %3606 = vmatprep.subr.bf16.mxu0 %v3504
  %3607 = vmatpush1.bf16.msra.mxu0 %v3503
  %3608 = vmatprep.subr.bf16.mxu0 %v3502
  %3609 = vmatpush1.bf16.msra.mxu0 %v3501
  %3610 = vmatprep.subr.bf16.mxu0 0
  %3611 = vmatpush2.bf16.msra.mxu0 0
  %3612 = vmatprep.subr.bf16.mxu0 0
  %3613 = vmatpush2.bf16.msra.mxu0 0
  %3614 = vmatprep.subr.bf16.mxu0 0
  %3615 = vmatpush2.bf16.msra.mxu0 0
  %3616 = vmatprep.subr.bf16.mxu0 0
  %3617 = vmatpush2.bf16.msra.mxu0 0
  %3618 = vmatprep.subr.bf16.mxu0 0
  %3619 = vmatpush2.bf16.msra.mxu0 0
  %3620 = vmatprep.subr.bf16.mxu0 %v3522
  %3621 = vmatpush2.bf16.msra.mxu0 %v3521
  %3622 = vmatprep.subr.bf16.mxu0 %v3520
  %3623 = vmatpush2.bf16.msra.mxu0 %v3519
  %3624 = vmatprep.subr.bf16.mxu0 %v3518
  %3625 = vmatpush2.bf16.msra.mxu0 %v3517
  %3626 = vmatprep.mubr.bf16.mxu0 %v3580
  %3627 = vmatmul.mubr.bf16.gmra.mxu0 %v3563
  %v3628 = vpop.f32.mrf.mxu0
  %v3629 = vadd.f32 0.0, %v3628
  %v3630 = vpop.f32.mrf.mxu0
  %v3631 = vadd.f32 0.0, %v3630
  %v3632 = vpop.f32.mrf.mxu0
  %v3633 = vadd.f32 0.0, %v3632
  %v3634 = vpop.f32.mrf.mxu0
  %v3635 = vadd.f32 0.0, %v3634
  %3636 = vmatprep.mubr.bf16.mxu0 %v3583
  %3637 = vmatmul.mubr.bf16.gmra.mxu0 %v3565
  %v3638 = vpop.f32.mrf.mxu0
  %v3639 = vadd.f32 0.0, %v3638
  %v3640 = vpop.f32.mrf.mxu0
  %v3641 = vadd.f32 0.0, %v3640
  %v3642 = vpop.f32.mrf.mxu0
  %v3643 = vadd.f32 0.0, %v3642
  %v3644 = vpop.f32.mrf.mxu0
  %v3645 = vadd.f32 0.0, %v3644
  %3646 = vmatprep.mubr.bf16.mxu0 %v3586
  %3647 = vmatmul.mubr.bf16.gmra.mxu0 %v3567
  %v3648 = vpop.f32.mrf.mxu0
  %v3649 = vadd.f32 0.0, %v3648
  %v3650 = vpop.f32.mrf.mxu0
  %v3651 = vadd.f32 0.0, %v3650
  %v3652 = vpop.f32.mrf.mxu0
  %v3653 = vadd.f32 0.0, %v3652
  %v3654 = vpop.f32.mrf.mxu0
  %v3655 = vadd.f32 0.0, %v3654
  %3656 = vmatprep.mubr.bf16.mxu0 %v3589
  %3657 = vmatmul.mubr.bf16.gmra.mxu0 %v3569
  %v3658 = vpop.f32.mrf.mxu0
  %v3659 = vadd.f32 0.0, %v3658
  %v3660 = vpop.f32.mrf.mxu0
  %v3661 = vadd.f32 0.0, %v3660
  %v3662 = vpop.f32.mrf.mxu0
  %v3663 = vadd.f32 0.0, %v3662
  %v3664 = vpop.f32.mrf.mxu0
  %v3665 = vadd.f32 0.0, %v3664
  %3666 = vmatprep.mubr.bf16.mxu0 %v3592
  %3667 = vmatmul.mubr.bf16.gmra.mxu0 %v3571
  %v3668 = vpop.f32.mrf.mxu0
  %v3669 = vadd.f32 0.0, %v3668
  %v3670 = vpop.f32.mrf.mxu0
  %v3671 = vadd.f32 0.0, %v3670
  %v3672 = vpop.f32.mrf.mxu0
  %v3673 = vadd.f32 0.0, %v3672
  %v3674 = vpop.f32.mrf.mxu0
  %v3675 = vadd.f32 0.0, %v3674
  %3676 = vdwg.mxu0
  %s3677 = scalar_lea.vmem %s5, 80
  %v3678 = vld [vmem:[%s3677] sm:$0xff]
  %v3679 = vld [vmem:[%s3677 + $0x8] sm:$0xff]
  %v3680 = vld [vmem:[%s3677 + $0x10] sm:$0xff]
  %v3681 = vld [vmem:[%s3677 + $0x18] sm:$0xff]
  %v3682 = vld [vmem:[%s3677 + $0x20] sm:$0xff]
  %v3683 = vld [vmem:[%s3677 + $0x28] sm:$0xff]
  %v3684 = vld [vmem:[%s3677 + $0x30] sm:$0xff]
  %v3685 = vld [vmem:[%s3677 + $0x38] sm:$0xff]
  %v3686 = vld [vmem:[%s3677 + $0x40] sm:$0xff]
  %v3687 = vld [vmem:[%s3677 + $0x48] sm:$0xff]
  %v3698 = vunpack.c.l.b16 %v3678
  %v3699 = vunpack.c.h.b16 %v3678
  %v3700 = vunpack.c.l.b16 %v3679
  %v3701 = vunpack.c.h.b16 %v3679
  %v3702 = vunpack.c.l.b16 %v3680
  %v3703 = vunpack.c.h.b16 %v3680
  %v3704 = vunpack.c.l.b16 %v3681
  %v3705 = vunpack.c.h.b16 %v3681
  %v3706 = vunpack.c.l.b16 %v3682
  %v3707 = vunpack.c.h.b16 %v3682
  %v3708 = vunpack.c.l.b16 %v3683
  %v3709 = vunpack.c.h.b16 %v3683
  %v3710 = vunpack.c.l.b16 %v3684
  %v3711 = vunpack.c.h.b16 %v3684
  %v3712 = vunpack.c.l.b16 %v3685
  %v3713 = vunpack.c.h.b16 %v3685
  %v3714 = vunpack.c.l.b16 %v3686
  %v3715 = vunpack.c.h.b16 %v3686
  %v3716 = vunpack.c.l.b16 %v3687
  %v3717 = vunpack.c.h.b16 %v3687
  %v3718 = vpack.c.b16 %v3700, %v3698
  %v3719 = vpack.c.b16 %v3701, %v3699
  %v3720 = vpack.c.b16 %v3704, %v3702
  %v3721 = vpack.c.b16 %v3705, %v3703
  %v3722 = vpack.c.b16 %v3708, %v3706
  %v3723 = vpack.c.b16 %v3709, %v3707
  %v3724 = vpack.c.b16 %v3712, %v3710
  %v3725 = vpack.c.b16 %v3713, %v3711
  %v3726 = vpack.c.b16 %v3716, %v3714
  %v3727 = vpack.c.b16 %v3717, %v3715
  %v3734 = vsel %vm3578, %v3719, 0
  %v3737 = vsel %vm3578, %v3721, 0
  %v3740 = vsel %vm3578, %v3723, 0
  %v3743 = vsel %vm3578, %v3725, 0
  %v3746 = vsel %vm3578, %v3727, 0
  %3748 = vmatprep.subr.bf16.mxu0 %v3516
  %3749 = vmatpush1.bf16.msra.mxu0 %v3515
  %3750 = vmatprep.subr.bf16.mxu0 %v3514
  %3751 = vmatpush1.bf16.msra.mxu0 %v3513
  %3752 = vmatprep.subr.bf16.mxu0 %v3512
  %3753 = vmatpush1.bf16.msra.mxu0 %v3511
  %3754 = vmatprep.subr.bf16.mxu0 %v3510
  %3755 = vmatpush1.bf16.msra.mxu0 %v3509
  %3756 = vmatprep.subr.bf16.mxu0 %v3508
  %3757 = vmatpush1.bf16.msra.mxu0 %v3507
  %3758 = vmatprep.subr.bf16.mxu0 %v3506
  %3759 = vmatpush1.bf16.msra.mxu0 %v3505
  %3760 = vmatprep.subr.bf16.mxu0 %v3504
  %3761 = vmatpush1.bf16.msra.mxu0 %v3503
  %3762 = vmatprep.subr.bf16.mxu0 %v3502
  %3763 = vmatpush1.bf16.msra.mxu0 %v3501
  %3764 = vmatprep.subr.bf16.mxu0 0
  %3765 = vmatpush2.bf16.msra.mxu0 0
  %3766 = vmatprep.subr.bf16.mxu0 0
  %3767 = vmatpush2.bf16.msra.mxu0 0
  %3768 = vmatprep.subr.bf16.mxu0 0
  %3769 = vmatpush2.bf16.msra.mxu0 0
  %3770 = vmatprep.subr.bf16.mxu0 0
  %3771 = vmatpush2.bf16.msra.mxu0 0
  %3772 = vmatprep.subr.bf16.mxu0 0
  %3773 = vmatpush2.bf16.msra.mxu0 0
  %3774 = vmatprep.subr.bf16.mxu0 %v3522
  %3775 = vmatpush2.bf16.msra.mxu0 %v3521
  %3776 = vmatprep.subr.bf16.mxu0 %v3520
  %3777 = vmatpush2.bf16.msra.mxu0 %v3519
  %3778 = vmatprep.subr.bf16.mxu0 %v3518
  %3779 = vmatpush2.bf16.msra.mxu0 %v3517
  %3780 = vmatprep.mubr.bf16.mxu0 %v3734
  %3781 = vmatmul.mubr.bf16.gmra.mxu0 %v3718
  %v3782 = vpop.f32.mrf.mxu0
  %v3783 = vadd.f32 0.0, %v3782
  %v3784 = vpop.f32.mrf.mxu0
  %v3785 = vadd.f32 0.0, %v3784
  %v3786 = vpop.f32.mrf.mxu0
  %v3787 = vadd.f32 0.0, %v3786
  %v3788 = vpop.f32.mrf.mxu0
  %v3789 = vadd.f32 0.0, %v3788
  %3790 = vmatprep.mubr.bf16.mxu0 %v3737
  %3791 = vmatmul.mubr.bf16.gmra.mxu0 %v3720
  %v3792 = vpop.f32.mrf.mxu0
  %v3793 = vadd.f32 0.0, %v3792
  %v3794 = vpop.f32.mrf.mxu0
  %v3795 = vadd.f32 0.0, %v3794
  %v3796 = vpop.f32.mrf.mxu0
  %v3797 = vadd.f32 0.0, %v3796
  %v3798 = vpop.f32.mrf.mxu0
  %v3799 = vadd.f32 0.0, %v3798
  %3800 = vmatprep.mubr.bf16.mxu0 %v3740
  %3801 = vmatmul.mubr.bf16.gmra.mxu0 %v3722
  %v3802 = vpop.f32.mrf.mxu0
  %v3803 = vadd.f32 0.0, %v3802
  %v3804 = vpop.f32.mrf.mxu0
  %v3805 = vadd.f32 0.0, %v3804
  %v3806 = vpop.f32.mrf.mxu0
  %v3807 = vadd.f32 0.0, %v3806
  %v3808 = vpop.f32.mrf.mxu0
  %v3809 = vadd.f32 0.0, %v3808
  %3810 = vmatprep.mubr.bf16.mxu0 %v3743
  %3811 = vmatmul.mubr.bf16.gmra.mxu0 %v3724
  %v3812 = vpop.f32.mrf.mxu0
  %v3813 = vadd.f32 0.0, %v3812
  %v3814 = vpop.f32.mrf.mxu0
  %v3815 = vadd.f32 0.0, %v3814
  %v3816 = vpop.f32.mrf.mxu0
  %v3817 = vadd.f32 0.0, %v3816
  %v3818 = vpop.f32.mrf.mxu0
  %v3819 = vadd.f32 0.0, %v3818
  %3820 = vmatprep.mubr.bf16.mxu0 %v3746
  %3821 = vmatmul.mubr.bf16.gmra.mxu0 %v3726
  %v3822 = vpop.f32.mrf.mxu0
  %v3823 = vadd.f32 0.0, %v3822
  %v3824 = vpop.f32.mrf.mxu0
  %v3825 = vadd.f32 0.0, %v3824
  %v3826 = vpop.f32.mrf.mxu0
  %v3827 = vadd.f32 0.0, %v3826
  %v3828 = vpop.f32.mrf.mxu0
  %v3829 = vadd.f32 0.0, %v3828
  %3830 = vdwg.mxu0
  %v3831 = vmax.f32 %v3629, %v3783
  %v3832 = vmax.f32 %v3631, %v3785
  %v3833 = vmax.f32 %v3633, %v3787
  %v3834 = vmax.f32 %v3635, %v3789
  %v3835 = vmax.f32 %v3639, %v3793
  %v3836 = vmax.f32 %v3641, %v3795
  %v3837 = vmax.f32 %v3643, %v3797
  %v3838 = vmax.f32 %v3645, %v3799
  %v3839 = vmax.f32 %v3649, %v3803
  %v3840 = vmax.f32 %v3651, %v3805
  %v3841 = vmax.f32 %v3653, %v3807
  %v3842 = vmax.f32 %v3655, %v3809
  %v3843 = vmax.f32 %v3659, %v3813
  %v3844 = vmax.f32 %v3661, %v3815
  %v3845 = vmax.f32 %v3663, %v3817
  %v3846 = vmax.f32 %v3665, %v3819
  %v3847 = vmax.f32 %v3669, %v3823
  %v3848 = vmax.f32 %v3671, %v3825
  %v3849 = vmax.f32 %v3673, %v3827
  %v3850 = vmax.f32 %v3675, %v3829
  %v3851 = vpack.c.bf16 %v3833, %v3831
  %v3852 = vpack.c.bf16 %v3834, %v3832
  %v3853 = vpack.c.bf16 %v3837, %v3835
  %v3854 = vpack.c.bf16 %v3838, %v3836
  %v3855 = vpack.c.bf16 %v3841, %v3839
  %v3856 = vpack.c.bf16 %v3842, %v3840
  %v3857 = vpack.c.bf16 %v3845, %v3843
  %v3858 = vpack.c.bf16 %v3846, %v3844
  %v3859 = vpack.c.bf16 %v3849, %v3847
  %v3860 = vpack.c.bf16 %v3850, %v3848
  %v3861 = vld [vmem:[%s6] sm:$0xf]
  %v3862 = vld [vmem:[%s6 + $0x4] sm:$0xf]
  %v3863 = vld [vmem:[%s6 + $0x8] sm:$0xf]
  %v3864 = vld [vmem:[%s6 + $0xc] sm:$0xf]
  %v3865 = vld [vmem:[%s6 + $0x10] sm:$0xf]
  %v3866 = vld [vmem:[%s6 + $0x14] sm:$0xf]
  %v3867 = vld [vmem:[%s6 + $0x18] sm:$0xf]
  %v3868 = vld [vmem:[%s6 + $0x1c] sm:$0xf]
  %v3869 = vld [vmem:[%s6 + $0x20] sm:$0xf]
  %v3870 = vld [vmem:[%s6 + $0x24] sm:$0xf]
  %v3871 = vld [vmem:[%s6 + $0x28] sm:$0xf]
  %v3872 = vld [vmem:[%s6 + $0x2c] sm:$0xf]
  %v3873 = vld [vmem:[%s6 + $0x30] sm:$0xf]
  %v3874 = vld [vmem:[%s6 + $0x34] sm:$0xf]
  %v3875 = vld [vmem:[%s6 + $0x38] sm:$0xf]
  %v3876 = vld [vmem:[%s6 + $0x3c] sm:$0xf]
  %v3877 = vld [vmem:[%s6 + $0x40] sm:$0xf]
  %v3878 = vld [vmem:[%s6 + $0x44] sm:$0xf]
  %v3879 = vld [vmem:[%s6 + $0x48] sm:$0xf]
  %v3880 = vld [vmem:[%s6 + $0x4c] sm:$0xf]
  %v3881 = vld [vmem:[%s6 + $0x50] sm:$0xf]
  %v3882 = vld [vmem:[%s6 + $0x54] sm:$0xf]
  %v3883 = vld [vmem:[%s6 + $0x58] sm:$0xf]
  %v3884 = vld [vmem:[%s6 + $0x5c] sm:$0xf]
  %v3885 = vld [vmem:[%s6 + $0x60] sm:$0xf]
  %v3886 = vld [vmem:[%s6 + $0x64] sm:$0xf]
  %v3887 = vld [vmem:[%s6 + $0x68] sm:$0xf]
  %v3888 = vld [vmem:[%s6 + $0x6c] sm:$0xf]
  %v3889 = vld [vmem:[%s6 + $0x70] sm:$0xf]
  %v3890 = vld [vmem:[%s6 + $0x74] sm:$0xf]
  %v3891 = vld [vmem:[%s6 + $0x78] sm:$0xf]
  %v3892 = vld [vmem:[%s6 + $0x7c] sm:$0x7]
  %v3925 = vunpack.c.l.b16 %v3861
  %v3926 = vunpack.c.l.b16 %v3862
  %v3927 = vunpack.c.l.b16 %v3863
  %v3928 = vunpack.c.l.b16 %v3864
  %v3929 = vunpack.c.l.b16 %v3865
  %v3930 = vunpack.c.l.b16 %v3866
  %v3931 = vunpack.c.l.b16 %v3867
  %v3932 = vunpack.c.l.b16 %v3868
  %v3933 = vunpack.c.l.b16 %v3869
  %v3934 = vunpack.c.l.b16 %v3870
  %v3935 = vunpack.c.l.b16 %v3871
  %v3936 = vunpack.c.l.b16 %v3872
  %v3937 = vunpack.c.l.b16 %v3873
  %v3938 = vunpack.c.l.b16 %v3874
  %v3939 = vunpack.c.l.b16 %v3875
  %v3940 = vunpack.c.l.b16 %v3876
  %v3941 = vunpack.c.l.b16 %v3877
  %v3942 = vunpack.c.l.b16 %v3878
  %v3943 = vunpack.c.l.b16 %v3879
  %v3944 = vunpack.c.l.b16 %v3880
  %v3945 = vunpack.c.l.b16 %v3881
  %v3946 = vunpack.c.l.b16 %v3882
  %v3947 = vunpack.c.l.b16 %v3883
  %v3948 = vunpack.c.l.b16 %v3884
  %v3949 = vunpack.c.l.b16 %v3885
  %v3950 = vunpack.c.l.b16 %v3886
  %v3951 = vunpack.c.l.b16 %v3887
  %v3952 = vunpack.c.l.b16 %v3888
  %v3953 = vunpack.c.l.b16 %v3889
  %v3954 = vunpack.c.l.b16 %v3890
  %v3955 = vunpack.c.l.b16 %v3891
  %v3956 = vunpack.c.l.b16 %v3892
  %v3957 = vpack.c.b16 %v3926, %v3925
  %v3958 = vpack.c.b16 %v3928, %v3927
  %v3959 = vpack.c.b16 %v3930, %v3929
  %v3960 = vpack.c.b16 %v3932, %v3931
  %v3961 = vpack.c.b16 %v3934, %v3933
  %v3962 = vpack.c.b16 %v3936, %v3935
  %v3963 = vpack.c.b16 %v3938, %v3937
  %v3964 = vpack.c.b16 %v3940, %v3939
  %v3965 = vpack.c.b16 %v3942, %v3941
  %v3966 = vpack.c.b16 %v3944, %v3943
  %v3967 = vpack.c.b16 %v3946, %v3945
  %v3968 = vpack.c.b16 %v3948, %v3947
  %v3969 = vpack.c.b16 %v3950, %v3949
  %v3970 = vpack.c.b16 %v3952, %v3951
  %v3971 = vpack.c.b16 %v3954, %v3953
  %v3972 = vpack.c.b16 %v3956, %v3955
  %v3989 = vsel %vm1912, %v3852, 0
  %v3992 = vsel %vm1912, %v3854, 0
  %v3995 = vsel %vm1912, %v3856, 0
  %v3998 = vsel %vm1912, %v3858, 0
  %v4001 = vsel %vm1912, %v3860, 0
  %v4004 = vsel %vm1934, %v3972, 0
  %4006 = vmatprep.subr.bf16.mxu0 0
  %4007 = vmatpush1.bf16.msra.mxu0 %v3964
  %4008 = vmatprep.subr.bf16.mxu0 0
  %4009 = vmatpush1.bf16.msra.mxu0 %v3963
  %4010 = vmatprep.subr.bf16.mxu0 0
  %4011 = vmatpush1.bf16.msra.mxu0 %v3962
  %4012 = vmatprep.subr.bf16.mxu0 0
  %4013 = vmatpush1.bf16.msra.mxu0 %v3961
  %4014 = vmatprep.subr.bf16.mxu0 0
  %4015 = vmatpush1.bf16.msra.mxu0 %v3960
  %4016 = vmatprep.subr.bf16.mxu0 0
  %4017 = vmatpush1.bf16.msra.mxu0 %v3959
  %4018 = vmatprep.subr.bf16.mxu0 0
  %4019 = vmatpush1.bf16.msra.mxu0 %v3958
  %4020 = vmatprep.subr.bf16.mxu0 0
  %4021 = vmatpush1.bf16.msra.mxu0 %v3957
  %4022 = vmatprep.subr.bf16.mxu0 0
  %4023 = vmatpush2.bf16.msra.mxu0 %v4004
  %4024 = vmatprep.subr.bf16.mxu0 0
  %4025 = vmatpush2.bf16.msra.mxu0 %v3971
  %4026 = vmatprep.subr.bf16.mxu0 0
  %4027 = vmatpush2.bf16.msra.mxu0 %v3970
  %4028 = vmatprep.subr.bf16.mxu0 0
  %4029 = vmatpush2.bf16.msra.mxu0 %v3969
  %4030 = vmatprep.subr.bf16.mxu0 0
  %4031 = vmatpush2.bf16.msra.mxu0 %v3968
  %4032 = vmatprep.subr.bf16.mxu0 0
  %4033 = vmatpush2.bf16.msra.mxu0 %v3967
  %4034 = vmatprep.subr.bf16.mxu0 0
  %4035 = vmatpush2.bf16.msra.mxu0 %v3966
  %4036 = vmatprep.subr.bf16.mxu0 0
  %4037 = vmatpush2.bf16.msra.mxu0 %v3965
  %4038 = vmatprep.mubr.bf16.mxu0 %v3989
  %4039 = vmatmul.mubr.bf16.gmra.mxu0 %v3851
  %v4040 = vpop.f32.mrf.mxu0
  %v4041 = vadd.f32 0.0, %v4040
  %v4042 = vpop.f32.mrf.mxu0
  %v4043 = vpop.f32.mrf.mxu0
  %v4044 = vadd.f32 0.0, %v4043
  %v4045 = vpop.f32.mrf.mxu0
  %4046 = vmatprep.mubr.bf16.mxu0 %v3992
  %4047 = vmatmul.mubr.bf16.gmra.mxu0 %v3853
  %v4048 = vpop.f32.mrf.mxu0
  %v4049 = vadd.f32 0.0, %v4048
  %v4050 = vpop.f32.mrf.mxu0
  %v4051 = vpop.f32.mrf.mxu0
  %v4052 = vadd.f32 0.0, %v4051
  %v4053 = vpop.f32.mrf.mxu0
  %4054 = vmatprep.mubr.bf16.mxu0 %v3995
  %4055 = vmatmul.mubr.bf16.gmra.mxu0 %v3855
  %v4056 = vpop.f32.mrf.mxu0
  %v4057 = vadd.f32 0.0, %v4056
  %v4058 = vpop.f32.mrf.mxu0
  %v4059 = vpop.f32.mrf.mxu0
  %v4060 = vadd.f32 0.0, %v4059
  %v4061 = vpop.f32.mrf.mxu0
  %4062 = vmatprep.mubr.bf16.mxu0 %v3998
  %4063 = vmatmul.mubr.bf16.gmra.mxu0 %v3857
  %v4064 = vpop.f32.mrf.mxu0
  %v4065 = vadd.f32 0.0, %v4064
  %v4066 = vpop.f32.mrf.mxu0
  %v4067 = vpop.f32.mrf.mxu0
  %v4068 = vadd.f32 0.0, %v4067
  %v4069 = vpop.f32.mrf.mxu0
  %4070 = vmatprep.mubr.bf16.mxu0 %v4001
  %4071 = vmatmul.mubr.bf16.gmra.mxu0 %v3859
  %v4072 = vpop.f32.mrf.mxu0
  %v4073 = vadd.f32 0.0, %v4072
  %v4074 = vpop.f32.mrf.mxu0
  %v4075 = vpop.f32.mrf.mxu0
  %v4076 = vadd.f32 0.0, %v4075
  %v4077 = vpop.f32.mrf.mxu0
  %4078 = vdwg.mxu0
  %s4079 = scalar_lea.vmem %s6, 128
  %v4080 = vld [vmem:[%s4079] sm:$0xf]
  %v4081 = vld [vmem:[%s4079 + $0x4] sm:$0xf]
  %v4082 = vld [vmem:[%s4079 + $0x8] sm:$0xf]
  %v4083 = vld [vmem:[%s4079 + $0xc] sm:$0xf]
  %v4084 = vld [vmem:[%s4079 + $0x10] sm:$0xf]
  %v4085 = vld [vmem:[%s4079 + $0x14] sm:$0xf]
  %v4086 = vld [vmem:[%s4079 + $0x18] sm:$0xf]
  %v4087 = vld [vmem:[%s4079 + $0x1c] sm:$0xf]
  %v4088 = vld [vmem:[%s4079 + $0x20] sm:$0xf]
  %v4089 = vld [vmem:[%s4079 + $0x24] sm:$0xf]
  %v4090 = vld [vmem:[%s4079 + $0x28] sm:$0xf]
  %v4091 = vld [vmem:[%s4079 + $0x2c] sm:$0xf]
  %v4092 = vld [vmem:[%s4079 + $0x30] sm:$0xf]
  %v4093 = vld [vmem:[%s4079 + $0x34] sm:$0xf]
  %v4094 = vld [vmem:[%s4079 + $0x38] sm:$0xf]
  %v4095 = vld [vmem:[%s4079 + $0x3c] sm:$0xf]
  %v4096 = vld [vmem:[%s4079 + $0x40] sm:$0xf]
  %v4097 = vld [vmem:[%s4079 + $0x44] sm:$0xf]
  %v4098 = vld [vmem:[%s4079 + $0x48] sm:$0xf]
  %v4099 = vld [vmem:[%s4079 + $0x4c] sm:$0xf]
  %v4100 = vld [vmem:[%s4079 + $0x50] sm:$0xf]
  %v4101 = vld [vmem:[%s4079 + $0x54] sm:$0xf]
  %v4102 = vld [vmem:[%s4079 + $0x58] sm:$0xf]
  %v4103 = vld [vmem:[%s4079 + $0x5c] sm:$0xf]
  %v4104 = vld [vmem:[%s4079 + $0x60] sm:$0xf]
  %v4105 = vld [vmem:[%s4079 + $0x64] sm:$0xf]
  %v4106 = vld [vmem:[%s4079 + $0x68] sm:$0xf]
  %v4107 = vld [vmem:[%s4079 + $0x6c] sm:$0xf]
  %v4108 = vld [vmem:[%s4079 + $0x70] sm:$0xf]
  %v4109 = vld [vmem:[%s4079 + $0x74] sm:$0xf]
  %v4110 = vld [vmem:[%s4079 + $0x78] sm:$0xf]
  %v4111 = vld [vmem:[%s4079 + $0x7c] sm:$0x7]
  %v4144 = vunpack.c.l.b16 %v4080
  %v4145 = vunpack.c.l.b16 %v4081
  %v4146 = vunpack.c.l.b16 %v4082
  %v4147 = vunpack.c.l.b16 %v4083
  %v4148 = vunpack.c.l.b16 %v4084
  %v4149 = vunpack.c.l.b16 %v4085
  %v4150 = vunpack.c.l.b16 %v4086
  %v4151 = vunpack.c.l.b16 %v4087
  %v4152 = vunpack.c.l.b16 %v4088
  %v4153 = vunpack.c.l.b16 %v4089
  %v4154 = vunpack.c.l.b16 %v4090
  %v4155 = vunpack.c.l.b16 %v4091
  %v4156 = vunpack.c.l.b16 %v4092
  %v4157 = vunpack.c.l.b16 %v4093
  %v4158 = vunpack.c.l.b16 %v4094
  %v4159 = vunpack.c.l.b16 %v4095
  %v4160 = vunpack.c.l.b16 %v4096
  %v4161 = vunpack.c.l.b16 %v4097
  %v4162 = vunpack.c.l.b16 %v4098
  %v4163 = vunpack.c.l.b16 %v4099
  %v4164 = vunpack.c.l.b16 %v4100
  %v4165 = vunpack.c.l.b16 %v4101
  %v4166 = vunpack.c.l.b16 %v4102
  %v4167 = vunpack.c.l.b16 %v4103
  %v4168 = vunpack.c.l.b16 %v4104
  %v4169 = vunpack.c.l.b16 %v4105
  %v4170 = vunpack.c.l.b16 %v4106
  %v4171 = vunpack.c.l.b16 %v4107
  %v4172 = vunpack.c.l.b16 %v4108
  %v4173 = vunpack.c.l.b16 %v4109
  %v4174 = vunpack.c.l.b16 %v4110
  %v4175 = vunpack.c.l.b16 %v4111
  %v4176 = vpack.c.b16 %v4145, %v4144
  %v4177 = vpack.c.b16 %v4147, %v4146
  %v4178 = vpack.c.b16 %v4149, %v4148
  %v4179 = vpack.c.b16 %v4151, %v4150
  %v4180 = vpack.c.b16 %v4153, %v4152
  %v4181 = vpack.c.b16 %v4155, %v4154
  %v4182 = vpack.c.b16 %v4157, %v4156
  %v4183 = vpack.c.b16 %v4159, %v4158
  %v4184 = vpack.c.b16 %v4161, %v4160
  %v4185 = vpack.c.b16 %v4163, %v4162
  %v4186 = vpack.c.b16 %v4165, %v4164
  %v4187 = vpack.c.b16 %v4167, %v4166
  %v4188 = vpack.c.b16 %v4169, %v4168
  %v4189 = vpack.c.b16 %v4171, %v4170
  %v4190 = vpack.c.b16 %v4173, %v4172
  %v4191 = vpack.c.b16 %v4175, %v4174
  %v4208 = vsel %vm1934, %v4191, 0
  %4210 = vmatprep.subr.bf16.mxu0 0
  %4211 = vmatpush1.bf16.msra.mxu0 %v4183
  %4212 = vmatprep.subr.bf16.mxu0 0
  %4213 = vmatpush1.bf16.msra.mxu0 %v4182
  %4214 = vmatprep.subr.bf16.mxu0 0
  %4215 = vmatpush1.bf16.msra.mxu0 %v4181
  %4216 = vmatprep.subr.bf16.mxu0 0
  %4217 = vmatpush1.bf16.msra.mxu0 %v4180
  %4218 = vmatprep.subr.bf16.mxu0 0
  %4219 = vmatpush1.bf16.msra.mxu0 %v4179
  %4220 = vmatprep.subr.bf16.mxu0 0
  %4221 = vmatpush1.bf16.msra.mxu0 %v4178
  %4222 = vmatprep.subr.bf16.mxu0 0
  %4223 = vmatpush1.bf16.msra.mxu0 %v4177
  %4224 = vmatprep.subr.bf16.mxu0 0
  %4225 = vmatpush1.bf16.msra.mxu0 %v4176
  %4226 = vmatprep.subr.bf16.mxu0 0
  %4227 = vmatpush2.bf16.msra.mxu0 %v4208
  %4228 = vmatprep.subr.bf16.mxu0 0
  %4229 = vmatpush2.bf16.msra.mxu0 %v4190
  %4230 = vmatprep.subr.bf16.mxu0 0
  %4231 = vmatpush2.bf16.msra.mxu0 %v4189
  %4232 = vmatprep.subr.bf16.mxu0 0
  %4233 = vmatpush2.bf16.msra.mxu0 %v4188
  %4234 = vmatprep.subr.bf16.mxu0 0
  %4235 = vmatpush2.bf16.msra.mxu0 %v4187
  %4236 = vmatprep.subr.bf16.mxu0 0
  %4237 = vmatpush2.bf16.msra.mxu0 %v4186
  %4238 = vmatprep.subr.bf16.mxu0 0
  %4239 = vmatpush2.bf16.msra.mxu0 %v4185
  %4240 = vmatprep.subr.bf16.mxu0 0
  %4241 = vmatpush2.bf16.msra.mxu0 %v4184
  %4242 = vmatprep.mubr.bf16.mxu0 %v3989
  %4243 = vmatmul.mubr.bf16.gmra.mxu0 %v3851
  %v4244 = vpop.f32.mrf.mxu0
  %v4245 = vadd.f32 0.0, %v4244
  %v4246 = vpop.f32.mrf.mxu0
  %v4247 = vpop.f32.mrf.mxu0
  %v4248 = vadd.f32 0.0, %v4247
  %v4249 = vpop.f32.mrf.mxu0
  %4250 = vmatprep.mubr.bf16.mxu0 %v3992
  %4251 = vmatmul.mubr.bf16.gmra.mxu0 %v3853
  %v4252 = vpop.f32.mrf.mxu0
  %v4253 = vadd.f32 0.0, %v4252
  %v4254 = vpop.f32.mrf.mxu0
  %v4255 = vpop.f32.mrf.mxu0
  %v4256 = vadd.f32 0.0, %v4255
  %v4257 = vpop.f32.mrf.mxu0
  %4258 = vmatprep.mubr.bf16.mxu0 %v3995
  %4259 = vmatmul.mubr.bf16.gmra.mxu0 %v3855
  %v4260 = vpop.f32.mrf.mxu0
  %v4261 = vadd.f32 0.0, %v4260
  %v4262 = vpop.f32.mrf.mxu0
  %v4263 = vpop.f32.mrf.mxu0
  %v4264 = vadd.f32 0.0, %v4263
  %v4265 = vpop.f32.mrf.mxu0
  %4266 = vmatprep.mubr.bf16.mxu0 %v3998
  %4267 = vmatmul.mubr.bf16.gmra.mxu0 %v3857
  %v4268 = vpop.f32.mrf.mxu0
  %v4269 = vadd.f32 0.0, %v4268
  %v4270 = vpop.f32.mrf.mxu0
  %v4271 = vpop.f32.mrf.mxu0
  %v4272 = vadd.f32 0.0, %v4271
  %v4273 = vpop.f32.mrf.mxu0
  %4274 = vmatprep.mubr.bf16.mxu0 %v4001
  %4275 = vmatmul.mubr.bf16.gmra.mxu0 %v3859
  %v4276 = vpop.f32.mrf.mxu0
  %v4277 = vadd.f32 0.0, %v4276
  %v4278 = vpop.f32.mrf.mxu0
  %v4279 = vpop.f32.mrf.mxu0
  %v4280 = vadd.f32 0.0, %v4279
  %v4281 = vpop.f32.mrf.mxu0
  %4282 = vdwg.mxu0
  %v4283 = vmax.f32 %v4041, %v4245
  %v4284 = vmax.f32 %v4044, %v4248
  %v4285 = vmax.f32 %v4049, %v4253
  %v4286 = vmax.f32 %v4052, %v4256
  %v4287 = vmax.f32 %v4057, %v4261
  %v4288 = vmax.f32 %v4060, %v4264
  %v4289 = vmax.f32 %v4065, %v4269
  %v4290 = vmax.f32 %v4068, %v4272
  %v4291 = vmax.f32 %v4073, %v4277
  %v4292 = vmax.f32 %v4076, %v4280
  %v4293 = vpack.c.bf16 %v4284, %v4283
  %v4294 = vpack.c.bf16 %v4286, %v4285
  %v4295 = vpack.c.bf16 %v4288, %v4287
  %v4296 = vpack.c.bf16 %v4290, %v4289
  %v4297 = vpack.c.bf16 %v4292, %v4291
  %v4298 = vld [vmem:[%s9] sm:$0xff]
  %v4299 = vld [vmem:[%s9 + $0x8] sm:$0xff]
  %v4300 = vld [vmem:[%s9 + $0x10] sm:$0xff]
  %v4301 = vld [vmem:[%s9 + $0x18] sm:$0xff]
  %v4302 = vld [vmem:[%s8] sm:$0xf]
  %v4303 = vld [vmem:[%s8 + $0x4] sm:$0xf]
  %v4304 = vld [vmem:[%s8 + $0x8] sm:$0xf]
  %v4305 = vld [vmem:[%s8 + $0xc] sm:$0xf]
  %v4306 = vld [vmem:[%s8 + $0x10] sm:$0xf]
  %v4307 = vld [vmem:[%s8 + $0x14] sm:$0xf]
  %v4308 = vld [vmem:[%s8 + $0x18] sm:$0xf]
  %v4309 = vld [vmem:[%s8 + $0x1c] sm:$0xf]
  %v4310 = vld [vmem:[%s8 + $0x20] sm:$0xf]
  %v4311 = vld [vmem:[%s8 + $0x24] sm:$0xf]
  %v4312 = vld [vmem:[%s8 + $0x28] sm:$0xf]
  %v4313 = vld [vmem:[%s8 + $0x2c] sm:$0xf]
  %v4314 = vld [vmem:[%s8 + $0x30] sm:$0xf]
  %v4315 = vld [vmem:[%s8 + $0x34] sm:$0xf]
  %v4316 = vld [vmem:[%s8 + $0x38] sm:$0xf]
  %v4317 = vld [vmem:[%s8 + $0x3c] sm:$0xf]
  %v4334 = vunpack.c.l.b16 %v4302
  %v4335 = vunpack.c.l.b16 %v4303
  %v4336 = vunpack.c.l.b16 %v4304
  %v4337 = vunpack.c.l.b16 %v4305
  %v4338 = vunpack.c.l.b16 %v4306
  %v4339 = vunpack.c.l.b16 %v4307
  %v4340 = vunpack.c.l.b16 %v4308
  %v4341 = vunpack.c.l.b16 %v4309
  %v4342 = vunpack.c.l.b16 %v4310
  %v4343 = vunpack.c.l.b16 %v4311
  %v4344 = vunpack.c.l.b16 %v4312
  %v4345 = vunpack.c.l.b16 %v4313
  %v4346 = vunpack.c.l.b16 %v4314
  %v4347 = vunpack.c.l.b16 %v4315
  %v4348 = vunpack.c.l.b16 %v4316
  %v4349 = vunpack.c.l.b16 %v4317
  %v4350 = vpack.c.b16 %v4335, %v4334
  %v4351 = vpack.c.b16 %v4337, %v4336
  %v4352 = vpack.c.b16 %v4339, %v4338
  %v4353 = vpack.c.b16 %v4341, %v4340
  %v4354 = vpack.c.b16 %v4343, %v4342
  %v4355 = vpack.c.b16 %v4345, %v4344
  %v4356 = vpack.c.b16 %v4347, %v4346
  %v4357 = vpack.c.b16 %v4349, %v4348
  %4366 = vmatprep.subr.bf16.mxu0 0
  %4367 = vmatpush1.bf16.msra.mxu0 %v4357
  %4368 = vmatprep.subr.bf16.mxu0 0
  %4369 = vmatpush1.bf16.msra.mxu0 %v4356
  %4370 = vmatprep.subr.bf16.mxu0 0
  %4371 = vmatpush1.bf16.msra.mxu0 %v4355
  %4372 = vmatprep.subr.bf16.mxu0 0
  %4373 = vmatpush1.bf16.msra.mxu0 %v4354
  %4374 = vmatprep.subr.bf16.mxu0 0
  %4375 = vmatpush1.bf16.msra.mxu0 %v4353
  %4376 = vmatprep.subr.bf16.mxu0 0
  %4377 = vmatpush1.bf16.msra.mxu0 %v4352
  %4378 = vmatprep.subr.bf16.mxu0 0
  %4379 = vmatpush1.bf16.msra.mxu0 %v4351
  %4380 = vmatprep.subr.bf16.mxu0 0
  %4381 = vmatpush1.bf16.msra.mxu0 %v4350
  %4382 = vmatprep.subr.bf16.mxu0 0
  %4383 = vmatpush2.bf16.msra.mxu0 0
  %4384 = vmatprep.subr.bf16.mxu0 0
  %4385 = vmatpush2.bf16.msra.mxu0 0
  %4386 = vmatprep.subr.bf16.mxu0 0
  %4387 = vmatpush2.bf16.msra.mxu0 0
  %4388 = vmatprep.subr.bf16.mxu0 0
  %4389 = vmatpush2.bf16.msra.mxu0 0
  %4390 = vmatprep.subr.bf16.mxu0 0
  %4391 = vmatpush2.bf16.msra.mxu0 0
  %4392 = vmatprep.subr.bf16.mxu0 0
  %4393 = vmatpush2.bf16.msra.mxu0 0
  %4394 = vmatprep.subr.bf16.mxu0 0
  %4395 = vmatpush2.bf16.msra.mxu0 0
  %4396 = vmatprep.subr.bf16.mxu0 0
  %4397 = vmatpush2.bf16.msra.mxu0 0
  %4398 = vmatprep.mubr.bf16.mxu0 0
  %4399 = vmatmul.mubr.bf16.gmra.mxu0 %v4293
  %v4400 = vpop.f32.mrf.mxu0
  %v4401 = vadd.f32 0.0, %v4400
  %v4402 = vpop.f32.mrf.mxu0
  %v4403 = vpop.f32.mrf.mxu0
  %v4404 = vadd.f32 0.0, %v4403
  %v4405 = vpop.f32.mrf.mxu0
  %4406 = vmatprep.mubr.bf16.mxu0 0
  %4407 = vmatmul.mubr.bf16.gmra.mxu0 %v4294
  %v4408 = vpop.f32.mrf.mxu0
  %v4409 = vadd.f32 0.0, %v4408
  %v4410 = vpop.f32.mrf.mxu0
  %v4411 = vpop.f32.mrf.mxu0
  %v4412 = vadd.f32 0.0, %v4411
  %v4413 = vpop.f32.mrf.mxu0
  %4414 = vmatprep.mubr.bf16.mxu0 0
  %4415 = vmatmul.mubr.bf16.gmra.mxu0 %v4295
  %v4416 = vpop.f32.mrf.mxu0
  %v4417 = vadd.f32 0.0, %v4416
  %v4418 = vpop.f32.mrf.mxu0
  %v4419 = vpop.f32.mrf.mxu0
  %v4420 = vadd.f32 0.0, %v4419
  %v4421 = vpop.f32.mrf.mxu0
  %4422 = vmatprep.mubr.bf16.mxu0 0
  %4423 = vmatmul.mubr.bf16.gmra.mxu0 %v4296
  %v4424 = vpop.f32.mrf.mxu0
  %v4425 = vadd.f32 0.0, %v4424
  %v4426 = vpop.f32.mrf.mxu0
  %v4427 = vpop.f32.mrf.mxu0
  %v4428 = vadd.f32 0.0, %v4427
  %v4429 = vpop.f32.mrf.mxu0
  %4430 = vmatprep.mubr.bf16.mxu0 0
  %4431 = vmatmul.mubr.bf16.gmra.mxu0 %v4297
  %v4432 = vpop.f32.mrf.mxu0
  %v4433 = vadd.f32 0.0, %v4432
  %v4434 = vpop.f32.mrf.mxu0
  %v4435 = vpop.f32.mrf.mxu0
  %v4436 = vadd.f32 0.0, %v4435
  %v4437 = vpop.f32.mrf.mxu0
  %4438 = vdwg.mxu0
  %v4439 = vpack.c.bf16 %v4404, %v4401
  %v4440 = vpack.c.bf16 %v4412, %v4409
  %v4441 = vpack.c.bf16 %v4420, %v4417
  %v4442 = vpack.c.bf16 %v4428, %v4425
  %v4443 = vpack.c.bf16 %v4436, %v4433
  %v4444 = vld [vmem:[%s7] sm:$0xf]
  %v4445 = vld [vmem:[%s7 + $0x4] sm:$0xf]
  %v4446 = vld [vmem:[%s7 + $0x8] sm:$0xf]
  %v4447 = vld [vmem:[%s7 + $0xc] sm:$0xf]
  %v4452 = vunpack.c.l.b16 %v4444
  %v4453 = vunpack.c.l.b16 %v4445
  %v4454 = vunpack.c.l.b16 %v4446
  %v4455 = vunpack.c.l.b16 %v4447
  %v4456 = vpack.c.b16 %v4453, %v4452
  %v4457 = vpack.c.b16 %v4455, %v4454
  %v4459 = vsel %vm929, %v4456, 0
  %v4462 = vsel %vm929, %v4457, 0
  %4464 = vmatprep.subr.bf16.mxu0 0
  %4465 = vmatpush1.bf16.msra.mxu0 0
  %4466 = vmatprep.subr.bf16.mxu0 0
  %4467 = vmatpush1.bf16.msra.mxu0 0
  %4468 = vmatprep.subr.bf16.mxu0 0
  %4469 = vmatpush1.bf16.msra.mxu0 0
  %4470 = vmatprep.subr.bf16.mxu0 0
  %4471 = vmatpush1.bf16.msra.mxu0 %v4443
  %4472 = vmatprep.subr.bf16.mxu0 0
  %4473 = vmatpush1.bf16.msra.mxu0 %v4442
  %4474 = vmatprep.subr.bf16.mxu0 0
  %4475 = vmatpush1.bf16.msra.mxu0 %v4441
  %4476 = vmatprep.subr.bf16.mxu0 0
  %4477 = vmatpush1.bf16.msra.mxu0 %v4440
  %4478 = vmatprep.subr.bf16.mxu0 0
  %4479 = vmatpush1.bf16.msra.mxu0 %v4439
  %4480 = vmatprep.subr.bf16.mxu0 0
  %4481 = vmatpush2.bf16.msra.mxu0 0
  %4482 = vmatprep.subr.bf16.mxu0 0
  %4483 = vmatpush2.bf16.msra.mxu0 0
  %4484 = vmatprep.subr.bf16.mxu0 0
  %4485 = vmatpush2.bf16.msra.mxu0 0
  %4486 = vmatprep.subr.bf16.mxu0 0
  %4487 = vmatpush2.bf16.msra.mxu0 0
  %4488 = vmatprep.subr.bf16.mxu0 0
  %4489 = vmatpush2.bf16.msra.mxu0 0
  %4490 = vmatprep.subr.bf16.mxu0 0
  %4491 = vmatpush2.bf16.msra.mxu0 0
  %4492 = vmatprep.subr.bf16.mxu0 0
  %4493 = vmatpush2.bf16.msra.mxu0 0
  %4494 = vmatprep.subr.bf16.mxu0 0
  %4495 = vmatpush2.bf16.msra.mxu0 0
  %4496 = vmatprep.mubr.bf16.mxu0 0
  %4497 = vmatmul.mubr.bf16.gmra.mxu0 %v4459
  %v4498 = vpop.f32.mrf.mxu0
  %v4499 = vadd.f32 0.0, %v4498
  %v4500 = vpop.f32.mrf.mxu0
  %v4501 = vpop.f32.mrf.mxu0
  %v4502 = vadd.f32 0.0, %v4501
  %v4503 = vpop.f32.mrf.mxu0
  %4504 = vmatprep.mubr.bf16.mxu0 0
  %4505 = vmatmul.mubr.bf16.gmra.mxu0 %v4462
  %v4506 = vpop.f32.mrf.mxu0
  %v4507 = vadd.f32 0.0, %v4506
  %v4508 = vpop.f32.mrf.mxu0
  %v4509 = vpop.f32.mrf.mxu0
  %v4510 = vadd.f32 0.0, %v4509
  %v4511 = vpop.f32.mrf.mxu0
  %4512 = vdwg.mxu0
  %v4513 = vadd.f32 %v4298, %v4499
  %v4514 = vadd.f32 %v4299, %v4502
  %v4515 = vadd.f32 %v4300, %v4507
  %v4516 = vadd.f32 %v4301, %v4510
  %s4517 = scalar_lea.vmem %s8, 64
  %v4518 = vld [vmem:[%s4517] sm:$0xf]
  %v4519 = vld [vmem:[%s4517 + $0x4] sm:$0xf]
  %v4520 = vld [vmem:[%s4517 + $0x8] sm:$0xf]
  %v4521 = vld [vmem:[%s4517 + $0xc] sm:$0xf]
  %v4522 = vld [vmem:[%s4517 + $0x10] sm:$0xf]
  %v4523 = vld [vmem:[%s4517 + $0x14] sm:$0xf]
  %v4524 = vld [vmem:[%s4517 + $0x18] sm:$0xf]
  %v4525 = vld [vmem:[%s4517 + $0x1c] sm:$0xf]
  %v4526 = vld [vmem:[%s4517 + $0x20] sm:$0xf]
  %v4527 = vld [vmem:[%s4517 + $0x24] sm:$0xf]
  %v4528 = vld [vmem:[%s4517 + $0x28] sm:$0xf]
  %v4529 = vld [vmem:[%s4517 + $0x2c] sm:$0xf]
  %v4530 = vld [vmem:[%s4517 + $0x30] sm:$0xf]
  %v4531 = vld [vmem:[%s4517 + $0x34] sm:$0xf]
  %v4532 = vld [vmem:[%s4517 + $0x38] sm:$0xf]
  %v4533 = vld [vmem:[%s4517 + $0x3c] sm:$0xf]
  %v4550 = vunpack.c.l.b16 %v4518
  %v4551 = vunpack.c.l.b16 %v4519
  %v4552 = vunpack.c.l.b16 %v4520
  %v4553 = vunpack.c.l.b16 %v4521
  %v4554 = vunpack.c.l.b16 %v4522
  %v4555 = vunpack.c.l.b16 %v4523
  %v4556 = vunpack.c.l.b16 %v4524
  %v4557 = vunpack.c.l.b16 %v4525
  %v4558 = vunpack.c.l.b16 %v4526
  %v4559 = vunpack.c.l.b16 %v4527
  %v4560 = vunpack.c.l.b16 %v4528
  %v4561 = vunpack.c.l.b16 %v4529
  %v4562 = vunpack.c.l.b16 %v4530
  %v4563 = vunpack.c.l.b16 %v4531
  %v4564 = vunpack.c.l.b16 %v4532
  %v4565 = vunpack.c.l.b16 %v4533
  %v4566 = vpack.c.b16 %v4551, %v4550
  %v4567 = vpack.c.b16 %v4553, %v4552
  %v4568 = vpack.c.b16 %v4555, %v4554
  %v4569 = vpack.c.b16 %v4557, %v4556
  %v4570 = vpack.c.b16 %v4559, %v4558
  %v4571 = vpack.c.b16 %v4561, %v4560
  %v4572 = vpack.c.b16 %v4563, %v4562
  %v4573 = vpack.c.b16 %v4565, %v4564
  %4582 = vmatprep.subr.bf16.mxu0 0
  %4583 = vmatpush1.bf16.msra.mxu0 %v4573
  %4584 = vmatprep.subr.bf16.mxu0 0
  %4585 = vmatpush1.bf16.msra.mxu0 %v4572
  %4586 = vmatprep.subr.bf16.mxu0 0
  %4587 = vmatpush1.bf16.msra.mxu0 %v4571
  %4588 = vmatprep.subr.bf16.mxu0 0
  %4589 = vmatpush1.bf16.msra.mxu0 %v4570
  %4590 = vmatprep.subr.bf16.mxu0 0
  %4591 = vmatpush1.bf16.msra.mxu0 %v4569
  %4592 = vmatprep.subr.bf16.mxu0 0
  %4593 = vmatpush1.bf16.msra.mxu0 %v4568
  %4594 = vmatprep.subr.bf16.mxu0 0
  %4595 = vmatpush1.bf16.msra.mxu0 %v4567
  %4596 = vmatprep.subr.bf16.mxu0 0
  %4597 = vmatpush1.bf16.msra.mxu0 %v4566
  %4598 = vmatprep.subr.bf16.mxu0 0
  %4599 = vmatpush2.bf16.msra.mxu0 0
  %4600 = vmatprep.subr.bf16.mxu0 0
  %4601 = vmatpush2.bf16.msra.mxu0 0
  %4602 = vmatprep.subr.bf16.mxu0 0
  %4603 = vmatpush2.bf16.msra.mxu0 0
  %4604 = vmatprep.subr.bf16.mxu0 0
  %4605 = vmatpush2.bf16.msra.mxu0 0
  %4606 = vmatprep.subr.bf16.mxu0 0
  %4607 = vmatpush2.bf16.msra.mxu0 0
  %4608 = vmatprep.subr.bf16.mxu0 0
  %4609 = vmatpush2.bf16.msra.mxu0 0
  %4610 = vmatprep.subr.bf16.mxu0 0
  %4611 = vmatpush2.bf16.msra.mxu0 0
  %4612 = vmatprep.subr.bf16.mxu0 0
  %4613 = vmatpush2.bf16.msra.mxu0 0
  %4614 = vmatprep.mubr.bf16.mxu0 0
  %4615 = vmatmul.mubr.bf16.gmra.mxu0 %v4293
  %v4616 = vpop.f32.mrf.mxu0
  %v4617 = vadd.f32 0.0, %v4616
  %v4618 = vpop.f32.mrf.mxu0
  %v4619 = vpop.f32.mrf.mxu0
  %v4620 = vadd.f32 0.0, %v4619
  %v4621 = vpop.f32.mrf.mxu0
  %4622 = vmatprep.mubr.bf16.mxu0 0
  %4623 = vmatmul.mubr.bf16.gmra.mxu0 %v4294
  %v4624 = vpop.f32.mrf.mxu0
  %v4625 = vadd.f32 0.0, %v4624
  %v4626 = vpop.f32.mrf.mxu0
  %v4627 = vpop.f32.mrf.mxu0
  %v4628 = vadd.f32 0.0, %v4627
  %v4629 = vpop.f32.mrf.mxu0
  %4630 = vmatprep.mubr.bf16.mxu0 0
  %4631 = vmatmul.mubr.bf16.gmra.mxu0 %v4295
  %v4632 = vpop.f32.mrf.mxu0
  %v4633 = vadd.f32 0.0, %v4632
  %v4634 = vpop.f32.mrf.mxu0
  %v4635 = vpop.f32.mrf.mxu0
  %v4636 = vadd.f32 0.0, %v4635
  %v4637 = vpop.f32.mrf.mxu0
  %4638 = vmatprep.mubr.bf16.mxu0 0
  %4639 = vmatmul.mubr.bf16.gmra.mxu0 %v4296
  %v4640 = vpop.f32.mrf.mxu0
  %v4641 = vadd.f32 0.0, %v4640
  %v4642 = vpop.f32.mrf.mxu0
  %v4643 = vpop.f32.mrf.mxu0
  %v4644 = vadd.f32 0.0, %v4643
  %v4645 = vpop.f32.mrf.mxu0
  %4646 = vmatprep.mubr.bf16.mxu0 0
  %4647 = vmatmul.mubr.bf16.gmra.mxu0 %v4297
  %v4648 = vpop.f32.mrf.mxu0
  %v4649 = vadd.f32 0.0, %v4648
  %v4650 = vpop.f32.mrf.mxu0
  %v4651 = vpop.f32.mrf.mxu0
  %v4652 = vadd.f32 0.0, %v4651
  %v4653 = vpop.f32.mrf.mxu0
  %4654 = vdwg.mxu0
  %v4655 = vpack.c.bf16 %v4620, %v4617
  %v4656 = vpack.c.bf16 %v4628, %v4625
  %v4657 = vpack.c.bf16 %v4636, %v4633
  %v4658 = vpack.c.bf16 %v4644, %v4641
  %v4659 = vpack.c.bf16 %v4652, %v4649
  %s4660 = scalar_lea.vmem %s7, 16
  %v4661 = vld [vmem:[%s4660] sm:$0xf]
  %v4662 = vld [vmem:[%s4660 + $0x4] sm:$0xf]
  %v4663 = vld [vmem:[%s4660 + $0x8] sm:$0xf]
  %v4664 = vld [vmem:[%s4660 + $0xc] sm:$0xf]
  %v4669 = vunpack.c.l.b16 %v4661
  %v4670 = vunpack.c.l.b16 %v4662
  %v4671 = vunpack.c.l.b16 %v4663
  %v4672 = vunpack.c.l.b16 %v4664
  %v4673 = vpack.c.b16 %v4670, %v4669
  %v4674 = vpack.c.b16 %v4672, %v4671
  %v4676 = vsel %vm929, %v4673, 0
  %v4679 = vsel %vm929, %v4674, 0
  %4681 = vmatprep.subr.bf16.mxu0 0
  %4682 = vmatpush1.bf16.msra.mxu0 0
  %4683 = vmatprep.subr.bf16.mxu0 0
  %4684 = vmatpush1.bf16.msra.mxu0 0
  %4685 = vmatprep.subr.bf16.mxu0 0
  %4686 = vmatpush1.bf16.msra.mxu0 0
  %4687 = vmatprep.subr.bf16.mxu0 0
  %4688 = vmatpush1.bf16.msra.mxu0 %v4659
  %4689 = vmatprep.subr.bf16.mxu0 0
  %4690 = vmatpush1.bf16.msra.mxu0 %v4658
  %4691 = vmatprep.subr.bf16.mxu0 0
  %4692 = vmatpush1.bf16.msra.mxu0 %v4657
  %4693 = vmatprep.subr.bf16.mxu0 0
  %4694 = vmatpush1.bf16.msra.mxu0 %v4656
  %4695 = vmatprep.subr.bf16.mxu0 0
  %4696 = vmatpush1.bf16.msra.mxu0 %v4655
  %4697 = vmatprep.subr.bf16.mxu0 0
  %4698 = vmatpush2.bf16.msra.mxu0 0
  %4699 = vmatprep.subr.bf16.mxu0 0
  %4700 = vmatpush2.bf16.msra.mxu0 0
  %4701 = vmatprep.subr.bf16.mxu0 0
  %4702 = vmatpush2.bf16.msra.mxu0 0
  %4703 = vmatprep.subr.bf16.mxu0 0
  %4704 = vmatpush2.bf16.msra.mxu0 0
  %4705 = vmatprep.subr.bf16.mxu0 0
  %4706 = vmatpush2.bf16.msra.mxu0 0
  %4707 = vmatprep.subr.bf16.mxu0 0
  %4708 = vmatpush2.bf16.msra.mxu0 0
  %4709 = vmatprep.subr.bf16.mxu0 0
  %4710 = vmatpush2.bf16.msra.mxu0 0
  %4711 = vmatprep.subr.bf16.mxu0 0
  %4712 = vmatpush2.bf16.msra.mxu0 0
  %4713 = vmatprep.mubr.bf16.mxu0 0
  %4714 = vmatmul.mubr.bf16.gmra.mxu0 %v4676
  %v4715 = vpop.f32.mrf.mxu0
  %v4716 = vadd.f32 0.0, %v4715
  %v4717 = vpop.f32.mrf.mxu0
  %v4718 = vpop.f32.mrf.mxu0
  %v4719 = vadd.f32 0.0, %v4718
  %v4720 = vpop.f32.mrf.mxu0
  %4721 = vmatprep.mubr.bf16.mxu0 0
  %4722 = vmatmul.mubr.bf16.gmra.mxu0 %v4679
  %v4723 = vpop.f32.mrf.mxu0
  %v4724 = vadd.f32 0.0, %v4723
  %v4725 = vpop.f32.mrf.mxu0
  %v4726 = vpop.f32.mrf.mxu0
  %v4727 = vadd.f32 0.0, %v4726
  %v4728 = vpop.f32.mrf.mxu0
  %4729 = vdwg.mxu0
  %v4730 = vadd.f32 %v4513, %v4716
  %v4731 = vadd.f32 %v4514, %v4719
  %v4732 = vadd.f32 %v4515, %v4724
  %v4733 = vadd.f32 %v4516, %v4727
  %s4734 = scalar_lea.vmem %s8, 128
  %v4735 = vld [vmem:[%s4734] sm:$0xf]
  %v4736 = vld [vmem:[%s4734 + $0x4] sm:$0xf]
  %v4737 = vld [vmem:[%s4734 + $0x8] sm:$0xf]
  %v4738 = vld [vmem:[%s4734 + $0xc] sm:$0xf]
  %v4739 = vld [vmem:[%s4734 + $0x10] sm:$0xf]
  %v4740 = vld [vmem:[%s4734 + $0x14] sm:$0xf]
  %v4741 = vld [vmem:[%s4734 + $0x18] sm:$0xf]
  %v4742 = vld [vmem:[%s4734 + $0x1c] sm:$0xf]
  %v4743 = vld [vmem:[%s4734 + $0x20] sm:$0xf]
  %v4744 = vld [vmem:[%s4734 + $0x24] sm:$0xf]
  %v4745 = vld [vmem:[%s4734 + $0x28] sm:$0xf]
  %v4746 = vld [vmem:[%s4734 + $0x2c] sm:$0xf]
  %v4747 = vld [vmem:[%s4734 + $0x30] sm:$0xf]
  %v4748 = vld [vmem:[%s4734 + $0x34] sm:$0xf]
  %v4749 = vld [vmem:[%s4734 + $0x38] sm:$0xf]
  %v4750 = vld [vmem:[%s4734 + $0x3c] sm:$0xf]
  %v4767 = vunpack.c.l.b16 %v4735
  %v4768 = vunpack.c.l.b16 %v4736
  %v4769 = vunpack.c.l.b16 %v4737
  %v4770 = vunpack.c.l.b16 %v4738
  %v4771 = vunpack.c.l.b16 %v4739
  %v4772 = vunpack.c.l.b16 %v4740
  %v4773 = vunpack.c.l.b16 %v4741
  %v4774 = vunpack.c.l.b16 %v4742
  %v4775 = vunpack.c.l.b16 %v4743
  %v4776 = vunpack.c.l.b16 %v4744
  %v4777 = vunpack.c.l.b16 %v4745
  %v4778 = vunpack.c.l.b16 %v4746
  %v4779 = vunpack.c.l.b16 %v4747
  %v4780 = vunpack.c.l.b16 %v4748
  %v4781 = vunpack.c.l.b16 %v4749
  %v4782 = vunpack.c.l.b16 %v4750
  %v4783 = vpack.c.b16 %v4768, %v4767
  %v4784 = vpack.c.b16 %v4770, %v4769
  %v4785 = vpack.c.b16 %v4772, %v4771
  %v4786 = vpack.c.b16 %v4774, %v4773
  %v4787 = vpack.c.b16 %v4776, %v4775
  %v4788 = vpack.c.b16 %v4778, %v4777
  %v4789 = vpack.c.b16 %v4780, %v4779
  %v4790 = vpack.c.b16 %v4782, %v4781
  %4799 = vmatprep.subr.bf16.mxu0 0
  %4800 = vmatpush1.bf16.msra.mxu0 %v4790
  %4801 = vmatprep.subr.bf16.mxu0 0
  %4802 = vmatpush1.bf16.msra.mxu0 %v4789
  %4803 = vmatprep.subr.bf16.mxu0 0
  %4804 = vmatpush1.bf16.msra.mxu0 %v4788
  %4805 = vmatprep.subr.bf16.mxu0 0
  %4806 = vmatpush1.bf16.msra.mxu0 %v4787
  %4807 = vmatprep.subr.bf16.mxu0 0
  %4808 = vmatpush1.bf16.msra.mxu0 %v4786
  %4809 = vmatprep.subr.bf16.mxu0 0
  %4810 = vmatpush1.bf16.msra.mxu0 %v4785
  %4811 = vmatprep.subr.bf16.mxu0 0
  %4812 = vmatpush1.bf16.msra.mxu0 %v4784
  %4813 = vmatprep.subr.bf16.mxu0 0
  %4814 = vmatpush1.bf16.msra.mxu0 %v4783
  %4815 = vmatprep.subr.bf16.mxu0 0
  %4816 = vmatpush2.bf16.msra.mxu0 0
  %4817 = vmatprep.subr.bf16.mxu0 0
  %4818 = vmatpush2.bf16.msra.mxu0 0
  %4819 = vmatprep.subr.bf16.mxu0 0
  %4820 = vmatpush2.bf16.msra.mxu0 0
  %4821 = vmatprep.subr.bf16.mxu0 0
  %4822 = vmatpush2.bf16.msra.mxu0 0
  %4823 = vmatprep.subr.bf16.mxu0 0
  %4824 = vmatpush2.bf16.msra.mxu0 0
  %4825 = vmatprep.subr.bf16.mxu0 0
  %4826 = vmatpush2.bf16.msra.mxu0 0
  %4827 = vmatprep.subr.bf16.mxu0 0
  %4828 = vmatpush2.bf16.msra.mxu0 0
  %4829 = vmatprep.subr.bf16.mxu0 0
  %4830 = vmatpush2.bf16.msra.mxu0 0
  %4831 = vmatprep.mubr.bf16.mxu0 0
  %4832 = vmatmul.mubr.bf16.gmra.mxu0 %v4293
  %v4833 = vpop.f32.mrf.mxu0
  %v4834 = vadd.f32 0.0, %v4833
  %v4835 = vpop.f32.mrf.mxu0
  %v4836 = vpop.f32.mrf.mxu0
  %v4837 = vadd.f32 0.0, %v4836
  %v4838 = vpop.f32.mrf.mxu0
  %4839 = vmatprep.mubr.bf16.mxu0 0
  %4840 = vmatmul.mubr.bf16.gmra.mxu0 %v4294
  %v4841 = vpop.f32.mrf.mxu0
  %v4842 = vadd.f32 0.0, %v4841
  %v4843 = vpop.f32.mrf.mxu0
  %v4844 = vpop.f32.mrf.mxu0
  %v4845 = vadd.f32 0.0, %v4844
  %v4846 = vpop.f32.mrf.mxu0
  %4847 = vmatprep.mubr.bf16.mxu0 0
  %4848 = vmatmul.mubr.bf16.gmra.mxu0 %v4295
  %v4849 = vpop.f32.mrf.mxu0
  %v4850 = vadd.f32 0.0, %v4849
  %v4851 = vpop.f32.mrf.mxu0
  %v4852 = vpop.f32.mrf.mxu0
  %v4853 = vadd.f32 0.0, %v4852
  %v4854 = vpop.f32.mrf.mxu0
  %4855 = vmatprep.mubr.bf16.mxu0 0
  %4856 = vmatmul.mubr.bf16.gmra.mxu0 %v4296
  %v4857 = vpop.f32.mrf.mxu0
  %v4858 = vadd.f32 0.0, %v4857
  %v4859 = vpop.f32.mrf.mxu0
  %v4860 = vpop.f32.mrf.mxu0
  %v4861 = vadd.f32 0.0, %v4860
  %v4862 = vpop.f32.mrf.mxu0
  %4863 = vmatprep.mubr.bf16.mxu0 0
  %4864 = vmatmul.mubr.bf16.gmra.mxu0 %v4297
  %v4865 = vpop.f32.mrf.mxu0
  %v4866 = vadd.f32 0.0, %v4865
  %v4867 = vpop.f32.mrf.mxu0
  %v4868 = vpop.f32.mrf.mxu0
  %v4869 = vadd.f32 0.0, %v4868
  %v4870 = vpop.f32.mrf.mxu0
  %4871 = vdwg.mxu0
  %v4872 = vpack.c.bf16 %v4837, %v4834
  %v4873 = vpack.c.bf16 %v4845, %v4842
  %v4874 = vpack.c.bf16 %v4853, %v4850
  %v4875 = vpack.c.bf16 %v4861, %v4858
  %v4876 = vpack.c.bf16 %v4869, %v4866
  %s4877 = scalar_lea.vmem %s7, 32
  %v4878 = vld [vmem:[%s4877] sm:$0xf]
  %v4879 = vld [vmem:[%s4877 + $0x4] sm:$0xf]
  %v4880 = vld [vmem:[%s4877 + $0x8] sm:$0xf]
  %v4881 = vld [vmem:[%s4877 + $0xc] sm:$0xf]
  %v4886 = vunpack.c.l.b16 %v4878
  %v4887 = vunpack.c.l.b16 %v4879
  %v4888 = vunpack.c.l.b16 %v4880
  %v4889 = vunpack.c.l.b16 %v4881
  %v4890 = vpack.c.b16 %v4887, %v4886
  %v4891 = vpack.c.b16 %v4889, %v4888
  %v4893 = vsel %vm929, %v4890, 0
  %v4896 = vsel %vm929, %v4891, 0
  %4898 = vmatprep.subr.bf16.mxu0 0
  %4899 = vmatpush1.bf16.msra.mxu0 0
  %4900 = vmatprep.subr.bf16.mxu0 0
  %4901 = vmatpush1.bf16.msra.mxu0 0
  %4902 = vmatprep.subr.bf16.mxu0 0
  %4903 = vmatpush1.bf16.msra.mxu0 0
  %4904 = vmatprep.subr.bf16.mxu0 0
  %4905 = vmatpush1.bf16.msra.mxu0 %v4876
  %4906 = vmatprep.subr.bf16.mxu0 0
  %4907 = vmatpush1.bf16.msra.mxu0 %v4875
  %4908 = vmatprep.subr.bf16.mxu0 0
  %4909 = vmatpush1.bf16.msra.mxu0 %v4874
  %4910 = vmatprep.subr.bf16.mxu0 0
  %4911 = vmatpush1.bf16.msra.mxu0 %v4873
  %4912 = vmatprep.subr.bf16.mxu0 0
  %4913 = vmatpush1.bf16.msra.mxu0 %v4872
  %4914 = vmatprep.subr.bf16.mxu0 0
  %4915 = vmatpush2.bf16.msra.mxu0 0
  %4916 = vmatprep.subr.bf16.mxu0 0
  %4917 = vmatpush2.bf16.msra.mxu0 0
  %4918 = vmatprep.subr.bf16.mxu0 0
  %4919 = vmatpush2.bf16.msra.mxu0 0
  %4920 = vmatprep.subr.bf16.mxu0 0
  %4921 = vmatpush2.bf16.msra.mxu0 0
  %4922 = vmatprep.subr.bf16.mxu0 0
  %4923 = vmatpush2.bf16.msra.mxu0 0
  %4924 = vmatprep.subr.bf16.mxu0 0
  %4925 = vmatpush2.bf16.msra.mxu0 0
  %4926 = vmatprep.subr.bf16.mxu0 0
  %4927 = vmatpush2.bf16.msra.mxu0 0
  %4928 = vmatprep.subr.bf16.mxu0 0
  %4929 = vmatpush2.bf16.msra.mxu0 0
  %4930 = vmatprep.mubr.bf16.mxu0 0
  %4931 = vmatmul.mubr.bf16.gmra.mxu0 %v4893
  %v4932 = vpop.f32.mrf.mxu0
  %v4933 = vadd.f32 0.0, %v4932
  %v4934 = vpop.f32.mrf.mxu0
  %v4935 = vpop.f32.mrf.mxu0
  %v4936 = vadd.f32 0.0, %v4935
  %v4937 = vpop.f32.mrf.mxu0
  %4938 = vmatprep.mubr.bf16.mxu0 0
  %4939 = vmatmul.mubr.bf16.gmra.mxu0 %v4896
  %v4940 = vpop.f32.mrf.mxu0
  %v4941 = vadd.f32 0.0, %v4940
  %v4942 = vpop.f32.mrf.mxu0
  %v4943 = vpop.f32.mrf.mxu0
  %v4944 = vadd.f32 0.0, %v4943
  %v4945 = vpop.f32.mrf.mxu0
  %4946 = vdwg.mxu0
  %v4947 = vadd.f32 %v4730, %v4933
  %v4948 = vadd.f32 %v4731, %v4936
  %v4949 = vadd.f32 %v4732, %v4941
  %v4950 = vadd.f32 %v4733, %v4944
  %s4951 = scalar_lea.vmem %s8, 192
  %v4952 = vld [vmem:[%s4951] sm:$0xf]
  %v4953 = vld [vmem:[%s4951 + $0x4] sm:$0xf]
  %v4954 = vld [vmem:[%s4951 + $0x8] sm:$0xf]
  %v4955 = vld [vmem:[%s4951 + $0xc] sm:$0xf]
  %v4956 = vld [vmem:[%s4951 + $0x10] sm:$0xf]
  %v4957 = vld [vmem:[%s4951 + $0x14] sm:$0xf]
  %v4958 = vld [vmem:[%s4951 + $0x18] sm:$0xf]
  %v4959 = vld [vmem:[%s4951 + $0x1c] sm:$0xf]
  %v4960 = vld [vmem:[%s4951 + $0x20] sm:$0xf]
  %v4961 = vld [vmem:[%s4951 + $0x24] sm:$0xf]
  %v4962 = vld [vmem:[%s4951 + $0x28] sm:$0xf]
  %v4963 = vld [vmem:[%s4951 + $0x2c] sm:$0xf]
  %v4964 = vld [vmem:[%s4951 + $0x30] sm:$0xf]
  %v4965 = vld [vmem:[%s4951 + $0x34] sm:$0xf]
  %v4966 = vld [vmem:[%s4951 + $0x38] sm:$0xf]
  %v4967 = vld [vmem:[%s4951 + $0x3c] sm:$0xf]
  %v4984 = vunpack.c.l.b16 %v4952
  %v4985 = vunpack.c.l.b16 %v4953
  %v4986 = vunpack.c.l.b16 %v4954
  %v4987 = vunpack.c.l.b16 %v4955
  %v4988 = vunpack.c.l.b16 %v4956
  %v4989 = vunpack.c.l.b16 %v4957
  %v4990 = vunpack.c.l.b16 %v4958
  %v4991 = vunpack.c.l.b16 %v4959
  %v4992 = vunpack.c.l.b16 %v4960
  %v4993 = vunpack.c.l.b16 %v4961
  %v4994 = vunpack.c.l.b16 %v4962
  %v4995 = vunpack.c.l.b16 %v4963
  %v4996 = vunpack.c.l.b16 %v4964
  %v4997 = vunpack.c.l.b16 %v4965
  %v4998 = vunpack.c.l.b16 %v4966
  %v4999 = vunpack.c.l.b16 %v4967
  %v5000 = vpack.c.b16 %v4985, %v4984
  %v5001 = vpack.c.b16 %v4987, %v4986
  %v5002 = vpack.c.b16 %v4989, %v4988
  %v5003 = vpack.c.b16 %v4991, %v4990
  %v5004 = vpack.c.b16 %v4993, %v4992
  %v5005 = vpack.c.b16 %v4995, %v4994
  %v5006 = vpack.c.b16 %v4997, %v4996
  %v5007 = vpack.c.b16 %v4999, %v4998
  %5016 = vmatprep.subr.bf16.mxu0 0
  %5017 = vmatpush1.bf16.msra.mxu0 %v5007
  %5018 = vmatprep.subr.bf16.mxu0 0
  %5019 = vmatpush1.bf16.msra.mxu0 %v5006
  %5020 = vmatprep.subr.bf16.mxu0 0
  %5021 = vmatpush1.bf16.msra.mxu0 %v5005
  %5022 = vmatprep.subr.bf16.mxu0 0
  %5023 = vmatpush1.bf16.msra.mxu0 %v5004
  %5024 = vmatprep.subr.bf16.mxu0 0
  %5025 = vmatpush1.bf16.msra.mxu0 %v5003
  %5026 = vmatprep.subr.bf16.mxu0 0
  %5027 = vmatpush1.bf16.msra.mxu0 %v5002
  %5028 = vmatprep.subr.bf16.mxu0 0
  %5029 = vmatpush1.bf16.msra.mxu0 %v5001
  %5030 = vmatprep.subr.bf16.mxu0 0
  %5031 = vmatpush1.bf16.msra.mxu0 %v5000
  %5032 = vmatprep.subr.bf16.mxu0 0
  %5033 = vmatpush2.bf16.msra.mxu0 0
  %5034 = vmatprep.subr.bf16.mxu0 0
  %5035 = vmatpush2.bf16.msra.mxu0 0
  %5036 = vmatprep.subr.bf16.mxu0 0
  %5037 = vmatpush2.bf16.msra.mxu0 0
  %5038 = vmatprep.subr.bf16.mxu0 0
  %5039 = vmatpush2.bf16.msra.mxu0 0
  %5040 = vmatprep.subr.bf16.mxu0 0
  %5041 = vmatpush2.bf16.msra.mxu0 0
  %5042 = vmatprep.subr.bf16.mxu0 0
  %5043 = vmatpush2.bf16.msra.mxu0 0
  %5044 = vmatprep.subr.bf16.mxu0 0
  %5045 = vmatpush2.bf16.msra.mxu0 0
  %5046 = vmatprep.subr.bf16.mxu0 0
  %5047 = vmatpush2.bf16.msra.mxu0 0
  %5048 = vmatprep.mubr.bf16.mxu0 0
  %5049 = vmatmul.mubr.bf16.gmra.mxu0 %v4293
  %v5050 = vpop.f32.mrf.mxu0
  %v5051 = vadd.f32 0.0, %v5050
  %v5052 = vpop.f32.mrf.mxu0
  %v5053 = vpop.f32.mrf.mxu0
  %v5054 = vadd.f32 0.0, %v5053
  %v5055 = vpop.f32.mrf.mxu0
  %5056 = vmatprep.mubr.bf16.mxu0 0
  %5057 = vmatmul.mubr.bf16.gmra.mxu0 %v4294
  %v5058 = vpop.f32.mrf.mxu0
  %v5059 = vadd.f32 0.0, %v5058
  %v5060 = vpop.f32.mrf.mxu0
  %v5061 = vpop.f32.mrf.mxu0
  %v5062 = vadd.f32 0.0, %v5061
  %v5063 = vpop.f32.mrf.mxu0
  %5064 = vmatprep.mubr.bf16.mxu0 0
  %5065 = vmatmul.mubr.bf16.gmra.mxu0 %v4295
  %v5066 = vpop.f32.mrf.mxu0
  %v5067 = vadd.f32 0.0, %v5066
  %v5068 = vpop.f32.mrf.mxu0
  %v5069 = vpop.f32.mrf.mxu0
  %v5070 = vadd.f32 0.0, %v5069
  %v5071 = vpop.f32.mrf.mxu0
  %5072 = vmatprep.mubr.bf16.mxu0 0
  %5073 = vmatmul.mubr.bf16.gmra.mxu0 %v4296
  %v5074 = vpop.f32.mrf.mxu0
  %v5075 = vadd.f32 0.0, %v5074
  %v5076 = vpop.f32.mrf.mxu0
  %v5077 = vpop.f32.mrf.mxu0
  %v5078 = vadd.f32 0.0, %v5077
  %v5079 = vpop.f32.mrf.mxu0
  %5080 = vmatprep.mubr.bf16.mxu0 0
  %5081 = vmatmul.mubr.bf16.gmra.mxu0 %v4297
  %v5082 = vpop.f32.mrf.mxu0
  %v5083 = vadd.f32 0.0, %v5082
  %v5084 = vpop.f32.mrf.mxu0
  %v5085 = vpop.f32.mrf.mxu0
  %v5086 = vadd.f32 0.0, %v5085
  %v5087 = vpop.f32.mrf.mxu0
  %5088 = vdwg.mxu0
  %v5089 = vpack.c.bf16 %v5054, %v5051
  %v5090 = vpack.c.bf16 %v5062, %v5059
  %v5091 = vpack.c.bf16 %v5070, %v5067
  %v5092 = vpack.c.bf16 %v5078, %v5075
  %v5093 = vpack.c.bf16 %v5086, %v5083
  %s5094 = scalar_lea.vmem %s7, 48
  %v5095 = vld [vmem:[%s5094] sm:$0xf]
  %v5096 = vld [vmem:[%s5094 + $0x4] sm:$0xf]
  %v5097 = vld [vmem:[%s5094 + $0x8] sm:$0xf]
  %v5098 = vld [vmem:[%s5094 + $0xc] sm:$0xf]
  %v5103 = vunpack.c.l.b16 %v5095
  %v5104 = vunpack.c.l.b16 %v5096
  %v5105 = vunpack.c.l.b16 %v5097
  %v5106 = vunpack.c.l.b16 %v5098
  %v5107 = vpack.c.b16 %v5104, %v5103
  %v5108 = vpack.c.b16 %v5106, %v5105
  %v5110 = vsel %vm929, %v5107, 0
  %v5113 = vsel %vm929, %v5108, 0
  %5115 = vmatprep.subr.bf16.mxu0 0
  %5116 = vmatpush1.bf16.msra.mxu0 0
  %5117 = vmatprep.subr.bf16.mxu0 0
  %5118 = vmatpush1.bf16.msra.mxu0 0
  %5119 = vmatprep.subr.bf16.mxu0 0
  %5120 = vmatpush1.bf16.msra.mxu0 0
  %5121 = vmatprep.subr.bf16.mxu0 0
  %5122 = vmatpush1.bf16.msra.mxu0 %v5093
  %5123 = vmatprep.subr.bf16.mxu0 0
  %5124 = vmatpush1.bf16.msra.mxu0 %v5092
  %5125 = vmatprep.subr.bf16.mxu0 0
  %5126 = vmatpush1.bf16.msra.mxu0 %v5091
  %5127 = vmatprep.subr.bf16.mxu0 0
  %5128 = vmatpush1.bf16.msra.mxu0 %v5090
  %5129 = vmatprep.subr.bf16.mxu0 0
  %5130 = vmatpush1.bf16.msra.mxu0 %v5089
  %5131 = vmatprep.subr.bf16.mxu0 0
  %5132 = vmatpush2.bf16.msra.mxu0 0
  %5133 = vmatprep.subr.bf16.mxu0 0
  %5134 = vmatpush2.bf16.msra.mxu0 0
  %5135 = vmatprep.subr.bf16.mxu0 0
  %5136 = vmatpush2.bf16.msra.mxu0 0
  %5137 = vmatprep.subr.bf16.mxu0 0
  %5138 = vmatpush2.bf16.msra.mxu0 0
  %5139 = vmatprep.subr.bf16.mxu0 0
  %5140 = vmatpush2.bf16.msra.mxu0 0
  %5141 = vmatprep.subr.bf16.mxu0 0
  %5142 = vmatpush2.bf16.msra.mxu0 0
  %5143 = vmatprep.subr.bf16.mxu0 0
  %5144 = vmatpush2.bf16.msra.mxu0 0
  %5145 = vmatprep.subr.bf16.mxu0 0
  %5146 = vmatpush2.bf16.msra.mxu0 0
  %5147 = vmatprep.mubr.bf16.mxu0 0
  %5148 = vmatmul.mubr.bf16.gmra.mxu0 %v5110
  %v5149 = vpop.f32.mrf.mxu0
  %v5150 = vadd.f32 0.0, %v5149
  %v5151 = vpop.f32.mrf.mxu0
  %v5152 = vpop.f32.mrf.mxu0
  %v5153 = vadd.f32 0.0, %v5152
  %v5154 = vpop.f32.mrf.mxu0
  %5155 = vmatprep.mubr.bf16.mxu0 0
  %5156 = vmatmul.mubr.bf16.gmra.mxu0 %v5113
  %v5157 = vpop.f32.mrf.mxu0
  %v5158 = vadd.f32 0.0, %v5157
  %v5159 = vpop.f32.mrf.mxu0
  %v5160 = vpop.f32.mrf.mxu0
  %v5161 = vadd.f32 0.0, %v5160
  %v5162 = vpop.f32.mrf.mxu0
  %5163 = vdwg.mxu0
  %v5164 = vadd.f32 %v4947, %v5150
  %v5165 = vadd.f32 %v4948, %v5153
  %v5166 = vadd.f32 %v4949, %v5158
  %v5167 = vadd.f32 %v4950, %v5161
  %s5168 = scalar_lea.vmem %s8, 256
  %v5169 = vld [vmem:[%s5168] sm:$0xf]
  %v5170 = vld [vmem:[%s5168 + $0x4] sm:$0xf]
  %v5171 = vld [vmem:[%s5168 + $0x8] sm:$0xf]
  %v5172 = vld [vmem:[%s5168 + $0xc] sm:$0xf]
  %v5173 = vld [vmem:[%s5168 + $0x10] sm:$0xf]
  %v5174 = vld [vmem:[%s5168 + $0x14] sm:$0xf]
  %v5175 = vld [vmem:[%s5168 + $0x18] sm:$0xf]
  %v5176 = vld [vmem:[%s5168 + $0x1c] sm:$0xf]
  %v5177 = vld [vmem:[%s5168 + $0x20] sm:$0xf]
  %v5178 = vld [vmem:[%s5168 + $0x24] sm:$0xf]
  %v5179 = vld [vmem:[%s5168 + $0x28] sm:$0xf]
  %v5180 = vld [vmem:[%s5168 + $0x2c] sm:$0xf]
  %v5181 = vld [vmem:[%s5168 + $0x30] sm:$0xf]
  %v5182 = vld [vmem:[%s5168 + $0x34] sm:$0xf]
  %v5183 = vld [vmem:[%s5168 + $0x38] sm:$0xf]
  %v5184 = vld [vmem:[%s5168 + $0x3c] sm:$0xf]
  %v5201 = vunpack.c.l.b16 %v5169
  %v5202 = vunpack.c.l.b16 %v5170
  %v5203 = vunpack.c.l.b16 %v5171
  %v5204 = vunpack.c.l.b16 %v5172
  %v5205 = vunpack.c.l.b16 %v5173
  %v5206 = vunpack.c.l.b16 %v5174
  %v5207 = vunpack.c.l.b16 %v5175
  %v5208 = vunpack.c.l.b16 %v5176
  %v5209 = vunpack.c.l.b16 %v5177
  %v5210 = vunpack.c.l.b16 %v5178
  %v5211 = vunpack.c.l.b16 %v5179
  %v5212 = vunpack.c.l.b16 %v5180
  %v5213 = vunpack.c.l.b16 %v5181
  %v5214 = vunpack.c.l.b16 %v5182
  %v5215 = vunpack.c.l.b16 %v5183
  %v5216 = vunpack.c.l.b16 %v5184
  %v5217 = vpack.c.b16 %v5202, %v5201
  %v5218 = vpack.c.b16 %v5204, %v5203
  %v5219 = vpack.c.b16 %v5206, %v5205
  %v5220 = vpack.c.b16 %v5208, %v5207
  %v5221 = vpack.c.b16 %v5210, %v5209
  %v5222 = vpack.c.b16 %v5212, %v5211
  %v5223 = vpack.c.b16 %v5214, %v5213
  %v5224 = vpack.c.b16 %v5216, %v5215
  %5233 = vmatprep.subr.bf16.mxu0 0
  %5234 = vmatpush1.bf16.msra.mxu0 %v5224
  %5235 = vmatprep.subr.bf16.mxu0 0
  %5236 = vmatpush1.bf16.msra.mxu0 %v5223
  %5237 = vmatprep.subr.bf16.mxu0 0
  %5238 = vmatpush1.bf16.msra.mxu0 %v5222
  %5239 = vmatprep.subr.bf16.mxu0 0
  %5240 = vmatpush1.bf16.msra.mxu0 %v5221
  %5241 = vmatprep.subr.bf16.mxu0 0
  %5242 = vmatpush1.bf16.msra.mxu0 %v5220
  %5243 = vmatprep.subr.bf16.mxu0 0
  %5244 = vmatpush1.bf16.msra.mxu0 %v5219
  %5245 = vmatprep.subr.bf16.mxu0 0
  %5246 = vmatpush1.bf16.msra.mxu0 %v5218
  %5247 = vmatprep.subr.bf16.mxu0 0
  %5248 = vmatpush1.bf16.msra.mxu0 %v5217
  %5249 = vmatprep.subr.bf16.mxu0 0
  %5250 = vmatpush2.bf16.msra.mxu0 0
  %5251 = vmatprep.subr.bf16.mxu0 0
  %5252 = vmatpush2.bf16.msra.mxu0 0
  %5253 = vmatprep.subr.bf16.mxu0 0
  %5254 = vmatpush2.bf16.msra.mxu0 0
  %5255 = vmatprep.subr.bf16.mxu0 0
  %5256 = vmatpush2.bf16.msra.mxu0 0
  %5257 = vmatprep.subr.bf16.mxu0 0
  %5258 = vmatpush2.bf16.msra.mxu0 0
  %5259 = vmatprep.subr.bf16.mxu0 0
  %5260 = vmatpush2.bf16.msra.mxu0 0
  %5261 = vmatprep.subr.bf16.mxu0 0
  %5262 = vmatpush2.bf16.msra.mxu0 0
  %5263 = vmatprep.subr.bf16.mxu0 0
  %5264 = vmatpush2.bf16.msra.mxu0 0
  %5265 = vmatprep.mubr.bf16.mxu0 0
  %5266 = vmatmul.mubr.bf16.gmra.mxu0 %v4293
  %v5267 = vpop.f32.mrf.mxu0
  %v5268 = vadd.f32 0.0, %v5267
  %v5269 = vpop.f32.mrf.mxu0
  %v5270 = vpop.f32.mrf.mxu0
  %v5271 = vadd.f32 0.0, %v5270
  %v5272 = vpop.f32.mrf.mxu0
  %5273 = vmatprep.mubr.bf16.mxu0 0
  %5274 = vmatmul.mubr.bf16.gmra.mxu0 %v4294
  %v5275 = vpop.f32.mrf.mxu0
  %v5276 = vadd.f32 0.0, %v5275
  %v5277 = vpop.f32.mrf.mxu0
  %v5278 = vpop.f32.mrf.mxu0
  %v5279 = vadd.f32 0.0, %v5278
  %v5280 = vpop.f32.mrf.mxu0
  %5281 = vmatprep.mubr.bf16.mxu0 0
  %5282 = vmatmul.mubr.bf16.gmra.mxu0 %v4295
  %v5283 = vpop.f32.mrf.mxu0
  %v5284 = vadd.f32 0.0, %v5283
  %v5285 = vpop.f32.mrf.mxu0
  %v5286 = vpop.f32.mrf.mxu0
  %v5287 = vadd.f32 0.0, %v5286
  %v5288 = vpop.f32.mrf.mxu0
  %5289 = vmatprep.mubr.bf16.mxu0 0
  %5290 = vmatmul.mubr.bf16.gmra.mxu0 %v4296
  %v5291 = vpop.f32.mrf.mxu0
  %v5292 = vadd.f32 0.0, %v5291
  %v5293 = vpop.f32.mrf.mxu0
  %v5294 = vpop.f32.mrf.mxu0
  %v5295 = vadd.f32 0.0, %v5294
  %v5296 = vpop.f32.mrf.mxu0
  %5297 = vmatprep.mubr.bf16.mxu0 0
  %5298 = vmatmul.mubr.bf16.gmra.mxu0 %v4297
  %v5299 = vpop.f32.mrf.mxu0
  %v5300 = vadd.f32 0.0, %v5299
  %v5301 = vpop.f32.mrf.mxu0
  %v5302 = vpop.f32.mrf.mxu0
  %v5303 = vadd.f32 0.0, %v5302
  %v5304 = vpop.f32.mrf.mxu0
  %5305 = vdwg.mxu0
  %v5306 = vpack.c.bf16 %v5271, %v5268
  %v5307 = vpack.c.bf16 %v5279, %v5276
  %v5308 = vpack.c.bf16 %v5287, %v5284
  %v5309 = vpack.c.bf16 %v5295, %v5292
  %v5310 = vpack.c.bf16 %v5303, %v5300
  %s5311 = scalar_lea.vmem %s7, 64
  %v5312 = vld [vmem:[%s5311] sm:$0xf]
  %v5313 = vld [vmem:[%s5311 + $0x4] sm:$0xf]
  %v5314 = vld [vmem:[%s5311 + $0x8] sm:$0xf]
  %v5315 = vld [vmem:[%s5311 + $0xc] sm:$0xf]
  %v5320 = vunpack.c.l.b16 %v5312
  %v5321 = vunpack.c.l.b16 %v5313
  %v5322 = vunpack.c.l.b16 %v5314
  %v5323 = vunpack.c.l.b16 %v5315
  %v5324 = vpack.c.b16 %v5321, %v5320
  %v5325 = vpack.c.b16 %v5323, %v5322
  %v5327 = vsel %vm929, %v5324, 0
  %v5330 = vsel %vm929, %v5325, 0
  %5332 = vmatprep.subr.bf16.mxu0 0
  %5333 = vmatpush1.bf16.msra.mxu0 0
  %5334 = vmatprep.subr.bf16.mxu0 0
  %5335 = vmatpush1.bf16.msra.mxu0 0
  %5336 = vmatprep.subr.bf16.mxu0 0
  %5337 = vmatpush1.bf16.msra.mxu0 0
  %5338 = vmatprep.subr.bf16.mxu0 0
  %5339 = vmatpush1.bf16.msra.mxu0 %v5310
  %5340 = vmatprep.subr.bf16.mxu0 0
  %5341 = vmatpush1.bf16.msra.mxu0 %v5309
  %5342 = vmatprep.subr.bf16.mxu0 0
  %5343 = vmatpush1.bf16.msra.mxu0 %v5308
  %5344 = vmatprep.subr.bf16.mxu0 0
  %5345 = vmatpush1.bf16.msra.mxu0 %v5307
  %5346 = vmatprep.subr.bf16.mxu0 0
  %5347 = vmatpush1.bf16.msra.mxu0 %v5306
  %5348 = vmatprep.subr.bf16.mxu0 0
  %5349 = vmatpush2.bf16.msra.mxu0 0
  %5350 = vmatprep.subr.bf16.mxu0 0
  %5351 = vmatpush2.bf16.msra.mxu0 0
  %5352 = vmatprep.subr.bf16.mxu0 0
  %5353 = vmatpush2.bf16.msra.mxu0 0
  %5354 = vmatprep.subr.bf16.mxu0 0
  %5355 = vmatpush2.bf16.msra.mxu0 0
  %5356 = vmatprep.subr.bf16.mxu0 0
  %5357 = vmatpush2.bf16.msra.mxu0 0
  %5358 = vmatprep.subr.bf16.mxu0 0
  %5359 = vmatpush2.bf16.msra.mxu0 0
  %5360 = vmatprep.subr.bf16.mxu0 0
  %5361 = vmatpush2.bf16.msra.mxu0 0
  %5362 = vmatprep.subr.bf16.mxu0 0
  %5363 = vmatpush2.bf16.msra.mxu0 0
  %5364 = vmatprep.mubr.bf16.mxu0 0
  %5365 = vmatmul.mubr.bf16.gmra.mxu0 %v5327
  %v5366 = vpop.f32.mrf.mxu0
  %v5367 = vadd.f32 0.0, %v5366
  %v5368 = vpop.f32.mrf.mxu0
  %v5369 = vpop.f32.mrf.mxu0
  %v5370 = vadd.f32 0.0, %v5369
  %v5371 = vpop.f32.mrf.mxu0
  %5372 = vmatprep.mubr.bf16.mxu0 0
  %5373 = vmatmul.mubr.bf16.gmra.mxu0 %v5330
  %v5374 = vpop.f32.mrf.mxu0
  %v5375 = vadd.f32 0.0, %v5374
  %v5376 = vpop.f32.mrf.mxu0
  %v5377 = vpop.f32.mrf.mxu0
  %v5378 = vadd.f32 0.0, %v5377
  %v5379 = vpop.f32.mrf.mxu0
  %5380 = vdwg.mxu0
  %v5381 = vadd.f32 %v5164, %v5367
  %v5382 = vadd.f32 %v5165, %v5370
  %v5383 = vadd.f32 %v5166, %v5375
  %v5384 = vadd.f32 %v5167, %v5378
  %v5385 = vmax.f32 %v5381, 0.0
  %v5386 = vmax.f32 %v5382, 0.0
  %v5387 = vmax.f32 %v5383, 0.0
  %v5388 = vmax.f32 %v5384, 0.0
  %v5389 = vpack.c.bf16 %v5386, %v5385
  %v5390 = vpack.c.bf16 %v5388, %v5387
  %v5391 = vld [vmem:[%s10] sm:$0xf]
  %v5392 = vld [vmem:[%s10 + $0x4] sm:$0xf]
  %v5393 = vld [vmem:[%s11] sm:$0xff]
  %v5394 = vld [vmem:[%s11 + $0x8] sm:$0xff]
  %v5397 = vunpack.c.l.b16 %v5391
  %v5398 = vunpack.c.l.b16 %v5392
  %v5399 = vpack.c.b16 %v5398, %v5397
  %vm5400 = vcmask 261120
  %v5402 = vsel %vm5400, %v5399, 0
  %5404 = vmatprep.subr.bf16.mxu0 0
  %5405 = vmatpush1.bf16.msra.mxu0 0
  %5406 = vmatprep.subr.bf16.mxu0 0
  %5407 = vmatpush1.bf16.msra.mxu0 0
  %5408 = vmatprep.subr.bf16.mxu0 0
  %5409 = vmatpush1.bf16.msra.mxu0 0
  %5410 = vmatprep.subr.bf16.mxu0 0
  %5411 = vmatpush1.bf16.msra.mxu0 0
  %5412 = vmatprep.subr.bf16.mxu0 0
  %5413 = vmatpush1.bf16.msra.mxu0 0
  %5414 = vmatprep.subr.bf16.mxu0 0
  %5415 = vmatpush1.bf16.msra.mxu0 0
  %5416 = vmatprep.subr.bf16.mxu0 0
  %5417 = vmatpush1.bf16.msra.mxu0 %v5390
  %5418 = vmatprep.subr.bf16.mxu0 0
  %5419 = vmatpush1.bf16.msra.mxu0 %v5389
  %5420 = vmatprep.subr.bf16.mxu0 0
  %5421 = vmatpush2.bf16.msra.mxu0 0
  %5422 = vmatprep.subr.bf16.mxu0 0
  %5423 = vmatpush2.bf16.msra.mxu0 0
  %5424 = vmatprep.subr.bf16.mxu0 0
  %5425 = vmatpush2.bf16.msra.mxu0 0
  %5426 = vmatprep.subr.bf16.mxu0 0
  %5427 = vmatpush2.bf16.msra.mxu0 0
  %5428 = vmatprep.subr.bf16.mxu0 0
  %5429 = vmatpush2.bf16.msra.mxu0 0
  %5430 = vmatprep.subr.bf16.mxu0 0
  %5431 = vmatpush2.bf16.msra.mxu0 0
  %5432 = vmatprep.subr.bf16.mxu0 0
  %5433 = vmatpush2.bf16.msra.mxu0 0
  %5434 = vmatprep.subr.bf16.mxu0 0
  %5435 = vmatpush2.bf16.msra.mxu0 0
  %5436 = vmatprep.mubr.bf16.mxu0 0
  %5437 = vmatmul.mubr.bf16.gmra.mxu0 %v5402
  %v5438 = vpop.f32.mrf.mxu0
  %v5439 = vadd.f32 %v5393, %v5438
  %v5440 = vpop.f32.mrf.mxu0
  %v5441 = vpop.f32.mrf.mxu0
  %v5442 = vadd.f32 %v5394, %v5441
  %v5443 = vpop.f32.mrf.mxu0
  %5444 = vdwg.mxu0
  %vm5445 = vcmask 130048
  %v5446 = vsel %vm5445, %v5439, 0.0
  %v5447 = vsel %vm5445, %v5442, 0.0
  %5448 = vst [vmem:[%s12] sm:$0xff] %v5446
  %5449 = vst [vmem:[%s12 + $0x8] sm:$0xff] %v5447
  // Predicated region
  $region50: #{_lambda_.1} parent=0 // pred_check
    _
  $region51: #{_lambda_.1} parent=0 // pred_check_branch
    %5451 = sbr.rel (0) target = $region53
  $region52: #{_lambda_.1} parent=0 // pred_region
    _
  $region53: #{_lambda_.1} parent=0 // pred_fallthru
    _
  // Predicated region
  $region54: #{_lambda_.1} parent=0 // pred_check
    _
  $region55: #{_lambda_.1} parent=0 // pred_check_branch
    %5453 = sbr.rel (0) target = $region57
  $region56: #{_lambda_.1} parent=0 // pred_region
    _
  $region57: #{_lambda_.1} parent=0 // pred_fallthru
    _

</llo_original>
